<compile_context>
chip_gen: v5e
topology: v5e:2x2
jax: 0.10.0
libtpu: 0.0.40
codegen_flags: <defaults>
</compile_context>

<pallas_src>
import jax
import jax.numpy as jnp
from jax.experimental import pallas as pl
from jax.experimental.pallas import tpu as pltpu


# ---------------------------------------------------------------------------
# helpers
# ---------------------------------------------------------------------------
def _round_up(x, m):
    return ((x + m - 1) // m) * m


def _pad_to(x, axis, multiple):
    size = x.shape[axis]
    pad = (-size) % multiple
    if pad == 0:
        return x
    widths = [(0, 0)] * x.ndim
    widths[axis] = (0, pad)
    return jnp.pad(x, widths)


def _vmem_capacity_bytes():
    """Generation-aware VMEM capacity (128 MiB v5e/v6e, 64 MiB per-TC v7x)."""
    try:
        info = pltpu.get_tpu_info()
        cap = int(getattr(info, "vmem_capacity_bytes", 0))
        if cap > 0:
            return cap
    except Exception:
        pass
    return 64 * 1024 * 1024  # conservative default (v7x per-TensorCore)


def _footprint_bytes(tm, tk, rep, cpad, cb):
    """Conservative VMEM footprint estimate (double-buffered residents)."""
    streamed = 2 * tm * tk * cb + 2 * tk * rep * cb            # x / W6 K-stream
    residents = 2 * (rep * rep * cb + rep * cpad * cb)          # W7 / [Wc|Wb]
    residents += 2 * (2 * rep + cpad) * 4                       # biases (f32)
    outputs = 2 * tm * rep * 2 + 2 * tm * cpad * 4              # feat bf16 / pred f32
    scratch = tm * rep * 4                                      # f32 accumulator
    return streamed + residents + outputs + scratch


# ---------------------------------------------------------------------------
# fused kernel: relu(fc7(relu(fc6(x)))) -> [cls_logits | box_regression]
# ---------------------------------------------------------------------------
def _roi_box_kernel(x_ref, w6_ref, b6_ref, w7_ref, b7_ref, wp_ref, bp_ref,
                    feat_ref, pred_ref, acc_ref):
    k = pl.program_id(1)

    # fc6 accumulator initialized with the broadcast bias: the bias add is
    # folded into the K reduction for free.
    @pl.when(k == 0)
    def _():
        acc_ref[...] = jnp.broadcast_to(b6_ref[...], acc_ref.shape)

    # Streamed fc6 partial product on the MXU, f32 accumulation.
    acc_ref[...] += jnp.dot(x_ref[...], w6_ref[...],
                            preferred_element_type=jnp.float32)

    # Epilogue on the last K step: ReLU -> fc7 (+bias, +ReLU) -> fused
    # predictor heads, all against resident weights.  Row-chunked to keep the
    # (rows, rep) f32 temporaries small (avoids vreg spills at large tm).
    @pl.when(k == pl.num_programs(1) - 1)
    def _():
        rows = acc_ref.shape[0]
        chunk = min(rows, 256)
        for r0 in range(0, rows, chunk):
            sl = pl.ds(r0, chunk)
            h = jnp.maximum(acc_ref[sl, :], 0.0).astype(w7_ref.dtype)
            f = jnp.dot(h, w7_ref[...], preferred_element_type=jnp.float32)
            f = jnp.maximum(f + b7_ref[...], 0.0)            # f32 box_features
            feat_ref[sl, :] = f.astype(feat_ref.dtype)
            p = jnp.dot(f.astype(wp_ref.dtype), wp_ref[...],
                        preferred_element_type=jnp.float32)
            pred_ref[sl, :] = (p + bp_ref[...]).astype(pred_ref.dtype)


# ---------------------------------------------------------------------------
# one-time weight preparation (hoisted out of the forward path)
# ---------------------------------------------------------------------------
def prepare_roi_box_params(w6, b6, w7, b7, w_cls, b_cls, w_bbox, b_bbox, *,
                           compute_dtype=jnp.bfloat16):
    """Cast / concat / pad weights once.  Weights stored (in, out), i.e. the
    transpose of torch Linear .weight."""
    din, rep = w6.shape
    assert rep % 128 == 0, "representation_size must be a multiple of 128"
    nc = w_cls.shape[1]
    nb = w_bbox.shape[1]
    cpad = _round_up(nc + nb, 128)          # lane-dense predictor output slab

    cap = _vmem_capacity_bytes()
    budget = int(cap * 0.7)
    cb = jnp.dtype(compute_dtype).itemsize

    # K tile chosen from Din and the VMEM budget (assuming the largest row
    # tile) so W6 can be padded exactly once here; 256-aligned for the
    # v6e/v7x 2x256^2 MXU (also a multiple of 128 for v5e).
    tk = min(1024, _round_up(din, 256))
    while tk > 256 and _footprint_bytes(1024, tk, rep, cpad, cb) > budget:
        tk -= 256

    wp = jnp.concatenate([w_cls, w_bbox], axis=1)
    bp = jnp.concatenate([jnp.reshape(b_cls, (1, -1)),
                          jnp.reshape(b_bbox, (1, -1))], axis=1)

    return dict(
        din=din, rep=rep, nc=nc, nb=nb, cpad=cpad, tk=tk,
        compute_dtype=compute_dtype, vmem_capacity=cap,
        w6=_pad_to(w6.astype(compute_dtype), 0, tk),           # (dinp, rep)
        b6=jnp.reshape(b6, (1, rep)).astype(jnp.float32),
        w7=w7.astype(compute_dtype),                            # (rep, rep)
        b7=jnp.reshape(b7, (1, rep)).astype(jnp.float32),
        wp=_pad_to(wp.astype(compute_dtype), 1, 128),           # (rep, cpad)
        bp=_pad_to(bp.astype(jnp.float32), 1, 128),             # (1, cpad)
    )


# ---------------------------------------------------------------------------
# fused forward: box_head (TwoMLPHead) + box_predictor in one pallas_call
# ---------------------------------------------------------------------------
def roi_box_forward(x_pooled, params):
    """x_pooled: (N, C, H, W) pooled ROI features (output of box_roi_pool).

    Returns (box_features [N, R] bf16, class_logits [N, nc] f32,
             box_regression [N, 4*nc] f32)."""
    n = x_pooled.shape[0]
    din, rep = params["din"], params["rep"]
    nc, nb, cpad = params["nc"], params["nb"], params["cpad"]
    tk = params["tk"]
    cdt = params["compute_dtype"]
    cb = jnp.dtype(cdt).itemsize
    dinp = params["w6"].shape[0]

    # Flatten exactly like torch.flatten(start_dim=1); cast to the MXU compute
    # dtype BEFORE padding so no full-size f32 copy is materialized.
    x2d = x_pooled.reshape(n, -1)
    assert x2d.shape[1] == din
    xb = x2d.astype(cdt)
    if xb.shape[1] != dinp:
        xb = jnp.pad(xb, ((0, 0), (0, dinp - xb.shape[1])))

    cap = params["vmem_capacity"]
    budget = int(cap * 0.7)

    # Row tile: as large as VMEM permits, 256-aligned, but keep >= 2 row tiles
    # when N allows so the "parallel" axis shards across v7x's 2 TensorCores.
    n256 = _round_up(max(n, 1), 256)
    if n256 <= 256:
        tm = 256
    else:
        tm = min(1024, _round_up((n256 + 1) // 2, 256))
    while tm > 256 and _footprint_bytes(tm, tk, rep, cpad, cb) > budget:
        tm -= 256

    xb = _pad_to(xb, 0, tm)
    npad = xb.shape[0]
    grid = (npad // tm, dinp // tk)

    fp = _footprint_bytes(tm, tk, rep, cpad, cb)
    vmem_limit = min(int(cap) - (8 << 20),
                     max(32 << 20, int(fp * 1.5), fp + (8 << 20)))
    vmem_limit = max(int(vmem_limit), 16 << 20)

    def _run(single_buffer_residents):
        resident_kw = (dict(pipeline_mode=pl.Buffered(1))
                       if single_buffer_residents else {})
        in_specs = [
            pl.BlockSpec((tm, tk), lambda i, k: (i, k)),               # x tile
            # W6 K-stream.  (Tuning knob: pipeline_mode=pl.Buffered(3) only if
            # a profile shows exposed DMA after enlarging tk.)
            pl.BlockSpec((tk, rep), lambda i, k: (k, 0)),
            pl.BlockSpec((1, rep), lambda i, k: (0, 0), **resident_kw),   # b6
            pl.BlockSpec((rep, rep), lambda i, k: (0, 0), **resident_kw), # W7
            pl.BlockSpec((1, rep), lambda i, k: (0, 0), **resident_kw),   # b7
            pl.BlockSpec((rep, cpad), lambda i, k: (0, 0), **resident_kw),  # [Wc|Wb]
            pl.BlockSpec((1, cpad), lambda i, k: (0, 0), **resident_kw),    # [bc|bb]
        ]
        out_specs = (
            pl.BlockSpec((tm, rep), lambda i, k: (i, 0)),    # box_features (bf16)
            pl.BlockSpec((tm, cpad), lambda i, k: (i, 0)),   # [logits | box_reg]
        )
        return pl.pallas_call(
            _roi_box_kernel,
            out_shape=(jax.ShapeDtypeStruct((npad, rep), cdt),
                       jax.ShapeDtypeStruct((npad, cpad), jnp.float32)),
            grid_spec=pltpu.PrefetchScalarGridSpec(
                num_scalar_prefetch=0,
                grid=grid,
                in_specs=in_specs,
                out_specs=out_specs,
                scratch_shapes=[pltpu.VMEM((tm, rep), jnp.float32)],
            ),
            compiler_params=pltpu.CompilerParams(
                dimension_semantics=("parallel", "arbitrary"),
                vmem_limit_bytes=vmem_limit,
            ),
        )(xb, params["w6"], params["b6"], params["w7"], params["b7"],
          params["wp"], params["bp"])

    try:
        feat, pred = _run(True)
    except Exception:
        # Fallback for environments where pipeline_mode=pl.Buffered(1) on the
        # resident inputs is not supported: default (double) buffering.
        feat, pred = _run(False)

    feat = feat[:n]
    pred = pred[:n]
    return feat, pred[:, :nc], pred[:, nc:nc + nb]


# ---------------------------------------------------------------------------
# self test
# ---------------------------------------------------------------------------
if __name__ == "__main__":
    # Shapes consistent with the RoIHeads box head, kept small but large enough
    # to exercise multiple row tiles AND multiple fc6 K tiles.
    N, C, H, W = 320, 32, 7, 7          # 320 pooled ROIs, Din = 1568
    DIN = C * H * W
    REP = 256                           # representation_size
    NUM_CLASSES = 8

    key = jax.random.PRNGKey(0)
    kx, k6w, k6b, k7w, k7b, kcw, kcb, kbw, kbb = jax.random.split(key, 9)

    x = jax.random.normal(kx, (N, C, H, W), dtype=jnp.float32)
    # Parameters stored as (in, out), i.e. transpose of torch Linear .weight.
    w6 = jax.random.normal(k6w, (DIN, REP), dtype=jnp.float32) * 0.05
    b6 = jax.random.normal(k6b, (1, REP), dtype=jnp.float32) * 0.05
    w7 = jax.random.normal(k7w, (REP, REP), dtype=jnp.float32) * 0.05
    b7 = jax.random.normal(k7b, (1, REP), dtype=jnp.float32) * 0.05
    wc = jax.random.normal(kcw, (REP, NUM_CLASSES), dtype=jnp.float32) * 0.05
    bc = jax.random.normal(kcb, (1, NUM_CLASSES), dtype=jnp.float32) * 0.05
    wb = jax.random.normal(kbw, (REP, 4 * NUM_CLASSES), dtype=jnp.float32) * 0.05
    bb = jax.random.normal(kbb, (1, 4 * NUM_CLASSES), dtype=jnp.float32) * 0.05

    # One-time weight prep, then the fused forward.
    params = prepare_roi_box_params(w6, b6, w7, b7, wc, bc, wb, bb)
    feat, cls_logits, box_reg = roi_box_forward(x, params)
    feat, cls_logits, box_reg = jax.block_until_ready((feat, cls_logits, box_reg))

    # Reference with the same numerics (bf16 MXU operands, f32 accumulation).
    dt = jnp.bfloat16
    x2d = x.reshape(N, -1)
    h_ref = jnp.maximum(
        jnp.dot(x2d.astype(dt), w6.astype(dt),
                preferred_element_type=jnp.float32) + b6, 0.0)
    f_ref = jnp.maximum(
        jnp.dot(h_ref.astype(dt), w7.astype(dt),
                preferred_element_type=jnp.float32) + b7, 0.0)
    cls_ref = jnp.dot(f_ref.astype(dt), wc.astype(dt),
                      preferred_element_type=jnp.float32) + bc
    box_ref = jnp.dot(f_ref.astype(dt), wb.astype(dt),
                      preferred_element_type=jnp.float32) + bb

    assert feat.shape == (N, REP) and feat.dtype == jnp.bfloat16
    assert cls_logits.shape == (N, NUM_CLASSES)
    assert box_reg.shape == (N, 4 * NUM_CLASSES)
    assert jnp.allclose(feat.astype(jnp.float32), f_ref, atol=2e-2, rtol=2e-2)
    assert jnp.allclose(cls_logits, cls_ref, atol=2e-2, rtol=2e-2)
    assert jnp.allclose(box_reg, box_ref, atol=2e-2, rtol=2e-2)

    print("KERNEL_OK")
</pallas_src>

<mosaic_0001>
module attributes {stable_mosaic.version = 11 : i64} {
  func.func @_roi_box_kernel(%arg0: i32, %arg1: i32, %arg2: memref<256x1024xbf16, #tpu.memory_space<vmem>>, %arg3: memref<1024x256xbf16, #tpu.memory_space<vmem>>, %arg4: memref<1x256xf32, #tpu.memory_space<vmem>>, %arg5: memref<256x256xbf16, #tpu.memory_space<vmem>>, %arg6: memref<1x256xf32, #tpu.memory_space<vmem>>, %arg7: memref<256x128xbf16, #tpu.memory_space<vmem>>, %arg8: memref<1x128xf32, #tpu.memory_space<vmem>>, %arg9: memref<256x256xbf16, #tpu.memory_space<vmem>>, %arg10: memref<256x128xf32, #tpu.memory_space<vmem>>, %arg11: memref<256x256xf32, #tpu.memory_space<vmem>>) attributes {dimension_semantics = [#tpu.dimension_semantics<parallel>, #tpu.dimension_semantics<arbitrary>], iteration_bounds = array<i64: 2, 2>, scalar_prefetch = 0 : i64, scratch_operands = 1 : i64, tpu.core_type = #tpu.core_type<tc>, window_params = [{transform_indices = @transform_0, window_bounds = array<i64: 256, 1024>}, {transform_indices = @transform_1, window_bounds = array<i64: 1024, 256>}, {pipeline_mode = #tpu.pipeline_mode<synchronous>, transform_indices = @transform_2, window_bounds = array<i64: 1, 256>}, {pipeline_mode = #tpu.pipeline_mode<synchronous>, transform_indices = @transform_3, window_bounds = array<i64: 256, 256>}, {pipeline_mode = #tpu.pipeline_mode<synchronous>, transform_indices = @transform_4, window_bounds = array<i64: 1, 256>}, {pipeline_mode = #tpu.pipeline_mode<synchronous>, transform_indices = @transform_5, window_bounds = array<i64: 256, 128>}, {pipeline_mode = #tpu.pipeline_mode<synchronous>, transform_indices = @transform_6, window_bounds = array<i64: 1, 128>}, {transform_indices = @transform_7, window_bounds = array<i64: 256, 256>}, {transform_indices = @transform_8, window_bounds = array<i64: 256, 128>}]} {
    %c0_i32 = arith.constant 0 : i32
    %0 = arith.cmpi eq, %arg1, %c0_i32 : i32
    %1 = arith.extui %0 : i1 to i32
    %c0_i32_0 = arith.constant 0 : i32
    %2 = arith.cmpi ne, %1, %c0_i32_0 : i32
    scf.if %2 {
      %c0_9 = arith.constant 0 : index
      %c0_10 = arith.constant 0 : index
      %12 = vector.load %arg4[%c0_9, %c0_10] : memref<1x256xf32, #tpu.memory_space<vmem>>, vector<1x256xf32>
      %13 = vector.shape_cast %12 : vector<1x256xf32> to vector<1x256xf32>
      %14 = vector.broadcast %13 : vector<1x256xf32> to vector<256x256xf32>
      %c0_11 = arith.constant 0 : index
      %c0_12 = arith.constant 0 : index
      %15 = vector.load %arg11[%c0_11, %c0_12] : memref<256x256xf32, #tpu.memory_space<vmem>>, vector<256x256xf32>
      tpu.vector_store %arg11[%c0_11, %c0_12], %14 {strides = array<i32>} : memref<256x256xf32, #tpu.memory_space<vmem>>, vector<256x256xf32>,
    } else {
    }
    %c0 = arith.constant 0 : index
    %c0_1 = arith.constant 0 : index
    %3 = vector.load %arg11[%c0, %c0_1] : memref<256x256xf32, #tpu.memory_space<vmem>>, vector<256x256xf32>
    %c0_2 = arith.constant 0 : index
    %c0_3 = arith.constant 0 : index
    %4 = vector.load %arg2[%c0_2, %c0_3] : memref<256x1024xbf16, #tpu.memory_space<vmem>>, vector<256x1024xbf16>
    %c0_4 = arith.constant 0 : index
    %c0_5 = arith.constant 0 : index
    %5 = vector.load %arg3[%c0_4, %c0_5] : memref<1024x256xbf16, #tpu.memory_space<vmem>>, vector<1024x256xbf16>
    %cst = arith.constant dense<0.000000e+00> : vector<256x256xf32>
    %6 = tpu.matmul %4, %5, %cst {dimension_numbers = #tpu.dot_dimension_numbers<[1], [0], [0], [1], [0, 0, 1, 1], [], []>} : vector<256x1024xbf16>, vector<1024x256xbf16>, vector<256x256xf32> -> vector<256x256xf32>
    %7 = arith.addf %3, %6 : vector<256x256xf32>
    %c0_6 = arith.constant 0 : index
    %c0_7 = arith.constant 0 : index
    %8 = vector.load %arg11[%c0_6, %c0_7] : memref<256x256xf32, #tpu.memory_space<vmem>>, vector<256x256xf32>
    tpu.vector_store %arg11[%c0_6, %c0_7], %7 {strides = array<i32>} : memref<256x256xf32, #tpu.memory_space<vmem>>, vector<256x256xf32>,
    %c1_i32 = arith.constant 1 : i32
    %9 = arith.cmpi eq, %arg1, %c1_i32 : i32
    %10 = arith.extui %9 : i1 to i32
    %c0_i32_8 = arith.constant 0 : i32
    %11 = arith.cmpi ne, %10, %c0_i32_8 : i32
    scf.if %11 {
      %c0_9 = arith.constant 0 : index
      %c0_10 = arith.constant 0 : index
      %12 = vector.load %arg11[%c0_9, %c0_10] : memref<256x256xf32, #tpu.memory_space<vmem>>, vector<256x256xf32>
      %cst_11 = arith.constant 0.000000e+00 : f32
      %13 = vector.broadcast %cst_11 : f32 to vector<256x256xf32>
      %14 = arith.maximumf %12, %13 : vector<256x256xf32>
      %15 = arith.truncf %14 : vector<256x256xf32> to vector<256x256xbf16>
      %c0_12 = arith.constant 0 : index
      %c0_13 = arith.constant 0 : index
      %16 = vector.load %arg5[%c0_12, %c0_13] : memref<256x256xbf16, #tpu.memory_space<vmem>>, vector<256x256xbf16>
      %cst_14 = arith.constant dense<0.000000e+00> : vector<256x256xf32>
      %17 = tpu.matmul %15, %16, %cst_14 {dimension_numbers = #tpu.dot_dimension_numbers<[1], [0], [0], [1], [0, 0, 1, 1], [], []>} : vector<256x256xbf16>, vector<256x256xbf16>, vector<256x256xf32> -> vector<256x256xf32>
      %c0_15 = arith.constant 0 : index
      %c0_16 = arith.constant 0 : index
      %18 = vector.load %arg6[%c0_15, %c0_16] : memref<1x256xf32, #tpu.memory_space<vmem>>, vector<1x256xf32>
      %19 = vector.broadcast %18 : vector<1x256xf32> to vector<256x256xf32>
      %20 = arith.addf %17, %19 : vector<256x256xf32>
      %cst_17 = arith.constant 0.000000e+00 : f32
      %21 = vector.broadcast %cst_17 : f32 to vector<256x256xf32>
      %22 = arith.maximumf %20, %21 : vector<256x256xf32>
      %23 = arith.truncf %22 : vector<256x256xf32> to vector<256x256xbf16>
      %c0_18 = arith.constant 0 : index
      %c0_19 = arith.constant 0 : index
      %24 = vector.load %arg9[%c0_18, %c0_19] : memref<256x256xbf16, #tpu.memory_space<vmem>>, vector<256x256xbf16>
      tpu.vector_store %arg9[%c0_18, %c0_19], %23 {strides = array<i32>} : memref<256x256xbf16, #tpu.memory_space<vmem>>, vector<256x256xbf16>,
      %25 = arith.truncf %22 : vector<256x256xf32> to vector<256x256xbf16>
      %c0_20 = arith.constant 0 : index
      %c0_21 = arith.constant 0 : index
      %26 = vector.load %arg7[%c0_20, %c0_21] : memref<256x128xbf16, #tpu.memory_space<vmem>>, vector<256x128xbf16>
      %cst_22 = arith.constant dense<0.000000e+00> : vector<256x128xf32>
      %27 = tpu.matmul %25, %26, %cst_22 {dimension_numbers = #tpu.dot_dimension_numbers<[1], [0], [0], [1], [0, 0, 1, 1], [], []>} : vector<256x256xbf16>, vector<256x128xbf16>, vector<256x128xf32> -> vector<256x128xf32>
      %c0_23 = arith.constant 0 : index
      %c0_24 = arith.constant 0 : index
      %28 = vector.load %arg8[%c0_23, %c0_24] : memref<1x128xf32, #tpu.memory_space<vmem>>, vector<1x128xf32>
      %29 = vector.broadcast %28 : vector<1x128xf32> to vector<256x128xf32>
      %30 = arith.addf %27, %29 : vector<256x128xf32>
      %c0_25 = arith.constant 0 : index
      %c0_26 = arith.constant 0 : index
      %31 = vector.load %arg10[%c0_25, %c0_26] : memref<256x128xf32, #tpu.memory_space<vmem>>, vector<256x128xf32>
      tpu.vector_store %arg10[%c0_25, %c0_26], %30 {strides = array<i32>} : memref<256x128xf32, #tpu.memory_space<vmem>>, vector<256x128xf32>,
    } else {
    }
    return
  }
  func.func @transform_0(%arg0: i32, %arg1: i32) -> (i32, i32) {
    %c0_i32 = arith.constant 0 : i32
    return %arg0, %arg1 : i32, i32
  }
  func.func @transform_1(%arg0: i32, %arg1: i32) -> (i32, i32) {
    %c0_i32 = arith.constant 0 : i32
    %c0_i32_0 = arith.constant 0 : i32
    return %arg1, %c0_i32 : i32, i32
  }
  func.func @transform_2(%arg0: i32, %arg1: i32) -> (i32, i32) {
    %c0_i32 = arith.constant 0 : i32
    %c0_i32_0 = arith.constant 0 : i32
    %c0_i32_1 = arith.constant 0 : i32
    return %c0_i32, %c0_i32_0 : i32, i32
  }
  func.func @transform_3(%arg0: i32, %arg1: i32) -> (i32, i32) {
    %c0_i32 = arith.constant 0 : i32
    %c0_i32_0 = arith.constant 0 : i32
    %c0_i32_1 = arith.constant 0 : i32
    return %c0_i32, %c0_i32_0 : i32, i32
  }
  func.func @transform_4(%arg0: i32, %arg1: i32) -> (i32, i32) {
    %c0_i32 = arith.constant 0 : i32
    %c0_i32_0 = arith.constant 0 : i32
    %c0_i32_1 = arith.constant 0 : i32
    return %c0_i32, %c0_i32_0 : i32, i32
  }
  func.func @transform_5(%arg0: i32, %arg1: i32) -> (i32, i32) {
    %c0_i32 = arith.constant 0 : i32
    %c0_i32_0 = arith.constant 0 : i32
    %c0_i32_1 = arith.constant 0 : i32
    return %c0_i32, %c0_i32_0 : i32, i32
  }
  func.func @transform_6(%arg0: i32, %arg1: i32) -> (i32, i32) {
    %c0_i32 = arith.constant 0 : i32
    %c0_i32_0 = arith.constant 0 : i32
    %c0_i32_1 = arith.constant 0 : i32
    return %c0_i32, %c0_i32_0 : i32, i32
  }
  func.func @transform_7(%arg0: i32, %arg1: i32) -> (i32, i32) {
    %c0_i32 = arith.constant 0 : i32
    %c0_i32_0 = arith.constant 0 : i32
    return %arg0, %c0_i32 : i32, i32
  }
  func.func @transform_8(%arg0: i32, %arg1: i32) -> (i32, i32) {
    %c0_i32 = arith.constant 0 : i32
    %c0_i32_0 = arith.constant 0 : i32
    return %arg0, %c0_i32 : i32, i32
  }
}

module attributes {stable_mosaic.version = 11 : i64} {
  func.func @_roi_box_kernel(%arg0: i32, %arg1: i32, %arg2: memref<256x1024xbf16, #tpu.memory_space<vmem>>, %arg3: memref<1024x256xbf16, #tpu.memory_space<vmem>>, %arg4: memref<1x256xf32, #tpu.memory_space<vmem>>, %arg5: memref<256x256xbf16, #tpu.memory_space<vmem>>, %arg6: memref<1x256xf32, #tpu.memory_space<vmem>>, %arg7: memref<256x128xbf16, #tpu.memory_space<vmem>>, %arg8: memref<1x128xf32, #tpu.memory_space<vmem>>, %arg9: memref<256x256xbf16, #tpu.memory_space<vmem>>, %arg10: memref<256x128xf32, #tpu.memory_space<vmem>>, %arg11: memref<256x256xf32, #tpu.memory_space<vmem>>) attributes {dimension_semantics = [#tpu.dimension_semantics<parallel>, #tpu.dimension_semantics<arbitrary>], iteration_bounds = array<i64: 2, 2>, scalar_prefetch = 0 : i64, scratch_operands = 1 : i64, tpu.core_type = #tpu.core_type<tc>, window_params = [{transform_indices = @transform_0, window_bounds = array<i64: 256, 1024>}, {transform_indices = @transform_1, window_bounds = array<i64: 1024, 256>}, {pipeline_mode = #tpu.pipeline_mode<synchronous>, transform_indices = @transform_2, window_bounds = array<i64: 1, 256>}, {pipeline_mode = #tpu.pipeline_mode<synchronous>, transform_indices = @transform_3, window_bounds = array<i64: 256, 256>}, {pipeline_mode = #tpu.pipeline_mode<synchronous>, transform_indices = @transform_4, window_bounds = array<i64: 1, 256>}, {pipeline_mode = #tpu.pipeline_mode<synchronous>, transform_indices = @transform_5, window_bounds = array<i64: 256, 128>}, {pipeline_mode = #tpu.pipeline_mode<synchronous>, transform_indices = @transform_6, window_bounds = array<i64: 1, 128>}, {transform_indices = @transform_7, window_bounds = array<i64: 256, 256>}, {transform_indices = @transform_8, window_bounds = array<i64: 256, 128>}]} {
    %c0_i32 = arith.constant 0 : i32
    %0 = arith.cmpi eq, %arg1, %c0_i32 : i32
    %1 = arith.extui %0 : i1 to i32
    %c0_i32_0 = arith.constant 0 : i32
    %2 = arith.cmpi ne, %1, %c0_i32_0 : i32
    scf.if %2 {
      %c0_9 = arith.constant 0 : index
      %c0_10 = arith.constant 0 : index
      %12 = vector.load %arg4[%c0_9, %c0_10] : memref<1x256xf32, #tpu.memory_space<vmem>>, vector<1x256xf32>
      %13 = vector.shape_cast %12 : vector<1x256xf32> to vector<1x256xf32>
      %14 = vector.broadcast %13 : vector<1x256xf32> to vector<256x256xf32>
      %c0_11 = arith.constant 0 : index
      %c0_12 = arith.constant 0 : index
      %15 = vector.load %arg11[%c0_11, %c0_12] : memref<256x256xf32, #tpu.memory_space<vmem>>, vector<256x256xf32>
      tpu.vector_store %arg11[%c0_11, %c0_12], %14 {strides = array<i32>} : memref<256x256xf32, #tpu.memory_space<vmem>>, vector<256x256xf32>,
    } else {
    }
    %c0 = arith.constant 0 : index
    %c0_1 = arith.constant 0 : index
    %3 = vector.load %arg11[%c0, %c0_1] : memref<256x256xf32, #tpu.memory_space<vmem>>, vector<256x256xf32>
    %c0_2 = arith.constant 0 : index
    %c0_3 = arith.constant 0 : index
    %4 = vector.load %arg2[%c0_2, %c0_3] : memref<256x1024xbf16, #tpu.memory_space<vmem>>, vector<256x1024xbf16>
    %c0_4 = arith.constant 0 : index
    %c0_5 = arith.constant 0 : index
    %5 = vector.load %arg3[%c0_4, %c0_5] : memref<1024x256xbf16, #tpu.memory_space<vmem>>, vector<1024x256xbf16>
    %cst = arith.constant dense<0.000000e+00> : vector<256x256xf32>
    %6 = tpu.matmul %4, %5, %cst {dimension_numbers = #tpu.dot_dimension_numbers<[1], [0], [0], [1], [0, 0, 1, 1], [], []>} : vector<256x1024xbf16>, vector<1024x256xbf16>, vector<256x256xf32> -> vector<256x256xf32>
    %7 = arith.addf %3, %6 : vector<256x256xf32>
    %c0_6 = arith.constant 0 : index
    %c0_7 = arith.constant 0 : index
    %8 = vector.load %arg11[%c0_6, %c0_7] : memref<256x256xf32, #tpu.memory_space<vmem>>, vector<256x256xf32>
    tpu.vector_store %arg11[%c0_6, %c0_7], %7 {strides = array<i32>} : memref<256x256xf32, #tpu.memory_space<vmem>>, vector<256x256xf32>,
    %c1_i32 = arith.constant 1 : i32
    %9 = arith.cmpi eq, %arg1, %c1_i32 : i32
    %10 = arith.extui %9 : i1 to i32
    %c0_i32_8 = arith.constant 0 : i32
    %11 = arith.cmpi ne, %10, %c0_i32_8 : i32
    scf.if %11 {
      %c0_9 = arith.constant 0 : index
      %c0_10 = arith.constant 0 : index
      %12 = vector.load %arg11[%c0_9, %c0_10] : memref<256x256xf32, #tpu.memory_space<vmem>>, vector<256x256xf32>
      %cst_11 = arith.constant 0.000000e+00 : f32
      %13 = vector.broadcast %cst_11 : f32 to vector<256x256xf32>
      %14 = arith.maximumf %12, %13 : vector<256x256xf32>
      %15 = arith.truncf %14 : vector<256x256xf32> to vector<256x256xbf16>
      %c0_12 = arith.constant 0 : index
      %c0_13 = arith.constant 0 : index
      %16 = vector.load %arg5[%c0_12, %c0_13] : memref<256x256xbf16, #tpu.memory_space<vmem>>, vector<256x256xbf16>
      %cst_14 = arith.constant dense<0.000000e+00> : vector<256x256xf32>
      %17 = tpu.matmul %15, %16, %cst_14 {dimension_numbers = #tpu.dot_dimension_numbers<[1], [0], [0], [1], [0, 0, 1, 1], [], []>} : vector<256x256xbf16>, vector<256x256xbf16>, vector<256x256xf32> -> vector<256x256xf32>
      %c0_15 = arith.constant 0 : index
      %c0_16 = arith.constant 0 : index
      %18 = vector.load %arg6[%c0_15, %c0_16] : memref<1x256xf32, #tpu.memory_space<vmem>>, vector<1x256xf32>
      %19 = vector.broadcast %18 : vector<1x256xf32> to vector<256x256xf32>
      %20 = arith.addf %17, %19 : vector<256x256xf32>
      %cst_17 = arith.constant 0.000000e+00 : f32
      %21 = vector.broadcast %cst_17 : f32 to vector<256x256xf32>
      %22 = arith.maximumf %20, %21 : vector<256x256xf32>
      %23 = arith.truncf %22 : vector<256x256xf32> to vector<256x256xbf16>
      %c0_18 = arith.constant 0 : index
      %c0_19 = arith.constant 0 : index
      %24 = vector.load %arg9[%c0_18, %c0_19] : memref<256x256xbf16, #tpu.memory_space<vmem>>, vector<256x256xbf16>
      tpu.vector_store %arg9[%c0_18, %c0_19], %23 {strides = array<i32>} : memref<256x256xbf16, #tpu.memory_space<vmem>>, vector<256x256xbf16>,
      %25 = arith.truncf %22 : vector<256x256xf32> to vector<256x256xbf16>
      %c0_20 = arith.constant 0 : index
      %c0_21 = arith.constant 0 : index
      %26 = vector.load %arg7[%c0_20, %c0_21] : memref<256x128xbf16, #tpu.memory_space<vmem>>, vector<256x128xbf16>
      %cst_22 = arith.constant dense<0.000000e+00> : vector<256x128xf32>
      %27 = tpu.matmul %25, %26, %cst_22 {dimension_numbers = #tpu.dot_dimension_numbers<[1], [0], [0], [1], [0, 0, 1, 1], [], []>} : vector<256x256xbf16>, vector<256x128xbf16>, vector<256x128xf32> -> vector<256x128xf32>
      %c0_23 = arith.constant 0 : index
      %c0_24 = arith.constant 0 : index
      %28 = vector.load %arg8[%c0_23, %c0_24] : memref<1x128xf32, #tpu.memory_space<vmem>>, vector<1x128xf32>
      %29 = vector.broadcast %28 : vector<1x128xf32> to vector<256x128xf32>
      %30 = arith.addf %27, %29 : vector<256x128xf32>
      %c0_25 = arith.constant 0 : index
      %c0_26 = arith.constant 0 : index
      %31 = vector.load %arg10[%c0_25, %c0_26] : memref<256x128xf32, #tpu.memory_space<vmem>>, vector<256x128xf32>
      tpu.vector_store %arg10[%c0_25, %c0_26], %30 {strides = array<i32>} : memref<256x128xf32, #tpu.memory_space<vmem>>, vector<256x128xf32>,
    } else {
    }
    return
  }
  func.func @transform_0(%arg0: i32, %arg1: i32) -> (i32, i32) {
    %c0_i32 = arith.constant 0 : i32
    return %arg0, %arg1 : i32, i32
  }
  func.func @transform_1(%arg0: i32, %arg1: i32) -> (i32, i32) {
    %c0_i32 = arith.constant 0 : i32
    %c0_i32_0 = arith.constant 0 : i32
    return %arg1, %c0_i32 : i32, i32
  }
  func.func @transform_2(%arg0: i32, %arg1: i32) -> (i32, i32) {
    %c0_i32 = arith.constant 0 : i32
    %c0_i32_0 = arith.constant 0 : i32
    %c0_i32_1 = arith.constant 0 : i32
    return %c0_i32, %c0_i32_0 : i32, i32
  }
  func.func @transform_3(%arg0: i32, %arg1: i32) -> (i32, i32) {
    %c0_i32 = arith.constant 0 : i32
    %c0_i32_0 = arith.constant 0 : i32
    %c0_i32_1 = arith.constant 0 : i32
    return %c0_i32, %c0_i32_0 : i32, i32
  }
  func.func @transform_4(%arg0: i32, %arg1: i32) -> (i32, i32) {
    %c0_i32 = arith.constant 0 : i32
    %c0_i32_0 = arith.constant 0 : i32
    %c0_i32_1 = arith.constant 0 : i32
    return %c0_i32, %c0_i32_0 : i32, i32
  }
  func.func @transform_5(%arg0: i32, %arg1: i32) -> (i32, i32) {
    %c0_i32 = arith.constant 0 : i32
    %c0_i32_0 = arith.constant 0 : i32
    %c0_i32_1 = arith.constant 0 : i32
    return %c0_i32, %c0_i32_0 : i32, i32
  }
  func.func @transform_6(%arg0: i32, %arg1: i32) -> (i32, i32) {
    %c0_i32 = arith.constant 0 : i32
    %c0_i32_0 = arith.constant 0 : i32
    %c0_i32_1 = arith.constant 0 : i32
    return %c0_i32, %c0_i32_0 : i32, i32
  }
  func.func @transform_7(%arg0: i32, %arg1: i32) -> (i32, i32) {
    %c0_i32 = arith.constant 0 : i32
    %c0_i32_0 = arith.constant 0 : i32
    return %arg0, %c0_i32 : i32, i32
  }
  func.func @transform_8(%arg0: i32, %arg1: i32) -> (i32, i32) {
    %c0_i32 = arith.constant 0 : i32
    %c0_i32_0 = arith.constant 0 : i32
    return %arg0, %c0_i32 : i32, i32
  }
}

</mosaic_0001>

<llo_original>
// kernel: tpu_custom_call.1
$region0: #{tpu_custom_call.1}
  #allocation0 [shape = 'u32[]', space=smem, size = 0x4, offset = 0x4, fixed_abs, tag = 'smem constant byte address 0x4 - core index']
  #allocation1 [shape = 'u32[72,128]{1,0:T(1,128)}', space=vmem, size = 0x9000, scoped, tag = 'internal scratch']
  #allocation2 [shape = 'f32[256,256]{1,0:T(8,128)}', space=vmem, size = 0x40000, scoped, tag = 'scratch operand']
  %s0 = inlined_call_operand.hbm [shape: bf16[512,2048], index: 0, kind: input, shape index: {}]
  %s1 = inlined_call_operand.hbm [shape: bf16[2048,256], index: 1, kind: input, shape index: {}]
  %s2 = inlined_call_operand.hbm [shape: f32[1,256], index: 2, kind: input, shape index: {}]
  %s3 = inlined_call_operand.hbm [shape: bf16[256,256], index: 3, kind: input, shape index: {}]
  %s4 = inlined_call_operand.hbm [shape: f32[1,256], index: 4, kind: input, shape index: {}]
  %s5 = inlined_call_operand.hbm [shape: bf16[256,128], index: 5, kind: input, shape index: {}]
  %s6 = inlined_call_operand.hbm [shape: f32[1,128], index: 6, kind: input, shape index: {}]
  %s7 = inlined_call_operand.hbm [shape: bf16[512,256], index: 7, kind: output, shape index: {0}]
  %s8 = inlined_call_operand.hbm [shape: f32[512,128], index: 8, kind: output, shape index: {1}]
  %9 = xla_tuple %s7, %s8
  %s10 = sld [smem:[#allocation0]]
  $region105: #{tpu_custom_call.1} parent=0
    _
  %s12 = ssub.s32 1, %s10
  %s13 = scalar_select 0, %s12, %s10
  $region1: #{tpu_custom_call.1} parent=0
    #allocation3 [shape = 'u8[1048576]{0}', space=vmem, size = 0x100000, scoped, tag = 'input window, operand 0']
    #allocation4 [shape = 's32[2]{0}', space=sflag, size = 0x8, scoped, tag = 'scoped memory for tpu_custom_call.1']
    #allocation5 [shape = 's32[2]{0}', space=sflag, size = 0x8, scoped, tag = 'scoped memory for tpu_custom_call.1']
    #allocation6 [shape = 'u8[1048576]{0}', space=vmem, size = 0x100000, scoped, tag = 'input window, operand 1']
    #allocation7 [shape = 's32[2]{0}', space=sflag, size = 0x8, scoped, tag = 'scoped memory for tpu_custom_call.1']
    #allocation8 [shape = 'u8[1024]{0}', space=vmem, size = 0x400, scoped, tag = 'input window, operand 2, single buffered']
    #allocation9 [shape = 'u8[131072]{0}', space=vmem, size = 0x20000, scoped, tag = 'input window, operand 3, single buffered']
    #allocation10 [shape = 's32[1]{0}', space=sflag, size = 0x4, scoped, tag = 'scoped memory for tpu_custom_call.1']
    #allocation11 [shape = 'u8[1024]{0}', space=vmem, size = 0x400, scoped, tag = 'input window, operand 4, single buffered']
    #allocation12 [shape = 'u8[65536]{0}', space=vmem, size = 0x10000, scoped, tag = 'input window, operand 5, single buffered']
    #allocation13 [shape = 's32[1]{0}', space=sflag, size = 0x4, scoped, tag = 'scoped memory for tpu_custom_call.1']
    #allocation14 [shape = 'u8[512]{0}', space=vmem, size = 0x400, scoped, tag = 'input window, operand 6, single buffered']
    #allocation15 [shape = 'u8[262144]{0}', space=vmem, size = 0x40000, scoped, tag = 'output window, operand 0']
    #allocation16 [shape = 'u8[262144]{0}', space=vmem, size = 0x40000, scoped, tag = 'output window, operand 1']
    #allocation17 [shape = 's32[2]{0}', space=sflag, size = 0x8, scoped, tag = 'scoped memory for tpu_custom_call.1']
    %14 = vsyncpa [#allocation4], 0
    %s15 = scalar_lea.sflag [#allocation4], 1
    %16 = vsyncpa %s15, 0
    %17 = vsyncpa [#allocation7], 0
    %s18 = scalar_lea.sflag [#allocation7], 1
    %19 = vsyncpa %s18, 0
    %20 = vsyncpa [#allocation10], 0
    %21 = vsyncpa [#allocation13], 0
    %22 = vsyncpa [#allocation5], 0
    %s23 = scalar_lea.sflag [#allocation5], 1
    %24 = vsyncpa %s23, 0
    %25 = vsyncpa [#allocation17], 0
    %s26 = scalar_lea.sflag [#allocation17], 1
    %27 = vsyncpa %s26, 0
    loop: start=0, step=1, limit=6
    $region2: #{tpu_custom_call.1} parent=1 // loop_pre_header
      _
    $region3: #{tpu_custom_call.1} parent=1 // loop_header
      %s29 = sphi 0, %s33
      %p30 = scmp.ge.s32.totalorder %s29, 6
      %s36 = sphi 0, %s48
      %s37 = sphi 0, %s44
      %s38 = sphi 0, %s36
      %s39 = sphi 0, %s37
      %s40 = sphi 0, %s38
      %s41 = sphi 0, %s39
      %s53 = sphi 0, %s55
      %s56 = sphi 0, %s53
      %s57 = sphi 0, %s56
      %s73 = sphi 0, %s57
      %s79 = sphi 0, %s81
      %s82 = sphi 0, %s79
      %s83 = sphi 0, %s82
      %s99 = sphi 0, %s83
      %s103 = sphi 0, %s103
      %s105 = sphi 0, %s103
      %s106 = sphi 0, %s105
      %s120 = sphi 0, %s106
      %s124 = sphi 0, %s124
      %s126 = sphi 0, %s124
      %s127 = sphi 0, %s126
      %s141 = sphi 0, %s127
      %s145 = sphi 0, %s145
      %s147 = sphi 0, %s145
      %s148 = sphi 0, %s147
      %s162 = sphi 0, %s148
      %s166 = sphi 0, %s166
      %s168 = sphi 0, %s166
      %s169 = sphi 0, %s168
      %s183 = sphi 0, %s169
      %s187 = sphi 0, %s187
      %s189 = sphi 0, %s187
      %s190 = sphi 0, %s189
      %s204 = sphi 0, %s190
      %s210 = sphi 0, %s212
      %s213 = sphi 0, %s210
      %s214 = sphi 0, %s213
      %s230 = sphi 0, %s214
      %s236 = sphi 0, %s238
      %s239 = sphi 0, %s236
      %s240 = sphi 0, %s239
      %s256 = sphi 0, %s240
    $region4: #{tpu_custom_call.1} parent=1 // loop_header_branch
      %32 = sbr.rel (%p30) target = $region8
    $region5: #{tpu_custom_call.1} parent=1 // loop_body
      %s34 = ssub.s32 %s29, 1
      %s35 = ssub.s32 %s29, 2
      %s42 = sadd.s32 1, %s37
      %p43 = scmp.ge.s32.totalorder %s42, 2
      %s44 = scalar_select %p43, 0, %s42
      %s45 = sadd.s32 1, %s36
      %s46 = scalar_select %p43, %s45, %s36
      %p47 = scmp.ge.s32.totalorder %s46, 2
      %s48 = scalar_select %p47, 0, %s46
      %s49 = ssub.s32 %s36, %s48
      %s50 = ssub.s32 %s37, %s44
      %s51 = sor.u32 %s49, %s50
      %p52 = scmp.eq.s32.totalorder %s51, 0
      %s54 = sadd.s32 %s53, 1
      %s55 = scalar_select %p52, %s53, %s54
      %p58 = pneg %p52
      %p59 = scmp.eq.s32.totalorder %s29, 3
      %p60 = por %p58, %p59
      %p61 = scmp.ne.s32.totalorder %s53, %s56
      %p62 = scmp.eq.s32.totalorder %s29, 0
      %p63 = por %p61, %p62
      %p64 = scmp.ne.s32.totalorder %s53, %s56
      %p65 = scmp.eq.s32.totalorder %s34, 3
      %p66 = por %p64, %p65
      %p67 = scmp.ne.s32.totalorder %s56, %s57
      %p68 = scmp.eq.s32.totalorder %s34, 0
      %p69 = por %p67, %p68
      %p70 = scmp.ne.s32.totalorder %s56, %s57
      %p71 = scmp.eq.s32.totalorder %s35, 3
      %p72 = por %p70, %p71
      %p74 = scmp.ne.s32.totalorder %s57, %s73
      %p75 = scmp.eq.s32.totalorder %s35, 0
      %p76 = por %p74, %p75
      %s77 = ssub.s32 %s37, %s44
      %p78 = scmp.eq.s32.totalorder %s77, 0
      %s80 = sadd.s32 %s79, 1
      %s81 = scalar_select %p78, %s79, %s80
      %p84 = pneg %p78
      %p85 = scmp.eq.s32.totalorder %s29, 3
      %p86 = por %p84, %p85
      %p87 = scmp.ne.s32.totalorder %s79, %s82
      %p88 = scmp.eq.s32.totalorder %s29, 0
      %p89 = por %p87, %p88
      %p90 = scmp.ne.s32.totalorder %s79, %s82
      %p91 = scmp.eq.s32.totalorder %s34, 3
      %p92 = por %p90, %p91
      %p93 = scmp.ne.s32.totalorder %s82, %s83
      %p94 = scmp.eq.s32.totalorder %s34, 0
      %p95 = por %p93, %p94
      %p96 = scmp.ne.s32.totalorder %s82, %s83
      %p97 = scmp.eq.s32.totalorder %s35, 3
      %p98 = por %p96, %p97
      %p100 = scmp.ne.s32.totalorder %s83, %s99
      %p101 = scmp.eq.s32.totalorder %s35, 0
      %p102 = por %p100, %p101
      %s104 = sadd.s32 %s103, 1
      %p107 = scmp.eq.s32.totalorder %s29, 3
      %p108 = scmp.ne.s32.totalorder %s103, %s105
      %p109 = scmp.eq.s32.totalorder %s29, 0
      %p110 = por %p108, %p109
      %p111 = scmp.ne.s32.totalorder %s103, %s105
      %p112 = scmp.eq.s32.totalorder %s34, 3
      %p113 = por %p111, %p112
      %p114 = scmp.ne.s32.totalorder %s105, %s106
      %p115 = scmp.eq.s32.totalorder %s34, 0
      %p116 = por %p114, %p115
      %p117 = scmp.ne.s32.totalorder %s105, %s106
      %p118 = scmp.eq.s32.totalorder %s35, 3
      %p119 = por %p117, %p118
      %p121 = scmp.ne.s32.totalorder %s106, %s120
      %p122 = scmp.eq.s32.totalorder %s35, 0
      %p123 = por %p121, %p122
      %s125 = sadd.s32 %s124, 1
      %p128 = scmp.eq.s32.totalorder %s29, 3
      %p129 = scmp.ne.s32.totalorder %s124, %s126
      %p130 = scmp.eq.s32.totalorder %s29, 0
      %p131 = por %p129, %p130
      %p132 = scmp.ne.s32.totalorder %s124, %s126
      %p133 = scmp.eq.s32.totalorder %s34, 3
      %p134 = por %p132, %p133
      %p135 = scmp.ne.s32.totalorder %s126, %s127
      %p136 = scmp.eq.s32.totalorder %s34, 0
      %p137 = por %p135, %p136
      %p138 = scmp.ne.s32.totalorder %s126, %s127
      %p139 = scmp.eq.s32.totalorder %s35, 3
      %p140 = por %p138, %p139
      %p142 = scmp.ne.s32.totalorder %s127, %s141
      %p143 = scmp.eq.s32.totalorder %s35, 0
      %p144 = por %p142, %p143
      %s146 = sadd.s32 %s145, 1
      %p149 = scmp.eq.s32.totalorder %s29, 3
      %p150 = scmp.ne.s32.totalorder %s145, %s147
      %p151 = scmp.eq.s32.totalorder %s29, 0
      %p152 = por %p150, %p151
      %p153 = scmp.ne.s32.totalorder %s145, %s147
      %p154 = scmp.eq.s32.totalorder %s34, 3
      %p155 = por %p153, %p154
      %p156 = scmp.ne.s32.totalorder %s147, %s148
      %p157 = scmp.eq.s32.totalorder %s34, 0
      %p158 = por %p156, %p157
      %p159 = scmp.ne.s32.totalorder %s147, %s148
      %p160 = scmp.eq.s32.totalorder %s35, 3
      %p161 = por %p159, %p160
      %p163 = scmp.ne.s32.totalorder %s148, %s162
      %p164 = scmp.eq.s32.totalorder %s35, 0
      %p165 = por %p163, %p164
      %s167 = sadd.s32 %s166, 1
      %p170 = scmp.eq.s32.totalorder %s29, 3
      %p171 = scmp.ne.s32.totalorder %s166, %s168
      %p172 = scmp.eq.s32.totalorder %s29, 0
      %p173 = por %p171, %p172
      %p174 = scmp.ne.s32.totalorder %s166, %s168
      %p175 = scmp.eq.s32.totalorder %s34, 3
      %p176 = por %p174, %p175
      %p177 = scmp.ne.s32.totalorder %s168, %s169
      %p178 = scmp.eq.s32.totalorder %s34, 0
      %p179 = por %p177, %p178
      %p180 = scmp.ne.s32.totalorder %s168, %s169
      %p181 = scmp.eq.s32.totalorder %s35, 3
      %p182 = por %p180, %p181
      %p184 = scmp.ne.s32.totalorder %s169, %s183
      %p185 = scmp.eq.s32.totalorder %s35, 0
      %p186 = por %p184, %p185
      %s188 = sadd.s32 %s187, 1
      %p191 = scmp.eq.s32.totalorder %s29, 3
      %p192 = scmp.ne.s32.totalorder %s187, %s189
      %p193 = scmp.eq.s32.totalorder %s29, 0
      %p194 = por %p192, %p193
      %p195 = scmp.ne.s32.totalorder %s187, %s189
      %p196 = scmp.eq.s32.totalorder %s34, 3
      %p197 = por %p195, %p196
      %p198 = scmp.ne.s32.totalorder %s189, %s190
      %p199 = scmp.eq.s32.totalorder %s34, 0
      %p200 = por %p198, %p199
      %p201 = scmp.ne.s32.totalorder %s189, %s190
      %p202 = scmp.eq.s32.totalorder %s35, 3
      %p203 = por %p201, %p202
      %p205 = scmp.ne.s32.totalorder %s190, %s204
      %p206 = scmp.eq.s32.totalorder %s35, 0
      %p207 = por %p205, %p206
      %s208 = ssub.s32 %s36, %s48
      %p209 = scmp.eq.s32.totalorder %s208, 0
      %s211 = sadd.s32 %s210, 1
      %s212 = scalar_select %p209, %s210, %s211
      %p215 = pneg %p209
      %p216 = scmp.eq.s32.totalorder %s29, 3
      %p217 = por %p215, %p216
      %p218 = scmp.ne.s32.totalorder %s210, %s213
      %p219 = scmp.eq.s32.totalorder %s29, 0
      %p220 = por %p218, %p219
      %p221 = scmp.ne.s32.totalorder %s210, %s213
      %p222 = scmp.eq.s32.totalorder %s34, 3
      %p223 = por %p221, %p222
      %p224 = scmp.ne.s32.totalorder %s213, %s214
      %p225 = scmp.eq.s32.totalorder %s34, 0
      %p226 = por %p224, %p225
      %p227 = scmp.ne.s32.totalorder %s213, %s214
      %p228 = scmp.eq.s32.totalorder %s35, 3
      %p229 = por %p227, %p228
      %p231 = scmp.ne.s32.totalorder %s214, %s230
      %p232 = scmp.eq.s32.totalorder %s35, 0
      %p233 = por %p231, %p232
      %s234 = ssub.s32 %s36, %s48
      %p235 = scmp.eq.s32.totalorder %s234, 0
      %s237 = sadd.s32 %s236, 1
      %s238 = scalar_select %p235, %s236, %s237
      %p241 = pneg %p235
      %p242 = scmp.eq.s32.totalorder %s29, 3
      %p243 = por %p241, %p242
      %p244 = scmp.ne.s32.totalorder %s236, %s239
      %p245 = scmp.eq.s32.totalorder %s29, 0
      %p246 = por %p244, %p245
      %p247 = scmp.ne.s32.totalorder %s236, %s239
      %p248 = scmp.eq.s32.totalorder %s34, 3
      %p249 = por %p247, %p248
      %p250 = scmp.ne.s32.totalorder %s239, %s240
      %p251 = scmp.eq.s32.totalorder %s34, 0
      %p252 = por %p250, %p251
      %p253 = scmp.ne.s32.totalorder %s239, %s240
      %p254 = scmp.eq.s32.totalorder %s35, 3
      %p255 = por %p253, %p254
      %p257 = scmp.ne.s32.totalorder %s240, %s256
      %p258 = scmp.eq.s32.totalorder %s35, 0
      %p259 = por %p257, %p258
      %p260 = scmp.le.s32.totalorder 1, %s29
      %p261 = scmp.lt.s32.totalorder %s29, 5
      %p262 = pnand %p260, %p261
      %p263 = pneg %p262
      // Predicated region
      $region9: #{tpu_custom_call.1} parent=5 // pred_check
        _
      $region10: #{tpu_custom_call.1} parent=5 // pred_check_branch
        %265 = sbr.rel (%p262) target = $region12
      $region11: #{tpu_custom_call.1} parent=5 // pred_region
        %s266 = ssub.s32 %s29, 1
        // Predicated region
        $region13: #{tpu_custom_call.1} parent=11 // pred_check
          %p267 = pneg %p116
        $region14: #{tpu_custom_call.1} parent=11 // pred_check_branch
          %269 = sbr.rel (%p267) target = $region16
        $region15: #{tpu_custom_call.1} parent=11 // pred_region
          %271 = vsyncadd [#allocation7], 0
          %s273 = sshll.u32 %s2, 4
          %s274 = int_to_ptr.hbm [resolvable:$true] %s273
          %s275 = sshll.u32 [#allocation8], 4
          %s276 = int_to_ptr.vmem [resolvable:$true] %s275
          %278 = dma.hbm_to_vmem [thread:$0]  %s274, 32, %s276, [#allocation7]
        $region16: #{tpu_custom_call.1} parent=11 // pred_fallthru
          _
        // Predicated region
        $region17: #{tpu_custom_call.1} parent=11 // pred_check
          %p279 = pneg %p137
        $region18: #{tpu_custom_call.1} parent=11 // pred_check_branch
          %281 = sbr.rel (%p279) target = $region20
        $region19: #{tpu_custom_call.1} parent=11 // pred_region
          %283 = vsyncadd [#allocation10], 0
          %s284 = sshll.u32 %s3, 4
          %s285 = int_to_ptr.hbm [resolvable:$true] %s284
          %s286 = sshll.u32 [#allocation9], 4
          %s287 = int_to_ptr.vmem [resolvable:$true] %s286
          %292 = dma.hbm_to_vmem [thread:$0]  %s285, 4096, %s287, [#allocation10], 128, 128, 8
        $region20: #{tpu_custom_call.1} parent=11 // pred_fallthru
          _
        // Predicated region
        $region21: #{tpu_custom_call.1} parent=11 // pred_check
          %p293 = pneg %p158
        $region22: #{tpu_custom_call.1} parent=11 // pred_check_branch
          %295 = sbr.rel (%p293) target = $region24
        $region23: #{tpu_custom_call.1} parent=11 // pred_region
          %297 = vsyncadd [#allocation10], 0
          %s299 = sshll.u32 %s4, 4
          %s300 = int_to_ptr.hbm [resolvable:$true] %s299
          %s301 = sshll.u32 [#allocation11], 4
          %s302 = int_to_ptr.vmem [resolvable:$true] %s301
          %304 = dma.hbm_to_vmem [thread:$0]  %s300, 32, %s302, [#allocation10]
        $region24: #{tpu_custom_call.1} parent=11 // pred_fallthru
          _
        // Predicated region
        $region25: #{tpu_custom_call.1} parent=11 // pred_check
          %p305 = pneg %p179
        $region26: #{tpu_custom_call.1} parent=11 // pred_check_branch
          %307 = sbr.rel (%p305) target = $region28
        $region27: #{tpu_custom_call.1} parent=11 // pred_region
          %309 = vsyncadd [#allocation13], 0
          %s310 = sshll.u32 %s5, 4
          %s311 = int_to_ptr.hbm [resolvable:$true] %s310
          %s312 = sshll.u32 [#allocation12], 4
          %s313 = int_to_ptr.vmem [resolvable:$true] %s312
          %318 = dma.hbm_to_vmem [thread:$0]  %s311, 2048, %s313, [#allocation13], 64, 64, 4
        $region28: #{tpu_custom_call.1} parent=11 // pred_fallthru
          _
        // Predicated region
        $region29: #{tpu_custom_call.1} parent=11 // pred_check
          %p319 = pneg %p200
        $region30: #{tpu_custom_call.1} parent=11 // pred_check_branch
          %321 = sbr.rel (%p319) target = $region32
        $region31: #{tpu_custom_call.1} parent=11 // pred_region
          %323 = vsyncadd [#allocation13], 0
          %s325 = sshll.u32 %s6, 4
          %s326 = int_to_ptr.hbm [resolvable:$true] %s325
          %s327 = sshll.u32 [#allocation14], 4
          %s328 = int_to_ptr.vmem [resolvable:$true] %s327
          %330 = dma.hbm_to_vmem [thread:$0]  %s326, 16, %s328, [#allocation13]
        $region32: #{tpu_custom_call.1} parent=11 // pred_fallthru
          _
      $region12: #{tpu_custom_call.1} parent=5 // pred_fallthru
        _
      %p331 = scmp.lt.s32.totalorder %s29, 4
      // Predicated region
      $region33: #{tpu_custom_call.1} parent=5 // pred_check
        %p332 = pneg %p331
      $region34: #{tpu_custom_call.1} parent=5 // pred_check_branch
        %334 = sbr.rel (%p332) target = $region36
      $region35: #{tpu_custom_call.1} parent=5 // pred_region
        // Predicated region
        $region37: #{tpu_custom_call.1} parent=35 // pred_check
          %p335 = pneg %p63
        $region38: #{tpu_custom_call.1} parent=35 // pred_check_branch
          %337 = sbr.rel (%p335) target = $region40
        $region39: #{tpu_custom_call.1} parent=35 // pred_region
          %s338 = sand.u32 %s53, 1
          %s339 = scalar_lea.sflag [#allocation4], %s338
          %s340 = sand.u32 %s53, 1
          %s341 = smul.addr %s340, 1024
          %s342 = scalar_lea.vmem [#allocation3], %s341
          %s343 = smul.u32 32, %s36
          %s344 = smul.u32 8, %s37
          %346 = vsyncadd %s339, 0
          %s347 = smul.addr %s343, 16
          %s348 = sadd.s32 %s344, %s347
          %s349 = smul.addr %s348, 4
          %s350 = scalar_lea.hbm %s0, %s349
          %s351 = sshll.u32 %s350, 4
          %s352 = int_to_ptr.hbm [resolvable:$true] %s351
          %s353 = sshll.u32 %s342, 4
          %s354 = int_to_ptr.vmem [resolvable:$true] %s353
          %359 = dma.hbm_to_vmem [thread:$0]  %s352, 16384, %s354, %s339, 1024, 512, 32
        $region40: #{tpu_custom_call.1} parent=35 // pred_fallthru
          _
        // Predicated region
        $region41: #{tpu_custom_call.1} parent=35 // pred_check
          %p360 = pneg %p89
        $region42: #{tpu_custom_call.1} parent=35 // pred_check_branch
          %362 = sbr.rel (%p360) target = $region44
        $region43: #{tpu_custom_call.1} parent=35 // pred_region
          %s363 = sand.u32 %s29, 1
          %s364 = scalar_lea.sflag [#allocation7], %s363
          %s365 = sand.u32 %s79, 1
          %s366 = smul.addr %s365, 1024
          %s367 = scalar_lea.vmem [#allocation6], %s366
          %s368 = smul.u32 128, %s37
          %370 = vsyncadd %s364, 0
          %s371 = smul.addr %s368, 2
          %s372 = smul.addr %s371, 4
          %s373 = scalar_lea.hbm %s1, %s372
          %s374 = sshll.u32 %s373, 4
          %s375 = int_to_ptr.hbm [resolvable:$true] %s374
          %s376 = sshll.u32 %s367, 4
          %s377 = int_to_ptr.vmem [resolvable:$true] %s376
          %382 = dma.hbm_to_vmem [thread:$0]  %s375, 16384, %s377, %s364, 128, 128, 8
        $region44: #{tpu_custom_call.1} parent=35 // pred_fallthru
          _
      $region36: #{tpu_custom_call.1} parent=5 // pred_fallthru
        _
      %p383 = scmp.le.s32.totalorder 1, %s29
      %p384 = scmp.lt.s32.totalorder %s29, 5
      %p385 = pnand %p383, %p384
      %p386 = pneg %p385
      // Predicated region
      $region45: #{tpu_custom_call.1} parent=5 // pred_check
        _
      $region46: #{tpu_custom_call.1} parent=5 // pred_check_branch
        %388 = sbr.rel (%p385) target = $region48
      $region47: #{tpu_custom_call.1} parent=5 // pred_region
        %s389 = ssub.s32 %s29, 1
        %s390 = sand.u32 %s56, 1
        %s391 = scalar_lea.sflag [#allocation4], %s390
        %s392 = sand.u32 %s56, 1
        %s393 = smul.addr %s392, 1024
        %s394 = scalar_lea.vmem [#allocation3], %s393
        // Predicated region
        $region49: #{tpu_custom_call.1} parent=47 // pred_check
          %p395 = pneg %p69
        $region50: #{tpu_custom_call.1} parent=47 // pred_check_branch
          %397 = sbr.rel (%p395) target = $region52
        $region51: #{tpu_custom_call.1} parent=47 // pred_region
          %399 = dma.done %s391, 16384
        $region52: #{tpu_custom_call.1} parent=47 // pred_fallthru
          _
        %s400 = sand.u32 %s34, 1
        %s401 = scalar_lea.sflag [#allocation7], %s400
        %s402 = sand.u32 %s82, 1
        %s403 = smul.addr %s402, 1024
        %s404 = scalar_lea.vmem [#allocation6], %s403
        // Predicated region
        $region53: #{tpu_custom_call.1} parent=47 // pred_check
          %p405 = pneg %p95
        $region54: #{tpu_custom_call.1} parent=47 // pred_check_branch
          %407 = sbr.rel (%p405) target = $region56
        $region55: #{tpu_custom_call.1} parent=47 // pred_region
          %409 = dma.done %s401, 16384
        $region56: #{tpu_custom_call.1} parent=47 // pred_fallthru
          _
        // Predicated region
        $region57: #{tpu_custom_call.1} parent=47 // pred_check
          %p410 = pneg %p116
        $region58: #{tpu_custom_call.1} parent=47 // pred_check_branch
          %412 = sbr.rel (%p410) target = $region60
        $region59: #{tpu_custom_call.1} parent=47 // pred_region
          %414 = dma.done [#allocation7], 32
        $region60: #{tpu_custom_call.1} parent=47 // pred_fallthru
          _
        // Predicated region
        $region61: #{tpu_custom_call.1} parent=47 // pred_check
          %p415 = pneg %p137
        $region62: #{tpu_custom_call.1} parent=47 // pred_check_branch
          %417 = sbr.rel (%p415) target = $region64
        $region63: #{tpu_custom_call.1} parent=47 // pred_region
          %419 = dma.done [#allocation10], 4096
        $region64: #{tpu_custom_call.1} parent=47 // pred_fallthru
          _
        // Predicated region
        $region65: #{tpu_custom_call.1} parent=47 // pred_check
          %p420 = pneg %p158
        $region66: #{tpu_custom_call.1} parent=47 // pred_check_branch
          %422 = sbr.rel (%p420) target = $region68
        $region67: #{tpu_custom_call.1} parent=47 // pred_region
          %424 = dma.done [#allocation10], 32
        $region68: #{tpu_custom_call.1} parent=47 // pred_fallthru
          _
        // Predicated region
        $region69: #{tpu_custom_call.1} parent=47 // pred_check
          %p425 = pneg %p179
        $region70: #{tpu_custom_call.1} parent=47 // pred_check_branch
          %427 = sbr.rel (%p425) target = $region72
        $region71: #{tpu_custom_call.1} parent=47 // pred_region
          %429 = dma.done [#allocation13], 2048
        $region72: #{tpu_custom_call.1} parent=47 // pred_fallthru
          _
        // Predicated region
        $region73: #{tpu_custom_call.1} parent=47 // pred_check
          %p430 = pneg %p200
        $region74: #{tpu_custom_call.1} parent=47 // pred_check_branch
          %432 = sbr.rel (%p430) target = $region76
        $region75: #{tpu_custom_call.1} parent=47 // pred_region
          %434 = dma.done [#allocation13], 16
        $region76: #{tpu_custom_call.1} parent=47 // pred_fallthru
          _
        %s435 = sand.u32 %s56, 1
        %s436 = scalar_lea.sflag [#allocation4], %s435
        %s437 = sand.u32 %s56, 1
        %s438 = smul.addr %s437, 1024
        %s439 = scalar_lea.vmem [#allocation3], %s438
        %p440 = pneg %p69
        %p441 = pneg %p66
        %s442 = sand.u32 %s34, 1
        %s443 = scalar_lea.sflag [#allocation7], %s442
        %s444 = sand.u32 %s82, 1
        %s445 = smul.addr %s444, 1024
        %s446 = scalar_lea.vmem [#allocation6], %s445
        %p447 = pneg %p95
        %p448 = pneg %p92
        %p449 = pneg %p116
        %p450 = pneg %p113
        %p451 = pneg %p137
        %p452 = pneg %p134
        %p453 = pneg %p158
        %p454 = pneg %p155
        %p455 = pneg %p179
        %p456 = pneg %p176
        %p457 = pneg %p200
        %p458 = pneg %p197
        %p459 = pneg %p226
        %p460 = pneg %p223
        %s461 = sand.u32 %s213, 1
        %s462 = scalar_lea.sflag [#allocation5], %s461
        %s463 = sand.u32 %s213, 1
        %s464 = smul.addr %s463, 256
        %s465 = scalar_lea.vmem [#allocation15], %s464
        %p466 = pneg %p252
        %p467 = pneg %p249
        %s468 = sand.u32 %s239, 1
        %s469 = scalar_lea.sflag [#allocation17], %s468
        %s470 = sand.u32 %s239, 1
        %s471 = smul.addr %s470, 256
        %s472 = scalar_lea.vmem [#allocation16], %s471
        %s473 = smul.u32 32, %s38
        %s474 = smul.u32 8, %s39
        %s475 = smul.u32 128, %s39
        %s476 = smul.u32 32, %s38
        %s477 = smul.u32 32, %s38
        %p478 = scmp.eq.s32.totalorder %s39, 0
        // Predicated region
        $region77: #{tpu_custom_call.1} parent=47 // pred_check
          %p479 = pneg %p478
        $region78: #{tpu_custom_call.1} parent=47 // pred_check_branch
          %481 = sbr.rel (%p479) target = $region80
        $region79: #{tpu_custom_call.1} parent=47 // pred_region
          %v482 = vld [vmem:[#allocation8] sm:$0x3]
          %v484 = vperm.slane %v482, 0
          %v485 = vperm.slane %v482, 1
          %488 = vst [vmem:[#allocation2] sm:$0xff] %v484
          %489 = vst [vmem:[#allocation2 + $0x8] sm:$0xff] %v485
          %490 = vst [vmem:[#allocation2 + $0x10] sm:$0xff] %v484
          %491 = vst [vmem:[#allocation2 + $0x18] sm:$0xff] %v485
          %492 = vst [vmem:[#allocation2 + $0x20] sm:$0xff] %v484
          %493 = vst [vmem:[#allocation2 + $0x28] sm:$0xff] %v485
          %494 = vst [vmem:[#allocation2 + $0x30] sm:$0xff] %v484
          %495 = vst [vmem:[#allocation2 + $0x38] sm:$0xff] %v485
          %496 = vst [vmem:[#allocation2 + $0x40] sm:$0xff] %v484
          %497 = vst [vmem:[#allocation2 + $0x48] sm:$0xff] %v485
          %498 = vst [vmem:[#allocation2 + $0x50] sm:$0xff] %v484
          %499 = vst [vmem:[#allocation2 + $0x58] sm:$0xff] %v485
          %500 = vst [vmem:[#allocation2 + $0x60] sm:$0xff] %v484
          %501 = vst [vmem:[#allocation2 + $0x68] sm:$0xff] %v485
          %502 = vst [vmem:[#allocation2 + $0x70] sm:$0xff] %v484
          %503 = vst [vmem:[#allocation2 + $0x78] sm:$0xff] %v485
          %504 = vst [vmem:[#allocation2 + $0x80] sm:$0xff] %v484
          %505 = vst [vmem:[#allocation2 + $0x88] sm:$0xff] %v485
          %506 = vst [vmem:[#allocation2 + $0x90] sm:$0xff] %v484
          %507 = vst [vmem:[#allocation2 + $0x98] sm:$0xff] %v485
          %508 = vst [vmem:[#allocation2 + $0xa0] sm:$0xff] %v484
          %509 = vst [vmem:[#allocation2 + $0xa8] sm:$0xff] %v485
          %510 = vst [vmem:[#allocation2 + $0xb0] sm:$0xff] %v484
          %511 = vst [vmem:[#allocation2 + $0xb8] sm:$0xff] %v485
          %512 = vst [vmem:[#allocation2 + $0xc0] sm:$0xff] %v484
          %513 = vst [vmem:[#allocation2 + $0xc8] sm:$0xff] %v485
          %514 = vst [vmem:[#allocation2 + $0xd0] sm:$0xff] %v484
          %515 = vst [vmem:[#allocation2 + $0xd8] sm:$0xff] %v485
          %516 = vst [vmem:[#allocation2 + $0xe0] sm:$0xff] %v484
          %517 = vst [vmem:[#allocation2 + $0xe8] sm:$0xff] %v485
          %518 = vst [vmem:[#allocation2 + $0xf0] sm:$0xff] %v484
          %519 = vst [vmem:[#allocation2 + $0xf8] sm:$0xff] %v485
          %520 = vst [vmem:[#allocation2 + $0x100] sm:$0xff] %v484
          %521 = vst [vmem:[#allocation2 + $0x108] sm:$0xff] %v485
          %522 = vst [vmem:[#allocation2 + $0x110] sm:$0xff] %v484
          %523 = vst [vmem:[#allocation2 + $0x118] sm:$0xff] %v485
          %524 = vst [vmem:[#allocation2 + $0x120] sm:$0xff] %v484
          %525 = vst [vmem:[#allocation2 + $0x128] sm:$0xff] %v485
          %526 = vst [vmem:[#allocation2 + $0x130] sm:$0xff] %v484
          %527 = vst [vmem:[#allocation2 + $0x138] sm:$0xff] %v485
          %528 = vst [vmem:[#allocation2 + $0x140] sm:$0xff] %v484
          %529 = vst [vmem:[#allocation2 + $0x148] sm:$0xff] %v485
          %530 = vst [vmem:[#allocation2 + $0x150] sm:$0xff] %v484
          %531 = vst [vmem:[#allocation2 + $0x158] sm:$0xff] %v485
          %532 = vst [vmem:[#allocation2 + $0x160] sm:$0xff] %v484
          %533 = vst [vmem:[#allocation2 + $0x168] sm:$0xff] %v485
          %534 = vst [vmem:[#allocation2 + $0x170] sm:$0xff] %v484
          %535 = vst [vmem:[#allocation2 + $0x178] sm:$0xff] %v485
          %536 = vst [vmem:[#allocation2 + $0x180] sm:$0xff] %v484
          %537 = vst [vmem:[#allocation2 + $0x188] sm:$0xff] %v485
          %538 = vst [vmem:[#allocation2 + $0x190] sm:$0xff] %v484
          %539 = vst [vmem:[#allocation2 + $0x198] sm:$0xff] %v485
          %540 = vst [vmem:[#allocation2 + $0x1a0] sm:$0xff] %v484
          %541 = vst [vmem:[#allocation2 + $0x1a8] sm:$0xff] %v485
          %542 = vst [vmem:[#allocation2 + $0x1b0] sm:$0xff] %v484
          %543 = vst [vmem:[#allocation2 + $0x1b8] sm:$0xff] %v485
          %544 = vst [vmem:[#allocation2 + $0x1c0] sm:$0xff] %v484
          %545 = vst [vmem:[#allocation2 + $0x1c8] sm:$0xff] %v485
          %546 = vst [vmem:[#allocation2 + $0x1d0] sm:$0xff] %v484
          %547 = vst [vmem:[#allocation2 + $0x1d8] sm:$0xff] %v485
          %548 = vst [vmem:[#allocation2 + $0x1e0] sm:$0xff] %v484
          %549 = vst [vmem:[#allocation2 + $0x1e8] sm:$0xff] %v485
          %550 = vst [vmem:[#allocation2 + $0x1f0] sm:$0xff] %v484
          %551 = vst [vmem:[#allocation2 + $0x1f8] sm:$0xff] %v485
        $region80: #{tpu_custom_call.1} parent=47 // pred_fallthru
          _
        %v552 = vld [vmem:[#allocation2] sm:$0xff]
        %v553 = vld [vmem:[#allocation2 + $0x8] sm:$0xff]
        %v554 = vld [vmem:[#allocation2 + $0x10] sm:$0xff]
        %v555 = vld [vmem:[#allocation2 + $0x18] sm:$0xff]
        %v556 = vld [vmem:[#allocation2 + $0x20] sm:$0xff]
        %v557 = vld [vmem:[#allocation2 + $0x28] sm:$0xff]
        %v558 = vld [vmem:[#allocation2 + $0x30] sm:$0xff]
        %v559 = vld [vmem:[#allocation2 + $0x38] sm:$0xff]
        %v560 = vld [vmem:[#allocation2 + $0x40] sm:$0xff]
        %v561 = vld [vmem:[#allocation2 + $0x48] sm:$0xff]
        %v562 = vld [vmem:[#allocation2 + $0x50] sm:$0xff]
        %v563 = vld [vmem:[#allocation2 + $0x58] sm:$0xff]
        %v564 = vld [vmem:[#allocation2 + $0x60] sm:$0xff]
        %v565 = vld [vmem:[#allocation2 + $0x68] sm:$0xff]
        %v566 = vld [vmem:[#allocation2 + $0x70] sm:$0xff]
        %v567 = vld [vmem:[#allocation2 + $0x78] sm:$0xff]
        %v568 = vld [vmem:[#allocation2 + $0x80] sm:$0xff]
        %v569 = vld [vmem:[#allocation2 + $0x88] sm:$0xff]
        %v570 = vld [vmem:[#allocation2 + $0x90] sm:$0xff]
        %v571 = vld [vmem:[#allocation2 + $0x98] sm:$0xff]
        %v572 = vld [vmem:[#allocation2 + $0xa0] sm:$0xff]
        %v573 = vld [vmem:[#allocation2 + $0xa8] sm:$0xff]
        %v574 = vld [vmem:[#allocation2 + $0xb0] sm:$0xff]
        %v575 = vld [vmem:[#allocation2 + $0xb8] sm:$0xff]
        %v576 = vld [vmem:[#allocation2 + $0xc0] sm:$0xff]
        %v577 = vld [vmem:[#allocation2 + $0xc8] sm:$0xff]
        %v578 = vld [vmem:[#allocation2 + $0xd0] sm:$0xff]
        %v579 = vld [vmem:[#allocation2 + $0xd8] sm:$0xff]
        %v580 = vld [vmem:[#allocation2 + $0xe0] sm:$0xff]
        %v581 = vld [vmem:[#allocation2 + $0xe8] sm:$0xff]
        %v582 = vld [vmem:[#allocation2 + $0xf0] sm:$0xff]
        %v583 = vld [vmem:[#allocation2 + $0xf8] sm:$0xff]
        %v584 = vld [vmem:[#allocation2 + $0x100] sm:$0xff]
        %v585 = vld [vmem:[#allocation2 + $0x108] sm:$0xff]
        %v586 = vld [vmem:[#allocation2 + $0x110] sm:$0xff]
        %v587 = vld [vmem:[#allocation2 + $0x118] sm:$0xff]
        %v588 = vld [vmem:[#allocation2 + $0x120] sm:$0xff]
        %v589 = vld [vmem:[#allocation2 + $0x128] sm:$0xff]
        %v590 = vld [vmem:[#allocation2 + $0x130] sm:$0xff]
        %v591 = vld [vmem:[#allocation2 + $0x138] sm:$0xff]
        %v592 = vld [vmem:[#allocation2 + $0x140] sm:$0xff]
        %v593 = vld [vmem:[#allocation2 + $0x148] sm:$0xff]
        %v594 = vld [vmem:[#allocation2 + $0x150] sm:$0xff]
        %v595 = vld [vmem:[#allocation2 + $0x158] sm:$0xff]
        %v596 = vld [vmem:[#allocation2 + $0x160] sm:$0xff]
        %v597 = vld [vmem:[#allocation2 + $0x168] sm:$0xff]
        %v598 = vld [vmem:[#allocation2 + $0x170] sm:$0xff]
        %v599 = vld [vmem:[#allocation2 + $0x178] sm:$0xff]
        %v600 = vld [vmem:[#allocation2 + $0x180] sm:$0xff]
        %v601 = vld [vmem:[#allocation2 + $0x188] sm:$0xff]
        %v602 = vld [vmem:[#allocation2 + $0x190] sm:$0xff]
        %v603 = vld [vmem:[#allocation2 + $0x198] sm:$0xff]
        %v604 = vld [vmem:[#allocation2 + $0x1a0] sm:$0xff]
        %v605 = vld [vmem:[#allocation2 + $0x1a8] sm:$0xff]
        %v606 = vld [vmem:[#allocation2 + $0x1b0] sm:$0xff]
        %v607 = vld [vmem:[#allocation2 + $0x1b8] sm:$0xff]
        %v608 = vld [vmem:[#allocation2 + $0x1c0] sm:$0xff]
        %v609 = vld [vmem:[#allocation2 + $0x1c8] sm:$0xff]
        %v610 = vld [vmem:[#allocation2 + $0x1d0] sm:$0xff]
        %v611 = vld [vmem:[#allocation2 + $0x1d8] sm:$0xff]
        %v612 = vld [vmem:[#allocation2 + $0x1e0] sm:$0xff]
        %v613 = vld [vmem:[#allocation2 + $0x1e8] sm:$0xff]
        %v614 = vld [vmem:[#allocation2 + $0x1f0] sm:$0xff]
        %v615 = vld [vmem:[#allocation2 + $0x1f8] sm:$0xff]
        %v616 = vld [vmem:[%s394] sm:$0xff]
        %v617 = vld [vmem:[%s394 + $0x8] sm:$0xff]
        %v618 = vld [vmem:[%s394 + $0x10] sm:$0xff]
        %v619 = vld [vmem:[%s394 + $0x18] sm:$0xff]
        %v620 = vld [vmem:[%s394 + $0x20] sm:$0xff]
        %v621 = vld [vmem:[%s394 + $0x28] sm:$0xff]
        %v622 = vld [vmem:[%s394 + $0x30] sm:$0xff]
        %v623 = vld [vmem:[%s394 + $0x38] sm:$0xff]
        %v624 = vld [vmem:[%s394 + $0x40] sm:$0xff]
        %v625 = vld [vmem:[%s394 + $0x48] sm:$0xff]
        %v626 = vld [vmem:[%s394 + $0x50] sm:$0xff]
        %v627 = vld [vmem:[%s394 + $0x58] sm:$0xff]
        %v628 = vld [vmem:[%s394 + $0x60] sm:$0xff]
        %v629 = vld [vmem:[%s394 + $0x68] sm:$0xff]
        %v630 = vld [vmem:[%s394 + $0x70] sm:$0xff]
        %v631 = vld [vmem:[%s394 + $0x78] sm:$0xff]
        %v632 = vld [vmem:[%s394 + $0x80] sm:$0xff]
        %v633 = vld [vmem:[%s394 + $0x88] sm:$0xff]
        %v634 = vld [vmem:[%s394 + $0x90] sm:$0xff]
        %v635 = vld [vmem:[%s394 + $0x98] sm:$0xff]
        %v636 = vld [vmem:[%s394 + $0xa0] sm:$0xff]
        %v637 = vld [vmem:[%s394 + $0xa8] sm:$0xff]
        %v638 = vld [vmem:[%s394 + $0xb0] sm:$0xff]
        %v639 = vld [vmem:[%s394 + $0xb8] sm:$0xff]
        %v640 = vld [vmem:[%s394 + $0xc0] sm:$0xff]
        %v641 = vld [vmem:[%s394 + $0xc8] sm:$0xff]
        %v642 = vld [vmem:[%s394 + $0xd0] sm:$0xff]
        %v643 = vld [vmem:[%s394 + $0xd8] sm:$0xff]
        %v644 = vld [vmem:[%s394 + $0xe0] sm:$0xff]
        %v645 = vld [vmem:[%s394 + $0xe8] sm:$0xff]
        %v646 = vld [vmem:[%s394 + $0xf0] sm:$0xff]
        %v647 = vld [vmem:[%s394 + $0xf8] sm:$0xff]
        %v648 = vld [vmem:[%s394 + $0x100] sm:$0xff]
        %v649 = vld [vmem:[%s394 + $0x108] sm:$0xff]
        %v650 = vld [vmem:[%s394 + $0x110] sm:$0xff]
        %v651 = vld [vmem:[%s394 + $0x118] sm:$0xff]
        %v652 = vld [vmem:[%s394 + $0x120] sm:$0xff]
        %v653 = vld [vmem:[%s394 + $0x128] sm:$0xff]
        %v654 = vld [vmem:[%s394 + $0x130] sm:$0xff]
        %v655 = vld [vmem:[%s394 + $0x138] sm:$0xff]
        %v656 = vld [vmem:[%s394 + $0x140] sm:$0xff]
        %v657 = vld [vmem:[%s394 + $0x148] sm:$0xff]
        %v658 = vld [vmem:[%s394 + $0x150] sm:$0xff]
        %v659 = vld [vmem:[%s394 + $0x158] sm:$0xff]
        %v660 = vld [vmem:[%s394 + $0x160] sm:$0xff]
        %v661 = vld [vmem:[%s394 + $0x168] sm:$0xff]
        %v662 = vld [vmem:[%s394 + $0x170] sm:$0xff]
        %v663 = vld [vmem:[%s394 + $0x178] sm:$0xff]
        %v664 = vld [vmem:[%s394 + $0x180] sm:$0xff]
        %v665 = vld [vmem:[%s394 + $0x188] sm:$0xff]
        %v666 = vld [vmem:[%s394 + $0x190] sm:$0xff]
        %v667 = vld [vmem:[%s394 + $0x198] sm:$0xff]
        %v668 = vld [vmem:[%s394 + $0x1a0] sm:$0xff]
        %v669 = vld [vmem:[%s394 + $0x1a8] sm:$0xff]
        %v670 = vld [vmem:[%s394 + $0x1b0] sm:$0xff]
        %v671 = vld [vmem:[%s394 + $0x1b8] sm:$0xff]
        %v672 = vld [vmem:[%s394 + $0x1c0] sm:$0xff]
        %v673 = vld [vmem:[%s394 + $0x1c8] sm:$0xff]
        %v674 = vld [vmem:[%s394 + $0x1d0] sm:$0xff]
        %v675 = vld [vmem:[%s394 + $0x1d8] sm:$0xff]
        %v676 = vld [vmem:[%s394 + $0x1e0] sm:$0xff]
        %v677 = vld [vmem:[%s394 + $0x1e8] sm:$0xff]
        %v678 = vld [vmem:[%s394 + $0x1f0] sm:$0xff]
        %v679 = vld [vmem:[%s394 + $0x1f8] sm:$0xff]
        %v680 = vld [vmem:[%s394 + $0x200] sm:$0xff]
        %v681 = vld [vmem:[%s394 + $0x208] sm:$0xff]
        %v682 = vld [vmem:[%s394 + $0x210] sm:$0xff]
        %v683 = vld [vmem:[%s394 + $0x218] sm:$0xff]
        %v684 = vld [vmem:[%s394 + $0x220] sm:$0xff]
        %v685 = vld [vmem:[%s394 + $0x228] sm:$0xff]
        %v686 = vld [vmem:[%s394 + $0x230] sm:$0xff]
        %v687 = vld [vmem:[%s394 + $0x238] sm:$0xff]
        %v688 = vld [vmem:[%s394 + $0x240] sm:$0xff]
        %v689 = vld [vmem:[%s394 + $0x248] sm:$0xff]
        %v690 = vld [vmem:[%s394 + $0x250] sm:$0xff]
        %v691 = vld [vmem:[%s394 + $0x258] sm:$0xff]
        %v692 = vld [vmem:[%s394 + $0x260] sm:$0xff]
        %v693 = vld [vmem:[%s394 + $0x268] sm:$0xff]
        %v694 = vld [vmem:[%s394 + $0x270] sm:$0xff]
        %v695 = vld [vmem:[%s394 + $0x278] sm:$0xff]
        %v696 = vld [vmem:[%s394 + $0x280] sm:$0xff]
        %v697 = vld [vmem:[%s394 + $0x288] sm:$0xff]
        %v698 = vld [vmem:[%s394 + $0x290] sm:$0xff]
        %v699 = vld [vmem:[%s394 + $0x298] sm:$0xff]
        %v700 = vld [vmem:[%s394 + $0x2a0] sm:$0xff]
        %v701 = vld [vmem:[%s394 + $0x2a8] sm:$0xff]
        %v702 = vld [vmem:[%s394 + $0x2b0] sm:$0xff]
        %v703 = vld [vmem:[%s394 + $0x2b8] sm:$0xff]
        %v704 = vld [vmem:[%s394 + $0x2c0] sm:$0xff]
        %v705 = vld [vmem:[%s394 + $0x2c8] sm:$0xff]
        %v706 = vld [vmem:[%s394 + $0x2d0] sm:$0xff]
        %v707 = vld [vmem:[%s394 + $0x2d8] sm:$0xff]
        %v708 = vld [vmem:[%s394 + $0x2e0] sm:$0xff]
        %v709 = vld [vmem:[%s394 + $0x2e8] sm:$0xff]
        %v710 = vld [vmem:[%s394 + $0x2f0] sm:$0xff]
        %v711 = vld [vmem:[%s394 + $0x2f8] sm:$0xff]
        %v712 = vld [vmem:[%s394 + $0x300] sm:$0xff]
        %v713 = vld [vmem:[%s394 + $0x308] sm:$0xff]
        %v714 = vld [vmem:[%s394 + $0x310] sm:$0xff]
        %v715 = vld [vmem:[%s394 + $0x318] sm:$0xff]
        %v716 = vld [vmem:[%s394 + $0x320] sm:$0xff]
        %v717 = vld [vmem:[%s394 + $0x328] sm:$0xff]
        %v718 = vld [vmem:[%s394 + $0x330] sm:$0xff]
        %v719 = vld [vmem:[%s394 + $0x338] sm:$0xff]
        %v720 = vld [vmem:[%s394 + $0x340] sm:$0xff]
        %v721 = vld [vmem:[%s394 + $0x348] sm:$0xff]
        %v722 = vld [vmem:[%s394 + $0x350] sm:$0xff]
        %v723 = vld [vmem:[%s394 + $0x358] sm:$0xff]
        %v724 = vld [vmem:[%s394 + $0x360] sm:$0xff]
        %v725 = vld [vmem:[%s394 + $0x368] sm:$0xff]
        %v726 = vld [vmem:[%s394 + $0x370] sm:$0xff]
        %v727 = vld [vmem:[%s394 + $0x378] sm:$0xff]
        %v728 = vld [vmem:[%s394 + $0x380] sm:$0xff]
        %v729 = vld [vmem:[%s394 + $0x388] sm:$0xff]
        %v730 = vld [vmem:[%s394 + $0x390] sm:$0xff]
        %v731 = vld [vmem:[%s394 + $0x398] sm:$0xff]
        %v732 = vld [vmem:[%s394 + $0x3a0] sm:$0xff]
        %v733 = vld [vmem:[%s394 + $0x3a8] sm:$0xff]
        %v734 = vld [vmem:[%s394 + $0x3b0] sm:$0xff]
        %v735 = vld [vmem:[%s394 + $0x3b8] sm:$0xff]
        %v736 = vld [vmem:[%s394 + $0x3c0] sm:$0xff]
        %v737 = vld [vmem:[%s394 + $0x3c8] sm:$0xff]
        %v738 = vld [vmem:[%s394 + $0x3d0] sm:$0xff]
        %v739 = vld [vmem:[%s394 + $0x3d8] sm:$0xff]
        %v740 = vld [vmem:[%s394 + $0x3e0] sm:$0xff]
        %v741 = vld [vmem:[%s394 + $0x3e8] sm:$0xff]
        %v742 = vld [vmem:[%s394 + $0x3f0] sm:$0xff]
        %v743 = vld [vmem:[%s394 + $0x3f8] sm:$0xff]
        %v744 = vld [vmem:[%s404] sm:$0xff]
        %v745 = vld [vmem:[%s404 + $0x8] sm:$0xff]
        %v746 = vld [vmem:[%s404 + $0x10] sm:$0xff]
        %v747 = vld [vmem:[%s404 + $0x18] sm:$0xff]
        %v748 = vld [vmem:[%s404 + $0x20] sm:$0xff]
        %v749 = vld [vmem:[%s404 + $0x28] sm:$0xff]
        %v750 = vld [vmem:[%s404 + $0x30] sm:$0xff]
        %v751 = vld [vmem:[%s404 + $0x38] sm:$0xff]
        %v752 = vld [vmem:[%s404 + $0x40] sm:$0xff]
        %v753 = vld [vmem:[%s404 + $0x48] sm:$0xff]
        %v754 = vld [vmem:[%s404 + $0x50] sm:$0xff]
        %v755 = vld [vmem:[%s404 + $0x58] sm:$0xff]
        %v756 = vld [vmem:[%s404 + $0x60] sm:$0xff]
        %v757 = vld [vmem:[%s404 + $0x68] sm:$0xff]
        %v758 = vld [vmem:[%s404 + $0x70] sm:$0xff]
        %v759 = vld [vmem:[%s404 + $0x78] sm:$0xff]
        %v760 = vld [vmem:[%s404 + $0x80] sm:$0xff]
        %v761 = vld [vmem:[%s404 + $0x88] sm:$0xff]
        %v762 = vld [vmem:[%s404 + $0x90] sm:$0xff]
        %v763 = vld [vmem:[%s404 + $0x98] sm:$0xff]
        %v764 = vld [vmem:[%s404 + $0xa0] sm:$0xff]
        %v765 = vld [vmem:[%s404 + $0xa8] sm:$0xff]
        %v766 = vld [vmem:[%s404 + $0xb0] sm:$0xff]
        %v767 = vld [vmem:[%s404 + $0xb8] sm:$0xff]
        %v768 = vld [vmem:[%s404 + $0xc0] sm:$0xff]
        %v769 = vld [vmem:[%s404 + $0xc8] sm:$0xff]
        %v770 = vld [vmem:[%s404 + $0xd0] sm:$0xff]
        %v771 = vld [vmem:[%s404 + $0xd8] sm:$0xff]
        %v772 = vld [vmem:[%s404 + $0xe0] sm:$0xff]
        %v773 = vld [vmem:[%s404 + $0xe8] sm:$0xff]
        %v774 = vld [vmem:[%s404 + $0xf0] sm:$0xff]
        %v775 = vld [vmem:[%s404 + $0xf8] sm:$0xff]
        %v776 = vld [vmem:[%s404 + $0x100] sm:$0xff]
        %v777 = vld [vmem:[%s404 + $0x108] sm:$0xff]
        %v778 = vld [vmem:[%s404 + $0x110] sm:$0xff]
        %v779 = vld [vmem:[%s404 + $0x118] sm:$0xff]
        %v780 = vld [vmem:[%s404 + $0x120] sm:$0xff]
        %v781 = vld [vmem:[%s404 + $0x128] sm:$0xff]
        %v782 = vld [vmem:[%s404 + $0x130] sm:$0xff]
        %v783 = vld [vmem:[%s404 + $0x138] sm:$0xff]
        %v784 = vld [vmem:[%s404 + $0x140] sm:$0xff]
        %v785 = vld [vmem:[%s404 + $0x148] sm:$0xff]
        %v786 = vld [vmem:[%s404 + $0x150] sm:$0xff]
        %v787 = vld [vmem:[%s404 + $0x158] sm:$0xff]
        %v788 = vld [vmem:[%s404 + $0x160] sm:$0xff]
        %v789 = vld [vmem:[%s404 + $0x168] sm:$0xff]
        %v790 = vld [vmem:[%s404 + $0x170] sm:$0xff]
        %v791 = vld [vmem:[%s404 + $0x178] sm:$0xff]
        %v792 = vld [vmem:[%s404 + $0x180] sm:$0xff]
        %v793 = vld [vmem:[%s404 + $0x188] sm:$0xff]
        %v794 = vld [vmem:[%s404 + $0x190] sm:$0xff]
        %v795 = vld [vmem:[%s404 + $0x198] sm:$0xff]
        %v796 = vld [vmem:[%s404 + $0x1a0] sm:$0xff]
        %v797 = vld [vmem:[%s404 + $0x1a8] sm:$0xff]
        %v798 = vld [vmem:[%s404 + $0x1b0] sm:$0xff]
        %v799 = vld [vmem:[%s404 + $0x1b8] sm:$0xff]
        %v800 = vld [vmem:[%s404 + $0x1c0] sm:$0xff]
        %v801 = vld [vmem:[%s404 + $0x1c8] sm:$0xff]
        %v802 = vld [vmem:[%s404 + $0x1d0] sm:$0xff]
        %v803 = vld [vmem:[%s404 + $0x1d8] sm:$0xff]
        %v804 = vld [vmem:[%s404 + $0x1e0] sm:$0xff]
        %v805 = vld [vmem:[%s404 + $0x1e8] sm:$0xff]
        %v806 = vld [vmem:[%s404 + $0x1f0] sm:$0xff]
        %v807 = vld [vmem:[%s404 + $0x1f8] sm:$0xff]
        %v808 = vld [vmem:[%s404 + $0x200] sm:$0xff]
        %v809 = vld [vmem:[%s404 + $0x208] sm:$0xff]
        %v810 = vld [vmem:[%s404 + $0x210] sm:$0xff]
        %v811 = vld [vmem:[%s404 + $0x218] sm:$0xff]
        %v812 = vld [vmem:[%s404 + $0x220] sm:$0xff]
        %v813 = vld [vmem:[%s404 + $0x228] sm:$0xff]
        %v814 = vld [vmem:[%s404 + $0x230] sm:$0xff]
        %v815 = vld [vmem:[%s404 + $0x238] sm:$0xff]
        %v816 = vld [vmem:[%s404 + $0x240] sm:$0xff]
        %v817 = vld [vmem:[%s404 + $0x248] sm:$0xff]
        %v818 = vld [vmem:[%s404 + $0x250] sm:$0xff]
        %v819 = vld [vmem:[%s404 + $0x258] sm:$0xff]
        %v820 = vld [vmem:[%s404 + $0x260] sm:$0xff]
        %v821 = vld [vmem:[%s404 + $0x268] sm:$0xff]
        %v822 = vld [vmem:[%s404 + $0x270] sm:$0xff]
        %v823 = vld [vmem:[%s404 + $0x278] sm:$0xff]
        %v824 = vld [vmem:[%s404 + $0x280] sm:$0xff]
        %v825 = vld [vmem:[%s404 + $0x288] sm:$0xff]
        %v826 = vld [vmem:[%s404 + $0x290] sm:$0xff]
        %v827 = vld [vmem:[%s404 + $0x298] sm:$0xff]
        %v828 = vld [vmem:[%s404 + $0x2a0] sm:$0xff]
        %v829 = vld [vmem:[%s404 + $0x2a8] sm:$0xff]
        %v830 = vld [vmem:[%s404 + $0x2b0] sm:$0xff]
        %v831 = vld [vmem:[%s404 + $0x2b8] sm:$0xff]
        %v832 = vld [vmem:[%s404 + $0x2c0] sm:$0xff]
        %v833 = vld [vmem:[%s404 + $0x2c8] sm:$0xff]
        %v834 = vld [vmem:[%s404 + $0x2d0] sm:$0xff]
        %v835 = vld [vmem:[%s404 + $0x2d8] sm:$0xff]
        %v836 = vld [vmem:[%s404 + $0x2e0] sm:$0xff]
        %v837 = vld [vmem:[%s404 + $0x2e8] sm:$0xff]
        %v838 = vld [vmem:[%s404 + $0x2f0] sm:$0xff]
        %v839 = vld [vmem:[%s404 + $0x2f8] sm:$0xff]
        %v840 = vld [vmem:[%s404 + $0x300] sm:$0xff]
        %v841 = vld [vmem:[%s404 + $0x308] sm:$0xff]
        %v842 = vld [vmem:[%s404 + $0x310] sm:$0xff]
        %v843 = vld [vmem:[%s404 + $0x318] sm:$0xff]
        %v844 = vld [vmem:[%s404 + $0x320] sm:$0xff]
        %v845 = vld [vmem:[%s404 + $0x328] sm:$0xff]
        %v846 = vld [vmem:[%s404 + $0x330] sm:$0xff]
        %v847 = vld [vmem:[%s404 + $0x338] sm:$0xff]
        %v848 = vld [vmem:[%s404 + $0x340] sm:$0xff]
        %v849 = vld [vmem:[%s404 + $0x348] sm:$0xff]
        %v850 = vld [vmem:[%s404 + $0x350] sm:$0xff]
        %v851 = vld [vmem:[%s404 + $0x358] sm:$0xff]
        %v852 = vld [vmem:[%s404 + $0x360] sm:$0xff]
        %v853 = vld [vmem:[%s404 + $0x368] sm:$0xff]
        %v854 = vld [vmem:[%s404 + $0x370] sm:$0xff]
        %v855 = vld [vmem:[%s404 + $0x378] sm:$0xff]
        %v856 = vld [vmem:[%s404 + $0x380] sm:$0xff]
        %v857 = vld [vmem:[%s404 + $0x388] sm:$0xff]
        %v858 = vld [vmem:[%s404 + $0x390] sm:$0xff]
        %v859 = vld [vmem:[%s404 + $0x398] sm:$0xff]
        %v860 = vld [vmem:[%s404 + $0x3a0] sm:$0xff]
        %v861 = vld [vmem:[%s404 + $0x3a8] sm:$0xff]
        %v862 = vld [vmem:[%s404 + $0x3b0] sm:$0xff]
        %v863 = vld [vmem:[%s404 + $0x3b8] sm:$0xff]
        %v864 = vld [vmem:[%s404 + $0x3c0] sm:$0xff]
        %v865 = vld [vmem:[%s404 + $0x3c8] sm:$0xff]
        %v866 = vld [vmem:[%s404 + $0x3d0] sm:$0xff]
        %v867 = vld [vmem:[%s404 + $0x3d8] sm:$0xff]
        %v868 = vld [vmem:[%s404 + $0x3e0] sm:$0xff]
        %v869 = vld [vmem:[%s404 + $0x3e8] sm:$0xff]
        %v870 = vld [vmem:[%s404 + $0x3f0] sm:$0xff]
        %v871 = vld [vmem:[%s404 + $0x3f8] sm:$0xff]
        %v1000 = vunpack.c.l.b16 %v616
        %v1001 = vunpack.c.h.b16 %v616
        %v1002 = vunpack.c.l.b16 %v617
        %v1003 = vunpack.c.h.b16 %v617
        %v1004 = vunpack.c.l.b16 %v618
        %v1005 = vunpack.c.h.b16 %v618
        %v1006 = vunpack.c.l.b16 %v619
        %v1007 = vunpack.c.h.b16 %v619
        %v1008 = vunpack.c.l.b16 %v620
        %v1009 = vunpack.c.h.b16 %v620
        %v1010 = vunpack.c.l.b16 %v621
        %v1011 = vunpack.c.h.b16 %v621
        %v1012 = vunpack.c.l.b16 %v622
        %v1013 = vunpack.c.h.b16 %v622
        %v1014 = vunpack.c.l.b16 %v623
        %v1015 = vunpack.c.h.b16 %v623
        %v1016 = vunpack.c.l.b16 %v624
        %v1017 = vunpack.c.h.b16 %v624
        %v1018 = vunpack.c.l.b16 %v625
        %v1019 = vunpack.c.h.b16 %v625
        %v1020 = vunpack.c.l.b16 %v626
        %v1021 = vunpack.c.h.b16 %v626
        %v1022 = vunpack.c.l.b16 %v627
        %v1023 = vunpack.c.h.b16 %v627
        %v1024 = vunpack.c.l.b16 %v628
        %v1025 = vunpack.c.h.b16 %v628
        %v1026 = vunpack.c.l.b16 %v629
        %v1027 = vunpack.c.h.b16 %v629
        %v1028 = vunpack.c.l.b16 %v630
        %v1029 = vunpack.c.h.b16 %v630
        %v1030 = vunpack.c.l.b16 %v631
        %v1031 = vunpack.c.h.b16 %v631
        %v1032 = vunpack.c.l.b16 %v632
        %v1033 = vunpack.c.h.b16 %v632
        %v1034 = vunpack.c.l.b16 %v633
        %v1035 = vunpack.c.h.b16 %v633
        %v1036 = vunpack.c.l.b16 %v634
        %v1037 = vunpack.c.h.b16 %v634
        %v1038 = vunpack.c.l.b16 %v635
        %v1039 = vunpack.c.h.b16 %v635
        %v1040 = vunpack.c.l.b16 %v636
        %v1041 = vunpack.c.h.b16 %v636
        %v1042 = vunpack.c.l.b16 %v637
        %v1043 = vunpack.c.h.b16 %v637
        %v1044 = vunpack.c.l.b16 %v638
        %v1045 = vunpack.c.h.b16 %v638
        %v1046 = vunpack.c.l.b16 %v639
        %v1047 = vunpack.c.h.b16 %v639
        %v1048 = vunpack.c.l.b16 %v640
        %v1049 = vunpack.c.h.b16 %v640
        %v1050 = vunpack.c.l.b16 %v641
        %v1051 = vunpack.c.h.b16 %v641
        %v1052 = vunpack.c.l.b16 %v642
        %v1053 = vunpack.c.h.b16 %v642
        %v1054 = vunpack.c.l.b16 %v643
        %v1055 = vunpack.c.h.b16 %v643
        %v1056 = vunpack.c.l.b16 %v644
        %v1057 = vunpack.c.h.b16 %v644
        %v1058 = vunpack.c.l.b16 %v645
        %v1059 = vunpack.c.h.b16 %v645
        %v1060 = vunpack.c.l.b16 %v646
        %v1061 = vunpack.c.h.b16 %v646
        %v1062 = vunpack.c.l.b16 %v647
        %v1063 = vunpack.c.h.b16 %v647
        %v1064 = vunpack.c.l.b16 %v648
        %v1065 = vunpack.c.h.b16 %v648
        %v1066 = vunpack.c.l.b16 %v649
        %v1067 = vunpack.c.h.b16 %v649
        %v1068 = vunpack.c.l.b16 %v650
        %v1069 = vunpack.c.h.b16 %v650
        %v1070 = vunpack.c.l.b16 %v651
        %v1071 = vunpack.c.h.b16 %v651
        %v1072 = vunpack.c.l.b16 %v652
        %v1073 = vunpack.c.h.b16 %v652
        %v1074 = vunpack.c.l.b16 %v653
        %v1075 = vunpack.c.h.b16 %v653
        %v1076 = vunpack.c.l.b16 %v654
        %v1077 = vunpack.c.h.b16 %v654
        %v1078 = vunpack.c.l.b16 %v655
        %v1079 = vunpack.c.h.b16 %v655
        %v1080 = vunpack.c.l.b16 %v656
        %v1081 = vunpack.c.h.b16 %v656
        %v1082 = vunpack.c.l.b16 %v657
        %v1083 = vunpack.c.h.b16 %v657
        %v1084 = vunpack.c.l.b16 %v658
        %v1085 = vunpack.c.h.b16 %v658
        %v1086 = vunpack.c.l.b16 %v659
        %v1087 = vunpack.c.h.b16 %v659
        %v1088 = vunpack.c.l.b16 %v660
        %v1089 = vunpack.c.h.b16 %v660
        %v1090 = vunpack.c.l.b16 %v661
        %v1091 = vunpack.c.h.b16 %v661
        %v1092 = vunpack.c.l.b16 %v662
        %v1093 = vunpack.c.h.b16 %v662
        %v1094 = vunpack.c.l.b16 %v663
        %v1095 = vunpack.c.h.b16 %v663
        %v1096 = vunpack.c.l.b16 %v664
        %v1097 = vunpack.c.h.b16 %v664
        %v1098 = vunpack.c.l.b16 %v665
        %v1099 = vunpack.c.h.b16 %v665
        %v1100 = vunpack.c.l.b16 %v666
        %v1101 = vunpack.c.h.b16 %v666
        %v1102 = vunpack.c.l.b16 %v667
        %v1103 = vunpack.c.h.b16 %v667
        %v1104 = vunpack.c.l.b16 %v668
        %v1105 = vunpack.c.h.b16 %v668
        %v1106 = vunpack.c.l.b16 %v669
        %v1107 = vunpack.c.h.b16 %v669
        %v1108 = vunpack.c.l.b16 %v670
        %v1109 = vunpack.c.h.b16 %v670
        %v1110 = vunpack.c.l.b16 %v671
        %v1111 = vunpack.c.h.b16 %v671
        %v1112 = vunpack.c.l.b16 %v672
        %v1113 = vunpack.c.h.b16 %v672
        %v1114 = vunpack.c.l.b16 %v673
        %v1115 = vunpack.c.h.b16 %v673
        %v1116 = vunpack.c.l.b16 %v674
        %v1117 = vunpack.c.h.b16 %v674
        %v1118 = vunpack.c.l.b16 %v675
        %v1119 = vunpack.c.h.b16 %v675
        %v1120 = vunpack.c.l.b16 %v676
        %v1121 = vunpack.c.h.b16 %v676
        %v1122 = vunpack.c.l.b16 %v677
        %v1123 = vunpack.c.h.b16 %v677
        %v1124 = vunpack.c.l.b16 %v678
        %v1125 = vunpack.c.h.b16 %v678
        %v1126 = vunpack.c.l.b16 %v679
        %v1127 = vunpack.c.h.b16 %v679
        %v1128 = vunpack.c.l.b16 %v680
        %v1129 = vunpack.c.h.b16 %v680
        %v1130 = vunpack.c.l.b16 %v681
        %v1131 = vunpack.c.h.b16 %v681
        %v1132 = vunpack.c.l.b16 %v682
        %v1133 = vunpack.c.h.b16 %v682
        %v1134 = vunpack.c.l.b16 %v683
        %v1135 = vunpack.c.h.b16 %v683
        %v1136 = vunpack.c.l.b16 %v684
        %v1137 = vunpack.c.h.b16 %v684
        %v1138 = vunpack.c.l.b16 %v685
        %v1139 = vunpack.c.h.b16 %v685
        %v1140 = vunpack.c.l.b16 %v686
        %v1141 = vunpack.c.h.b16 %v686
        %v1142 = vunpack.c.l.b16 %v687
        %v1143 = vunpack.c.h.b16 %v687
        %v1144 = vunpack.c.l.b16 %v688
        %v1145 = vunpack.c.h.b16 %v688
        %v1146 = vunpack.c.l.b16 %v689
        %v1147 = vunpack.c.h.b16 %v689
        %v1148 = vunpack.c.l.b16 %v690
        %v1149 = vunpack.c.h.b16 %v690
        %v1150 = vunpack.c.l.b16 %v691
        %v1151 = vunpack.c.h.b16 %v691
        %v1152 = vunpack.c.l.b16 %v692
        %v1153 = vunpack.c.h.b16 %v692
        %v1154 = vunpack.c.l.b16 %v693
        %v1155 = vunpack.c.h.b16 %v693
        %v1156 = vunpack.c.l.b16 %v694
        %v1157 = vunpack.c.h.b16 %v694
        %v1158 = vunpack.c.l.b16 %v695
        %v1159 = vunpack.c.h.b16 %v695
        %v1160 = vunpack.c.l.b16 %v696
        %v1161 = vunpack.c.h.b16 %v696
        %v1162 = vunpack.c.l.b16 %v697
        %v1163 = vunpack.c.h.b16 %v697
        %v1164 = vunpack.c.l.b16 %v698
        %v1165 = vunpack.c.h.b16 %v698
        %v1166 = vunpack.c.l.b16 %v699
        %v1167 = vunpack.c.h.b16 %v699
        %v1168 = vunpack.c.l.b16 %v700
        %v1169 = vunpack.c.h.b16 %v700
        %v1170 = vunpack.c.l.b16 %v701
        %v1171 = vunpack.c.h.b16 %v701
        %v1172 = vunpack.c.l.b16 %v702
        %v1173 = vunpack.c.h.b16 %v702
        %v1174 = vunpack.c.l.b16 %v703
        %v1175 = vunpack.c.h.b16 %v703
        %v1176 = vunpack.c.l.b16 %v704
        %v1177 = vunpack.c.h.b16 %v704
        %v1178 = vunpack.c.l.b16 %v705
        %v1179 = vunpack.c.h.b16 %v705
        %v1180 = vunpack.c.l.b16 %v706
        %v1181 = vunpack.c.h.b16 %v706
        %v1182 = vunpack.c.l.b16 %v707
        %v1183 = vunpack.c.h.b16 %v707
        %v1184 = vunpack.c.l.b16 %v708
        %v1185 = vunpack.c.h.b16 %v708
        %v1186 = vunpack.c.l.b16 %v709
        %v1187 = vunpack.c.h.b16 %v709
        %v1188 = vunpack.c.l.b16 %v710
        %v1189 = vunpack.c.h.b16 %v710
        %v1190 = vunpack.c.l.b16 %v711
        %v1191 = vunpack.c.h.b16 %v711
        %v1192 = vunpack.c.l.b16 %v712
        %v1193 = vunpack.c.h.b16 %v712
        %v1194 = vunpack.c.l.b16 %v713
        %v1195 = vunpack.c.h.b16 %v713
        %v1196 = vunpack.c.l.b16 %v714
        %v1197 = vunpack.c.h.b16 %v714
        %v1198 = vunpack.c.l.b16 %v715
        %v1199 = vunpack.c.h.b16 %v715
        %v1200 = vunpack.c.l.b16 %v716
        %v1201 = vunpack.c.h.b16 %v716
        %v1202 = vunpack.c.l.b16 %v717
        %v1203 = vunpack.c.h.b16 %v717
        %v1204 = vunpack.c.l.b16 %v718
        %v1205 = vunpack.c.h.b16 %v718
        %v1206 = vunpack.c.l.b16 %v719
        %v1207 = vunpack.c.h.b16 %v719
        %v1208 = vunpack.c.l.b16 %v720
        %v1209 = vunpack.c.h.b16 %v720
        %v1210 = vunpack.c.l.b16 %v721
        %v1211 = vunpack.c.h.b16 %v721
        %v1212 = vunpack.c.l.b16 %v722
        %v1213 = vunpack.c.h.b16 %v722
        %v1214 = vunpack.c.l.b16 %v723
        %v1215 = vunpack.c.h.b16 %v723
        %v1216 = vunpack.c.l.b16 %v724
        %v1217 = vunpack.c.h.b16 %v724
        %v1218 = vunpack.c.l.b16 %v725
        %v1219 = vunpack.c.h.b16 %v725
        %v1220 = vunpack.c.l.b16 %v726
        %v1221 = vunpack.c.h.b16 %v726
        %v1222 = vunpack.c.l.b16 %v727
        %v1223 = vunpack.c.h.b16 %v727
        %v1224 = vunpack.c.l.b16 %v728
        %v1225 = vunpack.c.h.b16 %v728
        %v1226 = vunpack.c.l.b16 %v729
        %v1227 = vunpack.c.h.b16 %v729
        %v1228 = vunpack.c.l.b16 %v730
        %v1229 = vunpack.c.h.b16 %v730
        %v1230 = vunpack.c.l.b16 %v731
        %v1231 = vunpack.c.h.b16 %v731
        %v1232 = vunpack.c.l.b16 %v732
        %v1233 = vunpack.c.h.b16 %v732
        %v1234 = vunpack.c.l.b16 %v733
        %v1235 = vunpack.c.h.b16 %v733
        %v1236 = vunpack.c.l.b16 %v734
        %v1237 = vunpack.c.h.b16 %v734
        %v1238 = vunpack.c.l.b16 %v735
        %v1239 = vunpack.c.h.b16 %v735
        %v1240 = vunpack.c.l.b16 %v736
        %v1241 = vunpack.c.h.b16 %v736
        %v1242 = vunpack.c.l.b16 %v737
        %v1243 = vunpack.c.h.b16 %v737
        %v1244 = vunpack.c.l.b16 %v738
        %v1245 = vunpack.c.h.b16 %v738
        %v1246 = vunpack.c.l.b16 %v739
        %v1247 = vunpack.c.h.b16 %v739
        %v1248 = vunpack.c.l.b16 %v740
        %v1249 = vunpack.c.h.b16 %v740
        %v1250 = vunpack.c.l.b16 %v741
        %v1251 = vunpack.c.h.b16 %v741
        %v1252 = vunpack.c.l.b16 %v742
        %v1253 = vunpack.c.h.b16 %v742
        %v1254 = vunpack.c.l.b16 %v743
        %v1255 = vunpack.c.h.b16 %v743
        %v1256 = vpack.c.b16 %v1008, %v1000
        %v1257 = vpack.c.b16 %v1009, %v1001
        %v1258 = vpack.c.b16 %v1010, %v1002
        %v1259 = vpack.c.b16 %v1011, %v1003
        %v1260 = vpack.c.b16 %v1012, %v1004
        %v1261 = vpack.c.b16 %v1013, %v1005
        %v1262 = vpack.c.b16 %v1014, %v1006
        %v1263 = vpack.c.b16 %v1015, %v1007
        %v1264 = vpack.c.b16 %v1024, %v1016
        %v1265 = vpack.c.b16 %v1025, %v1017
        %v1266 = vpack.c.b16 %v1026, %v1018
        %v1267 = vpack.c.b16 %v1027, %v1019
        %v1268 = vpack.c.b16 %v1028, %v1020
        %v1269 = vpack.c.b16 %v1029, %v1021
        %v1270 = vpack.c.b16 %v1030, %v1022
        %v1271 = vpack.c.b16 %v1031, %v1023
        %v1272 = vpack.c.b16 %v1040, %v1032
        %v1273 = vpack.c.b16 %v1041, %v1033
        %v1274 = vpack.c.b16 %v1042, %v1034
        %v1275 = vpack.c.b16 %v1043, %v1035
        %v1276 = vpack.c.b16 %v1044, %v1036
        %v1277 = vpack.c.b16 %v1045, %v1037
        %v1278 = vpack.c.b16 %v1046, %v1038
        %v1279 = vpack.c.b16 %v1047, %v1039
        %v1280 = vpack.c.b16 %v1056, %v1048
        %v1281 = vpack.c.b16 %v1057, %v1049
        %v1282 = vpack.c.b16 %v1058, %v1050
        %v1283 = vpack.c.b16 %v1059, %v1051
        %v1284 = vpack.c.b16 %v1060, %v1052
        %v1285 = vpack.c.b16 %v1061, %v1053
        %v1286 = vpack.c.b16 %v1062, %v1054
        %v1287 = vpack.c.b16 %v1063, %v1055
        %v1288 = vpack.c.b16 %v1072, %v1064
        %v1289 = vpack.c.b16 %v1073, %v1065
        %v1290 = vpack.c.b16 %v1074, %v1066
        %v1291 = vpack.c.b16 %v1075, %v1067
        %v1292 = vpack.c.b16 %v1076, %v1068
        %v1293 = vpack.c.b16 %v1077, %v1069
        %v1294 = vpack.c.b16 %v1078, %v1070
        %v1295 = vpack.c.b16 %v1079, %v1071
        %v1296 = vpack.c.b16 %v1088, %v1080
        %v1297 = vpack.c.b16 %v1089, %v1081
        %v1298 = vpack.c.b16 %v1090, %v1082
        %v1299 = vpack.c.b16 %v1091, %v1083
        %v1300 = vpack.c.b16 %v1092, %v1084
        %v1301 = vpack.c.b16 %v1093, %v1085
        %v1302 = vpack.c.b16 %v1094, %v1086
        %v1303 = vpack.c.b16 %v1095, %v1087
        %v1304 = vpack.c.b16 %v1104, %v1096
        %v1305 = vpack.c.b16 %v1105, %v1097
        %v1306 = vpack.c.b16 %v1106, %v1098
        %v1307 = vpack.c.b16 %v1107, %v1099
        %v1308 = vpack.c.b16 %v1108, %v1100
        %v1309 = vpack.c.b16 %v1109, %v1101
        %v1310 = vpack.c.b16 %v1110, %v1102
        %v1311 = vpack.c.b16 %v1111, %v1103
        %v1312 = vpack.c.b16 %v1120, %v1112
        %v1313 = vpack.c.b16 %v1121, %v1113
        %v1314 = vpack.c.b16 %v1122, %v1114
        %v1315 = vpack.c.b16 %v1123, %v1115
        %v1316 = vpack.c.b16 %v1124, %v1116
        %v1317 = vpack.c.b16 %v1125, %v1117
        %v1318 = vpack.c.b16 %v1126, %v1118
        %v1319 = vpack.c.b16 %v1127, %v1119
        %v1320 = vpack.c.b16 %v1136, %v1128
        %v1321 = vpack.c.b16 %v1137, %v1129
        %v1322 = vpack.c.b16 %v1138, %v1130
        %v1323 = vpack.c.b16 %v1139, %v1131
        %v1324 = vpack.c.b16 %v1140, %v1132
        %v1325 = vpack.c.b16 %v1141, %v1133
        %v1326 = vpack.c.b16 %v1142, %v1134
        %v1327 = vpack.c.b16 %v1143, %v1135
        %v1328 = vpack.c.b16 %v1152, %v1144
        %v1329 = vpack.c.b16 %v1153, %v1145
        %v1330 = vpack.c.b16 %v1154, %v1146
        %v1331 = vpack.c.b16 %v1155, %v1147
        %v1332 = vpack.c.b16 %v1156, %v1148
        %v1333 = vpack.c.b16 %v1157, %v1149
        %v1334 = vpack.c.b16 %v1158, %v1150
        %v1335 = vpack.c.b16 %v1159, %v1151
        %v1336 = vpack.c.b16 %v1168, %v1160
        %v1337 = vpack.c.b16 %v1169, %v1161
        %v1338 = vpack.c.b16 %v1170, %v1162
        %v1339 = vpack.c.b16 %v1171, %v1163
        %v1340 = vpack.c.b16 %v1172, %v1164
        %v1341 = vpack.c.b16 %v1173, %v1165
        %v1342 = vpack.c.b16 %v1174, %v1166
        %v1343 = vpack.c.b16 %v1175, %v1167
        %v1344 = vpack.c.b16 %v1184, %v1176
        %v1345 = vpack.c.b16 %v1185, %v1177
        %v1346 = vpack.c.b16 %v1186, %v1178
        %v1347 = vpack.c.b16 %v1187, %v1179
        %v1348 = vpack.c.b16 %v1188, %v1180
        %v1349 = vpack.c.b16 %v1189, %v1181
        %v1350 = vpack.c.b16 %v1190, %v1182
        %v1351 = vpack.c.b16 %v1191, %v1183
        %v1352 = vpack.c.b16 %v1200, %v1192
        %v1353 = vpack.c.b16 %v1201, %v1193
        %v1354 = vpack.c.b16 %v1202, %v1194
        %v1355 = vpack.c.b16 %v1203, %v1195
        %v1356 = vpack.c.b16 %v1204, %v1196
        %v1357 = vpack.c.b16 %v1205, %v1197
        %v1358 = vpack.c.b16 %v1206, %v1198
        %v1359 = vpack.c.b16 %v1207, %v1199
        %v1360 = vpack.c.b16 %v1216, %v1208
        %v1361 = vpack.c.b16 %v1217, %v1209
        %v1362 = vpack.c.b16 %v1218, %v1210
        %v1363 = vpack.c.b16 %v1219, %v1211
        %v1364 = vpack.c.b16 %v1220, %v1212
        %v1365 = vpack.c.b16 %v1221, %v1213
        %v1366 = vpack.c.b16 %v1222, %v1214
        %v1367 = vpack.c.b16 %v1223, %v1215
        %v1368 = vpack.c.b16 %v1232, %v1224
        %v1369 = vpack.c.b16 %v1233, %v1225
        %v1370 = vpack.c.b16 %v1234, %v1226
        %v1371 = vpack.c.b16 %v1235, %v1227
        %v1372 = vpack.c.b16 %v1236, %v1228
        %v1373 = vpack.c.b16 %v1237, %v1229
        %v1374 = vpack.c.b16 %v1238, %v1230
        %v1375 = vpack.c.b16 %v1239, %v1231
        %v1376 = vpack.c.b16 %v1248, %v1240
        %v1377 = vpack.c.b16 %v1249, %v1241
        %v1378 = vpack.c.b16 %v1250, %v1242
        %v1379 = vpack.c.b16 %v1251, %v1243
        %v1380 = vpack.c.b16 %v1252, %v1244
        %v1381 = vpack.c.b16 %v1253, %v1245
        %v1382 = vpack.c.b16 %v1254, %v1246
        %v1383 = vpack.c.b16 %v1255, %v1247
        %v1640 = vunpack.c.l.b16 %v744
        %v1641 = vunpack.c.h.b16 %v744
        %v1642 = vunpack.c.l.b16 %v745
        %v1643 = vunpack.c.h.b16 %v745
        %v1644 = vunpack.c.l.b16 %v746
        %v1645 = vunpack.c.h.b16 %v746
        %v1646 = vunpack.c.l.b16 %v747
        %v1647 = vunpack.c.h.b16 %v747
        %v1648 = vunpack.c.l.b16 %v748
        %v1649 = vunpack.c.h.b16 %v748
        %v1650 = vunpack.c.l.b16 %v749
        %v1651 = vunpack.c.h.b16 %v749
        %v1652 = vunpack.c.l.b16 %v750
        %v1653 = vunpack.c.h.b16 %v750
        %v1654 = vunpack.c.l.b16 %v751
        %v1655 = vunpack.c.h.b16 %v751
        %v1656 = vunpack.c.l.b16 %v752
        %v1657 = vunpack.c.h.b16 %v752
        %v1658 = vunpack.c.l.b16 %v753
        %v1659 = vunpack.c.h.b16 %v753
        %v1660 = vunpack.c.l.b16 %v754
        %v1661 = vunpack.c.h.b16 %v754
        %v1662 = vunpack.c.l.b16 %v755
        %v1663 = vunpack.c.h.b16 %v755
        %v1664 = vunpack.c.l.b16 %v756
        %v1665 = vunpack.c.h.b16 %v756
        %v1666 = vunpack.c.l.b16 %v757
        %v1667 = vunpack.c.h.b16 %v757
        %v1668 = vunpack.c.l.b16 %v758
        %v1669 = vunpack.c.h.b16 %v758
        %v1670 = vunpack.c.l.b16 %v759
        %v1671 = vunpack.c.h.b16 %v759
        %v1672 = vunpack.c.l.b16 %v760
        %v1673 = vunpack.c.h.b16 %v760
        %v1674 = vunpack.c.l.b16 %v761
        %v1675 = vunpack.c.h.b16 %v761
        %v1676 = vunpack.c.l.b16 %v762
        %v1677 = vunpack.c.h.b16 %v762
        %v1678 = vunpack.c.l.b16 %v763
        %v1679 = vunpack.c.h.b16 %v763
        %v1680 = vunpack.c.l.b16 %v764
        %v1681 = vunpack.c.h.b16 %v764
        %v1682 = vunpack.c.l.b16 %v765
        %v1683 = vunpack.c.h.b16 %v765
        %v1684 = vunpack.c.l.b16 %v766
        %v1685 = vunpack.c.h.b16 %v766
        %v1686 = vunpack.c.l.b16 %v767
        %v1687 = vunpack.c.h.b16 %v767
        %v1688 = vunpack.c.l.b16 %v768
        %v1689 = vunpack.c.h.b16 %v768
        %v1690 = vunpack.c.l.b16 %v769
        %v1691 = vunpack.c.h.b16 %v769
        %v1692 = vunpack.c.l.b16 %v770
        %v1693 = vunpack.c.h.b16 %v770
        %v1694 = vunpack.c.l.b16 %v771
        %v1695 = vunpack.c.h.b16 %v771
        %v1696 = vunpack.c.l.b16 %v772
        %v1697 = vunpack.c.h.b16 %v772
        %v1698 = vunpack.c.l.b16 %v773
        %v1699 = vunpack.c.h.b16 %v773
        %v1700 = vunpack.c.l.b16 %v774
        %v1701 = vunpack.c.h.b16 %v774
        %v1702 = vunpack.c.l.b16 %v775
        %v1703 = vunpack.c.h.b16 %v775
        %v1704 = vunpack.c.l.b16 %v776
        %v1705 = vunpack.c.h.b16 %v776
        %v1706 = vunpack.c.l.b16 %v777
        %v1707 = vunpack.c.h.b16 %v777
        %v1708 = vunpack.c.l.b16 %v778
        %v1709 = vunpack.c.h.b16 %v778
        %v1710 = vunpack.c.l.b16 %v779
        %v1711 = vunpack.c.h.b16 %v779
        %v1712 = vunpack.c.l.b16 %v780
        %v1713 = vunpack.c.h.b16 %v780
        %v1714 = vunpack.c.l.b16 %v781
        %v1715 = vunpack.c.h.b16 %v781
        %v1716 = vunpack.c.l.b16 %v782
        %v1717 = vunpack.c.h.b16 %v782
        %v1718 = vunpack.c.l.b16 %v783
        %v1719 = vunpack.c.h.b16 %v783
        %v1720 = vunpack.c.l.b16 %v784
        %v1721 = vunpack.c.h.b16 %v784
        %v1722 = vunpack.c.l.b16 %v785
        %v1723 = vunpack.c.h.b16 %v785
        %v1724 = vunpack.c.l.b16 %v786
        %v1725 = vunpack.c.h.b16 %v786
        %v1726 = vunpack.c.l.b16 %v787
        %v1727 = vunpack.c.h.b16 %v787
        %v1728 = vunpack.c.l.b16 %v788
        %v1729 = vunpack.c.h.b16 %v788
        %v1730 = vunpack.c.l.b16 %v789
        %v1731 = vunpack.c.h.b16 %v789
        %v1732 = vunpack.c.l.b16 %v790
        %v1733 = vunpack.c.h.b16 %v790
        %v1734 = vunpack.c.l.b16 %v791
        %v1735 = vunpack.c.h.b16 %v791
        %v1736 = vunpack.c.l.b16 %v792
        %v1737 = vunpack.c.h.b16 %v792
        %v1738 = vunpack.c.l.b16 %v793
        %v1739 = vunpack.c.h.b16 %v793
        %v1740 = vunpack.c.l.b16 %v794
        %v1741 = vunpack.c.h.b16 %v794
        %v1742 = vunpack.c.l.b16 %v795
        %v1743 = vunpack.c.h.b16 %v795
        %v1744 = vunpack.c.l.b16 %v796
        %v1745 = vunpack.c.h.b16 %v796
        %v1746 = vunpack.c.l.b16 %v797
        %v1747 = vunpack.c.h.b16 %v797
        %v1748 = vunpack.c.l.b16 %v798
        %v1749 = vunpack.c.h.b16 %v798
        %v1750 = vunpack.c.l.b16 %v799
        %v1751 = vunpack.c.h.b16 %v799
        %v1752 = vunpack.c.l.b16 %v800
        %v1753 = vunpack.c.h.b16 %v800
        %v1754 = vunpack.c.l.b16 %v801
        %v1755 = vunpack.c.h.b16 %v801
        %v1756 = vunpack.c.l.b16 %v802
        %v1757 = vunpack.c.h.b16 %v802
        %v1758 = vunpack.c.l.b16 %v803
        %v1759 = vunpack.c.h.b16 %v803
        %v1760 = vunpack.c.l.b16 %v804
        %v1761 = vunpack.c.h.b16 %v804
        %v1762 = vunpack.c.l.b16 %v805
        %v1763 = vunpack.c.h.b16 %v805
        %v1764 = vunpack.c.l.b16 %v806
        %v1765 = vunpack.c.h.b16 %v806
        %v1766 = vunpack.c.l.b16 %v807
        %v1767 = vunpack.c.h.b16 %v807
        %v1768 = vunpack.c.l.b16 %v808
        %v1769 = vunpack.c.h.b16 %v808
        %v1770 = vunpack.c.l.b16 %v809
        %v1771 = vunpack.c.h.b16 %v809
        %v1772 = vunpack.c.l.b16 %v810
        %v1773 = vunpack.c.h.b16 %v810
        %v1774 = vunpack.c.l.b16 %v811
        %v1775 = vunpack.c.h.b16 %v811
        %v1776 = vunpack.c.l.b16 %v812
        %v1777 = vunpack.c.h.b16 %v812
        %v1778 = vunpack.c.l.b16 %v813
        %v1779 = vunpack.c.h.b16 %v813
        %v1780 = vunpack.c.l.b16 %v814
        %v1781 = vunpack.c.h.b16 %v814
        %v1782 = vunpack.c.l.b16 %v815
        %v1783 = vunpack.c.h.b16 %v815
        %v1784 = vunpack.c.l.b16 %v816
        %v1785 = vunpack.c.h.b16 %v816
        %v1786 = vunpack.c.l.b16 %v817
        %v1787 = vunpack.c.h.b16 %v817
        %v1788 = vunpack.c.l.b16 %v818
        %v1789 = vunpack.c.h.b16 %v818
        %v1790 = vunpack.c.l.b16 %v819
        %v1791 = vunpack.c.h.b16 %v819
        %v1792 = vunpack.c.l.b16 %v820
        %v1793 = vunpack.c.h.b16 %v820
        %v1794 = vunpack.c.l.b16 %v821
        %v1795 = vunpack.c.h.b16 %v821
        %v1796 = vunpack.c.l.b16 %v822
        %v1797 = vunpack.c.h.b16 %v822
        %v1798 = vunpack.c.l.b16 %v823
        %v1799 = vunpack.c.h.b16 %v823
        %v1800 = vunpack.c.l.b16 %v824
        %v1801 = vunpack.c.h.b16 %v824
        %v1802 = vunpack.c.l.b16 %v825
        %v1803 = vunpack.c.h.b16 %v825
        %v1804 = vunpack.c.l.b16 %v826
        %v1805 = vunpack.c.h.b16 %v826
        %v1806 = vunpack.c.l.b16 %v827
        %v1807 = vunpack.c.h.b16 %v827
        %v1808 = vunpack.c.l.b16 %v828
        %v1809 = vunpack.c.h.b16 %v828
        %v1810 = vunpack.c.l.b16 %v829
        %v1811 = vunpack.c.h.b16 %v829
        %v1812 = vunpack.c.l.b16 %v830
        %v1813 = vunpack.c.h.b16 %v830
        %v1814 = vunpack.c.l.b16 %v831
        %v1815 = vunpack.c.h.b16 %v831
        %v1816 = vunpack.c.l.b16 %v832
        %v1817 = vunpack.c.h.b16 %v832
        %v1818 = vunpack.c.l.b16 %v833
        %v1819 = vunpack.c.h.b16 %v833
        %v1820 = vunpack.c.l.b16 %v834
        %v1821 = vunpack.c.h.b16 %v834
        %v1822 = vunpack.c.l.b16 %v835
        %v1823 = vunpack.c.h.b16 %v835
        %v1824 = vunpack.c.l.b16 %v836
        %v1825 = vunpack.c.h.b16 %v836
        %v1826 = vunpack.c.l.b16 %v837
        %v1827 = vunpack.c.h.b16 %v837
        %v1828 = vunpack.c.l.b16 %v838
        %v1829 = vunpack.c.h.b16 %v838
        %v1830 = vunpack.c.l.b16 %v839
        %v1831 = vunpack.c.h.b16 %v839
        %v1832 = vunpack.c.l.b16 %v840
        %v1833 = vunpack.c.h.b16 %v840
        %v1834 = vunpack.c.l.b16 %v841
        %v1835 = vunpack.c.h.b16 %v841
        %v1836 = vunpack.c.l.b16 %v842
        %v1837 = vunpack.c.h.b16 %v842
        %v1838 = vunpack.c.l.b16 %v843
        %v1839 = vunpack.c.h.b16 %v843
        %v1840 = vunpack.c.l.b16 %v844
        %v1841 = vunpack.c.h.b16 %v844
        %v1842 = vunpack.c.l.b16 %v845
        %v1843 = vunpack.c.h.b16 %v845
        %v1844 = vunpack.c.l.b16 %v846
        %v1845 = vunpack.c.h.b16 %v846
        %v1846 = vunpack.c.l.b16 %v847
        %v1847 = vunpack.c.h.b16 %v847
        %v1848 = vunpack.c.l.b16 %v848
        %v1849 = vunpack.c.h.b16 %v848
        %v1850 = vunpack.c.l.b16 %v849
        %v1851 = vunpack.c.h.b16 %v849
        %v1852 = vunpack.c.l.b16 %v850
        %v1853 = vunpack.c.h.b16 %v850
        %v1854 = vunpack.c.l.b16 %v851
        %v1855 = vunpack.c.h.b16 %v851
        %v1856 = vunpack.c.l.b16 %v852
        %v1857 = vunpack.c.h.b16 %v852
        %v1858 = vunpack.c.l.b16 %v853
        %v1859 = vunpack.c.h.b16 %v853
        %v1860 = vunpack.c.l.b16 %v854
        %v1861 = vunpack.c.h.b16 %v854
        %v1862 = vunpack.c.l.b16 %v855
        %v1863 = vunpack.c.h.b16 %v855
        %v1864 = vunpack.c.l.b16 %v856
        %v1865 = vunpack.c.h.b16 %v856
        %v1866 = vunpack.c.l.b16 %v857
        %v1867 = vunpack.c.h.b16 %v857
        %v1868 = vunpack.c.l.b16 %v858
        %v1869 = vunpack.c.h.b16 %v858
        %v1870 = vunpack.c.l.b16 %v859
        %v1871 = vunpack.c.h.b16 %v859
        %v1872 = vunpack.c.l.b16 %v860
        %v1873 = vunpack.c.h.b16 %v860
        %v1874 = vunpack.c.l.b16 %v861
        %v1875 = vunpack.c.h.b16 %v861
        %v1876 = vunpack.c.l.b16 %v862
        %v1877 = vunpack.c.h.b16 %v862
        %v1878 = vunpack.c.l.b16 %v863
        %v1879 = vunpack.c.h.b16 %v863
        %v1880 = vunpack.c.l.b16 %v864
        %v1881 = vunpack.c.h.b16 %v864
        %v1882 = vunpack.c.l.b16 %v865
        %v1883 = vunpack.c.h.b16 %v865
        %v1884 = vunpack.c.l.b16 %v866
        %v1885 = vunpack.c.h.b16 %v866
        %v1886 = vunpack.c.l.b16 %v867
        %v1887 = vunpack.c.h.b16 %v867
        %v1888 = vunpack.c.l.b16 %v868
        %v1889 = vunpack.c.h.b16 %v868
        %v1890 = vunpack.c.l.b16 %v869
        %v1891 = vunpack.c.h.b16 %v869
        %v1892 = vunpack.c.l.b16 %v870
        %v1893 = vunpack.c.h.b16 %v870
        %v1894 = vunpack.c.l.b16 %v871
        %v1895 = vunpack.c.h.b16 %v871
        %v1896 = vpack.c.b16 %v1642, %v1640
        %v1897 = vpack.c.b16 %v1643, %v1641
        %v1898 = vpack.c.b16 %v1646, %v1644
        %v1899 = vpack.c.b16 %v1647, %v1645
        %v1900 = vpack.c.b16 %v1650, %v1648
        %v1901 = vpack.c.b16 %v1651, %v1649
        %v1902 = vpack.c.b16 %v1654, %v1652
        %v1903 = vpack.c.b16 %v1655, %v1653
        %v1904 = vpack.c.b16 %v1658, %v1656
        %v1905 = vpack.c.b16 %v1659, %v1657
        %v1906 = vpack.c.b16 %v1662, %v1660
        %v1907 = vpack.c.b16 %v1663, %v1661
        %v1908 = vpack.c.b16 %v1666, %v1664
        %v1909 = vpack.c.b16 %v1667, %v1665
        %v1910 = vpack.c.b16 %v1670, %v1668
        %v1911 = vpack.c.b16 %v1671, %v1669
        %v1912 = vpack.c.b16 %v1674, %v1672
        %v1913 = vpack.c.b16 %v1675, %v1673
        %v1914 = vpack.c.b16 %v1678, %v1676
        %v1915 = vpack.c.b16 %v1679, %v1677
        %v1916 = vpack.c.b16 %v1682, %v1680
        %v1917 = vpack.c.b16 %v1683, %v1681
        %v1918 = vpack.c.b16 %v1686, %v1684
        %v1919 = vpack.c.b16 %v1687, %v1685
        %v1920 = vpack.c.b16 %v1690, %v1688
        %v1921 = vpack.c.b16 %v1691, %v1689
        %v1922 = vpack.c.b16 %v1694, %v1692
        %v1923 = vpack.c.b16 %v1695, %v1693
        %v1924 = vpack.c.b16 %v1698, %v1696
        %v1925 = vpack.c.b16 %v1699, %v1697
        %v1926 = vpack.c.b16 %v1702, %v1700
        %v1927 = vpack.c.b16 %v1703, %v1701
        %v1928 = vpack.c.b16 %v1706, %v1704
        %v1929 = vpack.c.b16 %v1707, %v1705
        %v1930 = vpack.c.b16 %v1710, %v1708
        %v1931 = vpack.c.b16 %v1711, %v1709
        %v1932 = vpack.c.b16 %v1714, %v1712
        %v1933 = vpack.c.b16 %v1715, %v1713
        %v1934 = vpack.c.b16 %v1718, %v1716
        %v1935 = vpack.c.b16 %v1719, %v1717
        %v1936 = vpack.c.b16 %v1722, %v1720
        %v1937 = vpack.c.b16 %v1723, %v1721
        %v1938 = vpack.c.b16 %v1726, %v1724
        %v1939 = vpack.c.b16 %v1727, %v1725
        %v1940 = vpack.c.b16 %v1730, %v1728
        %v1941 = vpack.c.b16 %v1731, %v1729
        %v1942 = vpack.c.b16 %v1734, %v1732
        %v1943 = vpack.c.b16 %v1735, %v1733
        %v1944 = vpack.c.b16 %v1738, %v1736
        %v1945 = vpack.c.b16 %v1739, %v1737
        %v1946 = vpack.c.b16 %v1742, %v1740
        %v1947 = vpack.c.b16 %v1743, %v1741
        %v1948 = vpack.c.b16 %v1746, %v1744
        %v1949 = vpack.c.b16 %v1747, %v1745
        %v1950 = vpack.c.b16 %v1750, %v1748
        %v1951 = vpack.c.b16 %v1751, %v1749
        %v1952 = vpack.c.b16 %v1754, %v1752
        %v1953 = vpack.c.b16 %v1755, %v1753
        %v1954 = vpack.c.b16 %v1758, %v1756
        %v1955 = vpack.c.b16 %v1759, %v1757
        %v1956 = vpack.c.b16 %v1762, %v1760
        %v1957 = vpack.c.b16 %v1763, %v1761
        %v1958 = vpack.c.b16 %v1766, %v1764
        %v1959 = vpack.c.b16 %v1767, %v1765
        %v1960 = vpack.c.b16 %v1770, %v1768
        %v1961 = vpack.c.b16 %v1771, %v1769
        %v1962 = vpack.c.b16 %v1774, %v1772
        %v1963 = vpack.c.b16 %v1775, %v1773
        %v1964 = vpack.c.b16 %v1778, %v1776
        %v1965 = vpack.c.b16 %v1779, %v1777
        %v1966 = vpack.c.b16 %v1782, %v1780
        %v1967 = vpack.c.b16 %v1783, %v1781
        %v1968 = vpack.c.b16 %v1786, %v1784
        %v1969 = vpack.c.b16 %v1787, %v1785
        %v1970 = vpack.c.b16 %v1790, %v1788
        %v1971 = vpack.c.b16 %v1791, %v1789
        %v1972 = vpack.c.b16 %v1794, %v1792
        %v1973 = vpack.c.b16 %v1795, %v1793
        %v1974 = vpack.c.b16 %v1798, %v1796
        %v1975 = vpack.c.b16 %v1799, %v1797
        %v1976 = vpack.c.b16 %v1802, %v1800
        %v1977 = vpack.c.b16 %v1803, %v1801
        %v1978 = vpack.c.b16 %v1806, %v1804
        %v1979 = vpack.c.b16 %v1807, %v1805
        %v1980 = vpack.c.b16 %v1810, %v1808
        %v1981 = vpack.c.b16 %v1811, %v1809
        %v1982 = vpack.c.b16 %v1814, %v1812
        %v1983 = vpack.c.b16 %v1815, %v1813
        %v1984 = vpack.c.b16 %v1818, %v1816
        %v1985 = vpack.c.b16 %v1819, %v1817
        %v1986 = vpack.c.b16 %v1822, %v1820
        %v1987 = vpack.c.b16 %v1823, %v1821
        %v1988 = vpack.c.b16 %v1826, %v1824
        %v1989 = vpack.c.b16 %v1827, %v1825
        %v1990 = vpack.c.b16 %v1830, %v1828
        %v1991 = vpack.c.b16 %v1831, %v1829
        %v1992 = vpack.c.b16 %v1834, %v1832
        %v1993 = vpack.c.b16 %v1835, %v1833
        %v1994 = vpack.c.b16 %v1838, %v1836
        %v1995 = vpack.c.b16 %v1839, %v1837
        %v1996 = vpack.c.b16 %v1842, %v1840
        %v1997 = vpack.c.b16 %v1843, %v1841
        %v1998 = vpack.c.b16 %v1846, %v1844
        %v1999 = vpack.c.b16 %v1847, %v1845
        %v2000 = vpack.c.b16 %v1850, %v1848
        %v2001 = vpack.c.b16 %v1851, %v1849
        %v2002 = vpack.c.b16 %v1854, %v1852
        %v2003 = vpack.c.b16 %v1855, %v1853
        %v2004 = vpack.c.b16 %v1858, %v1856
        %v2005 = vpack.c.b16 %v1859, %v1857
        %v2006 = vpack.c.b16 %v1862, %v1860
        %v2007 = vpack.c.b16 %v1863, %v1861
        %v2008 = vpack.c.b16 %v1866, %v1864
        %v2009 = vpack.c.b16 %v1867, %v1865
        %v2010 = vpack.c.b16 %v1870, %v1868
        %v2011 = vpack.c.b16 %v1871, %v1869
        %v2012 = vpack.c.b16 %v1874, %v1872
        %v2013 = vpack.c.b16 %v1875, %v1873
        %v2014 = vpack.c.b16 %v1878, %v1876
        %v2015 = vpack.c.b16 %v1879, %v1877
        %v2016 = vpack.c.b16 %v1882, %v1880
        %v2017 = vpack.c.b16 %v1883, %v1881
        %v2018 = vpack.c.b16 %v1886, %v1884
        %v2019 = vpack.c.b16 %v1887, %v1885
        %v2020 = vpack.c.b16 %v1890, %v1888
        %v2021 = vpack.c.b16 %v1891, %v1889
        %v2022 = vpack.c.b16 %v1894, %v1892
        %v2023 = vpack.c.b16 %v1895, %v1893
        %2152 = vmatpush.bf16.msra.mxu0 %v1910
        %2153 = vmatpush.bf16.msra.mxu0 %v1908
        %2154 = vmatpush.bf16.msra.mxu0 %v1906
        %2155 = vmatpush.bf16.msra.mxu0 %v1904
        %2156 = vmatpush.bf16.msra.mxu0 %v1902
        %2157 = vmatpush.bf16.msra.mxu0 %v1900
        %2158 = vmatpush.bf16.msra.mxu0 %v1898
        %2159 = vmatpush.bf16.msra.mxu0 %v1896
        %2160 = vmatmul.bf16.gmra.mxu0 %v1256
        %v2161 = vpop.f32.mrf.mxu0
        %v2162 = vadd.f32 0.0, %v2161
        %v2163 = vpop.f32.mrf.mxu0
        %v2164 = vadd.f32 0.0, %v2163
        %2165 = vmatmul.bf16.gmra.mxu0 %v1264
        %v2166 = vpop.f32.mrf.mxu0
        %v2167 = vadd.f32 0.0, %v2166
        %v2168 = vpop.f32.mrf.mxu0
        %v2169 = vadd.f32 0.0, %v2168
        %2170 = vmatmul.bf16.gmra.mxu0 %v1272
        %v2171 = vpop.f32.mrf.mxu0
        %v2172 = vadd.f32 0.0, %v2171
        %v2173 = vpop.f32.mrf.mxu0
        %v2174 = vadd.f32 0.0, %v2173
        %2175 = vmatmul.bf16.gmra.mxu0 %v1280
        %v2176 = vpop.f32.mrf.mxu0
        %v2177 = vadd.f32 0.0, %v2176
        %v2178 = vpop.f32.mrf.mxu0
        %v2179 = vadd.f32 0.0, %v2178
        %2180 = vmatmul.bf16.gmra.mxu0 %v1288
        %v2181 = vpop.f32.mrf.mxu0
        %v2182 = vadd.f32 0.0, %v2181
        %v2183 = vpop.f32.mrf.mxu0
        %v2184 = vadd.f32 0.0, %v2183
        %2185 = vmatmul.bf16.gmra.mxu0 %v1296
        %v2186 = vpop.f32.mrf.mxu0
        %v2187 = vadd.f32 0.0, %v2186
        %v2188 = vpop.f32.mrf.mxu0
        %v2189 = vadd.f32 0.0, %v2188
        %2190 = vmatmul.bf16.gmra.mxu0 %v1304
        %v2191 = vpop.f32.mrf.mxu0
        %v2192 = vadd.f32 0.0, %v2191
        %v2193 = vpop.f32.mrf.mxu0
        %v2194 = vadd.f32 0.0, %v2193
        %2195 = vmatmul.bf16.gmra.mxu0 %v1312
        %v2196 = vpop.f32.mrf.mxu0
        %v2197 = vadd.f32 0.0, %v2196
        %v2198 = vpop.f32.mrf.mxu0
        %v2199 = vadd.f32 0.0, %v2198
        %2200 = vmatmul.bf16.gmra.mxu0 %v1320
        %v2201 = vpop.f32.mrf.mxu0
        %v2202 = vadd.f32 0.0, %v2201
        %v2203 = vpop.f32.mrf.mxu0
        %v2204 = vadd.f32 0.0, %v2203
        %2205 = vmatmul.bf16.gmra.mxu0 %v1328
        %v2206 = vpop.f32.mrf.mxu0
        %v2207 = vadd.f32 0.0, %v2206
        %v2208 = vpop.f32.mrf.mxu0
        %v2209 = vadd.f32 0.0, %v2208
        %2210 = vmatmul.bf16.gmra.mxu0 %v1336
        %v2211 = vpop.f32.mrf.mxu0
        %v2212 = vadd.f32 0.0, %v2211
        %v2213 = vpop.f32.mrf.mxu0
        %v2214 = vadd.f32 0.0, %v2213
        %2215 = vmatmul.bf16.gmra.mxu0 %v1344
        %v2216 = vpop.f32.mrf.mxu0
        %v2217 = vadd.f32 0.0, %v2216
        %v2218 = vpop.f32.mrf.mxu0
        %v2219 = vadd.f32 0.0, %v2218
        %2220 = vmatmul.bf16.gmra.mxu0 %v1352
        %v2221 = vpop.f32.mrf.mxu0
        %v2222 = vadd.f32 0.0, %v2221
        %v2223 = vpop.f32.mrf.mxu0
        %v2224 = vadd.f32 0.0, %v2223
        %2225 = vmatmul.bf16.gmra.mxu0 %v1360
        %v2226 = vpop.f32.mrf.mxu0
        %v2227 = vadd.f32 0.0, %v2226
        %v2228 = vpop.f32.mrf.mxu0
        %v2229 = vadd.f32 0.0, %v2228
        %2230 = vmatmul.bf16.gmra.mxu0 %v1368
        %v2231 = vpop.f32.mrf.mxu0
        %v2232 = vadd.f32 0.0, %v2231
        %v2233 = vpop.f32.mrf.mxu0
        %v2234 = vadd.f32 0.0, %v2233
        %2235 = vmatmul.bf16.gmra.mxu0 %v1376
        %v2236 = vpop.f32.mrf.mxu0
        %v2237 = vadd.f32 0.0, %v2236
        %v2238 = vpop.f32.mrf.mxu0
        %v2239 = vadd.f32 0.0, %v2238
        %2240 = vdwg.mxu0
        %2241 = vmatpush.bf16.msra.mxu0 %v1926
        %2242 = vmatpush.bf16.msra.mxu0 %v1924
        %2243 = vmatpush.bf16.msra.mxu0 %v1922
        %2244 = vmatpush.bf16.msra.mxu0 %v1920
        %2245 = vmatpush.bf16.msra.mxu0 %v1918
        %2246 = vmatpush.bf16.msra.mxu0 %v1916
        %2247 = vmatpush.bf16.msra.mxu0 %v1914
        %2248 = vmatpush.bf16.msra.mxu0 %v1912
        %2249 = vmatmul.bf16.gmra.mxu0 %v1257
        %v2250 = vpop.f32.mrf.mxu0
        %v2251 = vadd.f32 %v2162, %v2250
        %v2252 = vpop.f32.mrf.mxu0
        %v2253 = vadd.f32 %v2164, %v2252
        %2254 = vmatmul.bf16.gmra.mxu0 %v1265
        %v2255 = vpop.f32.mrf.mxu0
        %v2256 = vadd.f32 %v2167, %v2255
        %v2257 = vpop.f32.mrf.mxu0
        %v2258 = vadd.f32 %v2169, %v2257
        %2259 = vmatmul.bf16.gmra.mxu0 %v1273
        %v2260 = vpop.f32.mrf.mxu0
        %v2261 = vadd.f32 %v2172, %v2260
        %v2262 = vpop.f32.mrf.mxu0
        %v2263 = vadd.f32 %v2174, %v2262
        %2264 = vmatmul.bf16.gmra.mxu0 %v1281
        %v2265 = vpop.f32.mrf.mxu0
        %v2266 = vadd.f32 %v2177, %v2265
        %v2267 = vpop.f32.mrf.mxu0
        %v2268 = vadd.f32 %v2179, %v2267
        %2269 = vmatmul.bf16.gmra.mxu0 %v1289
        %v2270 = vpop.f32.mrf.mxu0
        %v2271 = vadd.f32 %v2182, %v2270
        %v2272 = vpop.f32.mrf.mxu0
        %v2273 = vadd.f32 %v2184, %v2272
        %2274 = vmatmul.bf16.gmra.mxu0 %v1297
        %v2275 = vpop.f32.mrf.mxu0
        %v2276 = vadd.f32 %v2187, %v2275
        %v2277 = vpop.f32.mrf.mxu0
        %v2278 = vadd.f32 %v2189, %v2277
        %2279 = vmatmul.bf16.gmra.mxu0 %v1305
        %v2280 = vpop.f32.mrf.mxu0
        %v2281 = vadd.f32 %v2192, %v2280
        %v2282 = vpop.f32.mrf.mxu0
        %v2283 = vadd.f32 %v2194, %v2282
        %2284 = vmatmul.bf16.gmra.mxu0 %v1313
        %v2285 = vpop.f32.mrf.mxu0
        %v2286 = vadd.f32 %v2197, %v2285
        %v2287 = vpop.f32.mrf.mxu0
        %v2288 = vadd.f32 %v2199, %v2287
        %2289 = vmatmul.bf16.gmra.mxu0 %v1321
        %v2290 = vpop.f32.mrf.mxu0
        %v2291 = vadd.f32 %v2202, %v2290
        %v2292 = vpop.f32.mrf.mxu0
        %v2293 = vadd.f32 %v2204, %v2292
        %2294 = vmatmul.bf16.gmra.mxu0 %v1329
        %v2295 = vpop.f32.mrf.mxu0
        %v2296 = vadd.f32 %v2207, %v2295
        %v2297 = vpop.f32.mrf.mxu0
        %v2298 = vadd.f32 %v2209, %v2297
        %2299 = vmatmul.bf16.gmra.mxu0 %v1337
        %v2300 = vpop.f32.mrf.mxu0
        %v2301 = vadd.f32 %v2212, %v2300
        %v2302 = vpop.f32.mrf.mxu0
        %v2303 = vadd.f32 %v2214, %v2302
        %2304 = vmatmul.bf16.gmra.mxu0 %v1345
        %v2305 = vpop.f32.mrf.mxu0
        %v2306 = vadd.f32 %v2217, %v2305
        %v2307 = vpop.f32.mrf.mxu0
        %v2308 = vadd.f32 %v2219, %v2307
        %2309 = vmatmul.bf16.gmra.mxu0 %v1353
        %v2310 = vpop.f32.mrf.mxu0
        %v2311 = vadd.f32 %v2222, %v2310
        %v2312 = vpop.f32.mrf.mxu0
        %v2313 = vadd.f32 %v2224, %v2312
        %2314 = vmatmul.bf16.gmra.mxu0 %v1361
        %v2315 = vpop.f32.mrf.mxu0
        %v2316 = vadd.f32 %v2227, %v2315
        %v2317 = vpop.f32.mrf.mxu0
        %v2318 = vadd.f32 %v2229, %v2317
        %2319 = vmatmul.bf16.gmra.mxu0 %v1369
        %v2320 = vpop.f32.mrf.mxu0
        %v2321 = vadd.f32 %v2232, %v2320
        %v2322 = vpop.f32.mrf.mxu0
        %v2323 = vadd.f32 %v2234, %v2322
        %2324 = vmatmul.bf16.gmra.mxu0 %v1377
        %v2325 = vpop.f32.mrf.mxu0
        %v2326 = vadd.f32 %v2237, %v2325
        %v2327 = vpop.f32.mrf.mxu0
        %v2328 = vadd.f32 %v2239, %v2327
        %2329 = vdwg.mxu0
        %2330 = vmatpush.bf16.msra.mxu0 %v1942
        %2331 = vmatpush.bf16.msra.mxu0 %v1940
        %2332 = vmatpush.bf16.msra.mxu0 %v1938
        %2333 = vmatpush.bf16.msra.mxu0 %v1936
        %2334 = vmatpush.bf16.msra.mxu0 %v1934
        %2335 = vmatpush.bf16.msra.mxu0 %v1932
        %2336 = vmatpush.bf16.msra.mxu0 %v1930
        %2337 = vmatpush.bf16.msra.mxu0 %v1928
        %2338 = vmatmul.bf16.gmra.mxu0 %v1258
        %v2339 = vpop.f32.mrf.mxu0
        %v2340 = vadd.f32 %v2251, %v2339
        %v2341 = vpop.f32.mrf.mxu0
        %v2342 = vadd.f32 %v2253, %v2341
        %2343 = vmatmul.bf16.gmra.mxu0 %v1266
        %v2344 = vpop.f32.mrf.mxu0
        %v2345 = vadd.f32 %v2256, %v2344
        %v2346 = vpop.f32.mrf.mxu0
        %v2347 = vadd.f32 %v2258, %v2346
        %2348 = vmatmul.bf16.gmra.mxu0 %v1274
        %v2349 = vpop.f32.mrf.mxu0
        %v2350 = vadd.f32 %v2261, %v2349
        %v2351 = vpop.f32.mrf.mxu0
        %v2352 = vadd.f32 %v2263, %v2351
        %2353 = vmatmul.bf16.gmra.mxu0 %v1282
        %v2354 = vpop.f32.mrf.mxu0
        %v2355 = vadd.f32 %v2266, %v2354
        %v2356 = vpop.f32.mrf.mxu0
        %v2357 = vadd.f32 %v2268, %v2356
        %2358 = vmatmul.bf16.gmra.mxu0 %v1290
        %v2359 = vpop.f32.mrf.mxu0
        %v2360 = vadd.f32 %v2271, %v2359
        %v2361 = vpop.f32.mrf.mxu0
        %v2362 = vadd.f32 %v2273, %v2361
        %2363 = vmatmul.bf16.gmra.mxu0 %v1298
        %v2364 = vpop.f32.mrf.mxu0
        %v2365 = vadd.f32 %v2276, %v2364
        %v2366 = vpop.f32.mrf.mxu0
        %v2367 = vadd.f32 %v2278, %v2366
        %2368 = vmatmul.bf16.gmra.mxu0 %v1306
        %v2369 = vpop.f32.mrf.mxu0
        %v2370 = vadd.f32 %v2281, %v2369
        %v2371 = vpop.f32.mrf.mxu0
        %v2372 = vadd.f32 %v2283, %v2371
        %2373 = vmatmul.bf16.gmra.mxu0 %v1314
        %v2374 = vpop.f32.mrf.mxu0
        %v2375 = vadd.f32 %v2286, %v2374
        %v2376 = vpop.f32.mrf.mxu0
        %v2377 = vadd.f32 %v2288, %v2376
        %2378 = vmatmul.bf16.gmra.mxu0 %v1322
        %v2379 = vpop.f32.mrf.mxu0
        %v2380 = vadd.f32 %v2291, %v2379
        %v2381 = vpop.f32.mrf.mxu0
        %v2382 = vadd.f32 %v2293, %v2381
        %2383 = vmatmul.bf16.gmra.mxu0 %v1330
        %v2384 = vpop.f32.mrf.mxu0
        %v2385 = vadd.f32 %v2296, %v2384
        %v2386 = vpop.f32.mrf.mxu0
        %v2387 = vadd.f32 %v2298, %v2386
        %2388 = vmatmul.bf16.gmra.mxu0 %v1338
        %v2389 = vpop.f32.mrf.mxu0
        %v2390 = vadd.f32 %v2301, %v2389
        %v2391 = vpop.f32.mrf.mxu0
        %v2392 = vadd.f32 %v2303, %v2391
        %2393 = vmatmul.bf16.gmra.mxu0 %v1346
        %v2394 = vpop.f32.mrf.mxu0
        %v2395 = vadd.f32 %v2306, %v2394
        %v2396 = vpop.f32.mrf.mxu0
        %v2397 = vadd.f32 %v2308, %v2396
        %2398 = vmatmul.bf16.gmra.mxu0 %v1354
        %v2399 = vpop.f32.mrf.mxu0
        %v2400 = vadd.f32 %v2311, %v2399
        %v2401 = vpop.f32.mrf.mxu0
        %v2402 = vadd.f32 %v2313, %v2401
        %2403 = vmatmul.bf16.gmra.mxu0 %v1362
        %v2404 = vpop.f32.mrf.mxu0
        %v2405 = vadd.f32 %v2316, %v2404
        %v2406 = vpop.f32.mrf.mxu0
        %v2407 = vadd.f32 %v2318, %v2406
        %2408 = vmatmul.bf16.gmra.mxu0 %v1370
        %v2409 = vpop.f32.mrf.mxu0
        %v2410 = vadd.f32 %v2321, %v2409
        %v2411 = vpop.f32.mrf.mxu0
        %v2412 = vadd.f32 %v2323, %v2411
        %2413 = vmatmul.bf16.gmra.mxu0 %v1378
        %v2414 = vpop.f32.mrf.mxu0
        %v2415 = vadd.f32 %v2326, %v2414
        %v2416 = vpop.f32.mrf.mxu0
        %v2417 = vadd.f32 %v2328, %v2416
        %2418 = vdwg.mxu0
        %2419 = vmatpush.bf16.msra.mxu0 %v1958
        %2420 = vmatpush.bf16.msra.mxu0 %v1956
        %2421 = vmatpush.bf16.msra.mxu0 %v1954
        %2422 = vmatpush.bf16.msra.mxu0 %v1952
        %2423 = vmatpush.bf16.msra.mxu0 %v1950
        %2424 = vmatpush.bf16.msra.mxu0 %v1948
        %2425 = vmatpush.bf16.msra.mxu0 %v1946
        %2426 = vmatpush.bf16.msra.mxu0 %v1944
        %2427 = vmatmul.bf16.gmra.mxu0 %v1259
        %v2428 = vpop.f32.mrf.mxu0
        %v2429 = vadd.f32 %v2340, %v2428
        %v2430 = vpop.f32.mrf.mxu0
        %v2431 = vadd.f32 %v2342, %v2430
        %2432 = vmatmul.bf16.gmra.mxu0 %v1267
        %v2433 = vpop.f32.mrf.mxu0
        %v2434 = vadd.f32 %v2345, %v2433
        %v2435 = vpop.f32.mrf.mxu0
        %v2436 = vadd.f32 %v2347, %v2435
        %2437 = vmatmul.bf16.gmra.mxu0 %v1275
        %v2438 = vpop.f32.mrf.mxu0
        %v2439 = vadd.f32 %v2350, %v2438
        %v2440 = vpop.f32.mrf.mxu0
        %v2441 = vadd.f32 %v2352, %v2440
        %2442 = vmatmul.bf16.gmra.mxu0 %v1283
        %v2443 = vpop.f32.mrf.mxu0
        %v2444 = vadd.f32 %v2355, %v2443
        %v2445 = vpop.f32.mrf.mxu0
        %v2446 = vadd.f32 %v2357, %v2445
        %2447 = vmatmul.bf16.gmra.mxu0 %v1291
        %v2448 = vpop.f32.mrf.mxu0
        %v2449 = vadd.f32 %v2360, %v2448
        %v2450 = vpop.f32.mrf.mxu0
        %v2451 = vadd.f32 %v2362, %v2450
        %2452 = vmatmul.bf16.gmra.mxu0 %v1299
        %v2453 = vpop.f32.mrf.mxu0
        %v2454 = vadd.f32 %v2365, %v2453
        %v2455 = vpop.f32.mrf.mxu0
        %v2456 = vadd.f32 %v2367, %v2455
        %2457 = vmatmul.bf16.gmra.mxu0 %v1307
        %v2458 = vpop.f32.mrf.mxu0
        %v2459 = vadd.f32 %v2370, %v2458
        %v2460 = vpop.f32.mrf.mxu0
        %v2461 = vadd.f32 %v2372, %v2460
        %2462 = vmatmul.bf16.gmra.mxu0 %v1315
        %v2463 = vpop.f32.mrf.mxu0
        %v2464 = vadd.f32 %v2375, %v2463
        %v2465 = vpop.f32.mrf.mxu0
        %v2466 = vadd.f32 %v2377, %v2465
        %2467 = vmatmul.bf16.gmra.mxu0 %v1323
        %v2468 = vpop.f32.mrf.mxu0
        %v2469 = vadd.f32 %v2380, %v2468
        %v2470 = vpop.f32.mrf.mxu0
        %v2471 = vadd.f32 %v2382, %v2470
        %2472 = vmatmul.bf16.gmra.mxu0 %v1331
        %v2473 = vpop.f32.mrf.mxu0
        %v2474 = vadd.f32 %v2385, %v2473
        %v2475 = vpop.f32.mrf.mxu0
        %v2476 = vadd.f32 %v2387, %v2475
        %2477 = vmatmul.bf16.gmra.mxu0 %v1339
        %v2478 = vpop.f32.mrf.mxu0
        %v2479 = vadd.f32 %v2390, %v2478
        %v2480 = vpop.f32.mrf.mxu0
        %v2481 = vadd.f32 %v2392, %v2480
        %2482 = vmatmul.bf16.gmra.mxu0 %v1347
        %v2483 = vpop.f32.mrf.mxu0
        %v2484 = vadd.f32 %v2395, %v2483
        %v2485 = vpop.f32.mrf.mxu0
        %v2486 = vadd.f32 %v2397, %v2485
        %2487 = vmatmul.bf16.gmra.mxu0 %v1355
        %v2488 = vpop.f32.mrf.mxu0
        %v2489 = vadd.f32 %v2400, %v2488
        %v2490 = vpop.f32.mrf.mxu0
        %v2491 = vadd.f32 %v2402, %v2490
        %2492 = vmatmul.bf16.gmra.mxu0 %v1363
        %v2493 = vpop.f32.mrf.mxu0
        %v2494 = vadd.f32 %v2405, %v2493
        %v2495 = vpop.f32.mrf.mxu0
        %v2496 = vadd.f32 %v2407, %v2495
        %2497 = vmatmul.bf16.gmra.mxu0 %v1371
        %v2498 = vpop.f32.mrf.mxu0
        %v2499 = vadd.f32 %v2410, %v2498
        %v2500 = vpop.f32.mrf.mxu0
        %v2501 = vadd.f32 %v2412, %v2500
        %2502 = vmatmul.bf16.gmra.mxu0 %v1379
        %v2503 = vpop.f32.mrf.mxu0
        %v2504 = vadd.f32 %v2415, %v2503
        %v2505 = vpop.f32.mrf.mxu0
        %v2506 = vadd.f32 %v2417, %v2505
        %2507 = vdwg.mxu0
        %2508 = vmatpush.bf16.msra.mxu0 %v1974
        %2509 = vmatpush.bf16.msra.mxu0 %v1972
        %2510 = vmatpush.bf16.msra.mxu0 %v1970
        %2511 = vmatpush.bf16.msra.mxu0 %v1968
        %2512 = vmatpush.bf16.msra.mxu0 %v1966
        %2513 = vmatpush.bf16.msra.mxu0 %v1964
        %2514 = vmatpush.bf16.msra.mxu0 %v1962
        %2515 = vmatpush.bf16.msra.mxu0 %v1960
        %2516 = vmatmul.bf16.gmra.mxu0 %v1260
        %v2517 = vpop.f32.mrf.mxu0
        %v2518 = vadd.f32 %v2429, %v2517
        %v2519 = vpop.f32.mrf.mxu0
        %v2520 = vadd.f32 %v2431, %v2519
        %2521 = vmatmul.bf16.gmra.mxu0 %v1268
        %v2522 = vpop.f32.mrf.mxu0
        %v2523 = vadd.f32 %v2434, %v2522
        %v2524 = vpop.f32.mrf.mxu0
        %v2525 = vadd.f32 %v2436, %v2524
        %2526 = vmatmul.bf16.gmra.mxu0 %v1276
        %v2527 = vpop.f32.mrf.mxu0
        %v2528 = vadd.f32 %v2439, %v2527
        %v2529 = vpop.f32.mrf.mxu0
        %v2530 = vadd.f32 %v2441, %v2529
        %2531 = vmatmul.bf16.gmra.mxu0 %v1284
        %v2532 = vpop.f32.mrf.mxu0
        %v2533 = vadd.f32 %v2444, %v2532
        %v2534 = vpop.f32.mrf.mxu0
        %v2535 = vadd.f32 %v2446, %v2534
        %2536 = vmatmul.bf16.gmra.mxu0 %v1292
        %v2537 = vpop.f32.mrf.mxu0
        %v2538 = vadd.f32 %v2449, %v2537
        %v2539 = vpop.f32.mrf.mxu0
        %v2540 = vadd.f32 %v2451, %v2539
        %2541 = vmatmul.bf16.gmra.mxu0 %v1300
        %v2542 = vpop.f32.mrf.mxu0
        %v2543 = vadd.f32 %v2454, %v2542
        %v2544 = vpop.f32.mrf.mxu0
        %v2545 = vadd.f32 %v2456, %v2544
        %2546 = vmatmul.bf16.gmra.mxu0 %v1308
        %v2547 = vpop.f32.mrf.mxu0
        %v2548 = vadd.f32 %v2459, %v2547
        %v2549 = vpop.f32.mrf.mxu0
        %v2550 = vadd.f32 %v2461, %v2549
        %2551 = vmatmul.bf16.gmra.mxu0 %v1316
        %v2552 = vpop.f32.mrf.mxu0
        %v2553 = vadd.f32 %v2464, %v2552
        %v2554 = vpop.f32.mrf.mxu0
        %v2555 = vadd.f32 %v2466, %v2554
        %2556 = vmatmul.bf16.gmra.mxu0 %v1324
        %v2557 = vpop.f32.mrf.mxu0
        %v2558 = vadd.f32 %v2469, %v2557
        %v2559 = vpop.f32.mrf.mxu0
        %v2560 = vadd.f32 %v2471, %v2559
        %2561 = vmatmul.bf16.gmra.mxu0 %v1332
        %v2562 = vpop.f32.mrf.mxu0
        %v2563 = vadd.f32 %v2474, %v2562
        %v2564 = vpop.f32.mrf.mxu0
        %v2565 = vadd.f32 %v2476, %v2564
        %2566 = vmatmul.bf16.gmra.mxu0 %v1340
        %v2567 = vpop.f32.mrf.mxu0
        %v2568 = vadd.f32 %v2479, %v2567
        %v2569 = vpop.f32.mrf.mxu0
        %v2570 = vadd.f32 %v2481, %v2569
        %2571 = vmatmul.bf16.gmra.mxu0 %v1348
        %v2572 = vpop.f32.mrf.mxu0
        %v2573 = vadd.f32 %v2484, %v2572
        %v2574 = vpop.f32.mrf.mxu0
        %v2575 = vadd.f32 %v2486, %v2574
        %2576 = vmatmul.bf16.gmra.mxu0 %v1356
        %v2577 = vpop.f32.mrf.mxu0
        %v2578 = vadd.f32 %v2489, %v2577
        %v2579 = vpop.f32.mrf.mxu0
        %v2580 = vadd.f32 %v2491, %v2579
        %2581 = vmatmul.bf16.gmra.mxu0 %v1364
        %v2582 = vpop.f32.mrf.mxu0
        %v2583 = vadd.f32 %v2494, %v2582
        %v2584 = vpop.f32.mrf.mxu0
        %v2585 = vadd.f32 %v2496, %v2584
        %2586 = vmatmul.bf16.gmra.mxu0 %v1372
        %v2587 = vpop.f32.mrf.mxu0
        %v2588 = vadd.f32 %v2499, %v2587
        %v2589 = vpop.f32.mrf.mxu0
        %v2590 = vadd.f32 %v2501, %v2589
        %2591 = vmatmul.bf16.gmra.mxu0 %v1380
        %v2592 = vpop.f32.mrf.mxu0
        %v2593 = vadd.f32 %v2504, %v2592
        %v2594 = vpop.f32.mrf.mxu0
        %v2595 = vadd.f32 %v2506, %v2594
        %2596 = vdwg.mxu0
        %2597 = vmatpush.bf16.msra.mxu0 %v1990
        %2598 = vmatpush.bf16.msra.mxu0 %v1988
        %2599 = vmatpush.bf16.msra.mxu0 %v1986
        %2600 = vmatpush.bf16.msra.mxu0 %v1984
        %2601 = vmatpush.bf16.msra.mxu0 %v1982
        %2602 = vmatpush.bf16.msra.mxu0 %v1980
        %2603 = vmatpush.bf16.msra.mxu0 %v1978
        %2604 = vmatpush.bf16.msra.mxu0 %v1976
        %2605 = vmatmul.bf16.gmra.mxu0 %v1261
        %v2606 = vpop.f32.mrf.mxu0
        %v2607 = vadd.f32 %v2518, %v2606
        %v2608 = vpop.f32.mrf.mxu0
        %v2609 = vadd.f32 %v2520, %v2608
        %2610 = vmatmul.bf16.gmra.mxu0 %v1269
        %v2611 = vpop.f32.mrf.mxu0
        %v2612 = vadd.f32 %v2523, %v2611
        %v2613 = vpop.f32.mrf.mxu0
        %v2614 = vadd.f32 %v2525, %v2613
        %2615 = vmatmul.bf16.gmra.mxu0 %v1277
        %v2616 = vpop.f32.mrf.mxu0
        %v2617 = vadd.f32 %v2528, %v2616
        %v2618 = vpop.f32.mrf.mxu0
        %v2619 = vadd.f32 %v2530, %v2618
        %2620 = vmatmul.bf16.gmra.mxu0 %v1285
        %v2621 = vpop.f32.mrf.mxu0
        %v2622 = vadd.f32 %v2533, %v2621
        %v2623 = vpop.f32.mrf.mxu0
        %v2624 = vadd.f32 %v2535, %v2623
        %2625 = vmatmul.bf16.gmra.mxu0 %v1293
        %v2626 = vpop.f32.mrf.mxu0
        %v2627 = vadd.f32 %v2538, %v2626
        %v2628 = vpop.f32.mrf.mxu0
        %v2629 = vadd.f32 %v2540, %v2628
        %2630 = vmatmul.bf16.gmra.mxu0 %v1301
        %v2631 = vpop.f32.mrf.mxu0
        %v2632 = vadd.f32 %v2543, %v2631
        %v2633 = vpop.f32.mrf.mxu0
        %v2634 = vadd.f32 %v2545, %v2633
        %2635 = vmatmul.bf16.gmra.mxu0 %v1309
        %v2636 = vpop.f32.mrf.mxu0
        %v2637 = vadd.f32 %v2548, %v2636
        %v2638 = vpop.f32.mrf.mxu0
        %v2639 = vadd.f32 %v2550, %v2638
        %2640 = vmatmul.bf16.gmra.mxu0 %v1317
        %v2641 = vpop.f32.mrf.mxu0
        %v2642 = vadd.f32 %v2553, %v2641
        %v2643 = vpop.f32.mrf.mxu0
        %v2644 = vadd.f32 %v2555, %v2643
        %2645 = vmatmul.bf16.gmra.mxu0 %v1325
        %v2646 = vpop.f32.mrf.mxu0
        %v2647 = vadd.f32 %v2558, %v2646
        %v2648 = vpop.f32.mrf.mxu0
        %v2649 = vadd.f32 %v2560, %v2648
        %2650 = vmatmul.bf16.gmra.mxu0 %v1333
        %v2651 = vpop.f32.mrf.mxu0
        %v2652 = vadd.f32 %v2563, %v2651
        %v2653 = vpop.f32.mrf.mxu0
        %v2654 = vadd.f32 %v2565, %v2653
        %2655 = vmatmul.bf16.gmra.mxu0 %v1341
        %v2656 = vpop.f32.mrf.mxu0
        %v2657 = vadd.f32 %v2568, %v2656
        %v2658 = vpop.f32.mrf.mxu0
        %v2659 = vadd.f32 %v2570, %v2658
        %2660 = vmatmul.bf16.gmra.mxu0 %v1349
        %v2661 = vpop.f32.mrf.mxu0
        %v2662 = vadd.f32 %v2573, %v2661
        %v2663 = vpop.f32.mrf.mxu0
        %v2664 = vadd.f32 %v2575, %v2663
        %2665 = vmatmul.bf16.gmra.mxu0 %v1357
        %v2666 = vpop.f32.mrf.mxu0
        %v2667 = vadd.f32 %v2578, %v2666
        %v2668 = vpop.f32.mrf.mxu0
        %v2669 = vadd.f32 %v2580, %v2668
        %2670 = vmatmul.bf16.gmra.mxu0 %v1365
        %v2671 = vpop.f32.mrf.mxu0
        %v2672 = vadd.f32 %v2583, %v2671
        %v2673 = vpop.f32.mrf.mxu0
        %v2674 = vadd.f32 %v2585, %v2673
        %2675 = vmatmul.bf16.gmra.mxu0 %v1373
        %v2676 = vpop.f32.mrf.mxu0
        %v2677 = vadd.f32 %v2588, %v2676
        %v2678 = vpop.f32.mrf.mxu0
        %v2679 = vadd.f32 %v2590, %v2678
        %2680 = vmatmul.bf16.gmra.mxu0 %v1381
        %v2681 = vpop.f32.mrf.mxu0
        %v2682 = vadd.f32 %v2593, %v2681
        %v2683 = vpop.f32.mrf.mxu0
        %v2684 = vadd.f32 %v2595, %v2683
        %2685 = vdwg.mxu0
        %2686 = vmatpush.bf16.msra.mxu0 %v2006
        %2687 = vmatpush.bf16.msra.mxu0 %v2004
        %2688 = vmatpush.bf16.msra.mxu0 %v2002
        %2689 = vmatpush.bf16.msra.mxu0 %v2000
        %2690 = vmatpush.bf16.msra.mxu0 %v1998
        %2691 = vmatpush.bf16.msra.mxu0 %v1996
        %2692 = vmatpush.bf16.msra.mxu0 %v1994
        %2693 = vmatpush.bf16.msra.mxu0 %v1992
        %2694 = vmatmul.bf16.gmra.mxu0 %v1262
        %v2695 = vpop.f32.mrf.mxu0
        %v2696 = vadd.f32 %v2607, %v2695
        %v2697 = vpop.f32.mrf.mxu0
        %v2698 = vadd.f32 %v2609, %v2697
        %2699 = vmatmul.bf16.gmra.mxu0 %v1270
        %v2700 = vpop.f32.mrf.mxu0
        %v2701 = vadd.f32 %v2612, %v2700
        %v2702 = vpop.f32.mrf.mxu0
        %v2703 = vadd.f32 %v2614, %v2702
        %2704 = vmatmul.bf16.gmra.mxu0 %v1278
        %v2705 = vpop.f32.mrf.mxu0
        %v2706 = vadd.f32 %v2617, %v2705
        %v2707 = vpop.f32.mrf.mxu0
        %v2708 = vadd.f32 %v2619, %v2707
        %2709 = vmatmul.bf16.gmra.mxu0 %v1286
        %v2710 = vpop.f32.mrf.mxu0
        %v2711 = vadd.f32 %v2622, %v2710
        %v2712 = vpop.f32.mrf.mxu0
        %v2713 = vadd.f32 %v2624, %v2712
        %2714 = vmatmul.bf16.gmra.mxu0 %v1294
        %v2715 = vpop.f32.mrf.mxu0
        %v2716 = vadd.f32 %v2627, %v2715
        %v2717 = vpop.f32.mrf.mxu0
        %v2718 = vadd.f32 %v2629, %v2717
        %2719 = vmatmul.bf16.gmra.mxu0 %v1302
        %v2720 = vpop.f32.mrf.mxu0
        %v2721 = vadd.f32 %v2632, %v2720
        %v2722 = vpop.f32.mrf.mxu0
        %v2723 = vadd.f32 %v2634, %v2722
        %2724 = vmatmul.bf16.gmra.mxu0 %v1310
        %v2725 = vpop.f32.mrf.mxu0
        %v2726 = vadd.f32 %v2637, %v2725
        %v2727 = vpop.f32.mrf.mxu0
        %v2728 = vadd.f32 %v2639, %v2727
        %2729 = vmatmul.bf16.gmra.mxu0 %v1318
        %v2730 = vpop.f32.mrf.mxu0
        %v2731 = vadd.f32 %v2642, %v2730
        %v2732 = vpop.f32.mrf.mxu0
        %v2733 = vadd.f32 %v2644, %v2732
        %2734 = vmatmul.bf16.gmra.mxu0 %v1326
        %v2735 = vpop.f32.mrf.mxu0
        %v2736 = vadd.f32 %v2647, %v2735
        %v2737 = vpop.f32.mrf.mxu0
        %v2738 = vadd.f32 %v2649, %v2737
        %2739 = vmatmul.bf16.gmra.mxu0 %v1334
        %v2740 = vpop.f32.mrf.mxu0
        %v2741 = vadd.f32 %v2652, %v2740
        %v2742 = vpop.f32.mrf.mxu0
        %v2743 = vadd.f32 %v2654, %v2742
        %2744 = vmatmul.bf16.gmra.mxu0 %v1342
        %v2745 = vpop.f32.mrf.mxu0
        %v2746 = vadd.f32 %v2657, %v2745
        %v2747 = vpop.f32.mrf.mxu0
        %v2748 = vadd.f32 %v2659, %v2747
        %2749 = vmatmul.bf16.gmra.mxu0 %v1350
        %v2750 = vpop.f32.mrf.mxu0
        %v2751 = vadd.f32 %v2662, %v2750
        %v2752 = vpop.f32.mrf.mxu0
        %v2753 = vadd.f32 %v2664, %v2752
        %2754 = vmatmul.bf16.gmra.mxu0 %v1358
        %v2755 = vpop.f32.mrf.mxu0
        %v2756 = vadd.f32 %v2667, %v2755
        %v2757 = vpop.f32.mrf.mxu0
        %v2758 = vadd.f32 %v2669, %v2757
        %2759 = vmatmul.bf16.gmra.mxu0 %v1366
        %v2760 = vpop.f32.mrf.mxu0
        %v2761 = vadd.f32 %v2672, %v2760
        %v2762 = vpop.f32.mrf.mxu0
        %v2763 = vadd.f32 %v2674, %v2762
        %2764 = vmatmul.bf16.gmra.mxu0 %v1374
        %v2765 = vpop.f32.mrf.mxu0
        %v2766 = vadd.f32 %v2677, %v2765
        %v2767 = vpop.f32.mrf.mxu0
        %v2768 = vadd.f32 %v2679, %v2767
        %2769 = vmatmul.bf16.gmra.mxu0 %v1382
        %v2770 = vpop.f32.mrf.mxu0
        %v2771 = vadd.f32 %v2682, %v2770
        %v2772 = vpop.f32.mrf.mxu0
        %v2773 = vadd.f32 %v2684, %v2772
        %2774 = vdwg.mxu0
        %2775 = vmatpush.bf16.msra.mxu0 %v2022
        %2776 = vmatpush.bf16.msra.mxu0 %v2020
        %2777 = vmatpush.bf16.msra.mxu0 %v2018
        %2778 = vmatpush.bf16.msra.mxu0 %v2016
        %2779 = vmatpush.bf16.msra.mxu0 %v2014
        %2780 = vmatpush.bf16.msra.mxu0 %v2012
        %2781 = vmatpush.bf16.msra.mxu0 %v2010
        %2782 = vmatpush.bf16.msra.mxu0 %v2008
        %2783 = vmatmul.bf16.gmra.mxu0 %v1263
        %v2784 = vpop.f32.mrf.mxu0
        %v2785 = vadd.f32 %v2696, %v2784
        %v2786 = vpop.f32.mrf.mxu0
        %v2787 = vadd.f32 %v2698, %v2786
        %2788 = vmatmul.bf16.gmra.mxu0 %v1271
        %v2789 = vpop.f32.mrf.mxu0
        %v2790 = vadd.f32 %v2701, %v2789
        %v2791 = vpop.f32.mrf.mxu0
        %v2792 = vadd.f32 %v2703, %v2791
        %2793 = vmatmul.bf16.gmra.mxu0 %v1279
        %v2794 = vpop.f32.mrf.mxu0
        %v2795 = vadd.f32 %v2706, %v2794
        %v2796 = vpop.f32.mrf.mxu0
        %v2797 = vadd.f32 %v2708, %v2796
        %2798 = vmatmul.bf16.gmra.mxu0 %v1287
        %v2799 = vpop.f32.mrf.mxu0
        %v2800 = vadd.f32 %v2711, %v2799
        %v2801 = vpop.f32.mrf.mxu0
        %v2802 = vadd.f32 %v2713, %v2801
        %2803 = vmatmul.bf16.gmra.mxu0 %v1295
        %v2804 = vpop.f32.mrf.mxu0
        %v2805 = vadd.f32 %v2716, %v2804
        %v2806 = vpop.f32.mrf.mxu0
        %v2807 = vadd.f32 %v2718, %v2806
        %2808 = vmatmul.bf16.gmra.mxu0 %v1303
        %v2809 = vpop.f32.mrf.mxu0
        %v2810 = vadd.f32 %v2721, %v2809
        %v2811 = vpop.f32.mrf.mxu0
        %v2812 = vadd.f32 %v2723, %v2811
        %2813 = vmatmul.bf16.gmra.mxu0 %v1311
        %v2814 = vpop.f32.mrf.mxu0
        %v2815 = vadd.f32 %v2726, %v2814
        %v2816 = vpop.f32.mrf.mxu0
        %v2817 = vadd.f32 %v2728, %v2816
        %2818 = vmatmul.bf16.gmra.mxu0 %v1319
        %v2819 = vpop.f32.mrf.mxu0
        %v2820 = vadd.f32 %v2731, %v2819
        %v2821 = vpop.f32.mrf.mxu0
        %v2822 = vadd.f32 %v2733, %v2821
        %2823 = vmatmul.bf16.gmra.mxu0 %v1327
        %v2824 = vpop.f32.mrf.mxu0
        %v2825 = vadd.f32 %v2736, %v2824
        %v2826 = vpop.f32.mrf.mxu0
        %v2827 = vadd.f32 %v2738, %v2826
        %2828 = vmatmul.bf16.gmra.mxu0 %v1335
        %v2829 = vpop.f32.mrf.mxu0
        %v2830 = vadd.f32 %v2741, %v2829
        %v2831 = vpop.f32.mrf.mxu0
        %v2832 = vadd.f32 %v2743, %v2831
        %2833 = vmatmul.bf16.gmra.mxu0 %v1343
        %v2834 = vpop.f32.mrf.mxu0
        %v2835 = vadd.f32 %v2746, %v2834
        %v2836 = vpop.f32.mrf.mxu0
        %v2837 = vadd.f32 %v2748, %v2836
        %2838 = vmatmul.bf16.gmra.mxu0 %v1351
        %v2839 = vpop.f32.mrf.mxu0
        %v2840 = vadd.f32 %v2751, %v2839
        %v2841 = vpop.f32.mrf.mxu0
        %v2842 = vadd.f32 %v2753, %v2841
        %2843 = vmatmul.bf16.gmra.mxu0 %v1359
        %v2844 = vpop.f32.mrf.mxu0
        %v2845 = vadd.f32 %v2756, %v2844
        %v2846 = vpop.f32.mrf.mxu0
        %v2847 = vadd.f32 %v2758, %v2846
        %2848 = vmatmul.bf16.gmra.mxu0 %v1367
        %v2849 = vpop.f32.mrf.mxu0
        %v2850 = vadd.f32 %v2761, %v2849
        %v2851 = vpop.f32.mrf.mxu0
        %v2852 = vadd.f32 %v2763, %v2851
        %2853 = vmatmul.bf16.gmra.mxu0 %v1375
        %v2854 = vpop.f32.mrf.mxu0
        %v2855 = vadd.f32 %v2766, %v2854
        %v2856 = vpop.f32.mrf.mxu0
        %v2857 = vadd.f32 %v2768, %v2856
        %2858 = vmatmul.bf16.gmra.mxu0 %v1383
        %v2859 = vpop.f32.mrf.mxu0
        %v2860 = vadd.f32 %v2771, %v2859
        %v2861 = vpop.f32.mrf.mxu0
        %v2862 = vadd.f32 %v2773, %v2861
        %2863 = vdwg.mxu0
        %2864 = vmatpush.bf16.msra.mxu0 %v1911
        %2865 = vmatpush.bf16.msra.mxu0 %v1909
        %2866 = vmatpush.bf16.msra.mxu0 %v1907
        %2867 = vmatpush.bf16.msra.mxu0 %v1905
        %2868 = vmatpush.bf16.msra.mxu0 %v1903
        %2869 = vmatpush.bf16.msra.mxu0 %v1901
        %2870 = vmatpush.bf16.msra.mxu0 %v1899
        %2871 = vmatpush.bf16.msra.mxu0 %v1897
        %2872 = vmatmul.bf16.gmra.mxu0 %v1256
        %v2873 = vpop.f32.mrf.mxu0
        %v2874 = vadd.f32 0.0, %v2873
        %v2875 = vpop.f32.mrf.mxu0
        %v2876 = vadd.f32 0.0, %v2875
        %2877 = vmatmul.bf16.gmra.mxu0 %v1264
        %v2878 = vpop.f32.mrf.mxu0
        %v2879 = vadd.f32 0.0, %v2878
        %v2880 = vpop.f32.mrf.mxu0
        %v2881 = vadd.f32 0.0, %v2880
        %2882 = vmatmul.bf16.gmra.mxu0 %v1272
        %v2883 = vpop.f32.mrf.mxu0
        %v2884 = vadd.f32 0.0, %v2883
        %v2885 = vpop.f32.mrf.mxu0
        %v2886 = vadd.f32 0.0, %v2885
        %2887 = vmatmul.bf16.gmra.mxu0 %v1280
        %v2888 = vpop.f32.mrf.mxu0
        %v2889 = vadd.f32 0.0, %v2888
        %v2890 = vpop.f32.mrf.mxu0
        %v2891 = vadd.f32 0.0, %v2890
        %2892 = vmatmul.bf16.gmra.mxu0 %v1288
        %v2893 = vpop.f32.mrf.mxu0
        %v2894 = vadd.f32 0.0, %v2893
        %v2895 = vpop.f32.mrf.mxu0
        %v2896 = vadd.f32 0.0, %v2895
        %2897 = vmatmul.bf16.gmra.mxu0 %v1296
        %v2898 = vpop.f32.mrf.mxu0
        %v2899 = vadd.f32 0.0, %v2898
        %v2900 = vpop.f32.mrf.mxu0
        %v2901 = vadd.f32 0.0, %v2900
        %2902 = vmatmul.bf16.gmra.mxu0 %v1304
        %v2903 = vpop.f32.mrf.mxu0
        %v2904 = vadd.f32 0.0, %v2903
        %v2905 = vpop.f32.mrf.mxu0
        %v2906 = vadd.f32 0.0, %v2905
        %2907 = vmatmul.bf16.gmra.mxu0 %v1312
        %v2908 = vpop.f32.mrf.mxu0
        %v2909 = vadd.f32 0.0, %v2908
        %v2910 = vpop.f32.mrf.mxu0
        %v2911 = vadd.f32 0.0, %v2910
        %2912 = vmatmul.bf16.gmra.mxu0 %v1320
        %v2913 = vpop.f32.mrf.mxu0
        %v2914 = vadd.f32 0.0, %v2913
        %v2915 = vpop.f32.mrf.mxu0
        %v2916 = vadd.f32 0.0, %v2915
        %2917 = vmatmul.bf16.gmra.mxu0 %v1328
        %v2918 = vpop.f32.mrf.mxu0
        %v2919 = vadd.f32 0.0, %v2918
        %v2920 = vpop.f32.mrf.mxu0
        %v2921 = vadd.f32 0.0, %v2920
        %2922 = vmatmul.bf16.gmra.mxu0 %v1336
        %v2923 = vpop.f32.mrf.mxu0
        %v2924 = vadd.f32 0.0, %v2923
        %v2925 = vpop.f32.mrf.mxu0
        %v2926 = vadd.f32 0.0, %v2925
        %2927 = vmatmul.bf16.gmra.mxu0 %v1344
        %v2928 = vpop.f32.mrf.mxu0
        %v2929 = vadd.f32 0.0, %v2928
        %v2930 = vpop.f32.mrf.mxu0
        %v2931 = vadd.f32 0.0, %v2930
        %2932 = vmatmul.bf16.gmra.mxu0 %v1352
        %v2933 = vpop.f32.mrf.mxu0
        %v2934 = vadd.f32 0.0, %v2933
        %v2935 = vpop.f32.mrf.mxu0
        %v2936 = vadd.f32 0.0, %v2935
        %2937 = vmatmul.bf16.gmra.mxu0 %v1360
        %v2938 = vpop.f32.mrf.mxu0
        %v2939 = vadd.f32 0.0, %v2938
        %v2940 = vpop.f32.mrf.mxu0
        %v2941 = vadd.f32 0.0, %v2940
        %2942 = vmatmul.bf16.gmra.mxu0 %v1368
        %v2943 = vpop.f32.mrf.mxu0
        %v2944 = vadd.f32 0.0, %v2943
        %v2945 = vpop.f32.mrf.mxu0
        %v2946 = vadd.f32 0.0, %v2945
        %2947 = vmatmul.bf16.gmra.mxu0 %v1376
        %v2948 = vpop.f32.mrf.mxu0
        %v2949 = vadd.f32 0.0, %v2948
        %v2950 = vpop.f32.mrf.mxu0
        %v2951 = vadd.f32 0.0, %v2950
        %2952 = vdwg.mxu0
        %2953 = vmatpush.bf16.msra.mxu0 %v1927
        %2954 = vmatpush.bf16.msra.mxu0 %v1925
        %2955 = vmatpush.bf16.msra.mxu0 %v1923
        %2956 = vmatpush.bf16.msra.mxu0 %v1921
        %2957 = vmatpush.bf16.msra.mxu0 %v1919
        %2958 = vmatpush.bf16.msra.mxu0 %v1917
        %2959 = vmatpush.bf16.msra.mxu0 %v1915
        %2960 = vmatpush.bf16.msra.mxu0 %v1913
        %2961 = vmatmul.bf16.gmra.mxu0 %v1257
        %v2962 = vpop.f32.mrf.mxu0
        %v2963 = vadd.f32 %v2874, %v2962
        %v2964 = vpop.f32.mrf.mxu0
        %v2965 = vadd.f32 %v2876, %v2964
        %2966 = vmatmul.bf16.gmra.mxu0 %v1265
        %v2967 = vpop.f32.mrf.mxu0
        %v2968 = vadd.f32 %v2879, %v2967
        %v2969 = vpop.f32.mrf.mxu0
        %v2970 = vadd.f32 %v2881, %v2969
        %2971 = vmatmul.bf16.gmra.mxu0 %v1273
        %v2972 = vpop.f32.mrf.mxu0
        %v2973 = vadd.f32 %v2884, %v2972
        %v2974 = vpop.f32.mrf.mxu0
        %v2975 = vadd.f32 %v2886, %v2974
        %2976 = vmatmul.bf16.gmra.mxu0 %v1281
        %v2977 = vpop.f32.mrf.mxu0
        %v2978 = vadd.f32 %v2889, %v2977
        %v2979 = vpop.f32.mrf.mxu0
        %v2980 = vadd.f32 %v2891, %v2979
        %2981 = vmatmul.bf16.gmra.mxu0 %v1289
        %v2982 = vpop.f32.mrf.mxu0
        %v2983 = vadd.f32 %v2894, %v2982
        %v2984 = vpop.f32.mrf.mxu0
        %v2985 = vadd.f32 %v2896, %v2984
        %2986 = vmatmul.bf16.gmra.mxu0 %v1297
        %v2987 = vpop.f32.mrf.mxu0
        %v2988 = vadd.f32 %v2899, %v2987
        %v2989 = vpop.f32.mrf.mxu0
        %v2990 = vadd.f32 %v2901, %v2989
        %2991 = vmatmul.bf16.gmra.mxu0 %v1305
        %v2992 = vpop.f32.mrf.mxu0
        %v2993 = vadd.f32 %v2904, %v2992
        %v2994 = vpop.f32.mrf.mxu0
        %v2995 = vadd.f32 %v2906, %v2994
        %2996 = vmatmul.bf16.gmra.mxu0 %v1313
        %v2997 = vpop.f32.mrf.mxu0
        %v2998 = vadd.f32 %v2909, %v2997
        %v2999 = vpop.f32.mrf.mxu0
        %v3000 = vadd.f32 %v2911, %v2999
        %3001 = vmatmul.bf16.gmra.mxu0 %v1321
        %v3002 = vpop.f32.mrf.mxu0
        %v3003 = vadd.f32 %v2914, %v3002
        %v3004 = vpop.f32.mrf.mxu0
        %v3005 = vadd.f32 %v2916, %v3004
        %3006 = vmatmul.bf16.gmra.mxu0 %v1329
        %v3007 = vpop.f32.mrf.mxu0
        %v3008 = vadd.f32 %v2919, %v3007
        %v3009 = vpop.f32.mrf.mxu0
        %v3010 = vadd.f32 %v2921, %v3009
        %3011 = vmatmul.bf16.gmra.mxu0 %v1337
        %v3012 = vpop.f32.mrf.mxu0
        %v3013 = vadd.f32 %v2924, %v3012
        %v3014 = vpop.f32.mrf.mxu0
        %v3015 = vadd.f32 %v2926, %v3014
        %3016 = vmatmul.bf16.gmra.mxu0 %v1345
        %v3017 = vpop.f32.mrf.mxu0
        %v3018 = vadd.f32 %v2929, %v3017
        %v3019 = vpop.f32.mrf.mxu0
        %v3020 = vadd.f32 %v2931, %v3019
        %3021 = vmatmul.bf16.gmra.mxu0 %v1353
        %v3022 = vpop.f32.mrf.mxu0
        %v3023 = vadd.f32 %v2934, %v3022
        %v3024 = vpop.f32.mrf.mxu0
        %v3025 = vadd.f32 %v2936, %v3024
        %3026 = vmatmul.bf16.gmra.mxu0 %v1361
        %v3027 = vpop.f32.mrf.mxu0
        %v3028 = vadd.f32 %v2939, %v3027
        %v3029 = vpop.f32.mrf.mxu0
        %v3030 = vadd.f32 %v2941, %v3029
        %3031 = vmatmul.bf16.gmra.mxu0 %v1369
        %v3032 = vpop.f32.mrf.mxu0
        %v3033 = vadd.f32 %v2944, %v3032
        %v3034 = vpop.f32.mrf.mxu0
        %v3035 = vadd.f32 %v2946, %v3034
        %3036 = vmatmul.bf16.gmra.mxu0 %v1377
        %v3037 = vpop.f32.mrf.mxu0
        %v3038 = vadd.f32 %v2949, %v3037
        %v3039 = vpop.f32.mrf.mxu0
        %v3040 = vadd.f32 %v2951, %v3039
        %3041 = vdwg.mxu0
        %3042 = vmatpush.bf16.msra.mxu0 %v1943
        %3043 = vmatpush.bf16.msra.mxu0 %v1941
        %3044 = vmatpush.bf16.msra.mxu0 %v1939
        %3045 = vmatpush.bf16.msra.mxu0 %v1937
        %3046 = vmatpush.bf16.msra.mxu0 %v1935
        %3047 = vmatpush.bf16.msra.mxu0 %v1933
        %3048 = vmatpush.bf16.msra.mxu0 %v1931
        %3049 = vmatpush.bf16.msra.mxu0 %v1929
        %3050 = vmatmul.bf16.gmra.mxu0 %v1258
        %v3051 = vpop.f32.mrf.mxu0
        %v3052 = vadd.f32 %v2963, %v3051
        %v3053 = vpop.f32.mrf.mxu0
        %v3054 = vadd.f32 %v2965, %v3053
        %3055 = vmatmul.bf16.gmra.mxu0 %v1266
        %v3056 = vpop.f32.mrf.mxu0
        %v3057 = vadd.f32 %v2968, %v3056
        %v3058 = vpop.f32.mrf.mxu0
        %v3059 = vadd.f32 %v2970, %v3058
        %3060 = vmatmul.bf16.gmra.mxu0 %v1274
        %v3061 = vpop.f32.mrf.mxu0
        %v3062 = vadd.f32 %v2973, %v3061
        %v3063 = vpop.f32.mrf.mxu0
        %v3064 = vadd.f32 %v2975, %v3063
        %3065 = vmatmul.bf16.gmra.mxu0 %v1282
        %v3066 = vpop.f32.mrf.mxu0
        %v3067 = vadd.f32 %v2978, %v3066
        %v3068 = vpop.f32.mrf.mxu0
        %v3069 = vadd.f32 %v2980, %v3068
        %3070 = vmatmul.bf16.gmra.mxu0 %v1290
        %v3071 = vpop.f32.mrf.mxu0
        %v3072 = vadd.f32 %v2983, %v3071
        %v3073 = vpop.f32.mrf.mxu0
        %v3074 = vadd.f32 %v2985, %v3073
        %3075 = vmatmul.bf16.gmra.mxu0 %v1298
        %v3076 = vpop.f32.mrf.mxu0
        %v3077 = vadd.f32 %v2988, %v3076
        %v3078 = vpop.f32.mrf.mxu0
        %v3079 = vadd.f32 %v2990, %v3078
        %3080 = vmatmul.bf16.gmra.mxu0 %v1306
        %v3081 = vpop.f32.mrf.mxu0
        %v3082 = vadd.f32 %v2993, %v3081
        %v3083 = vpop.f32.mrf.mxu0
        %v3084 = vadd.f32 %v2995, %v3083
        %3085 = vmatmul.bf16.gmra.mxu0 %v1314
        %v3086 = vpop.f32.mrf.mxu0
        %v3087 = vadd.f32 %v2998, %v3086
        %v3088 = vpop.f32.mrf.mxu0
        %v3089 = vadd.f32 %v3000, %v3088
        %3090 = vmatmul.bf16.gmra.mxu0 %v1322
        %v3091 = vpop.f32.mrf.mxu0
        %v3092 = vadd.f32 %v3003, %v3091
        %v3093 = vpop.f32.mrf.mxu0
        %v3094 = vadd.f32 %v3005, %v3093
        %3095 = vmatmul.bf16.gmra.mxu0 %v1330
        %v3096 = vpop.f32.mrf.mxu0
        %v3097 = vadd.f32 %v3008, %v3096
        %v3098 = vpop.f32.mrf.mxu0
        %v3099 = vadd.f32 %v3010, %v3098
        %3100 = vmatmul.bf16.gmra.mxu0 %v1338
        %v3101 = vpop.f32.mrf.mxu0
        %v3102 = vadd.f32 %v3013, %v3101
        %v3103 = vpop.f32.mrf.mxu0
        %v3104 = vadd.f32 %v3015, %v3103
        %3105 = vmatmul.bf16.gmra.mxu0 %v1346
        %v3106 = vpop.f32.mrf.mxu0
        %v3107 = vadd.f32 %v3018, %v3106
        %v3108 = vpop.f32.mrf.mxu0
        %v3109 = vadd.f32 %v3020, %v3108
        %3110 = vmatmul.bf16.gmra.mxu0 %v1354
        %v3111 = vpop.f32.mrf.mxu0
        %v3112 = vadd.f32 %v3023, %v3111
        %v3113 = vpop.f32.mrf.mxu0
        %v3114 = vadd.f32 %v3025, %v3113
        %3115 = vmatmul.bf16.gmra.mxu0 %v1362
        %v3116 = vpop.f32.mrf.mxu0
        %v3117 = vadd.f32 %v3028, %v3116
        %v3118 = vpop.f32.mrf.mxu0
        %v3119 = vadd.f32 %v3030, %v3118
        %3120 = vmatmul.bf16.gmra.mxu0 %v1370
        %v3121 = vpop.f32.mrf.mxu0
        %v3122 = vadd.f32 %v3033, %v3121
        %v3123 = vpop.f32.mrf.mxu0
        %v3124 = vadd.f32 %v3035, %v3123
        %3125 = vmatmul.bf16.gmra.mxu0 %v1378
        %v3126 = vpop.f32.mrf.mxu0
        %v3127 = vadd.f32 %v3038, %v3126
        %v3128 = vpop.f32.mrf.mxu0
        %v3129 = vadd.f32 %v3040, %v3128
        %3130 = vdwg.mxu0
        %3131 = vmatpush.bf16.msra.mxu0 %v1959
        %3132 = vmatpush.bf16.msra.mxu0 %v1957
        %3133 = vmatpush.bf16.msra.mxu0 %v1955
        %3134 = vmatpush.bf16.msra.mxu0 %v1953
        %3135 = vmatpush.bf16.msra.mxu0 %v1951
        %3136 = vmatpush.bf16.msra.mxu0 %v1949
        %3137 = vmatpush.bf16.msra.mxu0 %v1947
        %3138 = vmatpush.bf16.msra.mxu0 %v1945
        %3139 = vmatmul.bf16.gmra.mxu0 %v1259
        %v3140 = vpop.f32.mrf.mxu0
        %v3141 = vadd.f32 %v3052, %v3140
        %v3142 = vpop.f32.mrf.mxu0
        %v3143 = vadd.f32 %v3054, %v3142
        %3144 = vmatmul.bf16.gmra.mxu0 %v1267
        %v3145 = vpop.f32.mrf.mxu0
        %v3146 = vadd.f32 %v3057, %v3145
        %v3147 = vpop.f32.mrf.mxu0
        %v3148 = vadd.f32 %v3059, %v3147
        %3149 = vmatmul.bf16.gmra.mxu0 %v1275
        %v3150 = vpop.f32.mrf.mxu0
        %v3151 = vadd.f32 %v3062, %v3150
        %v3152 = vpop.f32.mrf.mxu0
        %v3153 = vadd.f32 %v3064, %v3152
        %3154 = vmatmul.bf16.gmra.mxu0 %v1283
        %v3155 = vpop.f32.mrf.mxu0
        %v3156 = vadd.f32 %v3067, %v3155
        %v3157 = vpop.f32.mrf.mxu0
        %v3158 = vadd.f32 %v3069, %v3157
        %3159 = vmatmul.bf16.gmra.mxu0 %v1291
        %v3160 = vpop.f32.mrf.mxu0
        %v3161 = vadd.f32 %v3072, %v3160
        %v3162 = vpop.f32.mrf.mxu0
        %v3163 = vadd.f32 %v3074, %v3162
        %3164 = vmatmul.bf16.gmra.mxu0 %v1299
        %v3165 = vpop.f32.mrf.mxu0
        %v3166 = vadd.f32 %v3077, %v3165
        %v3167 = vpop.f32.mrf.mxu0
        %v3168 = vadd.f32 %v3079, %v3167
        %3169 = vmatmul.bf16.gmra.mxu0 %v1307
        %v3170 = vpop.f32.mrf.mxu0
        %v3171 = vadd.f32 %v3082, %v3170
        %v3172 = vpop.f32.mrf.mxu0
        %v3173 = vadd.f32 %v3084, %v3172
        %3174 = vmatmul.bf16.gmra.mxu0 %v1315
        %v3175 = vpop.f32.mrf.mxu0
        %v3176 = vadd.f32 %v3087, %v3175
        %v3177 = vpop.f32.mrf.mxu0
        %v3178 = vadd.f32 %v3089, %v3177
        %3179 = vmatmul.bf16.gmra.mxu0 %v1323
        %v3180 = vpop.f32.mrf.mxu0
        %v3181 = vadd.f32 %v3092, %v3180
        %v3182 = vpop.f32.mrf.mxu0
        %v3183 = vadd.f32 %v3094, %v3182
        %3184 = vmatmul.bf16.gmra.mxu0 %v1331
        %v3185 = vpop.f32.mrf.mxu0
        %v3186 = vadd.f32 %v3097, %v3185
        %v3187 = vpop.f32.mrf.mxu0
        %v3188 = vadd.f32 %v3099, %v3187
        %3189 = vmatmul.bf16.gmra.mxu0 %v1339
        %v3190 = vpop.f32.mrf.mxu0
        %v3191 = vadd.f32 %v3102, %v3190
        %v3192 = vpop.f32.mrf.mxu0
        %v3193 = vadd.f32 %v3104, %v3192
        %3194 = vmatmul.bf16.gmra.mxu0 %v1347
        %v3195 = vpop.f32.mrf.mxu0
        %v3196 = vadd.f32 %v3107, %v3195
        %v3197 = vpop.f32.mrf.mxu0
        %v3198 = vadd.f32 %v3109, %v3197
        %3199 = vmatmul.bf16.gmra.mxu0 %v1355
        %v3200 = vpop.f32.mrf.mxu0
        %v3201 = vadd.f32 %v3112, %v3200
        %v3202 = vpop.f32.mrf.mxu0
        %v3203 = vadd.f32 %v3114, %v3202
        %3204 = vmatmul.bf16.gmra.mxu0 %v1363
        %v3205 = vpop.f32.mrf.mxu0
        %v3206 = vadd.f32 %v3117, %v3205
        %v3207 = vpop.f32.mrf.mxu0
        %v3208 = vadd.f32 %v3119, %v3207
        %3209 = vmatmul.bf16.gmra.mxu0 %v1371
        %v3210 = vpop.f32.mrf.mxu0
        %v3211 = vadd.f32 %v3122, %v3210
        %v3212 = vpop.f32.mrf.mxu0
        %v3213 = vadd.f32 %v3124, %v3212
        %3214 = vmatmul.bf16.gmra.mxu0 %v1379
        %v3215 = vpop.f32.mrf.mxu0
        %v3216 = vadd.f32 %v3127, %v3215
        %v3217 = vpop.f32.mrf.mxu0
        %v3218 = vadd.f32 %v3129, %v3217
        %3219 = vdwg.mxu0
        %3220 = vmatpush.bf16.msra.mxu0 %v1975
        %3221 = vmatpush.bf16.msra.mxu0 %v1973
        %3222 = vmatpush.bf16.msra.mxu0 %v1971
        %3223 = vmatpush.bf16.msra.mxu0 %v1969
        %3224 = vmatpush.bf16.msra.mxu0 %v1967
        %3225 = vmatpush.bf16.msra.mxu0 %v1965
        %3226 = vmatpush.bf16.msra.mxu0 %v1963
        %3227 = vmatpush.bf16.msra.mxu0 %v1961
        %3228 = vmatmul.bf16.gmra.mxu0 %v1260
        %v3229 = vpop.f32.mrf.mxu0
        %v3230 = vadd.f32 %v3141, %v3229
        %v3231 = vpop.f32.mrf.mxu0
        %v3232 = vadd.f32 %v3143, %v3231
        %3233 = vmatmul.bf16.gmra.mxu0 %v1268
        %v3234 = vpop.f32.mrf.mxu0
        %v3235 = vadd.f32 %v3146, %v3234
        %v3236 = vpop.f32.mrf.mxu0
        %v3237 = vadd.f32 %v3148, %v3236
        %3238 = vmatmul.bf16.gmra.mxu0 %v1276
        %v3239 = vpop.f32.mrf.mxu0
        %v3240 = vadd.f32 %v3151, %v3239
        %v3241 = vpop.f32.mrf.mxu0
        %v3242 = vadd.f32 %v3153, %v3241
        %3243 = vmatmul.bf16.gmra.mxu0 %v1284
        %v3244 = vpop.f32.mrf.mxu0
        %v3245 = vadd.f32 %v3156, %v3244
        %v3246 = vpop.f32.mrf.mxu0
        %v3247 = vadd.f32 %v3158, %v3246
        %3248 = vmatmul.bf16.gmra.mxu0 %v1292
        %v3249 = vpop.f32.mrf.mxu0
        %v3250 = vadd.f32 %v3161, %v3249
        %v3251 = vpop.f32.mrf.mxu0
        %v3252 = vadd.f32 %v3163, %v3251
        %3253 = vmatmul.bf16.gmra.mxu0 %v1300
        %v3254 = vpop.f32.mrf.mxu0
        %v3255 = vadd.f32 %v3166, %v3254
        %v3256 = vpop.f32.mrf.mxu0
        %v3257 = vadd.f32 %v3168, %v3256
        %3258 = vmatmul.bf16.gmra.mxu0 %v1308
        %v3259 = vpop.f32.mrf.mxu0
        %v3260 = vadd.f32 %v3171, %v3259
        %v3261 = vpop.f32.mrf.mxu0
        %v3262 = vadd.f32 %v3173, %v3261
        %3263 = vmatmul.bf16.gmra.mxu0 %v1316
        %v3264 = vpop.f32.mrf.mxu0
        %v3265 = vadd.f32 %v3176, %v3264
        %v3266 = vpop.f32.mrf.mxu0
        %v3267 = vadd.f32 %v3178, %v3266
        %3268 = vmatmul.bf16.gmra.mxu0 %v1324
        %v3269 = vpop.f32.mrf.mxu0
        %v3270 = vadd.f32 %v3181, %v3269
        %v3271 = vpop.f32.mrf.mxu0
        %v3272 = vadd.f32 %v3183, %v3271
        %3273 = vmatmul.bf16.gmra.mxu0 %v1332
        %v3274 = vpop.f32.mrf.mxu0
        %v3275 = vadd.f32 %v3186, %v3274
        %v3276 = vpop.f32.mrf.mxu0
        %v3277 = vadd.f32 %v3188, %v3276
        %3278 = vmatmul.bf16.gmra.mxu0 %v1340
        %v3279 = vpop.f32.mrf.mxu0
        %v3280 = vadd.f32 %v3191, %v3279
        %v3281 = vpop.f32.mrf.mxu0
        %v3282 = vadd.f32 %v3193, %v3281
        %3283 = vmatmul.bf16.gmra.mxu0 %v1348
        %v3284 = vpop.f32.mrf.mxu0
        %v3285 = vadd.f32 %v3196, %v3284
        %v3286 = vpop.f32.mrf.mxu0
        %v3287 = vadd.f32 %v3198, %v3286
        %3288 = vmatmul.bf16.gmra.mxu0 %v1356
        %v3289 = vpop.f32.mrf.mxu0
        %v3290 = vadd.f32 %v3201, %v3289
        %v3291 = vpop.f32.mrf.mxu0
        %v3292 = vadd.f32 %v3203, %v3291
        %3293 = vmatmul.bf16.gmra.mxu0 %v1364
        %v3294 = vpop.f32.mrf.mxu0
        %v3295 = vadd.f32 %v3206, %v3294
        %v3296 = vpop.f32.mrf.mxu0
        %v3297 = vadd.f32 %v3208, %v3296
        %3298 = vmatmul.bf16.gmra.mxu0 %v1372
        %v3299 = vpop.f32.mrf.mxu0
        %v3300 = vadd.f32 %v3211, %v3299
        %v3301 = vpop.f32.mrf.mxu0
        %v3302 = vadd.f32 %v3213, %v3301
        %3303 = vmatmul.bf16.gmra.mxu0 %v1380
        %v3304 = vpop.f32.mrf.mxu0
        %v3305 = vadd.f32 %v3216, %v3304
        %v3306 = vpop.f32.mrf.mxu0
        %v3307 = vadd.f32 %v3218, %v3306
        %3308 = vdwg.mxu0
        %3309 = vmatpush.bf16.msra.mxu0 %v1991
        %3310 = vmatpush.bf16.msra.mxu0 %v1989
        %3311 = vmatpush.bf16.msra.mxu0 %v1987
        %3312 = vmatpush.bf16.msra.mxu0 %v1985
        %3313 = vmatpush.bf16.msra.mxu0 %v1983
        %3314 = vmatpush.bf16.msra.mxu0 %v1981
        %3315 = vmatpush.bf16.msra.mxu0 %v1979
        %3316 = vmatpush.bf16.msra.mxu0 %v1977
        %3317 = vmatmul.bf16.gmra.mxu0 %v1261
        %v3318 = vpop.f32.mrf.mxu0
        %v3319 = vadd.f32 %v3230, %v3318
        %v3320 = vpop.f32.mrf.mxu0
        %v3321 = vadd.f32 %v3232, %v3320
        %3322 = vmatmul.bf16.gmra.mxu0 %v1269
        %v3323 = vpop.f32.mrf.mxu0
        %v3324 = vadd.f32 %v3235, %v3323
        %v3325 = vpop.f32.mrf.mxu0
        %v3326 = vadd.f32 %v3237, %v3325
        %3327 = vmatmul.bf16.gmra.mxu0 %v1277
        %v3328 = vpop.f32.mrf.mxu0
        %v3329 = vadd.f32 %v3240, %v3328
        %v3330 = vpop.f32.mrf.mxu0
        %v3331 = vadd.f32 %v3242, %v3330
        %3332 = vmatmul.bf16.gmra.mxu0 %v1285
        %v3333 = vpop.f32.mrf.mxu0
        %v3334 = vadd.f32 %v3245, %v3333
        %v3335 = vpop.f32.mrf.mxu0
        %v3336 = vadd.f32 %v3247, %v3335
        %3337 = vmatmul.bf16.gmra.mxu0 %v1293
        %v3338 = vpop.f32.mrf.mxu0
        %v3339 = vadd.f32 %v3250, %v3338
        %v3340 = vpop.f32.mrf.mxu0
        %v3341 = vadd.f32 %v3252, %v3340
        %3342 = vmatmul.bf16.gmra.mxu0 %v1301
        %v3343 = vpop.f32.mrf.mxu0
        %v3344 = vadd.f32 %v3255, %v3343
        %v3345 = vpop.f32.mrf.mxu0
        %v3346 = vadd.f32 %v3257, %v3345
        %3347 = vmatmul.bf16.gmra.mxu0 %v1309
        %v3348 = vpop.f32.mrf.mxu0
        %v3349 = vadd.f32 %v3260, %v3348
        %v3350 = vpop.f32.mrf.mxu0
        %v3351 = vadd.f32 %v3262, %v3350
        %3352 = vmatmul.bf16.gmra.mxu0 %v1317
        %v3353 = vpop.f32.mrf.mxu0
        %v3354 = vadd.f32 %v3265, %v3353
        %v3355 = vpop.f32.mrf.mxu0
        %v3356 = vadd.f32 %v3267, %v3355
        %3357 = vmatmul.bf16.gmra.mxu0 %v1325
        %v3358 = vpop.f32.mrf.mxu0
        %v3359 = vadd.f32 %v3270, %v3358
        %v3360 = vpop.f32.mrf.mxu0
        %v3361 = vadd.f32 %v3272, %v3360
        %3362 = vmatmul.bf16.gmra.mxu0 %v1333
        %v3363 = vpop.f32.mrf.mxu0
        %v3364 = vadd.f32 %v3275, %v3363
        %v3365 = vpop.f32.mrf.mxu0
        %v3366 = vadd.f32 %v3277, %v3365
        %3367 = vmatmul.bf16.gmra.mxu0 %v1341
        %v3368 = vpop.f32.mrf.mxu0
        %v3369 = vadd.f32 %v3280, %v3368
        %v3370 = vpop.f32.mrf.mxu0
        %v3371 = vadd.f32 %v3282, %v3370
        %3372 = vmatmul.bf16.gmra.mxu0 %v1349
        %v3373 = vpop.f32.mrf.mxu0
        %v3374 = vadd.f32 %v3285, %v3373
        %v3375 = vpop.f32.mrf.mxu0
        %v3376 = vadd.f32 %v3287, %v3375
        %3377 = vmatmul.bf16.gmra.mxu0 %v1357
        %v3378 = vpop.f32.mrf.mxu0
        %v3379 = vadd.f32 %v3290, %v3378
        %v3380 = vpop.f32.mrf.mxu0
        %v3381 = vadd.f32 %v3292, %v3380
        %3382 = vmatmul.bf16.gmra.mxu0 %v1365
        %v3383 = vpop.f32.mrf.mxu0
        %v3384 = vadd.f32 %v3295, %v3383
        %v3385 = vpop.f32.mrf.mxu0
        %v3386 = vadd.f32 %v3297, %v3385
        %3387 = vmatmul.bf16.gmra.mxu0 %v1373
        %v3388 = vpop.f32.mrf.mxu0
        %v3389 = vadd.f32 %v3300, %v3388
        %v3390 = vpop.f32.mrf.mxu0
        %v3391 = vadd.f32 %v3302, %v3390
        %3392 = vmatmul.bf16.gmra.mxu0 %v1381
        %v3393 = vpop.f32.mrf.mxu0
        %v3394 = vadd.f32 %v3305, %v3393
        %v3395 = vpop.f32.mrf.mxu0
        %v3396 = vadd.f32 %v3307, %v3395
        %3397 = vdwg.mxu0
        %3398 = vmatpush.bf16.msra.mxu0 %v2007
        %3399 = vmatpush.bf16.msra.mxu0 %v2005
        %3400 = vmatpush.bf16.msra.mxu0 %v2003
        %3401 = vmatpush.bf16.msra.mxu0 %v2001
        %3402 = vmatpush.bf16.msra.mxu0 %v1999
        %3403 = vmatpush.bf16.msra.mxu0 %v1997
        %3404 = vmatpush.bf16.msra.mxu0 %v1995
        %3405 = vmatpush.bf16.msra.mxu0 %v1993
        %3406 = vmatmul.bf16.gmra.mxu0 %v1262
        %v3407 = vpop.f32.mrf.mxu0
        %v3408 = vadd.f32 %v3319, %v3407
        %v3409 = vpop.f32.mrf.mxu0
        %v3410 = vadd.f32 %v3321, %v3409
        %3411 = vmatmul.bf16.gmra.mxu0 %v1270
        %v3412 = vpop.f32.mrf.mxu0
        %v3413 = vadd.f32 %v3324, %v3412
        %v3414 = vpop.f32.mrf.mxu0
        %v3415 = vadd.f32 %v3326, %v3414
        %3416 = vmatmul.bf16.gmra.mxu0 %v1278
        %v3417 = vpop.f32.mrf.mxu0
        %v3418 = vadd.f32 %v3329, %v3417
        %v3419 = vpop.f32.mrf.mxu0
        %v3420 = vadd.f32 %v3331, %v3419
        %3421 = vmatmul.bf16.gmra.mxu0 %v1286
        %v3422 = vpop.f32.mrf.mxu0
        %v3423 = vadd.f32 %v3334, %v3422
        %v3424 = vpop.f32.mrf.mxu0
        %v3425 = vadd.f32 %v3336, %v3424
        %3426 = vmatmul.bf16.gmra.mxu0 %v1294
        %v3427 = vpop.f32.mrf.mxu0
        %v3428 = vadd.f32 %v3339, %v3427
        %v3429 = vpop.f32.mrf.mxu0
        %v3430 = vadd.f32 %v3341, %v3429
        %3431 = vmatmul.bf16.gmra.mxu0 %v1302
        %v3432 = vpop.f32.mrf.mxu0
        %v3433 = vadd.f32 %v3344, %v3432
        %v3434 = vpop.f32.mrf.mxu0
        %v3435 = vadd.f32 %v3346, %v3434
        %3436 = vmatmul.bf16.gmra.mxu0 %v1310
        %v3437 = vpop.f32.mrf.mxu0
        %v3438 = vadd.f32 %v3349, %v3437
        %v3439 = vpop.f32.mrf.mxu0
        %v3440 = vadd.f32 %v3351, %v3439
        %3441 = vmatmul.bf16.gmra.mxu0 %v1318
        %v3442 = vpop.f32.mrf.mxu0
        %v3443 = vadd.f32 %v3354, %v3442
        %v3444 = vpop.f32.mrf.mxu0
        %v3445 = vadd.f32 %v3356, %v3444
        %3446 = vmatmul.bf16.gmra.mxu0 %v1326
        %v3447 = vpop.f32.mrf.mxu0
        %v3448 = vadd.f32 %v3359, %v3447
        %v3449 = vpop.f32.mrf.mxu0
        %v3450 = vadd.f32 %v3361, %v3449
        %3451 = vmatmul.bf16.gmra.mxu0 %v1334
        %v3452 = vpop.f32.mrf.mxu0
        %v3453 = vadd.f32 %v3364, %v3452
        %v3454 = vpop.f32.mrf.mxu0
        %v3455 = vadd.f32 %v3366, %v3454
        %3456 = vmatmul.bf16.gmra.mxu0 %v1342
        %v3457 = vpop.f32.mrf.mxu0
        %v3458 = vadd.f32 %v3369, %v3457
        %v3459 = vpop.f32.mrf.mxu0
        %v3460 = vadd.f32 %v3371, %v3459
        %3461 = vmatmul.bf16.gmra.mxu0 %v1350
        %v3462 = vpop.f32.mrf.mxu0
        %v3463 = vadd.f32 %v3374, %v3462
        %v3464 = vpop.f32.mrf.mxu0
        %v3465 = vadd.f32 %v3376, %v3464
        %3466 = vmatmul.bf16.gmra.mxu0 %v1358
        %v3467 = vpop.f32.mrf.mxu0
        %v3468 = vadd.f32 %v3379, %v3467
        %v3469 = vpop.f32.mrf.mxu0
        %v3470 = vadd.f32 %v3381, %v3469
        %3471 = vmatmul.bf16.gmra.mxu0 %v1366
        %v3472 = vpop.f32.mrf.mxu0
        %v3473 = vadd.f32 %v3384, %v3472
        %v3474 = vpop.f32.mrf.mxu0
        %v3475 = vadd.f32 %v3386, %v3474
        %3476 = vmatmul.bf16.gmra.mxu0 %v1374
        %v3477 = vpop.f32.mrf.mxu0
        %v3478 = vadd.f32 %v3389, %v3477
        %v3479 = vpop.f32.mrf.mxu0
        %v3480 = vadd.f32 %v3391, %v3479
        %3481 = vmatmul.bf16.gmra.mxu0 %v1382
        %v3482 = vpop.f32.mrf.mxu0
        %v3483 = vadd.f32 %v3394, %v3482
        %v3484 = vpop.f32.mrf.mxu0
        %v3485 = vadd.f32 %v3396, %v3484
        %3486 = vdwg.mxu0
        %3487 = vmatpush.bf16.msra.mxu0 %v2023
        %3488 = vmatpush.bf16.msra.mxu0 %v2021
        %3489 = vmatpush.bf16.msra.mxu0 %v2019
        %3490 = vmatpush.bf16.msra.mxu0 %v2017
        %3491 = vmatpush.bf16.msra.mxu0 %v2015
        %3492 = vmatpush.bf16.msra.mxu0 %v2013
        %3493 = vmatpush.bf16.msra.mxu0 %v2011
        %3494 = vmatpush.bf16.msra.mxu0 %v2009
        %3495 = vmatmul.bf16.gmra.mxu0 %v1263
        %v3496 = vpop.f32.mrf.mxu0
        %v3497 = vadd.f32 %v3408, %v3496
        %v3498 = vpop.f32.mrf.mxu0
        %v3499 = vadd.f32 %v3410, %v3498
        %3500 = vmatmul.bf16.gmra.mxu0 %v1271
        %v3501 = vpop.f32.mrf.mxu0
        %v3502 = vadd.f32 %v3413, %v3501
        %v3503 = vpop.f32.mrf.mxu0
        %v3504 = vadd.f32 %v3415, %v3503
        %3505 = vmatmul.bf16.gmra.mxu0 %v1279
        %v3506 = vpop.f32.mrf.mxu0
        %v3507 = vadd.f32 %v3418, %v3506
        %v3508 = vpop.f32.mrf.mxu0
        %v3509 = vadd.f32 %v3420, %v3508
        %3510 = vmatmul.bf16.gmra.mxu0 %v1287
        %v3511 = vpop.f32.mrf.mxu0
        %v3512 = vadd.f32 %v3423, %v3511
        %v3513 = vpop.f32.mrf.mxu0
        %v3514 = vadd.f32 %v3425, %v3513
        %3515 = vmatmul.bf16.gmra.mxu0 %v1295
        %v3516 = vpop.f32.mrf.mxu0
        %v3517 = vadd.f32 %v3428, %v3516
        %v3518 = vpop.f32.mrf.mxu0
        %v3519 = vadd.f32 %v3430, %v3518
        %3520 = vmatmul.bf16.gmra.mxu0 %v1303
        %v3521 = vpop.f32.mrf.mxu0
        %v3522 = vadd.f32 %v3433, %v3521
        %v3523 = vpop.f32.mrf.mxu0
        %v3524 = vadd.f32 %v3435, %v3523
        %3525 = vmatmul.bf16.gmra.mxu0 %v1311
        %v3526 = vpop.f32.mrf.mxu0
        %v3527 = vadd.f32 %v3438, %v3526
        %v3528 = vpop.f32.mrf.mxu0
        %v3529 = vadd.f32 %v3440, %v3528
        %3530 = vmatmul.bf16.gmra.mxu0 %v1319
        %v3531 = vpop.f32.mrf.mxu0
        %v3532 = vadd.f32 %v3443, %v3531
        %v3533 = vpop.f32.mrf.mxu0
        %v3534 = vadd.f32 %v3445, %v3533
        %3535 = vmatmul.bf16.gmra.mxu0 %v1327
        %v3536 = vpop.f32.mrf.mxu0
        %v3537 = vadd.f32 %v3448, %v3536
        %v3538 = vpop.f32.mrf.mxu0
        %v3539 = vadd.f32 %v3450, %v3538
        %3540 = vmatmul.bf16.gmra.mxu0 %v1335
        %v3541 = vpop.f32.mrf.mxu0
        %v3542 = vadd.f32 %v3453, %v3541
        %v3543 = vpop.f32.mrf.mxu0
        %v3544 = vadd.f32 %v3455, %v3543
        %3545 = vmatmul.bf16.gmra.mxu0 %v1343
        %v3546 = vpop.f32.mrf.mxu0
        %v3547 = vadd.f32 %v3458, %v3546
        %v3548 = vpop.f32.mrf.mxu0
        %v3549 = vadd.f32 %v3460, %v3548
        %3550 = vmatmul.bf16.gmra.mxu0 %v1351
        %v3551 = vpop.f32.mrf.mxu0
        %v3552 = vadd.f32 %v3463, %v3551
        %v3553 = vpop.f32.mrf.mxu0
        %v3554 = vadd.f32 %v3465, %v3553
        %3555 = vmatmul.bf16.gmra.mxu0 %v1359
        %v3556 = vpop.f32.mrf.mxu0
        %v3557 = vadd.f32 %v3468, %v3556
        %v3558 = vpop.f32.mrf.mxu0
        %v3559 = vadd.f32 %v3470, %v3558
        %3560 = vmatmul.bf16.gmra.mxu0 %v1367
        %v3561 = vpop.f32.mrf.mxu0
        %v3562 = vadd.f32 %v3473, %v3561
        %v3563 = vpop.f32.mrf.mxu0
        %v3564 = vadd.f32 %v3475, %v3563
        %3565 = vmatmul.bf16.gmra.mxu0 %v1375
        %v3566 = vpop.f32.mrf.mxu0
        %v3567 = vadd.f32 %v3478, %v3566
        %v3568 = vpop.f32.mrf.mxu0
        %v3569 = vadd.f32 %v3480, %v3568
        %3570 = vmatmul.bf16.gmra.mxu0 %v1383
        %v3571 = vpop.f32.mrf.mxu0
        %v3572 = vadd.f32 %v3483, %v3571
        %v3573 = vpop.f32.mrf.mxu0
        %v3574 = vadd.f32 %v3485, %v3573
        %3575 = vdwg.mxu0
        %v3576 = vadd.f32 %v552, %v2785
        %v3577 = vadd.f32 %v553, %v3497
        %v3578 = vadd.f32 %v554, %v2787
        %v3579 = vadd.f32 %v555, %v3499
        %v3580 = vadd.f32 %v556, %v2790
        %v3581 = vadd.f32 %v557, %v3502
        %v3582 = vadd.f32 %v558, %v2792
        %v3583 = vadd.f32 %v559, %v3504
        %v3584 = vadd.f32 %v560, %v2795
        %v3585 = vadd.f32 %v561, %v3507
        %v3586 = vadd.f32 %v562, %v2797
        %v3587 = vadd.f32 %v563, %v3509
        %v3588 = vadd.f32 %v564, %v2800
        %v3589 = vadd.f32 %v565, %v3512
        %v3590 = vadd.f32 %v566, %v2802
        %v3591 = vadd.f32 %v567, %v3514
        %v3592 = vadd.f32 %v568, %v2805
        %v3593 = vadd.f32 %v569, %v3517
        %v3594 = vadd.f32 %v570, %v2807
        %v3595 = vadd.f32 %v571, %v3519
        %v3596 = vadd.f32 %v572, %v2810
        %v3597 = vadd.f32 %v573, %v3522
        %v3598 = vadd.f32 %v574, %v2812
        %v3599 = vadd.f32 %v575, %v3524
        %v3600 = vadd.f32 %v576, %v2815
        %v3601 = vadd.f32 %v577, %v3527
        %v3602 = vadd.f32 %v578, %v2817
        %v3603 = vadd.f32 %v579, %v3529
        %v3604 = vadd.f32 %v580, %v2820
        %v3605 = vadd.f32 %v581, %v3532
        %v3606 = vadd.f32 %v582, %v2822
        %v3607 = vadd.f32 %v583, %v3534
        %v3608 = vadd.f32 %v584, %v2825
        %v3609 = vadd.f32 %v585, %v3537
        %v3610 = vadd.f32 %v586, %v2827
        %v3611 = vadd.f32 %v587, %v3539
        %v3612 = vadd.f32 %v588, %v2830
        %v3613 = vadd.f32 %v589, %v3542
        %v3614 = vadd.f32 %v590, %v2832
        %v3615 = vadd.f32 %v591, %v3544
        %v3616 = vadd.f32 %v592, %v2835
        %v3617 = vadd.f32 %v593, %v3547
        %v3618 = vadd.f32 %v594, %v2837
        %v3619 = vadd.f32 %v595, %v3549
        %v3620 = vadd.f32 %v596, %v2840
        %v3621 = vadd.f32 %v597, %v3552
        %v3622 = vadd.f32 %v598, %v2842
        %v3623 = vadd.f32 %v599, %v3554
        %v3624 = vadd.f32 %v600, %v2845
        %v3625 = vadd.f32 %v601, %v3557
        %v3626 = vadd.f32 %v602, %v2847
        %v3627 = vadd.f32 %v603, %v3559
        %v3628 = vadd.f32 %v604, %v2850
        %v3629 = vadd.f32 %v605, %v3562
        %v3630 = vadd.f32 %v606, %v2852
        %v3631 = vadd.f32 %v607, %v3564
        %v3632 = vadd.f32 %v608, %v2855
        %v3633 = vadd.f32 %v609, %v3567
        %v3634 = vadd.f32 %v610, %v2857
        %v3635 = vadd.f32 %v611, %v3569
        %v3636 = vadd.f32 %v612, %v2860
        %v3637 = vadd.f32 %v613, %v3572
        %v3638 = vadd.f32 %v614, %v2862
        %v3639 = vadd.f32 %v615, %v3574
        %3640 = vst [vmem:[#allocation2] sm:$0xff] %v3576
        %3641 = vst [vmem:[#allocation2 + $0x8] sm:$0xff] %v3577
        %3642 = vst [vmem:[#allocation2 + $0x10] sm:$0xff] %v3578
        %3643 = vst [vmem:[#allocation2 + $0x18] sm:$0xff] %v3579
        %3644 = vst [vmem:[#allocation2 + $0x20] sm:$0xff] %v3580
        %3645 = vst [vmem:[#allocation2 + $0x28] sm:$0xff] %v3581
        %3646 = vst [vmem:[#allocation2 + $0x30] sm:$0xff] %v3582
        %3647 = vst [vmem:[#allocation2 + $0x38] sm:$0xff] %v3583
        %3648 = vst [vmem:[#allocation2 + $0x40] sm:$0xff] %v3584
        %3649 = vst [vmem:[#allocation2 + $0x48] sm:$0xff] %v3585
        %3650 = vst [vmem:[#allocation2 + $0x50] sm:$0xff] %v3586
        %3651 = vst [vmem:[#allocation2 + $0x58] sm:$0xff] %v3587
        %3652 = vst [vmem:[#allocation2 + $0x60] sm:$0xff] %v3588
        %3653 = vst [vmem:[#allocation2 + $0x68] sm:$0xff] %v3589
        %3654 = vst [vmem:[#allocation2 + $0x70] sm:$0xff] %v3590
        %3655 = vst [vmem:[#allocation2 + $0x78] sm:$0xff] %v3591
        %3656 = vst [vmem:[#allocation2 + $0x80] sm:$0xff] %v3592
        %3657 = vst [vmem:[#allocation2 + $0x88] sm:$0xff] %v3593
        %3658 = vst [vmem:[#allocation2 + $0x90] sm:$0xff] %v3594
        %3659 = vst [vmem:[#allocation2 + $0x98] sm:$0xff] %v3595
        %3660 = vst [vmem:[#allocation2 + $0xa0] sm:$0xff] %v3596
        %3661 = vst [vmem:[#allocation2 + $0xa8] sm:$0xff] %v3597
        %3662 = vst [vmem:[#allocation2 + $0xb0] sm:$0xff] %v3598
        %3663 = vst [vmem:[#allocation2 + $0xb8] sm:$0xff] %v3599
        %3664 = vst [vmem:[#allocation2 + $0xc0] sm:$0xff] %v3600
        %3665 = vst [vmem:[#allocation2 + $0xc8] sm:$0xff] %v3601
        %3666 = vst [vmem:[#allocation2 + $0xd0] sm:$0xff] %v3602
        %3667 = vst [vmem:[#allocation2 + $0xd8] sm:$0xff] %v3603
        %3668 = vst [vmem:[#allocation2 + $0xe0] sm:$0xff] %v3604
        %3669 = vst [vmem:[#allocation2 + $0xe8] sm:$0xff] %v3605
        %3670 = vst [vmem:[#allocation2 + $0xf0] sm:$0xff] %v3606
        %3671 = vst [vmem:[#allocation2 + $0xf8] sm:$0xff] %v3607
        %3672 = vst [vmem:[#allocation2 + $0x100] sm:$0xff] %v3608
        %3673 = vst [vmem:[#allocation2 + $0x108] sm:$0xff] %v3609
        %3674 = vst [vmem:[#allocation2 + $0x110] sm:$0xff] %v3610
        %3675 = vst [vmem:[#allocation2 + $0x118] sm:$0xff] %v3611
        %3676 = vst [vmem:[#allocation2 + $0x120] sm:$0xff] %v3612
        %3677 = vst [vmem:[#allocation2 + $0x128] sm:$0xff] %v3613
        %3678 = vst [vmem:[#allocation2 + $0x130] sm:$0xff] %v3614
        %3679 = vst [vmem:[#allocation2 + $0x138] sm:$0xff] %v3615
        %3680 = vst [vmem:[#allocation2 + $0x140] sm:$0xff] %v3616
        %3681 = vst [vmem:[#allocation2 + $0x148] sm:$0xff] %v3617
        %3682 = vst [vmem:[#allocation2 + $0x150] sm:$0xff] %v3618
        %3683 = vst [vmem:[#allocation2 + $0x158] sm:$0xff] %v3619
        %3684 = vst [vmem:[#allocation2 + $0x160] sm:$0xff] %v3620
        %3685 = vst [vmem:[#allocation2 + $0x168] sm:$0xff] %v3621
        %3686 = vst [vmem:[#allocation2 + $0x170] sm:$0xff] %v3622
        %3687 = vst [vmem:[#allocation2 + $0x178] sm:$0xff] %v3623
        %3688 = vst [vmem:[#allocation2 + $0x180] sm:$0xff] %v3624
        %3689 = vst [vmem:[#allocation2 + $0x188] sm:$0xff] %v3625
        %3690 = vst [vmem:[#allocation2 + $0x190] sm:$0xff] %v3626
        %3691 = vst [vmem:[#allocation2 + $0x198] sm:$0xff] %v3627
        %3692 = vst [vmem:[#allocation2 + $0x1a0] sm:$0xff] %v3628
        %3693 = vst [vmem:[#allocation2 + $0x1a8] sm:$0xff] %v3629
        %3694 = vst [vmem:[#allocation2 + $0x1b0] sm:$0xff] %v3630
        %3695 = vst [vmem:[#allocation2 + $0x1b8] sm:$0xff] %v3631
        %3696 = vst [vmem:[#allocation2 + $0x1c0] sm:$0xff] %v3632
        %3697 = vst [vmem:[#allocation2 + $0x1c8] sm:$0xff] %v3633
        %3698 = vst [vmem:[#allocation2 + $0x1d0] sm:$0xff] %v3634
        %3699 = vst [vmem:[#allocation2 + $0x1d8] sm:$0xff] %v3635
        %3700 = vst [vmem:[#allocation2 + $0x1e0] sm:$0xff] %v3636
        %3701 = vst [vmem:[#allocation2 + $0x1e8] sm:$0xff] %v3637
        %3702 = vst [vmem:[#allocation2 + $0x1f0] sm:$0xff] %v3638
        %3703 = vst [vmem:[#allocation2 + $0x1f8] sm:$0xff] %v3639
        %p3704 = scmp.eq.s32.totalorder %s39, 1
        // Predicated region
        $region81: #{tpu_custom_call.1} parent=47 // pred_check
          %p3705 = pneg %p3704
        $region82: #{tpu_custom_call.1} parent=47 // pred_check_branch
          %3707 = sbr.rel (%p3705) target = $region84
        $region83: #{tpu_custom_call.1} parent=47 // pred_region
          %v3708 = vld [vmem:[#allocation2] sm:$0xff]
          %v3709 = vld [vmem:[#allocation2 + $0x8] sm:$0xff]
          %v3710 = vld [vmem:[#allocation2 + $0x10] sm:$0xff]
          %v3711 = vld [vmem:[#allocation2 + $0x18] sm:$0xff]
          %v3712 = vld [vmem:[#allocation2 + $0x20] sm:$0xff]
          %v3713 = vld [vmem:[#allocation2 + $0x28] sm:$0xff]
          %v3714 = vld [vmem:[#allocation2 + $0x30] sm:$0xff]
          %v3715 = vld [vmem:[#allocation2 + $0x38] sm:$0xff]
          %v3716 = vld [vmem:[#allocation2 + $0x40] sm:$0xff]
          %v3717 = vld [vmem:[#allocation2 + $0x48] sm:$0xff]
          %v3718 = vld [vmem:[#allocation2 + $0x50] sm:$0xff]
          %v3719 = vld [vmem:[#allocation2 + $0x58] sm:$0xff]
          %v3720 = vld [vmem:[#allocation2 + $0x60] sm:$0xff]
          %v3721 = vld [vmem:[#allocation2 + $0x68] sm:$0xff]
          %v3722 = vld [vmem:[#allocation2 + $0x70] sm:$0xff]
          %v3723 = vld [vmem:[#allocation2 + $0x78] sm:$0xff]
          %v3724 = vld [vmem:[#allocation2 + $0x80] sm:$0xff]
          %v3725 = vld [vmem:[#allocation2 + $0x88] sm:$0xff]
          %v3726 = vld [vmem:[#allocation2 + $0x90] sm:$0xff]
          %v3727 = vld [vmem:[#allocation2 + $0x98] sm:$0xff]
          %v3728 = vld [vmem:[#allocation2 + $0xa0] sm:$0xff]
          %v3729 = vld [vmem:[#allocation2 + $0xa8] sm:$0xff]
          %v3730 = vld [vmem:[#allocation2 + $0xb0] sm:$0xff]
          %v3731 = vld [vmem:[#allocation2 + $0xb8] sm:$0xff]
          %v3732 = vld [vmem:[#allocation2 + $0xc0] sm:$0xff]
          %v3733 = vld [vmem:[#allocation2 + $0xc8] sm:$0xff]
          %v3734 = vld [vmem:[#allocation2 + $0xd0] sm:$0xff]
          %v3735 = vld [vmem:[#allocation2 + $0xd8] sm:$0xff]
          %v3736 = vld [vmem:[#allocation2 + $0xe0] sm:$0xff]
          %v3737 = vld [vmem:[#allocation2 + $0xe8] sm:$0xff]
          %v3738 = vld [vmem:[#allocation2 + $0xf0] sm:$0xff]
          %v3739 = vld [vmem:[#allocation2 + $0xf8] sm:$0xff]
          %v3740 = vld [vmem:[#allocation2 + $0x100] sm:$0xff]
          %v3741 = vld [vmem:[#allocation2 + $0x108] sm:$0xff]
          %v3742 = vld [vmem:[#allocation2 + $0x110] sm:$0xff]
          %v3743 = vld [vmem:[#allocation2 + $0x118] sm:$0xff]
          %v3744 = vld [vmem:[#allocation2 + $0x120] sm:$0xff]
          %v3745 = vld [vmem:[#allocation2 + $0x128] sm:$0xff]
          %v3746 = vld [vmem:[#allocation2 + $0x130] sm:$0xff]
          %v3747 = vld [vmem:[#allocation2 + $0x138] sm:$0xff]
          %v3748 = vld [vmem:[#allocation2 + $0x140] sm:$0xff]
          %v3749 = vld [vmem:[#allocation2 + $0x148] sm:$0xff]
          %v3750 = vld [vmem:[#allocation2 + $0x150] sm:$0xff]
          %v3751 = vld [vmem:[#allocation2 + $0x158] sm:$0xff]
          %v3752 = vld [vmem:[#allocation2 + $0x160] sm:$0xff]
          %v3753 = vld [vmem:[#allocation2 + $0x168] sm:$0xff]
          %v3754 = vld [vmem:[#allocation2 + $0x170] sm:$0xff]
          %v3755 = vld [vmem:[#allocation2 + $0x178] sm:$0xff]
          %v3756 = vld [vmem:[#allocation2 + $0x180] sm:$0xff]
          %v3757 = vld [vmem:[#allocation2 + $0x188] sm:$0xff]
          %v3758 = vld [vmem:[#allocation2 + $0x190] sm:$0xff]
          %v3759 = vld [vmem:[#allocation2 + $0x198] sm:$0xff]
          %v3760 = vld [vmem:[#allocation2 + $0x1a0] sm:$0xff]
          %v3761 = vld [vmem:[#allocation2 + $0x1a8] sm:$0xff]
          %v3762 = vld [vmem:[#allocation2 + $0x1b0] sm:$0xff]
          %v3763 = vld [vmem:[#allocation2 + $0x1b8] sm:$0xff]
          %v3764 = vld [vmem:[#allocation2 + $0x1c0] sm:$0xff]
          %v3765 = vld [vmem:[#allocation2 + $0x1c8] sm:$0xff]
          %v3766 = vld [vmem:[#allocation2 + $0x1d0] sm:$0xff]
          %v3767 = vld [vmem:[#allocation2 + $0x1d8] sm:$0xff]
          %v3768 = vld [vmem:[#allocation2 + $0x1e0] sm:$0xff]
          %v3769 = vld [vmem:[#allocation2 + $0x1e8] sm:$0xff]
          %v3770 = vld [vmem:[#allocation2 + $0x1f0] sm:$0xff]
          %v3771 = vld [vmem:[#allocation2 + $0x1f8] sm:$0xff]
          %v3772 = vmax.f32 %v3708, 0.0
          %v3773 = vmax.f32 %v3709, 0.0
          %v3774 = vmax.f32 %v3710, 0.0
          %v3775 = vmax.f32 %v3711, 0.0
          %v3776 = vmax.f32 %v3712, 0.0
          %v3777 = vmax.f32 %v3713, 0.0
          %v3778 = vmax.f32 %v3714, 0.0
          %v3779 = vmax.f32 %v3715, 0.0
          %v3780 = vmax.f32 %v3716, 0.0
          %v3781 = vmax.f32 %v3717, 0.0
          %v3782 = vmax.f32 %v3718, 0.0
          %v3783 = vmax.f32 %v3719, 0.0
          %v3784 = vmax.f32 %v3720, 0.0
          %v3785 = vmax.f32 %v3721, 0.0
          %v3786 = vmax.f32 %v3722, 0.0
          %v3787 = vmax.f32 %v3723, 0.0
          %v3788 = vmax.f32 %v3724, 0.0
          %v3789 = vmax.f32 %v3725, 0.0
          %v3790 = vmax.f32 %v3726, 0.0
          %v3791 = vmax.f32 %v3727, 0.0
          %v3792 = vmax.f32 %v3728, 0.0
          %v3793 = vmax.f32 %v3729, 0.0
          %v3794 = vmax.f32 %v3730, 0.0
          %v3795 = vmax.f32 %v3731, 0.0
          %v3796 = vmax.f32 %v3732, 0.0
          %v3797 = vmax.f32 %v3733, 0.0
          %v3798 = vmax.f32 %v3734, 0.0
          %v3799 = vmax.f32 %v3735, 0.0
          %v3800 = vmax.f32 %v3736, 0.0
          %v3801 = vmax.f32 %v3737, 0.0
          %v3802 = vmax.f32 %v3738, 0.0
          %v3803 = vmax.f32 %v3739, 0.0
          %v3804 = vmax.f32 %v3740, 0.0
          %v3805 = vmax.f32 %v3741, 0.0
          %v3806 = vmax.f32 %v3742, 0.0
          %v3807 = vmax.f32 %v3743, 0.0
          %v3808 = vmax.f32 %v3744, 0.0
          %v3809 = vmax.f32 %v3745, 0.0
          %v3810 = vmax.f32 %v3746, 0.0
          %v3811 = vmax.f32 %v3747, 0.0
          %v3812 = vmax.f32 %v3748, 0.0
          %v3813 = vmax.f32 %v3749, 0.0
          %v3814 = vmax.f32 %v3750, 0.0
          %v3815 = vmax.f32 %v3751, 0.0
          %v3816 = vmax.f32 %v3752, 0.0
          %v3817 = vmax.f32 %v3753, 0.0
          %v3818 = vmax.f32 %v3754, 0.0
          %v3819 = vmax.f32 %v3755, 0.0
          %v3820 = vmax.f32 %v3756, 0.0
          %v3821 = vmax.f32 %v3757, 0.0
          %v3822 = vmax.f32 %v3758, 0.0
          %v3823 = vmax.f32 %v3759, 0.0
          %v3824 = vmax.f32 %v3760, 0.0
          %v3825 = vmax.f32 %v3761, 0.0
          %v3826 = vmax.f32 %v3762, 0.0
          %v3827 = vmax.f32 %v3763, 0.0
          %v3828 = vmax.f32 %v3764, 0.0
          %v3829 = vmax.f32 %v3765, 0.0
          %v3830 = vmax.f32 %v3766, 0.0
          %v3831 = vmax.f32 %v3767, 0.0
          %v3832 = vmax.f32 %v3768, 0.0
          %v3833 = vmax.f32 %v3769, 0.0
          %v3834 = vmax.f32 %v3770, 0.0
          %v3835 = vmax.f32 %v3771, 0.0
          %v3836 = vpack.c.bf16 %v3774, %v3772
          %v3837 = vpack.c.bf16 %v3775, %v3773
          %v3838 = vpack.c.bf16 %v3778, %v3776
          %v3839 = vpack.c.bf16 %v3779, %v3777
          %v3840 = vpack.c.bf16 %v3782, %v3780
          %v3841 = vpack.c.bf16 %v3783, %v3781
          %v3842 = vpack.c.bf16 %v3786, %v3784
          %v3843 = vpack.c.bf16 %v3787, %v3785
          %v3844 = vpack.c.bf16 %v3790, %v3788
          %v3845 = vpack.c.bf16 %v3791, %v3789
          %v3846 = vpack.c.bf16 %v3794, %v3792
          %v3847 = vpack.c.bf16 %v3795, %v3793
          %v3848 = vpack.c.bf16 %v3798, %v3796
          %v3849 = vpack.c.bf16 %v3799, %v3797
          %v3850 = vpack.c.bf16 %v3802, %v3800
          %v3851 = vpack.c.bf16 %v3803, %v3801
          %v3852 = vpack.c.bf16 %v3806, %v3804
          %v3853 = vpack.c.bf16 %v3807, %v3805
          %v3854 = vpack.c.bf16 %v3810, %v3808
          %v3855 = vpack.c.bf16 %v3811, %v3809
          %v3856 = vpack.c.bf16 %v3814, %v3812
          %v3857 = vpack.c.bf16 %v3815, %v3813
          %v3858 = vpack.c.bf16 %v3818, %v3816
          %v3859 = vpack.c.bf16 %v3819, %v3817
          %v3860 = vpack.c.bf16 %v3822, %v3820
          %v3861 = vpack.c.bf16 %v3823, %v3821
          %v3862 = vpack.c.bf16 %v3826, %v3824
          %v3863 = vpack.c.bf16 %v3827, %v3825
          %v3864 = vpack.c.bf16 %v3830, %v3828
          %v3865 = vpack.c.bf16 %v3831, %v3829
          %v3866 = vpack.c.bf16 %v3834, %v3832
          %v3867 = vpack.c.bf16 %v3835, %v3833
          %v3868 = vld [vmem:[#allocation9] sm:$0xff]
          %v3869 = vld [vmem:[#allocation9 + $0x8] sm:$0xff]
          %v3870 = vld [vmem:[#allocation9 + $0x10] sm:$0xff]
          %v3871 = vld [vmem:[#allocation9 + $0x18] sm:$0xff]
          %v3872 = vld [vmem:[#allocation9 + $0x20] sm:$0xff]
          %v3873 = vld [vmem:[#allocation9 + $0x28] sm:$0xff]
          %v3874 = vld [vmem:[#allocation9 + $0x30] sm:$0xff]
          %v3875 = vld [vmem:[#allocation9 + $0x38] sm:$0xff]
          %v3876 = vld [vmem:[#allocation9 + $0x40] sm:$0xff]
          %v3877 = vld [vmem:[#allocation9 + $0x48] sm:$0xff]
          %v3878 = vld [vmem:[#allocation9 + $0x50] sm:$0xff]
          %v3879 = vld [vmem:[#allocation9 + $0x58] sm:$0xff]
          %v3880 = vld [vmem:[#allocation9 + $0x60] sm:$0xff]
          %v3881 = vld [vmem:[#allocation9 + $0x68] sm:$0xff]
          %v3882 = vld [vmem:[#allocation9 + $0x70] sm:$0xff]
          %v3883 = vld [vmem:[#allocation9 + $0x78] sm:$0xff]
          %v3884 = vld [vmem:[#allocation9 + $0x80] sm:$0xff]
          %v3885 = vld [vmem:[#allocation9 + $0x88] sm:$0xff]
          %v3886 = vld [vmem:[#allocation9 + $0x90] sm:$0xff]
          %v3887 = vld [vmem:[#allocation9 + $0x98] sm:$0xff]
          %v3888 = vld [vmem:[#allocation9 + $0xa0] sm:$0xff]
          %v3889 = vld [vmem:[#allocation9 + $0xa8] sm:$0xff]
          %v3890 = vld [vmem:[#allocation9 + $0xb0] sm:$0xff]
          %v3891 = vld [vmem:[#allocation9 + $0xb8] sm:$0xff]
          %v3892 = vld [vmem:[#allocation9 + $0xc0] sm:$0xff]
          %v3893 = vld [vmem:[#allocation9 + $0xc8] sm:$0xff]
          %v3894 = vld [vmem:[#allocation9 + $0xd0] sm:$0xff]
          %v3895 = vld [vmem:[#allocation9 + $0xd8] sm:$0xff]
          %v3896 = vld [vmem:[#allocation9 + $0xe0] sm:$0xff]
          %v3897 = vld [vmem:[#allocation9 + $0xe8] sm:$0xff]
          %v3898 = vld [vmem:[#allocation9 + $0xf0] sm:$0xff]
          %v3899 = vld [vmem:[#allocation9 + $0xf8] sm:$0xff]
          %v3900 = vld [vmem:[#allocation11] sm:$0x3]
          %v3902 = vperm.slane %v3900, 0
          %v3903 = vperm.slane %v3900, 1
          %v3938 = vunpack.c.l.b16 %v3868
          %v3939 = vunpack.c.h.b16 %v3868
          %v3940 = vunpack.c.l.b16 %v3869
          %v3941 = vunpack.c.h.b16 %v3869
          %v3942 = vunpack.c.l.b16 %v3870
          %v3943 = vunpack.c.h.b16 %v3870
          %v3944 = vunpack.c.l.b16 %v3871
          %v3945 = vunpack.c.h.b16 %v3871
          %v3946 = vunpack.c.l.b16 %v3872
          %v3947 = vunpack.c.h.b16 %v3872
          %v3948 = vunpack.c.l.b16 %v3873
          %v3949 = vunpack.c.h.b16 %v3873
          %v3950 = vunpack.c.l.b16 %v3874
          %v3951 = vunpack.c.h.b16 %v3874
          %v3952 = vunpack.c.l.b16 %v3875
          %v3953 = vunpack.c.h.b16 %v3875
          %v3954 = vunpack.c.l.b16 %v3876
          %v3955 = vunpack.c.h.b16 %v3876
          %v3956 = vunpack.c.l.b16 %v3877
          %v3957 = vunpack.c.h.b16 %v3877
          %v3958 = vunpack.c.l.b16 %v3878
          %v3959 = vunpack.c.h.b16 %v3878
          %v3960 = vunpack.c.l.b16 %v3879
          %v3961 = vunpack.c.h.b16 %v3879
          %v3962 = vunpack.c.l.b16 %v3880
          %v3963 = vunpack.c.h.b16 %v3880
          %v3964 = vunpack.c.l.b16 %v3881
          %v3965 = vunpack.c.h.b16 %v3881
          %v3966 = vunpack.c.l.b16 %v3882
          %v3967 = vunpack.c.h.b16 %v3882
          %v3968 = vunpack.c.l.b16 %v3883
          %v3969 = vunpack.c.h.b16 %v3883
          %v3970 = vunpack.c.l.b16 %v3884
          %v3971 = vunpack.c.h.b16 %v3884
          %v3972 = vunpack.c.l.b16 %v3885
          %v3973 = vunpack.c.h.b16 %v3885
          %v3974 = vunpack.c.l.b16 %v3886
          %v3975 = vunpack.c.h.b16 %v3886
          %v3976 = vunpack.c.l.b16 %v3887
          %v3977 = vunpack.c.h.b16 %v3887
          %v3978 = vunpack.c.l.b16 %v3888
          %v3979 = vunpack.c.h.b16 %v3888
          %v3980 = vunpack.c.l.b16 %v3889
          %v3981 = vunpack.c.h.b16 %v3889
          %v3982 = vunpack.c.l.b16 %v3890
          %v3983 = vunpack.c.h.b16 %v3890
          %v3984 = vunpack.c.l.b16 %v3891
          %v3985 = vunpack.c.h.b16 %v3891
          %v3986 = vunpack.c.l.b16 %v3892
          %v3987 = vunpack.c.h.b16 %v3892
          %v3988 = vunpack.c.l.b16 %v3893
          %v3989 = vunpack.c.h.b16 %v3893
          %v3990 = vunpack.c.l.b16 %v3894
          %v3991 = vunpack.c.h.b16 %v3894
          %v3992 = vunpack.c.l.b16 %v3895
          %v3993 = vunpack.c.h.b16 %v3895
          %v3994 = vunpack.c.l.b16 %v3896
          %v3995 = vunpack.c.h.b16 %v3896
          %v3996 = vunpack.c.l.b16 %v3897
          %v3997 = vunpack.c.h.b16 %v3897
          %v3998 = vunpack.c.l.b16 %v3898
          %v3999 = vunpack.c.h.b16 %v3898
          %v4000 = vunpack.c.l.b16 %v3899
          %v4001 = vunpack.c.h.b16 %v3899
          %v4002 = vpack.c.b16 %v3940, %v3938
          %v4003 = vpack.c.b16 %v3941, %v3939
          %v4004 = vpack.c.b16 %v3944, %v3942
          %v4005 = vpack.c.b16 %v3945, %v3943
          %v4006 = vpack.c.b16 %v3948, %v3946
          %v4007 = vpack.c.b16 %v3949, %v3947
          %v4008 = vpack.c.b16 %v3952, %v3950
          %v4009 = vpack.c.b16 %v3953, %v3951
          %v4010 = vpack.c.b16 %v3956, %v3954
          %v4011 = vpack.c.b16 %v3957, %v3955
          %v4012 = vpack.c.b16 %v3960, %v3958
          %v4013 = vpack.c.b16 %v3961, %v3959
          %v4014 = vpack.c.b16 %v3964, %v3962
          %v4015 = vpack.c.b16 %v3965, %v3963
          %v4016 = vpack.c.b16 %v3968, %v3966
          %v4017 = vpack.c.b16 %v3969, %v3967
          %v4018 = vpack.c.b16 %v3972, %v3970
          %v4019 = vpack.c.b16 %v3973, %v3971
          %v4020 = vpack.c.b16 %v3976, %v3974
          %v4021 = vpack.c.b16 %v3977, %v3975
          %v4022 = vpack.c.b16 %v3980, %v3978
          %v4023 = vpack.c.b16 %v3981, %v3979
          %v4024 = vpack.c.b16 %v3984, %v3982
          %v4025 = vpack.c.b16 %v3985, %v3983
          %v4026 = vpack.c.b16 %v3988, %v3986
          %v4027 = vpack.c.b16 %v3989, %v3987
          %v4028 = vpack.c.b16 %v3992, %v3990
          %v4029 = vpack.c.b16 %v3993, %v3991
          %v4030 = vpack.c.b16 %v3996, %v3994
          %v4031 = vpack.c.b16 %v3997, %v3995
          %v4032 = vpack.c.b16 %v4000, %v3998
          %v4033 = vpack.c.b16 %v4001, %v3999
          %4066 = vmatpush.bf16.msra.mxu0 %v4016
          %4067 = vmatpush.bf16.msra.mxu0 %v4014
          %4068 = vmatpush.bf16.msra.mxu0 %v4012
          %4069 = vmatpush.bf16.msra.mxu0 %v4010
          %4070 = vmatpush.bf16.msra.mxu0 %v4008
          %4071 = vmatpush.bf16.msra.mxu0 %v4006
          %4072 = vmatpush.bf16.msra.mxu0 %v4004
          %4073 = vmatpush.bf16.msra.mxu0 %v4002
          %4074 = vmatmul.bf16.gmra.mxu0 %v3836
          %v4075 = vpop.f32.mrf.mxu0
          %v4076 = vadd.f32 %v3902, %v4075
          %v4077 = vpop.f32.mrf.mxu0
          %v4078 = vadd.f32 %v3902, %v4077
          %4079 = vmatmul.bf16.gmra.mxu0 %v3838
          %v4080 = vpop.f32.mrf.mxu0
          %v4081 = vadd.f32 %v3902, %v4080
          %v4082 = vpop.f32.mrf.mxu0
          %v4083 = vadd.f32 %v3902, %v4082
          %4084 = vmatmul.bf16.gmra.mxu0 %v3840
          %v4085 = vpop.f32.mrf.mxu0
          %v4086 = vadd.f32 %v3902, %v4085
          %v4087 = vpop.f32.mrf.mxu0
          %v4088 = vadd.f32 %v3902, %v4087
          %4089 = vmatmul.bf16.gmra.mxu0 %v3842
          %v4090 = vpop.f32.mrf.mxu0
          %v4091 = vadd.f32 %v3902, %v4090
          %v4092 = vpop.f32.mrf.mxu0
          %v4093 = vadd.f32 %v3902, %v4092
          %4094 = vmatmul.bf16.gmra.mxu0 %v3844
          %v4095 = vpop.f32.mrf.mxu0
          %v4096 = vadd.f32 %v3902, %v4095
          %v4097 = vpop.f32.mrf.mxu0
          %v4098 = vadd.f32 %v3902, %v4097
          %4099 = vmatmul.bf16.gmra.mxu0 %v3846
          %v4100 = vpop.f32.mrf.mxu0
          %v4101 = vadd.f32 %v3902, %v4100
          %v4102 = vpop.f32.mrf.mxu0
          %v4103 = vadd.f32 %v3902, %v4102
          %4104 = vmatmul.bf16.gmra.mxu0 %v3848
          %v4105 = vpop.f32.mrf.mxu0
          %v4106 = vadd.f32 %v3902, %v4105
          %v4107 = vpop.f32.mrf.mxu0
          %v4108 = vadd.f32 %v3902, %v4107
          %4109 = vmatmul.bf16.gmra.mxu0 %v3850
          %v4110 = vpop.f32.mrf.mxu0
          %v4111 = vadd.f32 %v3902, %v4110
          %v4112 = vpop.f32.mrf.mxu0
          %v4113 = vadd.f32 %v3902, %v4112
          %4114 = vmatmul.bf16.gmra.mxu0 %v3852
          %v4115 = vpop.f32.mrf.mxu0
          %v4116 = vadd.f32 %v3902, %v4115
          %v4117 = vpop.f32.mrf.mxu0
          %v4118 = vadd.f32 %v3902, %v4117
          %4119 = vmatmul.bf16.gmra.mxu0 %v3854
          %v4120 = vpop.f32.mrf.mxu0
          %v4121 = vadd.f32 %v3902, %v4120
          %v4122 = vpop.f32.mrf.mxu0
          %v4123 = vadd.f32 %v3902, %v4122
          %4124 = vmatmul.bf16.gmra.mxu0 %v3856
          %v4125 = vpop.f32.mrf.mxu0
          %v4126 = vadd.f32 %v3902, %v4125
          %v4127 = vpop.f32.mrf.mxu0
          %v4128 = vadd.f32 %v3902, %v4127
          %4129 = vmatmul.bf16.gmra.mxu0 %v3858
          %v4130 = vpop.f32.mrf.mxu0
          %v4131 = vadd.f32 %v3902, %v4130
          %v4132 = vpop.f32.mrf.mxu0
          %v4133 = vadd.f32 %v3902, %v4132
          %4134 = vmatmul.bf16.gmra.mxu0 %v3860
          %v4135 = vpop.f32.mrf.mxu0
          %v4136 = vadd.f32 %v3902, %v4135
          %v4137 = vpop.f32.mrf.mxu0
          %v4138 = vadd.f32 %v3902, %v4137
          %4139 = vmatmul.bf16.gmra.mxu0 %v3862
          %v4140 = vpop.f32.mrf.mxu0
          %v4141 = vadd.f32 %v3902, %v4140
          %v4142 = vpop.f32.mrf.mxu0
          %v4143 = vadd.f32 %v3902, %v4142
          %4144 = vmatmul.bf16.gmra.mxu0 %v3864
          %v4145 = vpop.f32.mrf.mxu0
          %v4146 = vadd.f32 %v3902, %v4145
          %v4147 = vpop.f32.mrf.mxu0
          %v4148 = vadd.f32 %v3902, %v4147
          %4149 = vmatmul.bf16.gmra.mxu0 %v3866
          %v4150 = vpop.f32.mrf.mxu0
          %v4151 = vadd.f32 %v3902, %v4150
          %v4152 = vpop.f32.mrf.mxu0
          %v4153 = vadd.f32 %v3902, %v4152
          %4154 = vdwg.mxu0
          %4155 = vmatpush.bf16.msra.mxu0 %v4032
          %4156 = vmatpush.bf16.msra.mxu0 %v4030
          %4157 = vmatpush.bf16.msra.mxu0 %v4028
          %4158 = vmatpush.bf16.msra.mxu0 %v4026
          %4159 = vmatpush.bf16.msra.mxu0 %v4024
          %4160 = vmatpush.bf16.msra.mxu0 %v4022
          %4161 = vmatpush.bf16.msra.mxu0 %v4020
          %4162 = vmatpush.bf16.msra.mxu0 %v4018
          %4163 = vmatmul.bf16.gmra.mxu0 %v3837
          %v4164 = vpop.f32.mrf.mxu0
          %v4165 = vadd.f32 %v4076, %v4164
          %v4166 = vpop.f32.mrf.mxu0
          %v4167 = vadd.f32 %v4078, %v4166
          %4168 = vmatmul.bf16.gmra.mxu0 %v3839
          %v4169 = vpop.f32.mrf.mxu0
          %v4170 = vadd.f32 %v4081, %v4169
          %v4171 = vpop.f32.mrf.mxu0
          %v4172 = vadd.f32 %v4083, %v4171
          %4173 = vmatmul.bf16.gmra.mxu0 %v3841
          %v4174 = vpop.f32.mrf.mxu0
          %v4175 = vadd.f32 %v4086, %v4174
          %v4176 = vpop.f32.mrf.mxu0
          %v4177 = vadd.f32 %v4088, %v4176
          %4178 = vmatmul.bf16.gmra.mxu0 %v3843
          %v4179 = vpop.f32.mrf.mxu0
          %v4180 = vadd.f32 %v4091, %v4179
          %v4181 = vpop.f32.mrf.mxu0
          %v4182 = vadd.f32 %v4093, %v4181
          %4183 = vmatmul.bf16.gmra.mxu0 %v3845
          %v4184 = vpop.f32.mrf.mxu0
          %v4185 = vadd.f32 %v4096, %v4184
          %v4186 = vpop.f32.mrf.mxu0
          %v4187 = vadd.f32 %v4098, %v4186
          %4188 = vmatmul.bf16.gmra.mxu0 %v3847
          %v4189 = vpop.f32.mrf.mxu0
          %v4190 = vadd.f32 %v4101, %v4189
          %v4191 = vpop.f32.mrf.mxu0
          %v4192 = vadd.f32 %v4103, %v4191
          %4193 = vmatmul.bf16.gmra.mxu0 %v3849
          %v4194 = vpop.f32.mrf.mxu0
          %v4195 = vadd.f32 %v4106, %v4194
          %v4196 = vpop.f32.mrf.mxu0
          %v4197 = vadd.f32 %v4108, %v4196
          %4198 = vmatmul.bf16.gmra.mxu0 %v3851
          %v4199 = vpop.f32.mrf.mxu0
          %v4200 = vadd.f32 %v4111, %v4199
          %v4201 = vpop.f32.mrf.mxu0
          %v4202 = vadd.f32 %v4113, %v4201
          %4203 = vmatmul.bf16.gmra.mxu0 %v3853
          %v4204 = vpop.f32.mrf.mxu0
          %v4205 = vadd.f32 %v4116, %v4204
          %v4206 = vpop.f32.mrf.mxu0
          %v4207 = vadd.f32 %v4118, %v4206
          %4208 = vmatmul.bf16.gmra.mxu0 %v3855
          %v4209 = vpop.f32.mrf.mxu0
          %v4210 = vadd.f32 %v4121, %v4209
          %v4211 = vpop.f32.mrf.mxu0
          %v4212 = vadd.f32 %v4123, %v4211
          %4213 = vmatmul.bf16.gmra.mxu0 %v3857
          %v4214 = vpop.f32.mrf.mxu0
          %v4215 = vadd.f32 %v4126, %v4214
          %v4216 = vpop.f32.mrf.mxu0
          %v4217 = vadd.f32 %v4128, %v4216
          %4218 = vmatmul.bf16.gmra.mxu0 %v3859
          %v4219 = vpop.f32.mrf.mxu0
          %v4220 = vadd.f32 %v4131, %v4219
          %v4221 = vpop.f32.mrf.mxu0
          %v4222 = vadd.f32 %v4133, %v4221
          %4223 = vmatmul.bf16.gmra.mxu0 %v3861
          %v4224 = vpop.f32.mrf.mxu0
          %v4225 = vadd.f32 %v4136, %v4224
          %v4226 = vpop.f32.mrf.mxu0
          %v4227 = vadd.f32 %v4138, %v4226
          %4228 = vmatmul.bf16.gmra.mxu0 %v3863
          %v4229 = vpop.f32.mrf.mxu0
          %v4230 = vadd.f32 %v4141, %v4229
          %v4231 = vpop.f32.mrf.mxu0
          %v4232 = vadd.f32 %v4143, %v4231
          %4233 = vmatmul.bf16.gmra.mxu0 %v3865
          %v4234 = vpop.f32.mrf.mxu0
          %v4235 = vadd.f32 %v4146, %v4234
          %v4236 = vpop.f32.mrf.mxu0
          %v4237 = vadd.f32 %v4148, %v4236
          %4238 = vmatmul.bf16.gmra.mxu0 %v3867
          %v4239 = vpop.f32.mrf.mxu0
          %v4240 = vadd.f32 %v4151, %v4239
          %v4241 = vpop.f32.mrf.mxu0
          %v4242 = vadd.f32 %v4153, %v4241
          %4243 = vdwg.mxu0
          %4244 = vmatpush.bf16.msra.mxu0 %v4017
          %4245 = vmatpush.bf16.msra.mxu0 %v4015
          %4246 = vmatpush.bf16.msra.mxu0 %v4013
          %4247 = vmatpush.bf16.msra.mxu0 %v4011
          %4248 = vmatpush.bf16.msra.mxu0 %v4009
          %4249 = vmatpush.bf16.msra.mxu0 %v4007
          %4250 = vmatpush.bf16.msra.mxu0 %v4005
          %4251 = vmatpush.bf16.msra.mxu0 %v4003
          %4252 = vmatmul.bf16.gmra.mxu0 %v3836
          %v4253 = vpop.f32.mrf.mxu0
          %v4254 = vadd.f32 %v3903, %v4253
          %v4255 = vpop.f32.mrf.mxu0
          %v4256 = vadd.f32 %v3903, %v4255
          %4257 = vmatmul.bf16.gmra.mxu0 %v3838
          %v4258 = vpop.f32.mrf.mxu0
          %v4259 = vadd.f32 %v3903, %v4258
          %v4260 = vpop.f32.mrf.mxu0
          %v4261 = vadd.f32 %v3903, %v4260
          %4262 = vmatmul.bf16.gmra.mxu0 %v3840
          %v4263 = vpop.f32.mrf.mxu0
          %v4264 = vadd.f32 %v3903, %v4263
          %v4265 = vpop.f32.mrf.mxu0
          %v4266 = vadd.f32 %v3903, %v4265
          %4267 = vmatmul.bf16.gmra.mxu0 %v3842
          %v4268 = vpop.f32.mrf.mxu0
          %v4269 = vadd.f32 %v3903, %v4268
          %v4270 = vpop.f32.mrf.mxu0
          %v4271 = vadd.f32 %v3903, %v4270
          %4272 = vmatmul.bf16.gmra.mxu0 %v3844
          %v4273 = vpop.f32.mrf.mxu0
          %v4274 = vadd.f32 %v3903, %v4273
          %v4275 = vpop.f32.mrf.mxu0
          %v4276 = vadd.f32 %v3903, %v4275
          %4277 = vmatmul.bf16.gmra.mxu0 %v3846
          %v4278 = vpop.f32.mrf.mxu0
          %v4279 = vadd.f32 %v3903, %v4278
          %v4280 = vpop.f32.mrf.mxu0
          %v4281 = vadd.f32 %v3903, %v4280
          %4282 = vmatmul.bf16.gmra.mxu0 %v3848
          %v4283 = vpop.f32.mrf.mxu0
          %v4284 = vadd.f32 %v3903, %v4283
          %v4285 = vpop.f32.mrf.mxu0
          %v4286 = vadd.f32 %v3903, %v4285
          %4287 = vmatmul.bf16.gmra.mxu0 %v3850
          %v4288 = vpop.f32.mrf.mxu0
          %v4289 = vadd.f32 %v3903, %v4288
          %v4290 = vpop.f32.mrf.mxu0
          %v4291 = vadd.f32 %v3903, %v4290
          %4292 = vmatmul.bf16.gmra.mxu0 %v3852
          %v4293 = vpop.f32.mrf.mxu0
          %v4294 = vadd.f32 %v3903, %v4293
          %v4295 = vpop.f32.mrf.mxu0
          %v4296 = vadd.f32 %v3903, %v4295
          %4297 = vmatmul.bf16.gmra.mxu0 %v3854
          %v4298 = vpop.f32.mrf.mxu0
          %v4299 = vadd.f32 %v3903, %v4298
          %v4300 = vpop.f32.mrf.mxu0
          %v4301 = vadd.f32 %v3903, %v4300
          %4302 = vmatmul.bf16.gmra.mxu0 %v3856
          %v4303 = vpop.f32.mrf.mxu0
          %v4304 = vadd.f32 %v3903, %v4303
          %v4305 = vpop.f32.mrf.mxu0
          %v4306 = vadd.f32 %v3903, %v4305
          %4307 = vmatmul.bf16.gmra.mxu0 %v3858
          %v4308 = vpop.f32.mrf.mxu0
          %v4309 = vadd.f32 %v3903, %v4308
          %v4310 = vpop.f32.mrf.mxu0
          %v4311 = vadd.f32 %v3903, %v4310
          %4312 = vmatmul.bf16.gmra.mxu0 %v3860
          %v4313 = vpop.f32.mrf.mxu0
          %v4314 = vadd.f32 %v3903, %v4313
          %v4315 = vpop.f32.mrf.mxu0
          %v4316 = vadd.f32 %v3903, %v4315
          %4317 = vmatmul.bf16.gmra.mxu0 %v3862
          %v4318 = vpop.f32.mrf.mxu0
          %v4319 = vadd.f32 %v3903, %v4318
          %v4320 = vpop.f32.mrf.mxu0
          %v4321 = vadd.f32 %v3903, %v4320
          %4322 = vmatmul.bf16.gmra.mxu0 %v3864
          %v4323 = vpop.f32.mrf.mxu0
          %v4324 = vadd.f32 %v3903, %v4323
          %v4325 = vpop.f32.mrf.mxu0
          %v4326 = vadd.f32 %v3903, %v4325
          %4327 = vmatmul.bf16.gmra.mxu0 %v3866
          %v4328 = vpop.f32.mrf.mxu0
          %v4329 = vadd.f32 %v3903, %v4328
          %v4330 = vpop.f32.mrf.mxu0
          %v4331 = vadd.f32 %v3903, %v4330
          %4332 = vdwg.mxu0
          %4333 = vmatpush.bf16.msra.mxu0 %v4033
          %4334 = vmatpush.bf16.msra.mxu0 %v4031
          %4335 = vmatpush.bf16.msra.mxu0 %v4029
          %4336 = vmatpush.bf16.msra.mxu0 %v4027
          %4337 = vmatpush.bf16.msra.mxu0 %v4025
          %4338 = vmatpush.bf16.msra.mxu0 %v4023
          %4339 = vmatpush.bf16.msra.mxu0 %v4021
          %4340 = vmatpush.bf16.msra.mxu0 %v4019
          %4341 = vmatmul.bf16.gmra.mxu0 %v3837
          %v4342 = vpop.f32.mrf.mxu0
          %v4343 = vadd.f32 %v4254, %v4342
          %v4344 = vpop.f32.mrf.mxu0
          %v4345 = vadd.f32 %v4256, %v4344
          %4346 = vmatmul.bf16.gmra.mxu0 %v3839
          %v4347 = vpop.f32.mrf.mxu0
          %v4348 = vadd.f32 %v4259, %v4347
          %v4349 = vpop.f32.mrf.mxu0
          %v4350 = vadd.f32 %v4261, %v4349
          %4351 = vmatmul.bf16.gmra.mxu0 %v3841
          %v4352 = vpop.f32.mrf.mxu0
          %v4353 = vadd.f32 %v4264, %v4352
          %v4354 = vpop.f32.mrf.mxu0
          %v4355 = vadd.f32 %v4266, %v4354
          %4356 = vmatmul.bf16.gmra.mxu0 %v3843
          %v4357 = vpop.f32.mrf.mxu0
          %v4358 = vadd.f32 %v4269, %v4357
          %v4359 = vpop.f32.mrf.mxu0
          %v4360 = vadd.f32 %v4271, %v4359
          %4361 = vmatmul.bf16.gmra.mxu0 %v3845
          %v4362 = vpop.f32.mrf.mxu0
          %v4363 = vadd.f32 %v4274, %v4362
          %v4364 = vpop.f32.mrf.mxu0
          %v4365 = vadd.f32 %v4276, %v4364
          %4366 = vmatmul.bf16.gmra.mxu0 %v3847
          %v4367 = vpop.f32.mrf.mxu0
          %v4368 = vadd.f32 %v4279, %v4367
          %v4369 = vpop.f32.mrf.mxu0
          %v4370 = vadd.f32 %v4281, %v4369
          %4371 = vmatmul.bf16.gmra.mxu0 %v3849
          %v4372 = vpop.f32.mrf.mxu0
          %v4373 = vadd.f32 %v4284, %v4372
          %v4374 = vpop.f32.mrf.mxu0
          %v4375 = vadd.f32 %v4286, %v4374
          %4376 = vmatmul.bf16.gmra.mxu0 %v3851
          %v4377 = vpop.f32.mrf.mxu0
          %v4378 = vadd.f32 %v4289, %v4377
          %v4379 = vpop.f32.mrf.mxu0
          %v4380 = vadd.f32 %v4291, %v4379
          %4381 = vmatmul.bf16.gmra.mxu0 %v3853
          %v4382 = vpop.f32.mrf.mxu0
          %v4383 = vadd.f32 %v4294, %v4382
          %v4384 = vpop.f32.mrf.mxu0
          %v4385 = vadd.f32 %v4296, %v4384
          %4386 = vmatmul.bf16.gmra.mxu0 %v3855
          %v4387 = vpop.f32.mrf.mxu0
          %v4388 = vadd.f32 %v4299, %v4387
          %v4389 = vpop.f32.mrf.mxu0
          %v4390 = vadd.f32 %v4301, %v4389
          %4391 = vmatmul.bf16.gmra.mxu0 %v3857
          %v4392 = vpop.f32.mrf.mxu0
          %v4393 = vadd.f32 %v4304, %v4392
          %v4394 = vpop.f32.mrf.mxu0
          %v4395 = vadd.f32 %v4306, %v4394
          %4396 = vmatmul.bf16.gmra.mxu0 %v3859
          %v4397 = vpop.f32.mrf.mxu0
          %v4398 = vadd.f32 %v4309, %v4397
          %v4399 = vpop.f32.mrf.mxu0
          %v4400 = vadd.f32 %v4311, %v4399
          %4401 = vmatmul.bf16.gmra.mxu0 %v3861
          %v4402 = vpop.f32.mrf.mxu0
          %v4403 = vadd.f32 %v4314, %v4402
          %v4404 = vpop.f32.mrf.mxu0
          %v4405 = vadd.f32 %v4316, %v4404
          %4406 = vmatmul.bf16.gmra.mxu0 %v3863
          %v4407 = vpop.f32.mrf.mxu0
          %v4408 = vadd.f32 %v4319, %v4407
          %v4409 = vpop.f32.mrf.mxu0
          %v4410 = vadd.f32 %v4321, %v4409
          %4411 = vmatmul.bf16.gmra.mxu0 %v3865
          %v4412 = vpop.f32.mrf.mxu0
          %v4413 = vadd.f32 %v4324, %v4412
          %v4414 = vpop.f32.mrf.mxu0
          %v4415 = vadd.f32 %v4326, %v4414
          %4416 = vmatmul.bf16.gmra.mxu0 %v3867
          %v4417 = vpop.f32.mrf.mxu0
          %v4418 = vadd.f32 %v4329, %v4417
          %v4419 = vpop.f32.mrf.mxu0
          %v4420 = vadd.f32 %v4331, %v4419
          %4421 = vdwg.mxu0
          %v4422 = vmax.f32 %v4165, 0.0
          %v4423 = vmax.f32 %v4343, 0.0
          %v4424 = vmax.f32 %v4167, 0.0
          %v4425 = vmax.f32 %v4345, 0.0
          %v4426 = vmax.f32 %v4170, 0.0
          %v4427 = vmax.f32 %v4348, 0.0
          %v4428 = vmax.f32 %v4172, 0.0
          %v4429 = vmax.f32 %v4350, 0.0
          %v4430 = vmax.f32 %v4175, 0.0
          %v4431 = vmax.f32 %v4353, 0.0
          %v4432 = vmax.f32 %v4177, 0.0
          %v4433 = vmax.f32 %v4355, 0.0
          %v4434 = vmax.f32 %v4180, 0.0
          %v4435 = vmax.f32 %v4358, 0.0
          %v4436 = vmax.f32 %v4182, 0.0
          %v4437 = vmax.f32 %v4360, 0.0
          %v4438 = vmax.f32 %v4185, 0.0
          %v4439 = vmax.f32 %v4363, 0.0
          %v4440 = vmax.f32 %v4187, 0.0
          %v4441 = vmax.f32 %v4365, 0.0
          %v4442 = vmax.f32 %v4190, 0.0
          %v4443 = vmax.f32 %v4368, 0.0
          %v4444 = vmax.f32 %v4192, 0.0
          %v4445 = vmax.f32 %v4370, 0.0
          %v4446 = vmax.f32 %v4195, 0.0
          %v4447 = vmax.f32 %v4373, 0.0
          %v4448 = vmax.f32 %v4197, 0.0
          %v4449 = vmax.f32 %v4375, 0.0
          %v4450 = vmax.f32 %v4200, 0.0
          %v4451 = vmax.f32 %v4378, 0.0
          %v4452 = vmax.f32 %v4202, 0.0
          %v4453 = vmax.f32 %v4380, 0.0
          %v4454 = vmax.f32 %v4205, 0.0
          %v4455 = vmax.f32 %v4383, 0.0
          %v4456 = vmax.f32 %v4207, 0.0
          %v4457 = vmax.f32 %v4385, 0.0
          %v4458 = vmax.f32 %v4210, 0.0
          %v4459 = vmax.f32 %v4388, 0.0
          %v4460 = vmax.f32 %v4212, 0.0
          %v4461 = vmax.f32 %v4390, 0.0
          %v4462 = vmax.f32 %v4215, 0.0
          %v4463 = vmax.f32 %v4393, 0.0
          %v4464 = vmax.f32 %v4217, 0.0
          %v4465 = vmax.f32 %v4395, 0.0
          %v4466 = vmax.f32 %v4220, 0.0
          %v4467 = vmax.f32 %v4398, 0.0
          %v4468 = vmax.f32 %v4222, 0.0
          %v4469 = vmax.f32 %v4400, 0.0
          %v4470 = vmax.f32 %v4225, 0.0
          %v4471 = vmax.f32 %v4403, 0.0
          %v4472 = vmax.f32 %v4227, 0.0
          %v4473 = vmax.f32 %v4405, 0.0
          %v4474 = vmax.f32 %v4230, 0.0
          %v4475 = vmax.f32 %v4408, 0.0
          %v4476 = vmax.f32 %v4232, 0.0
          %v4477 = vmax.f32 %v4410, 0.0
          %v4478 = vmax.f32 %v4235, 0.0
          %v4479 = vmax.f32 %v4413, 0.0
          %v4480 = vmax.f32 %v4237, 0.0
          %v4481 = vmax.f32 %v4415, 0.0
          %v4482 = vmax.f32 %v4240, 0.0
          %v4483 = vmax.f32 %v4418, 0.0
          %v4484 = vmax.f32 %v4242, 0.0
          %v4485 = vmax.f32 %v4420, 0.0
          %v4486 = vpack.c.bf16 %v4423, %v4422
          %v4487 = vpack.c.bf16 %v4425, %v4424
          %v4488 = vpack.c.bf16 %v4427, %v4426
          %v4489 = vpack.c.bf16 %v4429, %v4428
          %v4490 = vpack.c.bf16 %v4431, %v4430
          %v4491 = vpack.c.bf16 %v4433, %v4432
          %v4492 = vpack.c.bf16 %v4435, %v4434
          %v4493 = vpack.c.bf16 %v4437, %v4436
          %v4494 = vpack.c.bf16 %v4439, %v4438
          %v4495 = vpack.c.bf16 %v4441, %v4440
          %v4496 = vpack.c.bf16 %v4443, %v4442
          %v4497 = vpack.c.bf16 %v4445, %v4444
          %v4498 = vpack.c.bf16 %v4447, %v4446
          %v4499 = vpack.c.bf16 %v4449, %v4448
          %v4500 = vpack.c.bf16 %v4451, %v4450
          %v4501 = vpack.c.bf16 %v4453, %v4452
          %v4502 = vpack.c.bf16 %v4455, %v4454
          %v4503 = vpack.c.bf16 %v4457, %v4456
          %v4504 = vpack.c.bf16 %v4459, %v4458
          %v4505 = vpack.c.bf16 %v4461, %v4460
          %v4506 = vpack.c.bf16 %v4463, %v4462
          %v4507 = vpack.c.bf16 %v4465, %v4464
          %v4508 = vpack.c.bf16 %v4467, %v4466
          %v4509 = vpack.c.bf16 %v4469, %v4468
          %v4510 = vpack.c.bf16 %v4471, %v4470
          %v4511 = vpack.c.bf16 %v4473, %v4472
          %v4512 = vpack.c.bf16 %v4475, %v4474
          %v4513 = vpack.c.bf16 %v4477, %v4476
          %v4514 = vpack.c.bf16 %v4479, %v4478
          %v4515 = vpack.c.bf16 %v4481, %v4480
          %v4516 = vpack.c.bf16 %v4483, %v4482
          %v4517 = vpack.c.bf16 %v4485, %v4484
          %4518 = vst [vmem:[%s465] sm:$0xff] %v4486
          %4519 = vst [vmem:[%s465 + $0x8] sm:$0xff] %v4487
          %4520 = vst [vmem:[%s465 + $0x10] sm:$0xff] %v4488
          %4521 = vst [vmem:[%s465 + $0x18] sm:$0xff] %v4489
          %4522 = vst [vmem:[%s465 + $0x20] sm:$0xff] %v4490
          %4523 = vst [vmem:[%s465 + $0x28] sm:$0xff] %v4491
          %4524 = vst [vmem:[%s465 + $0x30] sm:$0xff] %v4492
          %4525 = vst [vmem:[%s465 + $0x38] sm:$0xff] %v4493
          %4526 = vst [vmem:[%s465 + $0x40] sm:$0xff] %v4494
          %4527 = vst [vmem:[%s465 + $0x48] sm:$0xff] %v4495
          %4528 = vst [vmem:[%s465 + $0x50] sm:$0xff] %v4496
          %4529 = vst [vmem:[%s465 + $0x58] sm:$0xff] %v4497
          %4530 = vst [vmem:[%s465 + $0x60] sm:$0xff] %v4498
          %4531 = vst [vmem:[%s465 + $0x68] sm:$0xff] %v4499
          %4532 = vst [vmem:[%s465 + $0x70] sm:$0xff] %v4500
          %4533 = vst [vmem:[%s465 + $0x78] sm:$0xff] %v4501
          %4534 = vst [vmem:[%s465 + $0x80] sm:$0xff] %v4502
          %4535 = vst [vmem:[%s465 + $0x88] sm:$0xff] %v4503
          %4536 = vst [vmem:[%s465 + $0x90] sm:$0xff] %v4504
          %4537 = vst [vmem:[%s465 + $0x98] sm:$0xff] %v4505
          %4538 = vst [vmem:[%s465 + $0xa0] sm:$0xff] %v4506
          %4539 = vst [vmem:[%s465 + $0xa8] sm:$0xff] %v4507
          %4540 = vst [vmem:[%s465 + $0xb0] sm:$0xff] %v4508
          %4541 = vst [vmem:[%s465 + $0xb8] sm:$0xff] %v4509
          %4542 = vst [vmem:[%s465 + $0xc0] sm:$0xff] %v4510
          %4543 = vst [vmem:[%s465 + $0xc8] sm:$0xff] %v4511
          %4544 = vst [vmem:[%s465 + $0xd0] sm:$0xff] %v4512
          %4545 = vst [vmem:[%s465 + $0xd8] sm:$0xff] %v4513
          %4546 = vst [vmem:[%s465 + $0xe0] sm:$0xff] %v4514
          %4547 = vst [vmem:[%s465 + $0xe8] sm:$0xff] %v4515
          %4548 = vst [vmem:[%s465 + $0xf0] sm:$0xff] %v4516
          %4549 = vst [vmem:[%s465 + $0xf8] sm:$0xff] %v4517
          %v4550 = vld [vmem:[#allocation12] sm:$0xf]
          %v4551 = vld [vmem:[#allocation12 + $0x4] sm:$0xf]
          %v4552 = vld [vmem:[#allocation12 + $0x8] sm:$0xf]
          %v4553 = vld [vmem:[#allocation12 + $0xc] sm:$0xf]
          %v4554 = vld [vmem:[#allocation12 + $0x10] sm:$0xf]
          %v4555 = vld [vmem:[#allocation12 + $0x14] sm:$0xf]
          %v4556 = vld [vmem:[#allocation12 + $0x18] sm:$0xf]
          %v4557 = vld [vmem:[#allocation12 + $0x1c] sm:$0xf]
          %v4558 = vld [vmem:[#allocation12 + $0x20] sm:$0xf]
          %v4559 = vld [vmem:[#allocation12 + $0x24] sm:$0xf]
          %v4560 = vld [vmem:[#allocation12 + $0x28] sm:$0xf]
          %v4561 = vld [vmem:[#allocation12 + $0x2c] sm:$0xf]
          %v4562 = vld [vmem:[#allocation12 + $0x30] sm:$0xf]
          %v4563 = vld [vmem:[#allocation12 + $0x34] sm:$0xf]
          %v4564 = vld [vmem:[#allocation12 + $0x38] sm:$0xf]
          %v4565 = vld [vmem:[#allocation12 + $0x3c] sm:$0xf]
          %v4566 = vld [vmem:[#allocation12 + $0x40] sm:$0xf]
          %v4567 = vld [vmem:[#allocation12 + $0x44] sm:$0xf]
          %v4568 = vld [vmem:[#allocation12 + $0x48] sm:$0xf]
          %v4569 = vld [vmem:[#allocation12 + $0x4c] sm:$0xf]
          %v4570 = vld [vmem:[#allocation12 + $0x50] sm:$0xf]
          %v4571 = vld [vmem:[#allocation12 + $0x54] sm:$0xf]
          %v4572 = vld [vmem:[#allocation12 + $0x58] sm:$0xf]
          %v4573 = vld [vmem:[#allocation12 + $0x5c] sm:$0xf]
          %v4574 = vld [vmem:[#allocation12 + $0x60] sm:$0xf]
          %v4575 = vld [vmem:[#allocation12 + $0x64] sm:$0xf]
          %v4576 = vld [vmem:[#allocation12 + $0x68] sm:$0xf]
          %v4577 = vld [vmem:[#allocation12 + $0x6c] sm:$0xf]
          %v4578 = vld [vmem:[#allocation12 + $0x70] sm:$0xf]
          %v4579 = vld [vmem:[#allocation12 + $0x74] sm:$0xf]
          %v4580 = vld [vmem:[#allocation12 + $0x78] sm:$0xf]
          %v4581 = vld [vmem:[#allocation12 + $0x7c] sm:$0xf]
          %v4582 = vld [vmem:[#allocation14] sm:$0x1]
          %v4584 = vperm.slane %v4582, 0
          %v4618 = vunpack.c.l.b16 %v4486
          %v4619 = vunpack.c.h.b16 %v4486
          %v4620 = vunpack.c.l.b16 %v4487
          %v4621 = vunpack.c.h.b16 %v4487
          %v4622 = vunpack.c.l.b16 %v4488
          %v4623 = vunpack.c.h.b16 %v4488
          %v4624 = vunpack.c.l.b16 %v4489
          %v4625 = vunpack.c.h.b16 %v4489
          %v4626 = vunpack.c.l.b16 %v4490
          %v4627 = vunpack.c.h.b16 %v4490
          %v4628 = vunpack.c.l.b16 %v4491
          %v4629 = vunpack.c.h.b16 %v4491
          %v4630 = vunpack.c.l.b16 %v4492
          %v4631 = vunpack.c.h.b16 %v4492
          %v4632 = vunpack.c.l.b16 %v4493
          %v4633 = vunpack.c.h.b16 %v4493
          %v4634 = vunpack.c.l.b16 %v4494
          %v4635 = vunpack.c.h.b16 %v4494
          %v4636 = vunpack.c.l.b16 %v4495
          %v4637 = vunpack.c.h.b16 %v4495
          %v4638 = vunpack.c.l.b16 %v4496
          %v4639 = vunpack.c.h.b16 %v4496
          %v4640 = vunpack.c.l.b16 %v4497
          %v4641 = vunpack.c.h.b16 %v4497
          %v4642 = vunpack.c.l.b16 %v4498
          %v4643 = vunpack.c.h.b16 %v4498
          %v4644 = vunpack.c.l.b16 %v4499
          %v4645 = vunpack.c.h.b16 %v4499
          %v4646 = vunpack.c.l.b16 %v4500
          %v4647 = vunpack.c.h.b16 %v4500
          %v4648 = vunpack.c.l.b16 %v4501
          %v4649 = vunpack.c.h.b16 %v4501
          %v4650 = vunpack.c.l.b16 %v4502
          %v4651 = vunpack.c.h.b16 %v4502
          %v4652 = vunpack.c.l.b16 %v4503
          %v4653 = vunpack.c.h.b16 %v4503
          %v4654 = vunpack.c.l.b16 %v4504
          %v4655 = vunpack.c.h.b16 %v4504
          %v4656 = vunpack.c.l.b16 %v4505
          %v4657 = vunpack.c.h.b16 %v4505
          %v4658 = vunpack.c.l.b16 %v4506
          %v4659 = vunpack.c.h.b16 %v4506
          %v4660 = vunpack.c.l.b16 %v4507
          %v4661 = vunpack.c.h.b16 %v4507
          %v4662 = vunpack.c.l.b16 %v4508
          %v4663 = vunpack.c.h.b16 %v4508
          %v4664 = vunpack.c.l.b16 %v4509
          %v4665 = vunpack.c.h.b16 %v4509
          %v4666 = vunpack.c.l.b16 %v4510
          %v4667 = vunpack.c.h.b16 %v4510
          %v4668 = vunpack.c.l.b16 %v4511
          %v4669 = vunpack.c.h.b16 %v4511
          %v4670 = vunpack.c.l.b16 %v4512
          %v4671 = vunpack.c.h.b16 %v4512
          %v4672 = vunpack.c.l.b16 %v4513
          %v4673 = vunpack.c.h.b16 %v4513
          %v4674 = vunpack.c.l.b16 %v4514
          %v4675 = vunpack.c.h.b16 %v4514
          %v4676 = vunpack.c.l.b16 %v4515
          %v4677 = vunpack.c.h.b16 %v4515
          %v4678 = vunpack.c.l.b16 %v4516
          %v4679 = vunpack.c.h.b16 %v4516
          %v4680 = vunpack.c.l.b16 %v4517
          %v4681 = vunpack.c.h.b16 %v4517
          %v4682 = vpack.c.b16 %v4620, %v4618
          %v4683 = vpack.c.b16 %v4621, %v4619
          %v4684 = vpack.c.b16 %v4624, %v4622
          %v4685 = vpack.c.b16 %v4625, %v4623
          %v4686 = vpack.c.b16 %v4628, %v4626
          %v4687 = vpack.c.b16 %v4629, %v4627
          %v4688 = vpack.c.b16 %v4632, %v4630
          %v4689 = vpack.c.b16 %v4633, %v4631
          %v4690 = vpack.c.b16 %v4636, %v4634
          %v4691 = vpack.c.b16 %v4637, %v4635
          %v4692 = vpack.c.b16 %v4640, %v4638
          %v4693 = vpack.c.b16 %v4641, %v4639
          %v4694 = vpack.c.b16 %v4644, %v4642
          %v4695 = vpack.c.b16 %v4645, %v4643
          %v4696 = vpack.c.b16 %v4648, %v4646
          %v4697 = vpack.c.b16 %v4649, %v4647
          %v4698 = vpack.c.b16 %v4652, %v4650
          %v4699 = vpack.c.b16 %v4653, %v4651
          %v4700 = vpack.c.b16 %v4656, %v4654
          %v4701 = vpack.c.b16 %v4657, %v4655
          %v4702 = vpack.c.b16 %v4660, %v4658
          %v4703 = vpack.c.b16 %v4661, %v4659
          %v4704 = vpack.c.b16 %v4664, %v4662
          %v4705 = vpack.c.b16 %v4665, %v4663
          %v4706 = vpack.c.b16 %v4668, %v4666
          %v4707 = vpack.c.b16 %v4669, %v4667
          %v4708 = vpack.c.b16 %v4672, %v4670
          %v4709 = vpack.c.b16 %v4673, %v4671
          %v4710 = vpack.c.b16 %v4676, %v4674
          %v4711 = vpack.c.b16 %v4677, %v4675
          %v4712 = vpack.c.b16 %v4680, %v4678
          %v4713 = vpack.c.b16 %v4681, %v4679
          %v4778 = vunpack.c.l.b16 %v4550
          %v4779 = vunpack.c.l.b16 %v4551
          %v4780 = vunpack.c.l.b16 %v4552
          %v4781 = vunpack.c.l.b16 %v4553
          %v4782 = vunpack.c.l.b16 %v4554
          %v4783 = vunpack.c.l.b16 %v4555
          %v4784 = vunpack.c.l.b16 %v4556
          %v4785 = vunpack.c.l.b16 %v4557
          %v4786 = vunpack.c.l.b16 %v4558
          %v4787 = vunpack.c.l.b16 %v4559
          %v4788 = vunpack.c.l.b16 %v4560
          %v4789 = vunpack.c.l.b16 %v4561
          %v4790 = vunpack.c.l.b16 %v4562
          %v4791 = vunpack.c.l.b16 %v4563
          %v4792 = vunpack.c.l.b16 %v4564
          %v4793 = vunpack.c.l.b16 %v4565
          %v4794 = vunpack.c.l.b16 %v4566
          %v4795 = vunpack.c.l.b16 %v4567
          %v4796 = vunpack.c.l.b16 %v4568
          %v4797 = vunpack.c.l.b16 %v4569
          %v4798 = vunpack.c.l.b16 %v4570
          %v4799 = vunpack.c.l.b16 %v4571
          %v4800 = vunpack.c.l.b16 %v4572
          %v4801 = vunpack.c.l.b16 %v4573
          %v4802 = vunpack.c.l.b16 %v4574
          %v4803 = vunpack.c.l.b16 %v4575
          %v4804 = vunpack.c.l.b16 %v4576
          %v4805 = vunpack.c.l.b16 %v4577
          %v4806 = vunpack.c.l.b16 %v4578
          %v4807 = vunpack.c.l.b16 %v4579
          %v4808 = vunpack.c.l.b16 %v4580
          %v4809 = vunpack.c.l.b16 %v4581
          %v4810 = vpack.c.b16 %v4779, %v4778
          %v4811 = vpack.c.b16 %v4781, %v4780
          %v4812 = vpack.c.b16 %v4783, %v4782
          %v4813 = vpack.c.b16 %v4785, %v4784
          %v4814 = vpack.c.b16 %v4787, %v4786
          %v4815 = vpack.c.b16 %v4789, %v4788
          %v4816 = vpack.c.b16 %v4791, %v4790
          %v4817 = vpack.c.b16 %v4793, %v4792
          %v4818 = vpack.c.b16 %v4795, %v4794
          %v4819 = vpack.c.b16 %v4797, %v4796
          %v4820 = vpack.c.b16 %v4799, %v4798
          %v4821 = vpack.c.b16 %v4801, %v4800
          %v4822 = vpack.c.b16 %v4803, %v4802
          %v4823 = vpack.c.b16 %v4805, %v4804
          %v4824 = vpack.c.b16 %v4807, %v4806
          %v4825 = vpack.c.b16 %v4809, %v4808
          %4842 = vmatpush.bf16.msra.mxu0 %v4817
          %4843 = vmatpush.bf16.msra.mxu0 %v4816
          %4844 = vmatpush.bf16.msra.mxu0 %v4815
          %4845 = vmatpush.bf16.msra.mxu0 %v4814
          %4846 = vmatpush.bf16.msra.mxu0 %v4813
          %4847 = vmatpush.bf16.msra.mxu0 %v4812
          %4848 = vmatpush.bf16.msra.mxu0 %v4811
          %4849 = vmatpush.bf16.msra.mxu0 %v4810
          %4850 = vmatmul.bf16.gmra.mxu0 %v4682
          %v4851 = vpop.f32.mrf.mxu0
          %v4852 = vadd.f32 %v4584, %v4851
          %v4853 = vpop.f32.mrf.mxu0
          %v4854 = vadd.f32 %v4584, %v4853
          %4855 = vmatmul.bf16.gmra.mxu0 %v4684
          %v4856 = vpop.f32.mrf.mxu0
          %v4857 = vadd.f32 %v4584, %v4856
          %v4858 = vpop.f32.mrf.mxu0
          %v4859 = vadd.f32 %v4584, %v4858
          %4860 = vmatmul.bf16.gmra.mxu0 %v4686
          %v4861 = vpop.f32.mrf.mxu0
          %v4862 = vadd.f32 %v4584, %v4861
          %v4863 = vpop.f32.mrf.mxu0
          %v4864 = vadd.f32 %v4584, %v4863
          %4865 = vmatmul.bf16.gmra.mxu0 %v4688
          %v4866 = vpop.f32.mrf.mxu0
          %v4867 = vadd.f32 %v4584, %v4866
          %v4868 = vpop.f32.mrf.mxu0
          %v4869 = vadd.f32 %v4584, %v4868
          %4870 = vmatmul.bf16.gmra.mxu0 %v4690
          %v4871 = vpop.f32.mrf.mxu0
          %v4872 = vadd.f32 %v4584, %v4871
          %v4873 = vpop.f32.mrf.mxu0
          %v4874 = vadd.f32 %v4584, %v4873
          %4875 = vmatmul.bf16.gmra.mxu0 %v4692
          %v4876 = vpop.f32.mrf.mxu0
          %v4877 = vadd.f32 %v4584, %v4876
          %v4878 = vpop.f32.mrf.mxu0
          %v4879 = vadd.f32 %v4584, %v4878
          %4880 = vmatmul.bf16.gmra.mxu0 %v4694
          %v4881 = vpop.f32.mrf.mxu0
          %v4882 = vadd.f32 %v4584, %v4881
          %v4883 = vpop.f32.mrf.mxu0
          %v4884 = vadd.f32 %v4584, %v4883
          %4885 = vmatmul.bf16.gmra.mxu0 %v4696
          %v4886 = vpop.f32.mrf.mxu0
          %v4887 = vadd.f32 %v4584, %v4886
          %v4888 = vpop.f32.mrf.mxu0
          %v4889 = vadd.f32 %v4584, %v4888
          %4890 = vmatmul.bf16.gmra.mxu0 %v4698
          %v4891 = vpop.f32.mrf.mxu0
          %v4892 = vadd.f32 %v4584, %v4891
          %v4893 = vpop.f32.mrf.mxu0
          %v4894 = vadd.f32 %v4584, %v4893
          %4895 = vmatmul.bf16.gmra.mxu0 %v4700
          %v4896 = vpop.f32.mrf.mxu0
          %v4897 = vadd.f32 %v4584, %v4896
          %v4898 = vpop.f32.mrf.mxu0
          %v4899 = vadd.f32 %v4584, %v4898
          %4900 = vmatmul.bf16.gmra.mxu0 %v4702
          %v4901 = vpop.f32.mrf.mxu0
          %v4902 = vadd.f32 %v4584, %v4901
          %v4903 = vpop.f32.mrf.mxu0
          %v4904 = vadd.f32 %v4584, %v4903
          %4905 = vmatmul.bf16.gmra.mxu0 %v4704
          %v4906 = vpop.f32.mrf.mxu0
          %v4907 = vadd.f32 %v4584, %v4906
          %v4908 = vpop.f32.mrf.mxu0
          %v4909 = vadd.f32 %v4584, %v4908
          %4910 = vmatmul.bf16.gmra.mxu0 %v4706
          %v4911 = vpop.f32.mrf.mxu0
          %v4912 = vadd.f32 %v4584, %v4911
          %v4913 = vpop.f32.mrf.mxu0
          %v4914 = vadd.f32 %v4584, %v4913
          %4915 = vmatmul.bf16.gmra.mxu0 %v4708
          %v4916 = vpop.f32.mrf.mxu0
          %v4917 = vadd.f32 %v4584, %v4916
          %v4918 = vpop.f32.mrf.mxu0
          %v4919 = vadd.f32 %v4584, %v4918
          %4920 = vmatmul.bf16.gmra.mxu0 %v4710
          %v4921 = vpop.f32.mrf.mxu0
          %v4922 = vadd.f32 %v4584, %v4921
          %v4923 = vpop.f32.mrf.mxu0
          %v4924 = vadd.f32 %v4584, %v4923
          %4925 = vmatmul.bf16.gmra.mxu0 %v4712
          %v4926 = vpop.f32.mrf.mxu0
          %v4927 = vadd.f32 %v4584, %v4926
          %v4928 = vpop.f32.mrf.mxu0
          %v4929 = vadd.f32 %v4584, %v4928
          %4930 = vdwg.mxu0
          %4931 = vmatpush.bf16.msra.mxu0 %v4825
          %4932 = vmatpush.bf16.msra.mxu0 %v4824
          %4933 = vmatpush.bf16.msra.mxu0 %v4823
          %4934 = vmatpush.bf16.msra.mxu0 %v4822
          %4935 = vmatpush.bf16.msra.mxu0 %v4821
          %4936 = vmatpush.bf16.msra.mxu0 %v4820
          %4937 = vmatpush.bf16.msra.mxu0 %v4819
          %4938 = vmatpush.bf16.msra.mxu0 %v4818
          %4939 = vmatmul.bf16.gmra.mxu0 %v4683
          %v4940 = vpop.f32.mrf.mxu0
          %v4941 = vadd.f32 %v4852, %v4940
          %v4942 = vpop.f32.mrf.mxu0
          %v4943 = vadd.f32 %v4854, %v4942
          %4944 = vmatmul.bf16.gmra.mxu0 %v4685
          %v4945 = vpop.f32.mrf.mxu0
          %v4946 = vadd.f32 %v4857, %v4945
          %v4947 = vpop.f32.mrf.mxu0
          %v4948 = vadd.f32 %v4859, %v4947
          %4949 = vmatmul.bf16.gmra.mxu0 %v4687
          %v4950 = vpop.f32.mrf.mxu0
          %v4951 = vadd.f32 %v4862, %v4950
          %v4952 = vpop.f32.mrf.mxu0
          %v4953 = vadd.f32 %v4864, %v4952
          %4954 = vmatmul.bf16.gmra.mxu0 %v4689
          %v4955 = vpop.f32.mrf.mxu0
          %v4956 = vadd.f32 %v4867, %v4955
          %v4957 = vpop.f32.mrf.mxu0
          %v4958 = vadd.f32 %v4869, %v4957
          %4959 = vmatmul.bf16.gmra.mxu0 %v4691
          %v4960 = vpop.f32.mrf.mxu0
          %v4961 = vadd.f32 %v4872, %v4960
          %v4962 = vpop.f32.mrf.mxu0
          %v4963 = vadd.f32 %v4874, %v4962
          %4964 = vmatmul.bf16.gmra.mxu0 %v4693
          %v4965 = vpop.f32.mrf.mxu0
          %v4966 = vadd.f32 %v4877, %v4965
          %v4967 = vpop.f32.mrf.mxu0
          %v4968 = vadd.f32 %v4879, %v4967
          %4969 = vmatmul.bf16.gmra.mxu0 %v4695
          %v4970 = vpop.f32.mrf.mxu0
          %v4971 = vadd.f32 %v4882, %v4970
          %v4972 = vpop.f32.mrf.mxu0
          %v4973 = vadd.f32 %v4884, %v4972
          %4974 = vmatmul.bf16.gmra.mxu0 %v4697
          %v4975 = vpop.f32.mrf.mxu0
          %v4976 = vadd.f32 %v4887, %v4975
          %v4977 = vpop.f32.mrf.mxu0
          %v4978 = vadd.f32 %v4889, %v4977
          %4979 = vmatmul.bf16.gmra.mxu0 %v4699
          %v4980 = vpop.f32.mrf.mxu0
          %v4981 = vadd.f32 %v4892, %v4980
          %v4982 = vpop.f32.mrf.mxu0
          %v4983 = vadd.f32 %v4894, %v4982
          %4984 = vmatmul.bf16.gmra.mxu0 %v4701
          %v4985 = vpop.f32.mrf.mxu0
          %v4986 = vadd.f32 %v4897, %v4985
          %v4987 = vpop.f32.mrf.mxu0
          %v4988 = vadd.f32 %v4899, %v4987
          %4989 = vmatmul.bf16.gmra.mxu0 %v4703
          %v4990 = vpop.f32.mrf.mxu0
          %v4991 = vadd.f32 %v4902, %v4990
          %v4992 = vpop.f32.mrf.mxu0
          %v4993 = vadd.f32 %v4904, %v4992
          %4994 = vmatmul.bf16.gmra.mxu0 %v4705
          %v4995 = vpop.f32.mrf.mxu0
          %v4996 = vadd.f32 %v4907, %v4995
          %v4997 = vpop.f32.mrf.mxu0
          %v4998 = vadd.f32 %v4909, %v4997
          %4999 = vmatmul.bf16.gmra.mxu0 %v4707
          %v5000 = vpop.f32.mrf.mxu0
          %v5001 = vadd.f32 %v4912, %v5000
          %v5002 = vpop.f32.mrf.mxu0
          %v5003 = vadd.f32 %v4914, %v5002
          %5004 = vmatmul.bf16.gmra.mxu0 %v4709
          %v5005 = vpop.f32.mrf.mxu0
          %v5006 = vadd.f32 %v4917, %v5005
          %v5007 = vpop.f32.mrf.mxu0
          %v5008 = vadd.f32 %v4919, %v5007
          %5009 = vmatmul.bf16.gmra.mxu0 %v4711
          %v5010 = vpop.f32.mrf.mxu0
          %v5011 = vadd.f32 %v4922, %v5010
          %v5012 = vpop.f32.mrf.mxu0
          %v5013 = vadd.f32 %v4924, %v5012
          %5014 = vmatmul.bf16.gmra.mxu0 %v4713
          %v5015 = vpop.f32.mrf.mxu0
          %v5016 = vadd.f32 %v4927, %v5015
          %v5017 = vpop.f32.mrf.mxu0
          %v5018 = vadd.f32 %v4929, %v5017
          %5019 = vdwg.mxu0
          %5020 = vst [vmem:[%s472] sm:$0xff] %v4941
          %5021 = vst [vmem:[%s472 + $0x8] sm:$0xff] %v4943
          %5022 = vst [vmem:[%s472 + $0x10] sm:$0xff] %v4946
          %5023 = vst [vmem:[%s472 + $0x18] sm:$0xff] %v4948
          %5024 = vst [vmem:[%s472 + $0x20] sm:$0xff] %v4951
          %5025 = vst [vmem:[%s472 + $0x28] sm:$0xff] %v4953
          %5026 = vst [vmem:[%s472 + $0x30] sm:$0xff] %v4956
          %5027 = vst [vmem:[%s472 + $0x38] sm:$0xff] %v4958
          %5028 = vst [vmem:[%s472 + $0x40] sm:$0xff] %v4961
          %5029 = vst [vmem:[%s472 + $0x48] sm:$0xff] %v4963
          %5030 = vst [vmem:[%s472 + $0x50] sm:$0xff] %v4966
          %5031 = vst [vmem:[%s472 + $0x58] sm:$0xff] %v4968
          %5032 = vst [vmem:[%s472 + $0x60] sm:$0xff] %v4971
          %5033 = vst [vmem:[%s472 + $0x68] sm:$0xff] %v4973
          %5034 = vst [vmem:[%s472 + $0x70] sm:$0xff] %v4976
          %5035 = vst [vmem:[%s472 + $0x78] sm:$0xff] %v4978
          %5036 = vst [vmem:[%s472 + $0x80] sm:$0xff] %v4981
          %5037 = vst [vmem:[%s472 + $0x88] sm:$0xff] %v4983
          %5038 = vst [vmem:[%s472 + $0x90] sm:$0xff] %v4986
          %5039 = vst [vmem:[%s472 + $0x98] sm:$0xff] %v4988
          %5040 = vst [vmem:[%s472 + $0xa0] sm:$0xff] %v4991
          %5041 = vst [vmem:[%s472 + $0xa8] sm:$0xff] %v4993
          %5042 = vst [vmem:[%s472 + $0xb0] sm:$0xff] %v4996
          %5043 = vst [vmem:[%s472 + $0xb8] sm:$0xff] %v4998
          %5044 = vst [vmem:[%s472 + $0xc0] sm:$0xff] %v5001
          %5045 = vst [vmem:[%s472 + $0xc8] sm:$0xff] %v5003
          %5046 = vst [vmem:[%s472 + $0xd0] sm:$0xff] %v5006
          %5047 = vst [vmem:[%s472 + $0xd8] sm:$0xff] %v5008
          %5048 = vst [vmem:[%s472 + $0xe0] sm:$0xff] %v5011
          %5049 = vst [vmem:[%s472 + $0xe8] sm:$0xff] %v5013
          %5050 = vst [vmem:[%s472 + $0xf0] sm:$0xff] %v5016
          %5051 = vst [vmem:[%s472 + $0xf8] sm:$0xff] %v5018
        $region84: #{tpu_custom_call.1} parent=47 // pred_fallthru
          _
        %s5052 = sand.u32 %s213, 1
        %s5053 = scalar_lea.sflag [#allocation5], %s5052
        %s5054 = sand.u32 %s213, 1
        %s5055 = smul.addr %s5054, 256
        %s5056 = scalar_lea.vmem [#allocation15], %s5055
        %s5057 = sand.u32 %s239, 1
        %s5058 = scalar_lea.sflag [#allocation17], %s5057
        %s5059 = sand.u32 %s239, 1
        %s5060 = smul.addr %s5059, 256
        %s5061 = scalar_lea.vmem [#allocation16], %s5060
        // Predicated region
        $region85: #{tpu_custom_call.1} parent=47 // pred_check
          %p5062 = pneg %p223
        $region86: #{tpu_custom_call.1} parent=47 // pred_check_branch
          %5064 = sbr.rel (%p5062) target = $region88
        $region87: #{tpu_custom_call.1} parent=47 // pred_region
          %s5065 = smul.u32 32, %s38
          %5067 = vsyncadd %s5053, 0
          %s5068 = smul.addr %s5065, 2
          %s5069 = smul.addr %s5068, 4
          %s5070 = scalar_lea.hbm %s7, %s5069
          %s5071 = sshll.u32 %s5056, 4
          %s5072 = int_to_ptr.vmem [resolvable:$true] %s5071
          %s5073 = sshll.u32 %s5070, 4
          %s5074 = int_to_ptr.hbm [resolvable:$true] %s5073
          %5079 = dma.vmem_to_hbm [thread:$0]  %s5072, 4096, %s5074, %s5053, 128, 128, 8
        $region88: #{tpu_custom_call.1} parent=47 // pred_fallthru
          _
        // Predicated region
        $region89: #{tpu_custom_call.1} parent=47 // pred_check
          %p5080 = pneg %p249
        $region90: #{tpu_custom_call.1} parent=47 // pred_check_branch
          %5082 = sbr.rel (%p5080) target = $region92
        $region91: #{tpu_custom_call.1} parent=47 // pred_region
          %s5083 = smul.u32 32, %s38
          %5085 = vsyncadd %s5058, 0
          %s5086 = smul.addr %s5083, 8
          %s5087 = scalar_lea.hbm %s8, %s5086
          %s5088 = sshll.u32 %s5061, 4
          %s5089 = int_to_ptr.vmem [resolvable:$true] %s5088
          %s5090 = sshll.u32 %s5087, 4
          %s5091 = int_to_ptr.hbm [resolvable:$true] %s5090
          %5096 = dma.vmem_to_hbm [thread:$0]  %s5089, 4096, %s5091, %s5058, 128, 128, 8
        $region92: #{tpu_custom_call.1} parent=47 // pred_fallthru
          _
      $region48: #{tpu_custom_call.1} parent=5 // pred_fallthru
        _
      %p5097 = scmp.le.s32.totalorder 2, %s29
      // Predicated region
      $region93: #{tpu_custom_call.1} parent=5 // pred_check
        %p5098 = pneg %p5097
      $region94: #{tpu_custom_call.1} parent=5 // pred_check_branch
        %5100 = sbr.rel (%p5098) target = $region96
      $region95: #{tpu_custom_call.1} parent=5 // pred_region
        %s5101 = ssub.s32 %s29, 2
        // Predicated region
        $region97: #{tpu_custom_call.1} parent=95 // pred_check
          %p5102 = pneg %p229
        $region98: #{tpu_custom_call.1} parent=95 // pred_check_branch
          %5104 = sbr.rel (%p5102) target = $region100
        $region99: #{tpu_custom_call.1} parent=95 // pred_region
          %s5105 = sand.u32 %s214, 1
          %s5106 = scalar_lea.sflag [#allocation5], %s5105
          %s5107 = sand.u32 %s214, 1
          %s5108 = smul.addr %s5107, 256
          %s5109 = scalar_lea.vmem [#allocation15], %s5108
          %5111 = dma.done %s5106, 4096
        $region100: #{tpu_custom_call.1} parent=95 // pred_fallthru
          _
        // Predicated region
        $region101: #{tpu_custom_call.1} parent=95 // pred_check
          %p5112 = pneg %p255
        $region102: #{tpu_custom_call.1} parent=95 // pred_check_branch
          %5114 = sbr.rel (%p5112) target = $region104
        $region103: #{tpu_custom_call.1} parent=95 // pred_region
          %s5115 = sand.u32 %s240, 1
          %s5116 = scalar_lea.sflag [#allocation17], %s5115
          %s5117 = sand.u32 %s240, 1
          %s5118 = smul.addr %s5117, 256
          %s5119 = scalar_lea.vmem [#allocation16], %s5118
          %5121 = dma.done %s5116, 4096
        $region104: #{tpu_custom_call.1} parent=95 // pred_fallthru
          _
      $region96: #{tpu_custom_call.1} parent=5 // pred_fallthru
        _
    $region6: #{tpu_custom_call.1} parent=1 // loop_footer
      %s33 = sadd.s32 1, %s29
    $region7: #{tpu_custom_call.1} parent=1 // loop_footer_branch
      %28 = sbr.rel target = $region3
    $region8: #{tpu_custom_call.1} parent=1 // loop_exit
      _
    %5122 = vsyncpa [#allocation4], 1
    %s5123 = scalar_lea.sflag [#allocation4], 1
    %5124 = vsyncpa %s5123, 1
    %5125 = vsyncpa [#allocation7], 1
    %s5126 = scalar_lea.sflag [#allocation7], 1
    %5127 = vsyncpa %s5126, 1
    %5128 = vsyncpa [#allocation10], 1
    %5129 = vsyncpa [#allocation13], 1
    %5130 = vsyncpa [#allocation5], 1
    %s5131 = scalar_lea.sflag [#allocation5], 1
    %5132 = vsyncpa %s5131, 1
    %5133 = vsyncpa [#allocation17], 1
    %s5134 = scalar_lea.sflag [#allocation17], 1
    %5135 = vsyncpa %s5134, 1

// kernel: tpu_custom_call.1
$region0: #{tpu_custom_call.1}
  #allocation0 [shape = 'u32[]', space=smem, size = 0x4, offset = 0x4, fixed_abs, tag = 'smem constant byte address 0x4 - core index']
  #allocation1 [shape = 'u32[72,128]{1,0:T(1,128)}', space=vmem, size = 0x9000, scoped, tag = 'internal scratch']
  #allocation2 [shape = 'f32[256,256]{1,0:T(8,128)}', space=vmem, size = 0x40000, scoped, tag = 'scratch operand']
  %s0 = inlined_call_operand.hbm [shape: bf16[512,2048], index: 0, kind: input, shape index: {}]
  %s1 = inlined_call_operand.hbm [shape: bf16[2048,256], index: 1, kind: input, shape index: {}]
  %s2 = inlined_call_operand.hbm [shape: f32[1,256], index: 2, kind: input, shape index: {}]
  %s3 = inlined_call_operand.hbm [shape: bf16[256,256], index: 3, kind: input, shape index: {}]
  %s4 = inlined_call_operand.hbm [shape: f32[1,256], index: 4, kind: input, shape index: {}]
  %s5 = inlined_call_operand.hbm [shape: bf16[256,128], index: 5, kind: input, shape index: {}]
  %s6 = inlined_call_operand.hbm [shape: f32[1,128], index: 6, kind: input, shape index: {}]
  %s7 = inlined_call_operand.hbm [shape: bf16[512,256], index: 7, kind: output, shape index: {0}]
  %s8 = inlined_call_operand.hbm [shape: f32[512,128], index: 8, kind: output, shape index: {1}]
  %9 = xla_tuple %s7, %s8
  %s10 = sld [smem:[#allocation0]]
  $region105: #{tpu_custom_call.1} parent=0
    _
  %s12 = ssub.s32 1, %s10
  %s13 = scalar_select 0, %s12, %s10
  $region1: #{tpu_custom_call.1} parent=0
    #allocation3 [shape = 'u8[1048576]{0}', space=vmem, size = 0x100000, scoped, tag = 'input window, operand 0']
    #allocation4 [shape = 's32[2]{0}', space=sflag, size = 0x8, scoped, tag = 'scoped memory for tpu_custom_call.1']
    #allocation5 [shape = 's32[2]{0}', space=sflag, size = 0x8, scoped, tag = 'scoped memory for tpu_custom_call.1']
    #allocation6 [shape = 'u8[1048576]{0}', space=vmem, size = 0x100000, scoped, tag = 'input window, operand 1']
    #allocation7 [shape = 's32[2]{0}', space=sflag, size = 0x8, scoped, tag = 'scoped memory for tpu_custom_call.1']
    #allocation8 [shape = 'u8[1024]{0}', space=vmem, size = 0x400, scoped, tag = 'input window, operand 2, single buffered']
    #allocation9 [shape = 'u8[131072]{0}', space=vmem, size = 0x20000, scoped, tag = 'input window, operand 3, single buffered']
    #allocation10 [shape = 's32[1]{0}', space=sflag, size = 0x4, scoped, tag = 'scoped memory for tpu_custom_call.1']
    #allocation11 [shape = 'u8[1024]{0}', space=vmem, size = 0x400, scoped, tag = 'input window, operand 4, single buffered']
    #allocation12 [shape = 'u8[65536]{0}', space=vmem, size = 0x10000, scoped, tag = 'input window, operand 5, single buffered']
    #allocation13 [shape = 's32[1]{0}', space=sflag, size = 0x4, scoped, tag = 'scoped memory for tpu_custom_call.1']
    #allocation14 [shape = 'u8[512]{0}', space=vmem, size = 0x400, scoped, tag = 'input window, operand 6, single buffered']
    #allocation15 [shape = 'u8[262144]{0}', space=vmem, size = 0x40000, scoped, tag = 'output window, operand 0']
    #allocation16 [shape = 'u8[262144]{0}', space=vmem, size = 0x40000, scoped, tag = 'output window, operand 1']
    #allocation17 [shape = 's32[2]{0}', space=sflag, size = 0x8, scoped, tag = 'scoped memory for tpu_custom_call.1']
    %14 = vsyncpa [#allocation4], 0
    %s15 = scalar_lea.sflag [#allocation4], 1
    %16 = vsyncpa %s15, 0
    %17 = vsyncpa [#allocation7], 0
    %s18 = scalar_lea.sflag [#allocation7], 1
    %19 = vsyncpa %s18, 0
    %20 = vsyncpa [#allocation10], 0
    %21 = vsyncpa [#allocation13], 0
    %22 = vsyncpa [#allocation5], 0
    %s23 = scalar_lea.sflag [#allocation5], 1
    %24 = vsyncpa %s23, 0
    %25 = vsyncpa [#allocation17], 0
    %s26 = scalar_lea.sflag [#allocation17], 1
    %27 = vsyncpa %s26, 0
    loop: start=0, step=1, limit=6
    $region2: #{tpu_custom_call.1} parent=1 // loop_pre_header
      _
    $region3: #{tpu_custom_call.1} parent=1 // loop_header
      %s29 = sphi 0, %s33
      %p30 = scmp.ge.s32.totalorder %s29, 6
      %s36 = sphi 0, %s48
      %s37 = sphi 0, %s44
      %s38 = sphi 0, %s36
      %s39 = sphi 0, %s37
      %s40 = sphi 0, %s38
      %s41 = sphi 0, %s39
      %s53 = sphi 0, %s55
      %s56 = sphi 0, %s53
      %s57 = sphi 0, %s56
      %s73 = sphi 0, %s57
      %s79 = sphi 0, %s81
      %s82 = sphi 0, %s79
      %s83 = sphi 0, %s82
      %s99 = sphi 0, %s83
      %s103 = sphi 0, %s103
      %s105 = sphi 0, %s103
      %s106 = sphi 0, %s105
      %s120 = sphi 0, %s106
      %s124 = sphi 0, %s124
      %s126 = sphi 0, %s124
      %s127 = sphi 0, %s126
      %s141 = sphi 0, %s127
      %s145 = sphi 0, %s145
      %s147 = sphi 0, %s145
      %s148 = sphi 0, %s147
      %s162 = sphi 0, %s148
      %s166 = sphi 0, %s166
      %s168 = sphi 0, %s166
      %s169 = sphi 0, %s168
      %s183 = sphi 0, %s169
      %s187 = sphi 0, %s187
      %s189 = sphi 0, %s187
      %s190 = sphi 0, %s189
      %s204 = sphi 0, %s190
      %s210 = sphi 0, %s212
      %s213 = sphi 0, %s210
      %s214 = sphi 0, %s213
      %s230 = sphi 0, %s214
      %s236 = sphi 0, %s238
      %s239 = sphi 0, %s236
      %s240 = sphi 0, %s239
      %s256 = sphi 0, %s240
    $region4: #{tpu_custom_call.1} parent=1 // loop_header_branch
      %32 = sbr.rel (%p30) target = $region8
    $region5: #{tpu_custom_call.1} parent=1 // loop_body
      %s34 = ssub.s32 %s29, 1
      %s35 = ssub.s32 %s29, 2
      %s42 = sadd.s32 1, %s37
      %p43 = scmp.ge.s32.totalorder %s42, 2
      %s44 = scalar_select %p43, 0, %s42
      %s45 = sadd.s32 1, %s36
      %s46 = scalar_select %p43, %s45, %s36
      %p47 = scmp.ge.s32.totalorder %s46, 2
      %s48 = scalar_select %p47, 0, %s46
      %s49 = ssub.s32 %s36, %s48
      %s50 = ssub.s32 %s37, %s44
      %s51 = sor.u32 %s49, %s50
      %p52 = scmp.eq.s32.totalorder %s51, 0
      %s54 = sadd.s32 %s53, 1
      %s55 = scalar_select %p52, %s53, %s54
      %p58 = pneg %p52
      %p59 = scmp.eq.s32.totalorder %s29, 3
      %p60 = por %p58, %p59
      %p61 = scmp.ne.s32.totalorder %s53, %s56
      %p62 = scmp.eq.s32.totalorder %s29, 0
      %p63 = por %p61, %p62
      %p64 = scmp.ne.s32.totalorder %s53, %s56
      %p65 = scmp.eq.s32.totalorder %s34, 3
      %p66 = por %p64, %p65
      %p67 = scmp.ne.s32.totalorder %s56, %s57
      %p68 = scmp.eq.s32.totalorder %s34, 0
      %p69 = por %p67, %p68
      %p70 = scmp.ne.s32.totalorder %s56, %s57
      %p71 = scmp.eq.s32.totalorder %s35, 3
      %p72 = por %p70, %p71
      %p74 = scmp.ne.s32.totalorder %s57, %s73
      %p75 = scmp.eq.s32.totalorder %s35, 0
      %p76 = por %p74, %p75
      %s77 = ssub.s32 %s37, %s44
      %p78 = scmp.eq.s32.totalorder %s77, 0
      %s80 = sadd.s32 %s79, 1
      %s81 = scalar_select %p78, %s79, %s80
      %p84 = pneg %p78
      %p85 = scmp.eq.s32.totalorder %s29, 3
      %p86 = por %p84, %p85
      %p87 = scmp.ne.s32.totalorder %s79, %s82
      %p88 = scmp.eq.s32.totalorder %s29, 0
      %p89 = por %p87, %p88
      %p90 = scmp.ne.s32.totalorder %s79, %s82
      %p91 = scmp.eq.s32.totalorder %s34, 3
      %p92 = por %p90, %p91
      %p93 = scmp.ne.s32.totalorder %s82, %s83
      %p94 = scmp.eq.s32.totalorder %s34, 0
      %p95 = por %p93, %p94
      %p96 = scmp.ne.s32.totalorder %s82, %s83
      %p97 = scmp.eq.s32.totalorder %s35, 3
      %p98 = por %p96, %p97
      %p100 = scmp.ne.s32.totalorder %s83, %s99
      %p101 = scmp.eq.s32.totalorder %s35, 0
      %p102 = por %p100, %p101
      %s104 = sadd.s32 %s103, 1
      %p107 = scmp.eq.s32.totalorder %s29, 3
      %p108 = scmp.ne.s32.totalorder %s103, %s105
      %p109 = scmp.eq.s32.totalorder %s29, 0
      %p110 = por %p108, %p109
      %p111 = scmp.ne.s32.totalorder %s103, %s105
      %p112 = scmp.eq.s32.totalorder %s34, 3
      %p113 = por %p111, %p112
      %p114 = scmp.ne.s32.totalorder %s105, %s106
      %p115 = scmp.eq.s32.totalorder %s34, 0
      %p116 = por %p114, %p115
      %p117 = scmp.ne.s32.totalorder %s105, %s106
      %p118 = scmp.eq.s32.totalorder %s35, 3
      %p119 = por %p117, %p118
      %p121 = scmp.ne.s32.totalorder %s106, %s120
      %p122 = scmp.eq.s32.totalorder %s35, 0
      %p123 = por %p121, %p122
      %s125 = sadd.s32 %s124, 1
      %p128 = scmp.eq.s32.totalorder %s29, 3
      %p129 = scmp.ne.s32.totalorder %s124, %s126
      %p130 = scmp.eq.s32.totalorder %s29, 0
      %p131 = por %p129, %p130
      %p132 = scmp.ne.s32.totalorder %s124, %s126
      %p133 = scmp.eq.s32.totalorder %s34, 3
      %p134 = por %p132, %p133
      %p135 = scmp.ne.s32.totalorder %s126, %s127
      %p136 = scmp.eq.s32.totalorder %s34, 0
      %p137 = por %p135, %p136
      %p138 = scmp.ne.s32.totalorder %s126, %s127
      %p139 = scmp.eq.s32.totalorder %s35, 3
      %p140 = por %p138, %p139
      %p142 = scmp.ne.s32.totalorder %s127, %s141
      %p143 = scmp.eq.s32.totalorder %s35, 0
      %p144 = por %p142, %p143
      %s146 = sadd.s32 %s145, 1
      %p149 = scmp.eq.s32.totalorder %s29, 3
      %p150 = scmp.ne.s32.totalorder %s145, %s147
      %p151 = scmp.eq.s32.totalorder %s29, 0
      %p152 = por %p150, %p151
      %p153 = scmp.ne.s32.totalorder %s145, %s147
      %p154 = scmp.eq.s32.totalorder %s34, 3
      %p155 = por %p153, %p154
      %p156 = scmp.ne.s32.totalorder %s147, %s148
      %p157 = scmp.eq.s32.totalorder %s34, 0
      %p158 = por %p156, %p157
      %p159 = scmp.ne.s32.totalorder %s147, %s148
      %p160 = scmp.eq.s32.totalorder %s35, 3
      %p161 = por %p159, %p160
      %p163 = scmp.ne.s32.totalorder %s148, %s162
      %p164 = scmp.eq.s32.totalorder %s35, 0
      %p165 = por %p163, %p164
      %s167 = sadd.s32 %s166, 1
      %p170 = scmp.eq.s32.totalorder %s29, 3
      %p171 = scmp.ne.s32.totalorder %s166, %s168
      %p172 = scmp.eq.s32.totalorder %s29, 0
      %p173 = por %p171, %p172
      %p174 = scmp.ne.s32.totalorder %s166, %s168
      %p175 = scmp.eq.s32.totalorder %s34, 3
      %p176 = por %p174, %p175
      %p177 = scmp.ne.s32.totalorder %s168, %s169
      %p178 = scmp.eq.s32.totalorder %s34, 0
      %p179 = por %p177, %p178
      %p180 = scmp.ne.s32.totalorder %s168, %s169
      %p181 = scmp.eq.s32.totalorder %s35, 3
      %p182 = por %p180, %p181
      %p184 = scmp.ne.s32.totalorder %s169, %s183
      %p185 = scmp.eq.s32.totalorder %s35, 0
      %p186 = por %p184, %p185
      %s188 = sadd.s32 %s187, 1
      %p191 = scmp.eq.s32.totalorder %s29, 3
      %p192 = scmp.ne.s32.totalorder %s187, %s189
      %p193 = scmp.eq.s32.totalorder %s29, 0
      %p194 = por %p192, %p193
      %p195 = scmp.ne.s32.totalorder %s187, %s189
      %p196 = scmp.eq.s32.totalorder %s34, 3
      %p197 = por %p195, %p196
      %p198 = scmp.ne.s32.totalorder %s189, %s190
      %p199 = scmp.eq.s32.totalorder %s34, 0
      %p200 = por %p198, %p199
      %p201 = scmp.ne.s32.totalorder %s189, %s190
      %p202 = scmp.eq.s32.totalorder %s35, 3
      %p203 = por %p201, %p202
      %p205 = scmp.ne.s32.totalorder %s190, %s204
      %p206 = scmp.eq.s32.totalorder %s35, 0
      %p207 = por %p205, %p206
      %s208 = ssub.s32 %s36, %s48
      %p209 = scmp.eq.s32.totalorder %s208, 0
      %s211 = sadd.s32 %s210, 1
      %s212 = scalar_select %p209, %s210, %s211
      %p215 = pneg %p209
      %p216 = scmp.eq.s32.totalorder %s29, 3
      %p217 = por %p215, %p216
      %p218 = scmp.ne.s32.totalorder %s210, %s213
      %p219 = scmp.eq.s32.totalorder %s29, 0
      %p220 = por %p218, %p219
      %p221 = scmp.ne.s32.totalorder %s210, %s213
      %p222 = scmp.eq.s32.totalorder %s34, 3
      %p223 = por %p221, %p222
      %p224 = scmp.ne.s32.totalorder %s213, %s214
      %p225 = scmp.eq.s32.totalorder %s34, 0
      %p226 = por %p224, %p225
      %p227 = scmp.ne.s32.totalorder %s213, %s214
      %p228 = scmp.eq.s32.totalorder %s35, 3
      %p229 = por %p227, %p228
      %p231 = scmp.ne.s32.totalorder %s214, %s230
      %p232 = scmp.eq.s32.totalorder %s35, 0
      %p233 = por %p231, %p232
      %s234 = ssub.s32 %s36, %s48
      %p235 = scmp.eq.s32.totalorder %s234, 0
      %s237 = sadd.s32 %s236, 1
      %s238 = scalar_select %p235, %s236, %s237
      %p241 = pneg %p235
      %p242 = scmp.eq.s32.totalorder %s29, 3
      %p243 = por %p241, %p242
      %p244 = scmp.ne.s32.totalorder %s236, %s239
      %p245 = scmp.eq.s32.totalorder %s29, 0
      %p246 = por %p244, %p245
      %p247 = scmp.ne.s32.totalorder %s236, %s239
      %p248 = scmp.eq.s32.totalorder %s34, 3
      %p249 = por %p247, %p248
      %p250 = scmp.ne.s32.totalorder %s239, %s240
      %p251 = scmp.eq.s32.totalorder %s34, 0
      %p252 = por %p250, %p251
      %p253 = scmp.ne.s32.totalorder %s239, %s240
      %p254 = scmp.eq.s32.totalorder %s35, 3
      %p255 = por %p253, %p254
      %p257 = scmp.ne.s32.totalorder %s240, %s256
      %p258 = scmp.eq.s32.totalorder %s35, 0
      %p259 = por %p257, %p258
      %p260 = scmp.le.s32.totalorder 1, %s29
      %p261 = scmp.lt.s32.totalorder %s29, 5
      %p262 = pnand %p260, %p261
      %p263 = pneg %p262
      // Predicated region
      $region9: #{tpu_custom_call.1} parent=5 // pred_check
        _
      $region10: #{tpu_custom_call.1} parent=5 // pred_check_branch
        %265 = sbr.rel (%p262) target = $region12
      $region11: #{tpu_custom_call.1} parent=5 // pred_region
        %s266 = ssub.s32 %s29, 1
        // Predicated region
        $region13: #{tpu_custom_call.1} parent=11 // pred_check
          %p267 = pneg %p116
        $region14: #{tpu_custom_call.1} parent=11 // pred_check_branch
          %269 = sbr.rel (%p267) target = $region16
        $region15: #{tpu_custom_call.1} parent=11 // pred_region
          %271 = vsyncadd [#allocation7], 0
          %s273 = sshll.u32 %s2, 4
          %s274 = int_to_ptr.hbm [resolvable:$true] %s273
          %s275 = sshll.u32 [#allocation8], 4
          %s276 = int_to_ptr.vmem [resolvable:$true] %s275
          %278 = dma.hbm_to_vmem [thread:$0]  %s274, 32, %s276, [#allocation7]
        $region16: #{tpu_custom_call.1} parent=11 // pred_fallthru
          _
        // Predicated region
        $region17: #{tpu_custom_call.1} parent=11 // pred_check
          %p279 = pneg %p137
        $region18: #{tpu_custom_call.1} parent=11 // pred_check_branch
          %281 = sbr.rel (%p279) target = $region20
        $region19: #{tpu_custom_call.1} parent=11 // pred_region
          %283 = vsyncadd [#allocation10], 0
          %s284 = sshll.u32 %s3, 4
          %s285 = int_to_ptr.hbm [resolvable:$true] %s284
          %s286 = sshll.u32 [#allocation9], 4
          %s287 = int_to_ptr.vmem [resolvable:$true] %s286
          %292 = dma.hbm_to_vmem [thread:$0]  %s285, 4096, %s287, [#allocation10], 128, 128, 8
        $region20: #{tpu_custom_call.1} parent=11 // pred_fallthru
          _
        // Predicated region
        $region21: #{tpu_custom_call.1} parent=11 // pred_check
          %p293 = pneg %p158
        $region22: #{tpu_custom_call.1} parent=11 // pred_check_branch
          %295 = sbr.rel (%p293) target = $region24
        $region23: #{tpu_custom_call.1} parent=11 // pred_region
          %297 = vsyncadd [#allocation10], 0
          %s299 = sshll.u32 %s4, 4
          %s300 = int_to_ptr.hbm [resolvable:$true] %s299
          %s301 = sshll.u32 [#allocation11], 4
          %s302 = int_to_ptr.vmem [resolvable:$true] %s301
          %304 = dma.hbm_to_vmem [thread:$0]  %s300, 32, %s302, [#allocation10]
        $region24: #{tpu_custom_call.1} parent=11 // pred_fallthru
          _
        // Predicated region
        $region25: #{tpu_custom_call.1} parent=11 // pred_check
          %p305 = pneg %p179
        $region26: #{tpu_custom_call.1} parent=11 // pred_check_branch
          %307 = sbr.rel (%p305) target = $region28
        $region27: #{tpu_custom_call.1} parent=11 // pred_region
          %309 = vsyncadd [#allocation13], 0
          %s310 = sshll.u32 %s5, 4
          %s311 = int_to_ptr.hbm [resolvable:$true] %s310
          %s312 = sshll.u32 [#allocation12], 4
          %s313 = int_to_ptr.vmem [resolvable:$true] %s312
          %318 = dma.hbm_to_vmem [thread:$0]  %s311, 2048, %s313, [#allocation13], 64, 64, 4
        $region28: #{tpu_custom_call.1} parent=11 // pred_fallthru
          _
        // Predicated region
        $region29: #{tpu_custom_call.1} parent=11 // pred_check
          %p319 = pneg %p200
        $region30: #{tpu_custom_call.1} parent=11 // pred_check_branch
          %321 = sbr.rel (%p319) target = $region32
        $region31: #{tpu_custom_call.1} parent=11 // pred_region
          %323 = vsyncadd [#allocation13], 0
          %s325 = sshll.u32 %s6, 4
          %s326 = int_to_ptr.hbm [resolvable:$true] %s325
          %s327 = sshll.u32 [#allocation14], 4
          %s328 = int_to_ptr.vmem [resolvable:$true] %s327
          %330 = dma.hbm_to_vmem [thread:$0]  %s326, 16, %s328, [#allocation13]
        $region32: #{tpu_custom_call.1} parent=11 // pred_fallthru
          _
      $region12: #{tpu_custom_call.1} parent=5 // pred_fallthru
        _
      %p331 = scmp.lt.s32.totalorder %s29, 4
      // Predicated region
      $region33: #{tpu_custom_call.1} parent=5 // pred_check
        %p332 = pneg %p331
      $region34: #{tpu_custom_call.1} parent=5 // pred_check_branch
        %334 = sbr.rel (%p332) target = $region36
      $region35: #{tpu_custom_call.1} parent=5 // pred_region
        // Predicated region
        $region37: #{tpu_custom_call.1} parent=35 // pred_check
          %p335 = pneg %p63
        $region38: #{tpu_custom_call.1} parent=35 // pred_check_branch
          %337 = sbr.rel (%p335) target = $region40
        $region39: #{tpu_custom_call.1} parent=35 // pred_region
          %s338 = sand.u32 %s53, 1
          %s339 = scalar_lea.sflag [#allocation4], %s338
          %s340 = sand.u32 %s53, 1
          %s341 = smul.addr %s340, 1024
          %s342 = scalar_lea.vmem [#allocation3], %s341
          %s343 = smul.u32 32, %s36
          %s344 = smul.u32 8, %s37
          %346 = vsyncadd %s339, 0
          %s347 = smul.addr %s343, 16
          %s348 = sadd.s32 %s344, %s347
          %s349 = smul.addr %s348, 4
          %s350 = scalar_lea.hbm %s0, %s349
          %s351 = sshll.u32 %s350, 4
          %s352 = int_to_ptr.hbm [resolvable:$true] %s351
          %s353 = sshll.u32 %s342, 4
          %s354 = int_to_ptr.vmem [resolvable:$true] %s353
          %359 = dma.hbm_to_vmem [thread:$0]  %s352, 16384, %s354, %s339, 1024, 512, 32
        $region40: #{tpu_custom_call.1} parent=35 // pred_fallthru
          _
        // Predicated region
        $region41: #{tpu_custom_call.1} parent=35 // pred_check
          %p360 = pneg %p89
        $region42: #{tpu_custom_call.1} parent=35 // pred_check_branch
          %362 = sbr.rel (%p360) target = $region44
        $region43: #{tpu_custom_call.1} parent=35 // pred_region
          %s363 = sand.u32 %s29, 1
          %s364 = scalar_lea.sflag [#allocation7], %s363
          %s365 = sand.u32 %s79, 1
          %s366 = smul.addr %s365, 1024
          %s367 = scalar_lea.vmem [#allocation6], %s366
          %s368 = smul.u32 128, %s37
          %370 = vsyncadd %s364, 0
          %s371 = smul.addr %s368, 2
          %s372 = smul.addr %s371, 4
          %s373 = scalar_lea.hbm %s1, %s372
          %s374 = sshll.u32 %s373, 4
          %s375 = int_to_ptr.hbm [resolvable:$true] %s374
          %s376 = sshll.u32 %s367, 4
          %s377 = int_to_ptr.vmem [resolvable:$true] %s376
          %382 = dma.hbm_to_vmem [thread:$0]  %s375, 16384, %s377, %s364, 128, 128, 8
        $region44: #{tpu_custom_call.1} parent=35 // pred_fallthru
          _
      $region36: #{tpu_custom_call.1} parent=5 // pred_fallthru
        _
      %p383 = scmp.le.s32.totalorder 1, %s29
      %p384 = scmp.lt.s32.totalorder %s29, 5
      %p385 = pnand %p383, %p384
      %p386 = pneg %p385
      // Predicated region
      $region45: #{tpu_custom_call.1} parent=5 // pred_check
        _
      $region46: #{tpu_custom_call.1} parent=5 // pred_check_branch
        %388 = sbr.rel (%p385) target = $region48
      $region47: #{tpu_custom_call.1} parent=5 // pred_region
        %s389 = ssub.s32 %s29, 1
        %s390 = sand.u32 %s56, 1
        %s391 = scalar_lea.sflag [#allocation4], %s390
        %s392 = sand.u32 %s56, 1
        %s393 = smul.addr %s392, 1024
        %s394 = scalar_lea.vmem [#allocation3], %s393
        // Predicated region
        $region49: #{tpu_custom_call.1} parent=47 // pred_check
          %p395 = pneg %p69
        $region50: #{tpu_custom_call.1} parent=47 // pred_check_branch
          %397 = sbr.rel (%p395) target = $region52
        $region51: #{tpu_custom_call.1} parent=47 // pred_region
          %399 = dma.done %s391, 16384
        $region52: #{tpu_custom_call.1} parent=47 // pred_fallthru
          _
        %s400 = sand.u32 %s34, 1
        %s401 = scalar_lea.sflag [#allocation7], %s400
        %s402 = sand.u32 %s82, 1
        %s403 = smul.addr %s402, 1024
        %s404 = scalar_lea.vmem [#allocation6], %s403
        // Predicated region
        $region53: #{tpu_custom_call.1} parent=47 // pred_check
          %p405 = pneg %p95
        $region54: #{tpu_custom_call.1} parent=47 // pred_check_branch
          %407 = sbr.rel (%p405) target = $region56
        $region55: #{tpu_custom_call.1} parent=47 // pred_region
          %409 = dma.done %s401, 16384
        $region56: #{tpu_custom_call.1} parent=47 // pred_fallthru
          _
        // Predicated region
        $region57: #{tpu_custom_call.1} parent=47 // pred_check
          %p410 = pneg %p116
        $region58: #{tpu_custom_call.1} parent=47 // pred_check_branch
          %412 = sbr.rel (%p410) target = $region60
        $region59: #{tpu_custom_call.1} parent=47 // pred_region
          %414 = dma.done [#allocation7], 32
        $region60: #{tpu_custom_call.1} parent=47 // pred_fallthru
          _
        // Predicated region
        $region61: #{tpu_custom_call.1} parent=47 // pred_check
          %p415 = pneg %p137
        $region62: #{tpu_custom_call.1} parent=47 // pred_check_branch
          %417 = sbr.rel (%p415) target = $region64
        $region63: #{tpu_custom_call.1} parent=47 // pred_region
          %419 = dma.done [#allocation10], 4096
        $region64: #{tpu_custom_call.1} parent=47 // pred_fallthru
          _
        // Predicated region
        $region65: #{tpu_custom_call.1} parent=47 // pred_check
          %p420 = pneg %p158
        $region66: #{tpu_custom_call.1} parent=47 // pred_check_branch
          %422 = sbr.rel (%p420) target = $region68
        $region67: #{tpu_custom_call.1} parent=47 // pred_region
          %424 = dma.done [#allocation10], 32
        $region68: #{tpu_custom_call.1} parent=47 // pred_fallthru
          _
        // Predicated region
        $region69: #{tpu_custom_call.1} parent=47 // pred_check
          %p425 = pneg %p179
        $region70: #{tpu_custom_call.1} parent=47 // pred_check_branch
          %427 = sbr.rel (%p425) target = $region72
        $region71: #{tpu_custom_call.1} parent=47 // pred_region
          %429 = dma.done [#allocation13], 2048
        $region72: #{tpu_custom_call.1} parent=47 // pred_fallthru
          _
        // Predicated region
        $region73: #{tpu_custom_call.1} parent=47 // pred_check
          %p430 = pneg %p200
        $region74: #{tpu_custom_call.1} parent=47 // pred_check_branch
          %432 = sbr.rel (%p430) target = $region76
        $region75: #{tpu_custom_call.1} parent=47 // pred_region
          %434 = dma.done [#allocation13], 16
        $region76: #{tpu_custom_call.1} parent=47 // pred_fallthru
          _
        %s435 = sand.u32 %s56, 1
        %s436 = scalar_lea.sflag [#allocation4], %s435
        %s437 = sand.u32 %s56, 1
        %s438 = smul.addr %s437, 1024
        %s439 = scalar_lea.vmem [#allocation3], %s438
        %p440 = pneg %p69
        %p441 = pneg %p66
        %s442 = sand.u32 %s34, 1
        %s443 = scalar_lea.sflag [#allocation7], %s442
        %s444 = sand.u32 %s82, 1
        %s445 = smul.addr %s444, 1024
        %s446 = scalar_lea.vmem [#allocation6], %s445
        %p447 = pneg %p95
        %p448 = pneg %p92
        %p449 = pneg %p116
        %p450 = pneg %p113
        %p451 = pneg %p137
        %p452 = pneg %p134
        %p453 = pneg %p158
        %p454 = pneg %p155
        %p455 = pneg %p179
        %p456 = pneg %p176
        %p457 = pneg %p200
        %p458 = pneg %p197
        %p459 = pneg %p226
        %p460 = pneg %p223
        %s461 = sand.u32 %s213, 1
        %s462 = scalar_lea.sflag [#allocation5], %s461
        %s463 = sand.u32 %s213, 1
        %s464 = smul.addr %s463, 256
        %s465 = scalar_lea.vmem [#allocation15], %s464
        %p466 = pneg %p252
        %p467 = pneg %p249
        %s468 = sand.u32 %s239, 1
        %s469 = scalar_lea.sflag [#allocation17], %s468
        %s470 = sand.u32 %s239, 1
        %s471 = smul.addr %s470, 256
        %s472 = scalar_lea.vmem [#allocation16], %s471
        %s473 = smul.u32 32, %s38
        %s474 = smul.u32 8, %s39
        %s475 = smul.u32 128, %s39
        %s476 = smul.u32 32, %s38
        %s477 = smul.u32 32, %s38
        %p478 = scmp.eq.s32.totalorder %s39, 0
        // Predicated region
        $region77: #{tpu_custom_call.1} parent=47 // pred_check
          %p479 = pneg %p478
        $region78: #{tpu_custom_call.1} parent=47 // pred_check_branch
          %481 = sbr.rel (%p479) target = $region80
        $region79: #{tpu_custom_call.1} parent=47 // pred_region
          %v482 = vld [vmem:[#allocation8] sm:$0x3]
          %v484 = vperm.slane %v482, 0
          %v485 = vperm.slane %v482, 1
          %488 = vst [vmem:[#allocation2] sm:$0xff] %v484
          %489 = vst [vmem:[#allocation2 + $0x8] sm:$0xff] %v485
          %490 = vst [vmem:[#allocation2 + $0x10] sm:$0xff] %v484
          %491 = vst [vmem:[#allocation2 + $0x18] sm:$0xff] %v485
          %492 = vst [vmem:[#allocation2 + $0x20] sm:$0xff] %v484
          %493 = vst [vmem:[#allocation2 + $0x28] sm:$0xff] %v485
          %494 = vst [vmem:[#allocation2 + $0x30] sm:$0xff] %v484
          %495 = vst [vmem:[#allocation2 + $0x38] sm:$0xff] %v485
          %496 = vst [vmem:[#allocation2 + $0x40] sm:$0xff] %v484
          %497 = vst [vmem:[#allocation2 + $0x48] sm:$0xff] %v485
          %498 = vst [vmem:[#allocation2 + $0x50] sm:$0xff] %v484
          %499 = vst [vmem:[#allocation2 + $0x58] sm:$0xff] %v485
          %500 = vst [vmem:[#allocation2 + $0x60] sm:$0xff] %v484
          %501 = vst [vmem:[#allocation2 + $0x68] sm:$0xff] %v485
          %502 = vst [vmem:[#allocation2 + $0x70] sm:$0xff] %v484
          %503 = vst [vmem:[#allocation2 + $0x78] sm:$0xff] %v485
          %504 = vst [vmem:[#allocation2 + $0x80] sm:$0xff] %v484
          %505 = vst [vmem:[#allocation2 + $0x88] sm:$0xff] %v485
          %506 = vst [vmem:[#allocation2 + $0x90] sm:$0xff] %v484
          %507 = vst [vmem:[#allocation2 + $0x98] sm:$0xff] %v485
          %508 = vst [vmem:[#allocation2 + $0xa0] sm:$0xff] %v484
          %509 = vst [vmem:[#allocation2 + $0xa8] sm:$0xff] %v485
          %510 = vst [vmem:[#allocation2 + $0xb0] sm:$0xff] %v484
          %511 = vst [vmem:[#allocation2 + $0xb8] sm:$0xff] %v485
          %512 = vst [vmem:[#allocation2 + $0xc0] sm:$0xff] %v484
          %513 = vst [vmem:[#allocation2 + $0xc8] sm:$0xff] %v485
          %514 = vst [vmem:[#allocation2 + $0xd0] sm:$0xff] %v484
          %515 = vst [vmem:[#allocation2 + $0xd8] sm:$0xff] %v485
          %516 = vst [vmem:[#allocation2 + $0xe0] sm:$0xff] %v484
          %517 = vst [vmem:[#allocation2 + $0xe8] sm:$0xff] %v485
          %518 = vst [vmem:[#allocation2 + $0xf0] sm:$0xff] %v484
          %519 = vst [vmem:[#allocation2 + $0xf8] sm:$0xff] %v485
          %520 = vst [vmem:[#allocation2 + $0x100] sm:$0xff] %v484
          %521 = vst [vmem:[#allocation2 + $0x108] sm:$0xff] %v485
          %522 = vst [vmem:[#allocation2 + $0x110] sm:$0xff] %v484
          %523 = vst [vmem:[#allocation2 + $0x118] sm:$0xff] %v485
          %524 = vst [vmem:[#allocation2 + $0x120] sm:$0xff] %v484
          %525 = vst [vmem:[#allocation2 + $0x128] sm:$0xff] %v485
          %526 = vst [vmem:[#allocation2 + $0x130] sm:$0xff] %v484
          %527 = vst [vmem:[#allocation2 + $0x138] sm:$0xff] %v485
          %528 = vst [vmem:[#allocation2 + $0x140] sm:$0xff] %v484
          %529 = vst [vmem:[#allocation2 + $0x148] sm:$0xff] %v485
          %530 = vst [vmem:[#allocation2 + $0x150] sm:$0xff] %v484
          %531 = vst [vmem:[#allocation2 + $0x158] sm:$0xff] %v485
          %532 = vst [vmem:[#allocation2 + $0x160] sm:$0xff] %v484
          %533 = vst [vmem:[#allocation2 + $0x168] sm:$0xff] %v485
          %534 = vst [vmem:[#allocation2 + $0x170] sm:$0xff] %v484
          %535 = vst [vmem:[#allocation2 + $0x178] sm:$0xff] %v485
          %536 = vst [vmem:[#allocation2 + $0x180] sm:$0xff] %v484
          %537 = vst [vmem:[#allocation2 + $0x188] sm:$0xff] %v485
          %538 = vst [vmem:[#allocation2 + $0x190] sm:$0xff] %v484
          %539 = vst [vmem:[#allocation2 + $0x198] sm:$0xff] %v485
          %540 = vst [vmem:[#allocation2 + $0x1a0] sm:$0xff] %v484
          %541 = vst [vmem:[#allocation2 + $0x1a8] sm:$0xff] %v485
          %542 = vst [vmem:[#allocation2 + $0x1b0] sm:$0xff] %v484
          %543 = vst [vmem:[#allocation2 + $0x1b8] sm:$0xff] %v485
          %544 = vst [vmem:[#allocation2 + $0x1c0] sm:$0xff] %v484
          %545 = vst [vmem:[#allocation2 + $0x1c8] sm:$0xff] %v485
          %546 = vst [vmem:[#allocation2 + $0x1d0] sm:$0xff] %v484
          %547 = vst [vmem:[#allocation2 + $0x1d8] sm:$0xff] %v485
          %548 = vst [vmem:[#allocation2 + $0x1e0] sm:$0xff] %v484
          %549 = vst [vmem:[#allocation2 + $0x1e8] sm:$0xff] %v485
          %550 = vst [vmem:[#allocation2 + $0x1f0] sm:$0xff] %v484
          %551 = vst [vmem:[#allocation2 + $0x1f8] sm:$0xff] %v485
        $region80: #{tpu_custom_call.1} parent=47 // pred_fallthru
          _
        %v552 = vld [vmem:[#allocation2] sm:$0xff]
        %v553 = vld [vmem:[#allocation2 + $0x8] sm:$0xff]
        %v554 = vld [vmem:[#allocation2 + $0x10] sm:$0xff]
        %v555 = vld [vmem:[#allocation2 + $0x18] sm:$0xff]
        %v556 = vld [vmem:[#allocation2 + $0x20] sm:$0xff]
        %v557 = vld [vmem:[#allocation2 + $0x28] sm:$0xff]
        %v558 = vld [vmem:[#allocation2 + $0x30] sm:$0xff]
        %v559 = vld [vmem:[#allocation2 + $0x38] sm:$0xff]
        %v560 = vld [vmem:[#allocation2 + $0x40] sm:$0xff]
        %v561 = vld [vmem:[#allocation2 + $0x48] sm:$0xff]
        %v562 = vld [vmem:[#allocation2 + $0x50] sm:$0xff]
        %v563 = vld [vmem:[#allocation2 + $0x58] sm:$0xff]
        %v564 = vld [vmem:[#allocation2 + $0x60] sm:$0xff]
        %v565 = vld [vmem:[#allocation2 + $0x68] sm:$0xff]
        %v566 = vld [vmem:[#allocation2 + $0x70] sm:$0xff]
        %v567 = vld [vmem:[#allocation2 + $0x78] sm:$0xff]
        %v568 = vld [vmem:[#allocation2 + $0x80] sm:$0xff]
        %v569 = vld [vmem:[#allocation2 + $0x88] sm:$0xff]
        %v570 = vld [vmem:[#allocation2 + $0x90] sm:$0xff]
        %v571 = vld [vmem:[#allocation2 + $0x98] sm:$0xff]
        %v572 = vld [vmem:[#allocation2 + $0xa0] sm:$0xff]
        %v573 = vld [vmem:[#allocation2 + $0xa8] sm:$0xff]
        %v574 = vld [vmem:[#allocation2 + $0xb0] sm:$0xff]
        %v575 = vld [vmem:[#allocation2 + $0xb8] sm:$0xff]
        %v576 = vld [vmem:[#allocation2 + $0xc0] sm:$0xff]
        %v577 = vld [vmem:[#allocation2 + $0xc8] sm:$0xff]
        %v578 = vld [vmem:[#allocation2 + $0xd0] sm:$0xff]
        %v579 = vld [vmem:[#allocation2 + $0xd8] sm:$0xff]
        %v580 = vld [vmem:[#allocation2 + $0xe0] sm:$0xff]
        %v581 = vld [vmem:[#allocation2 + $0xe8] sm:$0xff]
        %v582 = vld [vmem:[#allocation2 + $0xf0] sm:$0xff]
        %v583 = vld [vmem:[#allocation2 + $0xf8] sm:$0xff]
        %v584 = vld [vmem:[#allocation2 + $0x100] sm:$0xff]
        %v585 = vld [vmem:[#allocation2 + $0x108] sm:$0xff]
        %v586 = vld [vmem:[#allocation2 + $0x110] sm:$0xff]
        %v587 = vld [vmem:[#allocation2 + $0x118] sm:$0xff]
        %v588 = vld [vmem:[#allocation2 + $0x120] sm:$0xff]
        %v589 = vld [vmem:[#allocation2 + $0x128] sm:$0xff]
        %v590 = vld [vmem:[#allocation2 + $0x130] sm:$0xff]
        %v591 = vld [vmem:[#allocation2 + $0x138] sm:$0xff]
        %v592 = vld [vmem:[#allocation2 + $0x140] sm:$0xff]
        %v593 = vld [vmem:[#allocation2 + $0x148] sm:$0xff]
        %v594 = vld [vmem:[#allocation2 + $0x150] sm:$0xff]
        %v595 = vld [vmem:[#allocation2 + $0x158] sm:$0xff]
        %v596 = vld [vmem:[#allocation2 + $0x160] sm:$0xff]
        %v597 = vld [vmem:[#allocation2 + $0x168] sm:$0xff]
        %v598 = vld [vmem:[#allocation2 + $0x170] sm:$0xff]
        %v599 = vld [vmem:[#allocation2 + $0x178] sm:$0xff]
        %v600 = vld [vmem:[#allocation2 + $0x180] sm:$0xff]
        %v601 = vld [vmem:[#allocation2 + $0x188] sm:$0xff]
        %v602 = vld [vmem:[#allocation2 + $0x190] sm:$0xff]
        %v603 = vld [vmem:[#allocation2 + $0x198] sm:$0xff]
        %v604 = vld [vmem:[#allocation2 + $0x1a0] sm:$0xff]
        %v605 = vld [vmem:[#allocation2 + $0x1a8] sm:$0xff]
        %v606 = vld [vmem:[#allocation2 + $0x1b0] sm:$0xff]
        %v607 = vld [vmem:[#allocation2 + $0x1b8] sm:$0xff]
        %v608 = vld [vmem:[#allocation2 + $0x1c0] sm:$0xff]
        %v609 = vld [vmem:[#allocation2 + $0x1c8] sm:$0xff]
        %v610 = vld [vmem:[#allocation2 + $0x1d0] sm:$0xff]
        %v611 = vld [vmem:[#allocation2 + $0x1d8] sm:$0xff]
        %v612 = vld [vmem:[#allocation2 + $0x1e0] sm:$0xff]
        %v613 = vld [vmem:[#allocation2 + $0x1e8] sm:$0xff]
        %v614 = vld [vmem:[#allocation2 + $0x1f0] sm:$0xff]
        %v615 = vld [vmem:[#allocation2 + $0x1f8] sm:$0xff]
        %v616 = vld [vmem:[%s394] sm:$0xff]
        %v617 = vld [vmem:[%s394 + $0x8] sm:$0xff]
        %v618 = vld [vmem:[%s394 + $0x10] sm:$0xff]
        %v619 = vld [vmem:[%s394 + $0x18] sm:$0xff]
        %v620 = vld [vmem:[%s394 + $0x20] sm:$0xff]
        %v621 = vld [vmem:[%s394 + $0x28] sm:$0xff]
        %v622 = vld [vmem:[%s394 + $0x30] sm:$0xff]
        %v623 = vld [vmem:[%s394 + $0x38] sm:$0xff]
        %v624 = vld [vmem:[%s394 + $0x40] sm:$0xff]
        %v625 = vld [vmem:[%s394 + $0x48] sm:$0xff]
        %v626 = vld [vmem:[%s394 + $0x50] sm:$0xff]
        %v627 = vld [vmem:[%s394 + $0x58] sm:$0xff]
        %v628 = vld [vmem:[%s394 + $0x60] sm:$0xff]
        %v629 = vld [vmem:[%s394 + $0x68] sm:$0xff]
        %v630 = vld [vmem:[%s394 + $0x70] sm:$0xff]
        %v631 = vld [vmem:[%s394 + $0x78] sm:$0xff]
        %v632 = vld [vmem:[%s394 + $0x80] sm:$0xff]
        %v633 = vld [vmem:[%s394 + $0x88] sm:$0xff]
        %v634 = vld [vmem:[%s394 + $0x90] sm:$0xff]
        %v635 = vld [vmem:[%s394 + $0x98] sm:$0xff]
        %v636 = vld [vmem:[%s394 + $0xa0] sm:$0xff]
        %v637 = vld [vmem:[%s394 + $0xa8] sm:$0xff]
        %v638 = vld [vmem:[%s394 + $0xb0] sm:$0xff]
        %v639 = vld [vmem:[%s394 + $0xb8] sm:$0xff]
        %v640 = vld [vmem:[%s394 + $0xc0] sm:$0xff]
        %v641 = vld [vmem:[%s394 + $0xc8] sm:$0xff]
        %v642 = vld [vmem:[%s394 + $0xd0] sm:$0xff]
        %v643 = vld [vmem:[%s394 + $0xd8] sm:$0xff]
        %v644 = vld [vmem:[%s394 + $0xe0] sm:$0xff]
        %v645 = vld [vmem:[%s394 + $0xe8] sm:$0xff]
        %v646 = vld [vmem:[%s394 + $0xf0] sm:$0xff]
        %v647 = vld [vmem:[%s394 + $0xf8] sm:$0xff]
        %v648 = vld [vmem:[%s394 + $0x100] sm:$0xff]
        %v649 = vld [vmem:[%s394 + $0x108] sm:$0xff]
        %v650 = vld [vmem:[%s394 + $0x110] sm:$0xff]
        %v651 = vld [vmem:[%s394 + $0x118] sm:$0xff]
        %v652 = vld [vmem:[%s394 + $0x120] sm:$0xff]
        %v653 = vld [vmem:[%s394 + $0x128] sm:$0xff]
        %v654 = vld [vmem:[%s394 + $0x130] sm:$0xff]
        %v655 = vld [vmem:[%s394 + $0x138] sm:$0xff]
        %v656 = vld [vmem:[%s394 + $0x140] sm:$0xff]
        %v657 = vld [vmem:[%s394 + $0x148] sm:$0xff]
        %v658 = vld [vmem:[%s394 + $0x150] sm:$0xff]
        %v659 = vld [vmem:[%s394 + $0x158] sm:$0xff]
        %v660 = vld [vmem:[%s394 + $0x160] sm:$0xff]
        %v661 = vld [vmem:[%s394 + $0x168] sm:$0xff]
        %v662 = vld [vmem:[%s394 + $0x170] sm:$0xff]
        %v663 = vld [vmem:[%s394 + $0x178] sm:$0xff]
        %v664 = vld [vmem:[%s394 + $0x180] sm:$0xff]
        %v665 = vld [vmem:[%s394 + $0x188] sm:$0xff]
        %v666 = vld [vmem:[%s394 + $0x190] sm:$0xff]
        %v667 = vld [vmem:[%s394 + $0x198] sm:$0xff]
        %v668 = vld [vmem:[%s394 + $0x1a0] sm:$0xff]
        %v669 = vld [vmem:[%s394 + $0x1a8] sm:$0xff]
        %v670 = vld [vmem:[%s394 + $0x1b0] sm:$0xff]
        %v671 = vld [vmem:[%s394 + $0x1b8] sm:$0xff]
        %v672 = vld [vmem:[%s394 + $0x1c0] sm:$0xff]
        %v673 = vld [vmem:[%s394 + $0x1c8] sm:$0xff]
        %v674 = vld [vmem:[%s394 + $0x1d0] sm:$0xff]
        %v675 = vld [vmem:[%s394 + $0x1d8] sm:$0xff]
        %v676 = vld [vmem:[%s394 + $0x1e0] sm:$0xff]
        %v677 = vld [vmem:[%s394 + $0x1e8] sm:$0xff]
        %v678 = vld [vmem:[%s394 + $0x1f0] sm:$0xff]
        %v679 = vld [vmem:[%s394 + $0x1f8] sm:$0xff]
        %v680 = vld [vmem:[%s394 + $0x200] sm:$0xff]
        %v681 = vld [vmem:[%s394 + $0x208] sm:$0xff]
        %v682 = vld [vmem:[%s394 + $0x210] sm:$0xff]
        %v683 = vld [vmem:[%s394 + $0x218] sm:$0xff]
        %v684 = vld [vmem:[%s394 + $0x220] sm:$0xff]
        %v685 = vld [vmem:[%s394 + $0x228] sm:$0xff]
        %v686 = vld [vmem:[%s394 + $0x230] sm:$0xff]
        %v687 = vld [vmem:[%s394 + $0x238] sm:$0xff]
        %v688 = vld [vmem:[%s394 + $0x240] sm:$0xff]
        %v689 = vld [vmem:[%s394 + $0x248] sm:$0xff]
        %v690 = vld [vmem:[%s394 + $0x250] sm:$0xff]
        %v691 = vld [vmem:[%s394 + $0x258] sm:$0xff]
        %v692 = vld [vmem:[%s394 + $0x260] sm:$0xff]
        %v693 = vld [vmem:[%s394 + $0x268] sm:$0xff]
        %v694 = vld [vmem:[%s394 + $0x270] sm:$0xff]
        %v695 = vld [vmem:[%s394 + $0x278] sm:$0xff]
        %v696 = vld [vmem:[%s394 + $0x280] sm:$0xff]
        %v697 = vld [vmem:[%s394 + $0x288] sm:$0xff]
        %v698 = vld [vmem:[%s394 + $0x290] sm:$0xff]
        %v699 = vld [vmem:[%s394 + $0x298] sm:$0xff]
        %v700 = vld [vmem:[%s394 + $0x2a0] sm:$0xff]
        %v701 = vld [vmem:[%s394 + $0x2a8] sm:$0xff]
        %v702 = vld [vmem:[%s394 + $0x2b0] sm:$0xff]
        %v703 = vld [vmem:[%s394 + $0x2b8] sm:$0xff]
        %v704 = vld [vmem:[%s394 + $0x2c0] sm:$0xff]
        %v705 = vld [vmem:[%s394 + $0x2c8] sm:$0xff]
        %v706 = vld [vmem:[%s394 + $0x2d0] sm:$0xff]
        %v707 = vld [vmem:[%s394 + $0x2d8] sm:$0xff]
        %v708 = vld [vmem:[%s394 + $0x2e0] sm:$0xff]
        %v709 = vld [vmem:[%s394 + $0x2e8] sm:$0xff]
        %v710 = vld [vmem:[%s394 + $0x2f0] sm:$0xff]
        %v711 = vld [vmem:[%s394 + $0x2f8] sm:$0xff]
        %v712 = vld [vmem:[%s394 + $0x300] sm:$0xff]
        %v713 = vld [vmem:[%s394 + $0x308] sm:$0xff]
        %v714 = vld [vmem:[%s394 + $0x310] sm:$0xff]
        %v715 = vld [vmem:[%s394 + $0x318] sm:$0xff]
        %v716 = vld [vmem:[%s394 + $0x320] sm:$0xff]
        %v717 = vld [vmem:[%s394 + $0x328] sm:$0xff]
        %v718 = vld [vmem:[%s394 + $0x330] sm:$0xff]
        %v719 = vld [vmem:[%s394 + $0x338] sm:$0xff]
        %v720 = vld [vmem:[%s394 + $0x340] sm:$0xff]
        %v721 = vld [vmem:[%s394 + $0x348] sm:$0xff]
        %v722 = vld [vmem:[%s394 + $0x350] sm:$0xff]
        %v723 = vld [vmem:[%s394 + $0x358] sm:$0xff]
        %v724 = vld [vmem:[%s394 + $0x360] sm:$0xff]
        %v725 = vld [vmem:[%s394 + $0x368] sm:$0xff]
        %v726 = vld [vmem:[%s394 + $0x370] sm:$0xff]
        %v727 = vld [vmem:[%s394 + $0x378] sm:$0xff]
        %v728 = vld [vmem:[%s394 + $0x380] sm:$0xff]
        %v729 = vld [vmem:[%s394 + $0x388] sm:$0xff]
        %v730 = vld [vmem:[%s394 + $0x390] sm:$0xff]
        %v731 = vld [vmem:[%s394 + $0x398] sm:$0xff]
        %v732 = vld [vmem:[%s394 + $0x3a0] sm:$0xff]
        %v733 = vld [vmem:[%s394 + $0x3a8] sm:$0xff]
        %v734 = vld [vmem:[%s394 + $0x3b0] sm:$0xff]
        %v735 = vld [vmem:[%s394 + $0x3b8] sm:$0xff]
        %v736 = vld [vmem:[%s394 + $0x3c0] sm:$0xff]
        %v737 = vld [vmem:[%s394 + $0x3c8] sm:$0xff]
        %v738 = vld [vmem:[%s394 + $0x3d0] sm:$0xff]
        %v739 = vld [vmem:[%s394 + $0x3d8] sm:$0xff]
        %v740 = vld [vmem:[%s394 + $0x3e0] sm:$0xff]
        %v741 = vld [vmem:[%s394 + $0x3e8] sm:$0xff]
        %v742 = vld [vmem:[%s394 + $0x3f0] sm:$0xff]
        %v743 = vld [vmem:[%s394 + $0x3f8] sm:$0xff]
        %v744 = vld [vmem:[%s404] sm:$0xff]
        %v745 = vld [vmem:[%s404 + $0x8] sm:$0xff]
        %v746 = vld [vmem:[%s404 + $0x10] sm:$0xff]
        %v747 = vld [vmem:[%s404 + $0x18] sm:$0xff]
        %v748 = vld [vmem:[%s404 + $0x20] sm:$0xff]
        %v749 = vld [vmem:[%s404 + $0x28] sm:$0xff]
        %v750 = vld [vmem:[%s404 + $0x30] sm:$0xff]
        %v751 = vld [vmem:[%s404 + $0x38] sm:$0xff]
        %v752 = vld [vmem:[%s404 + $0x40] sm:$0xff]
        %v753 = vld [vmem:[%s404 + $0x48] sm:$0xff]
        %v754 = vld [vmem:[%s404 + $0x50] sm:$0xff]
        %v755 = vld [vmem:[%s404 + $0x58] sm:$0xff]
        %v756 = vld [vmem:[%s404 + $0x60] sm:$0xff]
        %v757 = vld [vmem:[%s404 + $0x68] sm:$0xff]
        %v758 = vld [vmem:[%s404 + $0x70] sm:$0xff]
        %v759 = vld [vmem:[%s404 + $0x78] sm:$0xff]
        %v760 = vld [vmem:[%s404 + $0x80] sm:$0xff]
        %v761 = vld [vmem:[%s404 + $0x88] sm:$0xff]
        %v762 = vld [vmem:[%s404 + $0x90] sm:$0xff]
        %v763 = vld [vmem:[%s404 + $0x98] sm:$0xff]
        %v764 = vld [vmem:[%s404 + $0xa0] sm:$0xff]
        %v765 = vld [vmem:[%s404 + $0xa8] sm:$0xff]
        %v766 = vld [vmem:[%s404 + $0xb0] sm:$0xff]
        %v767 = vld [vmem:[%s404 + $0xb8] sm:$0xff]
        %v768 = vld [vmem:[%s404 + $0xc0] sm:$0xff]
        %v769 = vld [vmem:[%s404 + $0xc8] sm:$0xff]
        %v770 = vld [vmem:[%s404 + $0xd0] sm:$0xff]
        %v771 = vld [vmem:[%s404 + $0xd8] sm:$0xff]
        %v772 = vld [vmem:[%s404 + $0xe0] sm:$0xff]
        %v773 = vld [vmem:[%s404 + $0xe8] sm:$0xff]
        %v774 = vld [vmem:[%s404 + $0xf0] sm:$0xff]
        %v775 = vld [vmem:[%s404 + $0xf8] sm:$0xff]
        %v776 = vld [vmem:[%s404 + $0x100] sm:$0xff]
        %v777 = vld [vmem:[%s404 + $0x108] sm:$0xff]
        %v778 = vld [vmem:[%s404 + $0x110] sm:$0xff]
        %v779 = vld [vmem:[%s404 + $0x118] sm:$0xff]
        %v780 = vld [vmem:[%s404 + $0x120] sm:$0xff]
        %v781 = vld [vmem:[%s404 + $0x128] sm:$0xff]
        %v782 = vld [vmem:[%s404 + $0x130] sm:$0xff]
        %v783 = vld [vmem:[%s404 + $0x138] sm:$0xff]
        %v784 = vld [vmem:[%s404 + $0x140] sm:$0xff]
        %v785 = vld [vmem:[%s404 + $0x148] sm:$0xff]
        %v786 = vld [vmem:[%s404 + $0x150] sm:$0xff]
        %v787 = vld [vmem:[%s404 + $0x158] sm:$0xff]
        %v788 = vld [vmem:[%s404 + $0x160] sm:$0xff]
        %v789 = vld [vmem:[%s404 + $0x168] sm:$0xff]
        %v790 = vld [vmem:[%s404 + $0x170] sm:$0xff]
        %v791 = vld [vmem:[%s404 + $0x178] sm:$0xff]
        %v792 = vld [vmem:[%s404 + $0x180] sm:$0xff]
        %v793 = vld [vmem:[%s404 + $0x188] sm:$0xff]
        %v794 = vld [vmem:[%s404 + $0x190] sm:$0xff]
        %v795 = vld [vmem:[%s404 + $0x198] sm:$0xff]
        %v796 = vld [vmem:[%s404 + $0x1a0] sm:$0xff]
        %v797 = vld [vmem:[%s404 + $0x1a8] sm:$0xff]
        %v798 = vld [vmem:[%s404 + $0x1b0] sm:$0xff]
        %v799 = vld [vmem:[%s404 + $0x1b8] sm:$0xff]
        %v800 = vld [vmem:[%s404 + $0x1c0] sm:$0xff]
        %v801 = vld [vmem:[%s404 + $0x1c8] sm:$0xff]
        %v802 = vld [vmem:[%s404 + $0x1d0] sm:$0xff]
        %v803 = vld [vmem:[%s404 + $0x1d8] sm:$0xff]
        %v804 = vld [vmem:[%s404 + $0x1e0] sm:$0xff]
        %v805 = vld [vmem:[%s404 + $0x1e8] sm:$0xff]
        %v806 = vld [vmem:[%s404 + $0x1f0] sm:$0xff]
        %v807 = vld [vmem:[%s404 + $0x1f8] sm:$0xff]
        %v808 = vld [vmem:[%s404 + $0x200] sm:$0xff]
        %v809 = vld [vmem:[%s404 + $0x208] sm:$0xff]
        %v810 = vld [vmem:[%s404 + $0x210] sm:$0xff]
        %v811 = vld [vmem:[%s404 + $0x218] sm:$0xff]
        %v812 = vld [vmem:[%s404 + $0x220] sm:$0xff]
        %v813 = vld [vmem:[%s404 + $0x228] sm:$0xff]
        %v814 = vld [vmem:[%s404 + $0x230] sm:$0xff]
        %v815 = vld [vmem:[%s404 + $0x238] sm:$0xff]
        %v816 = vld [vmem:[%s404 + $0x240] sm:$0xff]
        %v817 = vld [vmem:[%s404 + $0x248] sm:$0xff]
        %v818 = vld [vmem:[%s404 + $0x250] sm:$0xff]
        %v819 = vld [vmem:[%s404 + $0x258] sm:$0xff]
        %v820 = vld [vmem:[%s404 + $0x260] sm:$0xff]
        %v821 = vld [vmem:[%s404 + $0x268] sm:$0xff]
        %v822 = vld [vmem:[%s404 + $0x270] sm:$0xff]
        %v823 = vld [vmem:[%s404 + $0x278] sm:$0xff]
        %v824 = vld [vmem:[%s404 + $0x280] sm:$0xff]
        %v825 = vld [vmem:[%s404 + $0x288] sm:$0xff]
        %v826 = vld [vmem:[%s404 + $0x290] sm:$0xff]
        %v827 = vld [vmem:[%s404 + $0x298] sm:$0xff]
        %v828 = vld [vmem:[%s404 + $0x2a0] sm:$0xff]
        %v829 = vld [vmem:[%s404 + $0x2a8] sm:$0xff]
        %v830 = vld [vmem:[%s404 + $0x2b0] sm:$0xff]
        %v831 = vld [vmem:[%s404 + $0x2b8] sm:$0xff]
        %v832 = vld [vmem:[%s404 + $0x2c0] sm:$0xff]
        %v833 = vld [vmem:[%s404 + $0x2c8] sm:$0xff]
        %v834 = vld [vmem:[%s404 + $0x2d0] sm:$0xff]
        %v835 = vld [vmem:[%s404 + $0x2d8] sm:$0xff]
        %v836 = vld [vmem:[%s404 + $0x2e0] sm:$0xff]
        %v837 = vld [vmem:[%s404 + $0x2e8] sm:$0xff]
        %v838 = vld [vmem:[%s404 + $0x2f0] sm:$0xff]
        %v839 = vld [vmem:[%s404 + $0x2f8] sm:$0xff]
        %v840 = vld [vmem:[%s404 + $0x300] sm:$0xff]
        %v841 = vld [vmem:[%s404 + $0x308] sm:$0xff]
        %v842 = vld [vmem:[%s404 + $0x310] sm:$0xff]
        %v843 = vld [vmem:[%s404 + $0x318] sm:$0xff]
        %v844 = vld [vmem:[%s404 + $0x320] sm:$0xff]
        %v845 = vld [vmem:[%s404 + $0x328] sm:$0xff]
        %v846 = vld [vmem:[%s404 + $0x330] sm:$0xff]
        %v847 = vld [vmem:[%s404 + $0x338] sm:$0xff]
        %v848 = vld [vmem:[%s404 + $0x340] sm:$0xff]
        %v849 = vld [vmem:[%s404 + $0x348] sm:$0xff]
        %v850 = vld [vmem:[%s404 + $0x350] sm:$0xff]
        %v851 = vld [vmem:[%s404 + $0x358] sm:$0xff]
        %v852 = vld [vmem:[%s404 + $0x360] sm:$0xff]
        %v853 = vld [vmem:[%s404 + $0x368] sm:$0xff]
        %v854 = vld [vmem:[%s404 + $0x370] sm:$0xff]
        %v855 = vld [vmem:[%s404 + $0x378] sm:$0xff]
        %v856 = vld [vmem:[%s404 + $0x380] sm:$0xff]
        %v857 = vld [vmem:[%s404 + $0x388] sm:$0xff]
        %v858 = vld [vmem:[%s404 + $0x390] sm:$0xff]
        %v859 = vld [vmem:[%s404 + $0x398] sm:$0xff]
        %v860 = vld [vmem:[%s404 + $0x3a0] sm:$0xff]
        %v861 = vld [vmem:[%s404 + $0x3a8] sm:$0xff]
        %v862 = vld [vmem:[%s404 + $0x3b0] sm:$0xff]
        %v863 = vld [vmem:[%s404 + $0x3b8] sm:$0xff]
        %v864 = vld [vmem:[%s404 + $0x3c0] sm:$0xff]
        %v865 = vld [vmem:[%s404 + $0x3c8] sm:$0xff]
        %v866 = vld [vmem:[%s404 + $0x3d0] sm:$0xff]
        %v867 = vld [vmem:[%s404 + $0x3d8] sm:$0xff]
        %v868 = vld [vmem:[%s404 + $0x3e0] sm:$0xff]
        %v869 = vld [vmem:[%s404 + $0x3e8] sm:$0xff]
        %v870 = vld [vmem:[%s404 + $0x3f0] sm:$0xff]
        %v871 = vld [vmem:[%s404 + $0x3f8] sm:$0xff]
        %v1000 = vunpack.c.l.b16 %v616
        %v1001 = vunpack.c.h.b16 %v616
        %v1002 = vunpack.c.l.b16 %v617
        %v1003 = vunpack.c.h.b16 %v617
        %v1004 = vunpack.c.l.b16 %v618
        %v1005 = vunpack.c.h.b16 %v618
        %v1006 = vunpack.c.l.b16 %v619
        %v1007 = vunpack.c.h.b16 %v619
        %v1008 = vunpack.c.l.b16 %v620
        %v1009 = vunpack.c.h.b16 %v620
        %v1010 = vunpack.c.l.b16 %v621
        %v1011 = vunpack.c.h.b16 %v621
        %v1012 = vunpack.c.l.b16 %v622
        %v1013 = vunpack.c.h.b16 %v622
        %v1014 = vunpack.c.l.b16 %v623
        %v1015 = vunpack.c.h.b16 %v623
        %v1016 = vunpack.c.l.b16 %v624
        %v1017 = vunpack.c.h.b16 %v624
        %v1018 = vunpack.c.l.b16 %v625
        %v1019 = vunpack.c.h.b16 %v625
        %v1020 = vunpack.c.l.b16 %v626
        %v1021 = vunpack.c.h.b16 %v626
        %v1022 = vunpack.c.l.b16 %v627
        %v1023 = vunpack.c.h.b16 %v627
        %v1024 = vunpack.c.l.b16 %v628
        %v1025 = vunpack.c.h.b16 %v628
        %v1026 = vunpack.c.l.b16 %v629
        %v1027 = vunpack.c.h.b16 %v629
        %v1028 = vunpack.c.l.b16 %v630
        %v1029 = vunpack.c.h.b16 %v630
        %v1030 = vunpack.c.l.b16 %v631
        %v1031 = vunpack.c.h.b16 %v631
        %v1032 = vunpack.c.l.b16 %v632
        %v1033 = vunpack.c.h.b16 %v632
        %v1034 = vunpack.c.l.b16 %v633
        %v1035 = vunpack.c.h.b16 %v633
        %v1036 = vunpack.c.l.b16 %v634
        %v1037 = vunpack.c.h.b16 %v634
        %v1038 = vunpack.c.l.b16 %v635
        %v1039 = vunpack.c.h.b16 %v635
        %v1040 = vunpack.c.l.b16 %v636
        %v1041 = vunpack.c.h.b16 %v636
        %v1042 = vunpack.c.l.b16 %v637
        %v1043 = vunpack.c.h.b16 %v637
        %v1044 = vunpack.c.l.b16 %v638
        %v1045 = vunpack.c.h.b16 %v638
        %v1046 = vunpack.c.l.b16 %v639
        %v1047 = vunpack.c.h.b16 %v639
        %v1048 = vunpack.c.l.b16 %v640
        %v1049 = vunpack.c.h.b16 %v640
        %v1050 = vunpack.c.l.b16 %v641
        %v1051 = vunpack.c.h.b16 %v641
        %v1052 = vunpack.c.l.b16 %v642
        %v1053 = vunpack.c.h.b16 %v642
        %v1054 = vunpack.c.l.b16 %v643
        %v1055 = vunpack.c.h.b16 %v643
        %v1056 = vunpack.c.l.b16 %v644
        %v1057 = vunpack.c.h.b16 %v644
        %v1058 = vunpack.c.l.b16 %v645
        %v1059 = vunpack.c.h.b16 %v645
        %v1060 = vunpack.c.l.b16 %v646
        %v1061 = vunpack.c.h.b16 %v646
        %v1062 = vunpack.c.l.b16 %v647
        %v1063 = vunpack.c.h.b16 %v647
        %v1064 = vunpack.c.l.b16 %v648
        %v1065 = vunpack.c.h.b16 %v648
        %v1066 = vunpack.c.l.b16 %v649
        %v1067 = vunpack.c.h.b16 %v649
        %v1068 = vunpack.c.l.b16 %v650
        %v1069 = vunpack.c.h.b16 %v650
        %v1070 = vunpack.c.l.b16 %v651
        %v1071 = vunpack.c.h.b16 %v651
        %v1072 = vunpack.c.l.b16 %v652
        %v1073 = vunpack.c.h.b16 %v652
        %v1074 = vunpack.c.l.b16 %v653
        %v1075 = vunpack.c.h.b16 %v653
        %v1076 = vunpack.c.l.b16 %v654
        %v1077 = vunpack.c.h.b16 %v654
        %v1078 = vunpack.c.l.b16 %v655
        %v1079 = vunpack.c.h.b16 %v655
        %v1080 = vunpack.c.l.b16 %v656
        %v1081 = vunpack.c.h.b16 %v656
        %v1082 = vunpack.c.l.b16 %v657
        %v1083 = vunpack.c.h.b16 %v657
        %v1084 = vunpack.c.l.b16 %v658
        %v1085 = vunpack.c.h.b16 %v658
        %v1086 = vunpack.c.l.b16 %v659
        %v1087 = vunpack.c.h.b16 %v659
        %v1088 = vunpack.c.l.b16 %v660
        %v1089 = vunpack.c.h.b16 %v660
        %v1090 = vunpack.c.l.b16 %v661
        %v1091 = vunpack.c.h.b16 %v661
        %v1092 = vunpack.c.l.b16 %v662
        %v1093 = vunpack.c.h.b16 %v662
        %v1094 = vunpack.c.l.b16 %v663
        %v1095 = vunpack.c.h.b16 %v663
        %v1096 = vunpack.c.l.b16 %v664
        %v1097 = vunpack.c.h.b16 %v664
        %v1098 = vunpack.c.l.b16 %v665
        %v1099 = vunpack.c.h.b16 %v665
        %v1100 = vunpack.c.l.b16 %v666
        %v1101 = vunpack.c.h.b16 %v666
        %v1102 = vunpack.c.l.b16 %v667
        %v1103 = vunpack.c.h.b16 %v667
        %v1104 = vunpack.c.l.b16 %v668
        %v1105 = vunpack.c.h.b16 %v668
        %v1106 = vunpack.c.l.b16 %v669
        %v1107 = vunpack.c.h.b16 %v669
        %v1108 = vunpack.c.l.b16 %v670
        %v1109 = vunpack.c.h.b16 %v670
        %v1110 = vunpack.c.l.b16 %v671
        %v1111 = vunpack.c.h.b16 %v671
        %v1112 = vunpack.c.l.b16 %v672
        %v1113 = vunpack.c.h.b16 %v672
        %v1114 = vunpack.c.l.b16 %v673
        %v1115 = vunpack.c.h.b16 %v673
        %v1116 = vunpack.c.l.b16 %v674
        %v1117 = vunpack.c.h.b16 %v674
        %v1118 = vunpack.c.l.b16 %v675
        %v1119 = vunpack.c.h.b16 %v675
        %v1120 = vunpack.c.l.b16 %v676
        %v1121 = vunpack.c.h.b16 %v676
        %v1122 = vunpack.c.l.b16 %v677
        %v1123 = vunpack.c.h.b16 %v677
        %v1124 = vunpack.c.l.b16 %v678
        %v1125 = vunpack.c.h.b16 %v678
        %v1126 = vunpack.c.l.b16 %v679
        %v1127 = vunpack.c.h.b16 %v679
        %v1128 = vunpack.c.l.b16 %v680
        %v1129 = vunpack.c.h.b16 %v680
        %v1130 = vunpack.c.l.b16 %v681
        %v1131 = vunpack.c.h.b16 %v681
        %v1132 = vunpack.c.l.b16 %v682
        %v1133 = vunpack.c.h.b16 %v682
        %v1134 = vunpack.c.l.b16 %v683
        %v1135 = vunpack.c.h.b16 %v683
        %v1136 = vunpack.c.l.b16 %v684
        %v1137 = vunpack.c.h.b16 %v684
        %v1138 = vunpack.c.l.b16 %v685
        %v1139 = vunpack.c.h.b16 %v685
        %v1140 = vunpack.c.l.b16 %v686
        %v1141 = vunpack.c.h.b16 %v686
        %v1142 = vunpack.c.l.b16 %v687
        %v1143 = vunpack.c.h.b16 %v687
        %v1144 = vunpack.c.l.b16 %v688
        %v1145 = vunpack.c.h.b16 %v688
        %v1146 = vunpack.c.l.b16 %v689
        %v1147 = vunpack.c.h.b16 %v689
        %v1148 = vunpack.c.l.b16 %v690
        %v1149 = vunpack.c.h.b16 %v690
        %v1150 = vunpack.c.l.b16 %v691
        %v1151 = vunpack.c.h.b16 %v691
        %v1152 = vunpack.c.l.b16 %v692
        %v1153 = vunpack.c.h.b16 %v692
        %v1154 = vunpack.c.l.b16 %v693
        %v1155 = vunpack.c.h.b16 %v693
        %v1156 = vunpack.c.l.b16 %v694
        %v1157 = vunpack.c.h.b16 %v694
        %v1158 = vunpack.c.l.b16 %v695
        %v1159 = vunpack.c.h.b16 %v695
        %v1160 = vunpack.c.l.b16 %v696
        %v1161 = vunpack.c.h.b16 %v696
        %v1162 = vunpack.c.l.b16 %v697
        %v1163 = vunpack.c.h.b16 %v697
        %v1164 = vunpack.c.l.b16 %v698
        %v1165 = vunpack.c.h.b16 %v698
        %v1166 = vunpack.c.l.b16 %v699
        %v1167 = vunpack.c.h.b16 %v699
        %v1168 = vunpack.c.l.b16 %v700
        %v1169 = vunpack.c.h.b16 %v700
        %v1170 = vunpack.c.l.b16 %v701
        %v1171 = vunpack.c.h.b16 %v701
        %v1172 = vunpack.c.l.b16 %v702
        %v1173 = vunpack.c.h.b16 %v702
        %v1174 = vunpack.c.l.b16 %v703
        %v1175 = vunpack.c.h.b16 %v703
        %v1176 = vunpack.c.l.b16 %v704
        %v1177 = vunpack.c.h.b16 %v704
        %v1178 = vunpack.c.l.b16 %v705
        %v1179 = vunpack.c.h.b16 %v705
        %v1180 = vunpack.c.l.b16 %v706
        %v1181 = vunpack.c.h.b16 %v706
        %v1182 = vunpack.c.l.b16 %v707
        %v1183 = vunpack.c.h.b16 %v707
        %v1184 = vunpack.c.l.b16 %v708
        %v1185 = vunpack.c.h.b16 %v708
        %v1186 = vunpack.c.l.b16 %v709
        %v1187 = vunpack.c.h.b16 %v709
        %v1188 = vunpack.c.l.b16 %v710
        %v1189 = vunpack.c.h.b16 %v710
        %v1190 = vunpack.c.l.b16 %v711
        %v1191 = vunpack.c.h.b16 %v711
        %v1192 = vunpack.c.l.b16 %v712
        %v1193 = vunpack.c.h.b16 %v712
        %v1194 = vunpack.c.l.b16 %v713
        %v1195 = vunpack.c.h.b16 %v713
        %v1196 = vunpack.c.l.b16 %v714
        %v1197 = vunpack.c.h.b16 %v714
        %v1198 = vunpack.c.l.b16 %v715
        %v1199 = vunpack.c.h.b16 %v715
        %v1200 = vunpack.c.l.b16 %v716
        %v1201 = vunpack.c.h.b16 %v716
        %v1202 = vunpack.c.l.b16 %v717
        %v1203 = vunpack.c.h.b16 %v717
        %v1204 = vunpack.c.l.b16 %v718
        %v1205 = vunpack.c.h.b16 %v718
        %v1206 = vunpack.c.l.b16 %v719
        %v1207 = vunpack.c.h.b16 %v719
        %v1208 = vunpack.c.l.b16 %v720
        %v1209 = vunpack.c.h.b16 %v720
        %v1210 = vunpack.c.l.b16 %v721
        %v1211 = vunpack.c.h.b16 %v721
        %v1212 = vunpack.c.l.b16 %v722
        %v1213 = vunpack.c.h.b16 %v722
        %v1214 = vunpack.c.l.b16 %v723
        %v1215 = vunpack.c.h.b16 %v723
        %v1216 = vunpack.c.l.b16 %v724
        %v1217 = vunpack.c.h.b16 %v724
        %v1218 = vunpack.c.l.b16 %v725
        %v1219 = vunpack.c.h.b16 %v725
        %v1220 = vunpack.c.l.b16 %v726
        %v1221 = vunpack.c.h.b16 %v726
        %v1222 = vunpack.c.l.b16 %v727
        %v1223 = vunpack.c.h.b16 %v727
        %v1224 = vunpack.c.l.b16 %v728
        %v1225 = vunpack.c.h.b16 %v728
        %v1226 = vunpack.c.l.b16 %v729
        %v1227 = vunpack.c.h.b16 %v729
        %v1228 = vunpack.c.l.b16 %v730
        %v1229 = vunpack.c.h.b16 %v730
        %v1230 = vunpack.c.l.b16 %v731
        %v1231 = vunpack.c.h.b16 %v731
        %v1232 = vunpack.c.l.b16 %v732
        %v1233 = vunpack.c.h.b16 %v732
        %v1234 = vunpack.c.l.b16 %v733
        %v1235 = vunpack.c.h.b16 %v733
        %v1236 = vunpack.c.l.b16 %v734
        %v1237 = vunpack.c.h.b16 %v734
        %v1238 = vunpack.c.l.b16 %v735
        %v1239 = vunpack.c.h.b16 %v735
        %v1240 = vunpack.c.l.b16 %v736
        %v1241 = vunpack.c.h.b16 %v736
        %v1242 = vunpack.c.l.b16 %v737
        %v1243 = vunpack.c.h.b16 %v737
        %v1244 = vunpack.c.l.b16 %v738
        %v1245 = vunpack.c.h.b16 %v738
        %v1246 = vunpack.c.l.b16 %v739
        %v1247 = vunpack.c.h.b16 %v739
        %v1248 = vunpack.c.l.b16 %v740
        %v1249 = vunpack.c.h.b16 %v740
        %v1250 = vunpack.c.l.b16 %v741
        %v1251 = vunpack.c.h.b16 %v741
        %v1252 = vunpack.c.l.b16 %v742
        %v1253 = vunpack.c.h.b16 %v742
        %v1254 = vunpack.c.l.b16 %v743
        %v1255 = vunpack.c.h.b16 %v743
        %v1256 = vpack.c.b16 %v1008, %v1000
        %v1257 = vpack.c.b16 %v1009, %v1001
        %v1258 = vpack.c.b16 %v1010, %v1002
        %v1259 = vpack.c.b16 %v1011, %v1003
        %v1260 = vpack.c.b16 %v1012, %v1004
        %v1261 = vpack.c.b16 %v1013, %v1005
        %v1262 = vpack.c.b16 %v1014, %v1006
        %v1263 = vpack.c.b16 %v1015, %v1007
        %v1264 = vpack.c.b16 %v1024, %v1016
        %v1265 = vpack.c.b16 %v1025, %v1017
        %v1266 = vpack.c.b16 %v1026, %v1018
        %v1267 = vpack.c.b16 %v1027, %v1019
        %v1268 = vpack.c.b16 %v1028, %v1020
        %v1269 = vpack.c.b16 %v1029, %v1021
        %v1270 = vpack.c.b16 %v1030, %v1022
        %v1271 = vpack.c.b16 %v1031, %v1023
        %v1272 = vpack.c.b16 %v1040, %v1032
        %v1273 = vpack.c.b16 %v1041, %v1033
        %v1274 = vpack.c.b16 %v1042, %v1034
        %v1275 = vpack.c.b16 %v1043, %v1035
        %v1276 = vpack.c.b16 %v1044, %v1036
        %v1277 = vpack.c.b16 %v1045, %v1037
        %v1278 = vpack.c.b16 %v1046, %v1038
        %v1279 = vpack.c.b16 %v1047, %v1039
        %v1280 = vpack.c.b16 %v1056, %v1048
        %v1281 = vpack.c.b16 %v1057, %v1049
        %v1282 = vpack.c.b16 %v1058, %v1050
        %v1283 = vpack.c.b16 %v1059, %v1051
        %v1284 = vpack.c.b16 %v1060, %v1052
        %v1285 = vpack.c.b16 %v1061, %v1053
        %v1286 = vpack.c.b16 %v1062, %v1054
        %v1287 = vpack.c.b16 %v1063, %v1055
        %v1288 = vpack.c.b16 %v1072, %v1064
        %v1289 = vpack.c.b16 %v1073, %v1065
        %v1290 = vpack.c.b16 %v1074, %v1066
        %v1291 = vpack.c.b16 %v1075, %v1067
        %v1292 = vpack.c.b16 %v1076, %v1068
        %v1293 = vpack.c.b16 %v1077, %v1069
        %v1294 = vpack.c.b16 %v1078, %v1070
        %v1295 = vpack.c.b16 %v1079, %v1071
        %v1296 = vpack.c.b16 %v1088, %v1080
        %v1297 = vpack.c.b16 %v1089, %v1081
        %v1298 = vpack.c.b16 %v1090, %v1082
        %v1299 = vpack.c.b16 %v1091, %v1083
        %v1300 = vpack.c.b16 %v1092, %v1084
        %v1301 = vpack.c.b16 %v1093, %v1085
        %v1302 = vpack.c.b16 %v1094, %v1086
        %v1303 = vpack.c.b16 %v1095, %v1087
        %v1304 = vpack.c.b16 %v1104, %v1096
        %v1305 = vpack.c.b16 %v1105, %v1097
        %v1306 = vpack.c.b16 %v1106, %v1098
        %v1307 = vpack.c.b16 %v1107, %v1099
        %v1308 = vpack.c.b16 %v1108, %v1100
        %v1309 = vpack.c.b16 %v1109, %v1101
        %v1310 = vpack.c.b16 %v1110, %v1102
        %v1311 = vpack.c.b16 %v1111, %v1103
        %v1312 = vpack.c.b16 %v1120, %v1112
        %v1313 = vpack.c.b16 %v1121, %v1113
        %v1314 = vpack.c.b16 %v1122, %v1114
        %v1315 = vpack.c.b16 %v1123, %v1115
        %v1316 = vpack.c.b16 %v1124, %v1116
        %v1317 = vpack.c.b16 %v1125, %v1117
        %v1318 = vpack.c.b16 %v1126, %v1118
        %v1319 = vpack.c.b16 %v1127, %v1119
        %v1320 = vpack.c.b16 %v1136, %v1128
        %v1321 = vpack.c.b16 %v1137, %v1129
        %v1322 = vpack.c.b16 %v1138, %v1130
        %v1323 = vpack.c.b16 %v1139, %v1131
        %v1324 = vpack.c.b16 %v1140, %v1132
        %v1325 = vpack.c.b16 %v1141, %v1133
        %v1326 = vpack.c.b16 %v1142, %v1134
        %v1327 = vpack.c.b16 %v1143, %v1135
        %v1328 = vpack.c.b16 %v1152, %v1144
        %v1329 = vpack.c.b16 %v1153, %v1145
        %v1330 = vpack.c.b16 %v1154, %v1146
        %v1331 = vpack.c.b16 %v1155, %v1147
        %v1332 = vpack.c.b16 %v1156, %v1148
        %v1333 = vpack.c.b16 %v1157, %v1149
        %v1334 = vpack.c.b16 %v1158, %v1150
        %v1335 = vpack.c.b16 %v1159, %v1151
        %v1336 = vpack.c.b16 %v1168, %v1160
        %v1337 = vpack.c.b16 %v1169, %v1161
        %v1338 = vpack.c.b16 %v1170, %v1162
        %v1339 = vpack.c.b16 %v1171, %v1163
        %v1340 = vpack.c.b16 %v1172, %v1164
        %v1341 = vpack.c.b16 %v1173, %v1165
        %v1342 = vpack.c.b16 %v1174, %v1166
        %v1343 = vpack.c.b16 %v1175, %v1167
        %v1344 = vpack.c.b16 %v1184, %v1176
        %v1345 = vpack.c.b16 %v1185, %v1177
        %v1346 = vpack.c.b16 %v1186, %v1178
        %v1347 = vpack.c.b16 %v1187, %v1179
        %v1348 = vpack.c.b16 %v1188, %v1180
        %v1349 = vpack.c.b16 %v1189, %v1181
        %v1350 = vpack.c.b16 %v1190, %v1182
        %v1351 = vpack.c.b16 %v1191, %v1183
        %v1352 = vpack.c.b16 %v1200, %v1192
        %v1353 = vpack.c.b16 %v1201, %v1193
        %v1354 = vpack.c.b16 %v1202, %v1194
        %v1355 = vpack.c.b16 %v1203, %v1195
        %v1356 = vpack.c.b16 %v1204, %v1196
        %v1357 = vpack.c.b16 %v1205, %v1197
        %v1358 = vpack.c.b16 %v1206, %v1198
        %v1359 = vpack.c.b16 %v1207, %v1199
        %v1360 = vpack.c.b16 %v1216, %v1208
        %v1361 = vpack.c.b16 %v1217, %v1209
        %v1362 = vpack.c.b16 %v1218, %v1210
        %v1363 = vpack.c.b16 %v1219, %v1211
        %v1364 = vpack.c.b16 %v1220, %v1212
        %v1365 = vpack.c.b16 %v1221, %v1213
        %v1366 = vpack.c.b16 %v1222, %v1214
        %v1367 = vpack.c.b16 %v1223, %v1215
        %v1368 = vpack.c.b16 %v1232, %v1224
        %v1369 = vpack.c.b16 %v1233, %v1225
        %v1370 = vpack.c.b16 %v1234, %v1226
        %v1371 = vpack.c.b16 %v1235, %v1227
        %v1372 = vpack.c.b16 %v1236, %v1228
        %v1373 = vpack.c.b16 %v1237, %v1229
        %v1374 = vpack.c.b16 %v1238, %v1230
        %v1375 = vpack.c.b16 %v1239, %v1231
        %v1376 = vpack.c.b16 %v1248, %v1240
        %v1377 = vpack.c.b16 %v1249, %v1241
        %v1378 = vpack.c.b16 %v1250, %v1242
        %v1379 = vpack.c.b16 %v1251, %v1243
        %v1380 = vpack.c.b16 %v1252, %v1244
        %v1381 = vpack.c.b16 %v1253, %v1245
        %v1382 = vpack.c.b16 %v1254, %v1246
        %v1383 = vpack.c.b16 %v1255, %v1247
        %v1640 = vunpack.c.l.b16 %v744
        %v1641 = vunpack.c.h.b16 %v744
        %v1642 = vunpack.c.l.b16 %v745
        %v1643 = vunpack.c.h.b16 %v745
        %v1644 = vunpack.c.l.b16 %v746
        %v1645 = vunpack.c.h.b16 %v746
        %v1646 = vunpack.c.l.b16 %v747
        %v1647 = vunpack.c.h.b16 %v747
        %v1648 = vunpack.c.l.b16 %v748
        %v1649 = vunpack.c.h.b16 %v748
        %v1650 = vunpack.c.l.b16 %v749
        %v1651 = vunpack.c.h.b16 %v749
        %v1652 = vunpack.c.l.b16 %v750
        %v1653 = vunpack.c.h.b16 %v750
        %v1654 = vunpack.c.l.b16 %v751
        %v1655 = vunpack.c.h.b16 %v751
        %v1656 = vunpack.c.l.b16 %v752
        %v1657 = vunpack.c.h.b16 %v752
        %v1658 = vunpack.c.l.b16 %v753
        %v1659 = vunpack.c.h.b16 %v753
        %v1660 = vunpack.c.l.b16 %v754
        %v1661 = vunpack.c.h.b16 %v754
        %v1662 = vunpack.c.l.b16 %v755
        %v1663 = vunpack.c.h.b16 %v755
        %v1664 = vunpack.c.l.b16 %v756
        %v1665 = vunpack.c.h.b16 %v756
        %v1666 = vunpack.c.l.b16 %v757
        %v1667 = vunpack.c.h.b16 %v757
        %v1668 = vunpack.c.l.b16 %v758
        %v1669 = vunpack.c.h.b16 %v758
        %v1670 = vunpack.c.l.b16 %v759
        %v1671 = vunpack.c.h.b16 %v759
        %v1672 = vunpack.c.l.b16 %v760
        %v1673 = vunpack.c.h.b16 %v760
        %v1674 = vunpack.c.l.b16 %v761
        %v1675 = vunpack.c.h.b16 %v761
        %v1676 = vunpack.c.l.b16 %v762
        %v1677 = vunpack.c.h.b16 %v762
        %v1678 = vunpack.c.l.b16 %v763
        %v1679 = vunpack.c.h.b16 %v763
        %v1680 = vunpack.c.l.b16 %v764
        %v1681 = vunpack.c.h.b16 %v764
        %v1682 = vunpack.c.l.b16 %v765
        %v1683 = vunpack.c.h.b16 %v765
        %v1684 = vunpack.c.l.b16 %v766
        %v1685 = vunpack.c.h.b16 %v766
        %v1686 = vunpack.c.l.b16 %v767
        %v1687 = vunpack.c.h.b16 %v767
        %v1688 = vunpack.c.l.b16 %v768
        %v1689 = vunpack.c.h.b16 %v768
        %v1690 = vunpack.c.l.b16 %v769
        %v1691 = vunpack.c.h.b16 %v769
        %v1692 = vunpack.c.l.b16 %v770
        %v1693 = vunpack.c.h.b16 %v770
        %v1694 = vunpack.c.l.b16 %v771
        %v1695 = vunpack.c.h.b16 %v771
        %v1696 = vunpack.c.l.b16 %v772
        %v1697 = vunpack.c.h.b16 %v772
        %v1698 = vunpack.c.l.b16 %v773
        %v1699 = vunpack.c.h.b16 %v773
        %v1700 = vunpack.c.l.b16 %v774
        %v1701 = vunpack.c.h.b16 %v774
        %v1702 = vunpack.c.l.b16 %v775
        %v1703 = vunpack.c.h.b16 %v775
        %v1704 = vunpack.c.l.b16 %v776
        %v1705 = vunpack.c.h.b16 %v776
        %v1706 = vunpack.c.l.b16 %v777
        %v1707 = vunpack.c.h.b16 %v777
        %v1708 = vunpack.c.l.b16 %v778
        %v1709 = vunpack.c.h.b16 %v778
        %v1710 = vunpack.c.l.b16 %v779
        %v1711 = vunpack.c.h.b16 %v779
        %v1712 = vunpack.c.l.b16 %v780
        %v1713 = vunpack.c.h.b16 %v780
        %v1714 = vunpack.c.l.b16 %v781
        %v1715 = vunpack.c.h.b16 %v781
        %v1716 = vunpack.c.l.b16 %v782
        %v1717 = vunpack.c.h.b16 %v782
        %v1718 = vunpack.c.l.b16 %v783
        %v1719 = vunpack.c.h.b16 %v783
        %v1720 = vunpack.c.l.b16 %v784
        %v1721 = vunpack.c.h.b16 %v784
        %v1722 = vunpack.c.l.b16 %v785
        %v1723 = vunpack.c.h.b16 %v785
        %v1724 = vunpack.c.l.b16 %v786
        %v1725 = vunpack.c.h.b16 %v786
        %v1726 = vunpack.c.l.b16 %v787
        %v1727 = vunpack.c.h.b16 %v787
        %v1728 = vunpack.c.l.b16 %v788
        %v1729 = vunpack.c.h.b16 %v788
        %v1730 = vunpack.c.l.b16 %v789
        %v1731 = vunpack.c.h.b16 %v789
        %v1732 = vunpack.c.l.b16 %v790
        %v1733 = vunpack.c.h.b16 %v790
        %v1734 = vunpack.c.l.b16 %v791
        %v1735 = vunpack.c.h.b16 %v791
        %v1736 = vunpack.c.l.b16 %v792
        %v1737 = vunpack.c.h.b16 %v792
        %v1738 = vunpack.c.l.b16 %v793
        %v1739 = vunpack.c.h.b16 %v793
        %v1740 = vunpack.c.l.b16 %v794
        %v1741 = vunpack.c.h.b16 %v794
        %v1742 = vunpack.c.l.b16 %v795
        %v1743 = vunpack.c.h.b16 %v795
        %v1744 = vunpack.c.l.b16 %v796
        %v1745 = vunpack.c.h.b16 %v796
        %v1746 = vunpack.c.l.b16 %v797
        %v1747 = vunpack.c.h.b16 %v797
        %v1748 = vunpack.c.l.b16 %v798
        %v1749 = vunpack.c.h.b16 %v798
        %v1750 = vunpack.c.l.b16 %v799
        %v1751 = vunpack.c.h.b16 %v799
        %v1752 = vunpack.c.l.b16 %v800
        %v1753 = vunpack.c.h.b16 %v800
        %v1754 = vunpack.c.l.b16 %v801
        %v1755 = vunpack.c.h.b16 %v801
        %v1756 = vunpack.c.l.b16 %v802
        %v1757 = vunpack.c.h.b16 %v802
        %v1758 = vunpack.c.l.b16 %v803
        %v1759 = vunpack.c.h.b16 %v803
        %v1760 = vunpack.c.l.b16 %v804
        %v1761 = vunpack.c.h.b16 %v804
        %v1762 = vunpack.c.l.b16 %v805
        %v1763 = vunpack.c.h.b16 %v805
        %v1764 = vunpack.c.l.b16 %v806
        %v1765 = vunpack.c.h.b16 %v806
        %v1766 = vunpack.c.l.b16 %v807
        %v1767 = vunpack.c.h.b16 %v807
        %v1768 = vunpack.c.l.b16 %v808
        %v1769 = vunpack.c.h.b16 %v808
        %v1770 = vunpack.c.l.b16 %v809
        %v1771 = vunpack.c.h.b16 %v809
        %v1772 = vunpack.c.l.b16 %v810
        %v1773 = vunpack.c.h.b16 %v810
        %v1774 = vunpack.c.l.b16 %v811
        %v1775 = vunpack.c.h.b16 %v811
        %v1776 = vunpack.c.l.b16 %v812
        %v1777 = vunpack.c.h.b16 %v812
        %v1778 = vunpack.c.l.b16 %v813
        %v1779 = vunpack.c.h.b16 %v813
        %v1780 = vunpack.c.l.b16 %v814
        %v1781 = vunpack.c.h.b16 %v814
        %v1782 = vunpack.c.l.b16 %v815
        %v1783 = vunpack.c.h.b16 %v815
        %v1784 = vunpack.c.l.b16 %v816
        %v1785 = vunpack.c.h.b16 %v816
        %v1786 = vunpack.c.l.b16 %v817
        %v1787 = vunpack.c.h.b16 %v817
        %v1788 = vunpack.c.l.b16 %v818
        %v1789 = vunpack.c.h.b16 %v818
        %v1790 = vunpack.c.l.b16 %v819
        %v1791 = vunpack.c.h.b16 %v819
        %v1792 = vunpack.c.l.b16 %v820
        %v1793 = vunpack.c.h.b16 %v820
        %v1794 = vunpack.c.l.b16 %v821
        %v1795 = vunpack.c.h.b16 %v821
        %v1796 = vunpack.c.l.b16 %v822
        %v1797 = vunpack.c.h.b16 %v822
        %v1798 = vunpack.c.l.b16 %v823
        %v1799 = vunpack.c.h.b16 %v823
        %v1800 = vunpack.c.l.b16 %v824
        %v1801 = vunpack.c.h.b16 %v824
        %v1802 = vunpack.c.l.b16 %v825
        %v1803 = vunpack.c.h.b16 %v825
        %v1804 = vunpack.c.l.b16 %v826
        %v1805 = vunpack.c.h.b16 %v826
        %v1806 = vunpack.c.l.b16 %v827
        %v1807 = vunpack.c.h.b16 %v827
        %v1808 = vunpack.c.l.b16 %v828
        %v1809 = vunpack.c.h.b16 %v828
        %v1810 = vunpack.c.l.b16 %v829
        %v1811 = vunpack.c.h.b16 %v829
        %v1812 = vunpack.c.l.b16 %v830
        %v1813 = vunpack.c.h.b16 %v830
        %v1814 = vunpack.c.l.b16 %v831
        %v1815 = vunpack.c.h.b16 %v831
        %v1816 = vunpack.c.l.b16 %v832
        %v1817 = vunpack.c.h.b16 %v832
        %v1818 = vunpack.c.l.b16 %v833
        %v1819 = vunpack.c.h.b16 %v833
        %v1820 = vunpack.c.l.b16 %v834
        %v1821 = vunpack.c.h.b16 %v834
        %v1822 = vunpack.c.l.b16 %v835
        %v1823 = vunpack.c.h.b16 %v835
        %v1824 = vunpack.c.l.b16 %v836
        %v1825 = vunpack.c.h.b16 %v836
        %v1826 = vunpack.c.l.b16 %v837
        %v1827 = vunpack.c.h.b16 %v837
        %v1828 = vunpack.c.l.b16 %v838
        %v1829 = vunpack.c.h.b16 %v838
        %v1830 = vunpack.c.l.b16 %v839
        %v1831 = vunpack.c.h.b16 %v839
        %v1832 = vunpack.c.l.b16 %v840
        %v1833 = vunpack.c.h.b16 %v840
        %v1834 = vunpack.c.l.b16 %v841
        %v1835 = vunpack.c.h.b16 %v841
        %v1836 = vunpack.c.l.b16 %v842
        %v1837 = vunpack.c.h.b16 %v842
        %v1838 = vunpack.c.l.b16 %v843
        %v1839 = vunpack.c.h.b16 %v843
        %v1840 = vunpack.c.l.b16 %v844
        %v1841 = vunpack.c.h.b16 %v844
        %v1842 = vunpack.c.l.b16 %v845
        %v1843 = vunpack.c.h.b16 %v845
        %v1844 = vunpack.c.l.b16 %v846
        %v1845 = vunpack.c.h.b16 %v846
        %v1846 = vunpack.c.l.b16 %v847
        %v1847 = vunpack.c.h.b16 %v847
        %v1848 = vunpack.c.l.b16 %v848
        %v1849 = vunpack.c.h.b16 %v848
        %v1850 = vunpack.c.l.b16 %v849
        %v1851 = vunpack.c.h.b16 %v849
        %v1852 = vunpack.c.l.b16 %v850
        %v1853 = vunpack.c.h.b16 %v850
        %v1854 = vunpack.c.l.b16 %v851
        %v1855 = vunpack.c.h.b16 %v851
        %v1856 = vunpack.c.l.b16 %v852
        %v1857 = vunpack.c.h.b16 %v852
        %v1858 = vunpack.c.l.b16 %v853
        %v1859 = vunpack.c.h.b16 %v853
        %v1860 = vunpack.c.l.b16 %v854
        %v1861 = vunpack.c.h.b16 %v854
        %v1862 = vunpack.c.l.b16 %v855
        %v1863 = vunpack.c.h.b16 %v855
        %v1864 = vunpack.c.l.b16 %v856
        %v1865 = vunpack.c.h.b16 %v856
        %v1866 = vunpack.c.l.b16 %v857
        %v1867 = vunpack.c.h.b16 %v857
        %v1868 = vunpack.c.l.b16 %v858
        %v1869 = vunpack.c.h.b16 %v858
        %v1870 = vunpack.c.l.b16 %v859
        %v1871 = vunpack.c.h.b16 %v859
        %v1872 = vunpack.c.l.b16 %v860
        %v1873 = vunpack.c.h.b16 %v860
        %v1874 = vunpack.c.l.b16 %v861
        %v1875 = vunpack.c.h.b16 %v861
        %v1876 = vunpack.c.l.b16 %v862
        %v1877 = vunpack.c.h.b16 %v862
        %v1878 = vunpack.c.l.b16 %v863
        %v1879 = vunpack.c.h.b16 %v863
        %v1880 = vunpack.c.l.b16 %v864
        %v1881 = vunpack.c.h.b16 %v864
        %v1882 = vunpack.c.l.b16 %v865
        %v1883 = vunpack.c.h.b16 %v865
        %v1884 = vunpack.c.l.b16 %v866
        %v1885 = vunpack.c.h.b16 %v866
        %v1886 = vunpack.c.l.b16 %v867
        %v1887 = vunpack.c.h.b16 %v867
        %v1888 = vunpack.c.l.b16 %v868
        %v1889 = vunpack.c.h.b16 %v868
        %v1890 = vunpack.c.l.b16 %v869
        %v1891 = vunpack.c.h.b16 %v869
        %v1892 = vunpack.c.l.b16 %v870
        %v1893 = vunpack.c.h.b16 %v870
        %v1894 = vunpack.c.l.b16 %v871
        %v1895 = vunpack.c.h.b16 %v871
        %v1896 = vpack.c.b16 %v1642, %v1640
        %v1897 = vpack.c.b16 %v1643, %v1641
        %v1898 = vpack.c.b16 %v1646, %v1644
        %v1899 = vpack.c.b16 %v1647, %v1645
        %v1900 = vpack.c.b16 %v1650, %v1648
        %v1901 = vpack.c.b16 %v1651, %v1649
        %v1902 = vpack.c.b16 %v1654, %v1652
        %v1903 = vpack.c.b16 %v1655, %v1653
        %v1904 = vpack.c.b16 %v1658, %v1656
        %v1905 = vpack.c.b16 %v1659, %v1657
        %v1906 = vpack.c.b16 %v1662, %v1660
        %v1907 = vpack.c.b16 %v1663, %v1661
        %v1908 = vpack.c.b16 %v1666, %v1664
        %v1909 = vpack.c.b16 %v1667, %v1665
        %v1910 = vpack.c.b16 %v1670, %v1668
        %v1911 = vpack.c.b16 %v1671, %v1669
        %v1912 = vpack.c.b16 %v1674, %v1672
        %v1913 = vpack.c.b16 %v1675, %v1673
        %v1914 = vpack.c.b16 %v1678, %v1676
        %v1915 = vpack.c.b16 %v1679, %v1677
        %v1916 = vpack.c.b16 %v1682, %v1680
        %v1917 = vpack.c.b16 %v1683, %v1681
        %v1918 = vpack.c.b16 %v1686, %v1684
        %v1919 = vpack.c.b16 %v1687, %v1685
        %v1920 = vpack.c.b16 %v1690, %v1688
        %v1921 = vpack.c.b16 %v1691, %v1689
        %v1922 = vpack.c.b16 %v1694, %v1692
        %v1923 = vpack.c.b16 %v1695, %v1693
        %v1924 = vpack.c.b16 %v1698, %v1696
        %v1925 = vpack.c.b16 %v1699, %v1697
        %v1926 = vpack.c.b16 %v1702, %v1700
        %v1927 = vpack.c.b16 %v1703, %v1701
        %v1928 = vpack.c.b16 %v1706, %v1704
        %v1929 = vpack.c.b16 %v1707, %v1705
        %v1930 = vpack.c.b16 %v1710, %v1708
        %v1931 = vpack.c.b16 %v1711, %v1709
        %v1932 = vpack.c.b16 %v1714, %v1712
        %v1933 = vpack.c.b16 %v1715, %v1713
        %v1934 = vpack.c.b16 %v1718, %v1716
        %v1935 = vpack.c.b16 %v1719, %v1717
        %v1936 = vpack.c.b16 %v1722, %v1720
        %v1937 = vpack.c.b16 %v1723, %v1721
        %v1938 = vpack.c.b16 %v1726, %v1724
        %v1939 = vpack.c.b16 %v1727, %v1725
        %v1940 = vpack.c.b16 %v1730, %v1728
        %v1941 = vpack.c.b16 %v1731, %v1729
        %v1942 = vpack.c.b16 %v1734, %v1732
        %v1943 = vpack.c.b16 %v1735, %v1733
        %v1944 = vpack.c.b16 %v1738, %v1736
        %v1945 = vpack.c.b16 %v1739, %v1737
        %v1946 = vpack.c.b16 %v1742, %v1740
        %v1947 = vpack.c.b16 %v1743, %v1741
        %v1948 = vpack.c.b16 %v1746, %v1744
        %v1949 = vpack.c.b16 %v1747, %v1745
        %v1950 = vpack.c.b16 %v1750, %v1748
        %v1951 = vpack.c.b16 %v1751, %v1749
        %v1952 = vpack.c.b16 %v1754, %v1752
        %v1953 = vpack.c.b16 %v1755, %v1753
        %v1954 = vpack.c.b16 %v1758, %v1756
        %v1955 = vpack.c.b16 %v1759, %v1757
        %v1956 = vpack.c.b16 %v1762, %v1760
        %v1957 = vpack.c.b16 %v1763, %v1761
        %v1958 = vpack.c.b16 %v1766, %v1764
        %v1959 = vpack.c.b16 %v1767, %v1765
        %v1960 = vpack.c.b16 %v1770, %v1768
        %v1961 = vpack.c.b16 %v1771, %v1769
        %v1962 = vpack.c.b16 %v1774, %v1772
        %v1963 = vpack.c.b16 %v1775, %v1773
        %v1964 = vpack.c.b16 %v1778, %v1776
        %v1965 = vpack.c.b16 %v1779, %v1777
        %v1966 = vpack.c.b16 %v1782, %v1780
        %v1967 = vpack.c.b16 %v1783, %v1781
        %v1968 = vpack.c.b16 %v1786, %v1784
        %v1969 = vpack.c.b16 %v1787, %v1785
        %v1970 = vpack.c.b16 %v1790, %v1788
        %v1971 = vpack.c.b16 %v1791, %v1789
        %v1972 = vpack.c.b16 %v1794, %v1792
        %v1973 = vpack.c.b16 %v1795, %v1793
        %v1974 = vpack.c.b16 %v1798, %v1796
        %v1975 = vpack.c.b16 %v1799, %v1797
        %v1976 = vpack.c.b16 %v1802, %v1800
        %v1977 = vpack.c.b16 %v1803, %v1801
        %v1978 = vpack.c.b16 %v1806, %v1804
        %v1979 = vpack.c.b16 %v1807, %v1805
        %v1980 = vpack.c.b16 %v1810, %v1808
        %v1981 = vpack.c.b16 %v1811, %v1809
        %v1982 = vpack.c.b16 %v1814, %v1812
        %v1983 = vpack.c.b16 %v1815, %v1813
        %v1984 = vpack.c.b16 %v1818, %v1816
        %v1985 = vpack.c.b16 %v1819, %v1817
        %v1986 = vpack.c.b16 %v1822, %v1820
        %v1987 = vpack.c.b16 %v1823, %v1821
        %v1988 = vpack.c.b16 %v1826, %v1824
        %v1989 = vpack.c.b16 %v1827, %v1825
        %v1990 = vpack.c.b16 %v1830, %v1828
        %v1991 = vpack.c.b16 %v1831, %v1829
        %v1992 = vpack.c.b16 %v1834, %v1832
        %v1993 = vpack.c.b16 %v1835, %v1833
        %v1994 = vpack.c.b16 %v1838, %v1836
        %v1995 = vpack.c.b16 %v1839, %v1837
        %v1996 = vpack.c.b16 %v1842, %v1840
        %v1997 = vpack.c.b16 %v1843, %v1841
        %v1998 = vpack.c.b16 %v1846, %v1844
        %v1999 = vpack.c.b16 %v1847, %v1845
        %v2000 = vpack.c.b16 %v1850, %v1848
        %v2001 = vpack.c.b16 %v1851, %v1849
        %v2002 = vpack.c.b16 %v1854, %v1852
        %v2003 = vpack.c.b16 %v1855, %v1853
        %v2004 = vpack.c.b16 %v1858, %v1856
        %v2005 = vpack.c.b16 %v1859, %v1857
        %v2006 = vpack.c.b16 %v1862, %v1860
        %v2007 = vpack.c.b16 %v1863, %v1861
        %v2008 = vpack.c.b16 %v1866, %v1864
        %v2009 = vpack.c.b16 %v1867, %v1865
        %v2010 = vpack.c.b16 %v1870, %v1868
        %v2011 = vpack.c.b16 %v1871, %v1869
        %v2012 = vpack.c.b16 %v1874, %v1872
        %v2013 = vpack.c.b16 %v1875, %v1873
        %v2014 = vpack.c.b16 %v1878, %v1876
        %v2015 = vpack.c.b16 %v1879, %v1877
        %v2016 = vpack.c.b16 %v1882, %v1880
        %v2017 = vpack.c.b16 %v1883, %v1881
        %v2018 = vpack.c.b16 %v1886, %v1884
        %v2019 = vpack.c.b16 %v1887, %v1885
        %v2020 = vpack.c.b16 %v1890, %v1888
        %v2021 = vpack.c.b16 %v1891, %v1889
        %v2022 = vpack.c.b16 %v1894, %v1892
        %v2023 = vpack.c.b16 %v1895, %v1893
        %2152 = vmatpush.bf16.msra.mxu0 %v1910
        %2153 = vmatpush.bf16.msra.mxu0 %v1908
        %2154 = vmatpush.bf16.msra.mxu0 %v1906
        %2155 = vmatpush.bf16.msra.mxu0 %v1904
        %2156 = vmatpush.bf16.msra.mxu0 %v1902
        %2157 = vmatpush.bf16.msra.mxu0 %v1900
        %2158 = vmatpush.bf16.msra.mxu0 %v1898
        %2159 = vmatpush.bf16.msra.mxu0 %v1896
        %2160 = vmatmul.bf16.gmra.mxu0 %v1256
        %v2161 = vpop.f32.mrf.mxu0
        %v2162 = vadd.f32 0.0, %v2161
        %v2163 = vpop.f32.mrf.mxu0
        %v2164 = vadd.f32 0.0, %v2163
        %2165 = vmatmul.bf16.gmra.mxu0 %v1264
        %v2166 = vpop.f32.mrf.mxu0
        %v2167 = vadd.f32 0.0, %v2166
        %v2168 = vpop.f32.mrf.mxu0
        %v2169 = vadd.f32 0.0, %v2168
        %2170 = vmatmul.bf16.gmra.mxu0 %v1272
        %v2171 = vpop.f32.mrf.mxu0
        %v2172 = vadd.f32 0.0, %v2171
        %v2173 = vpop.f32.mrf.mxu0
        %v2174 = vadd.f32 0.0, %v2173
        %2175 = vmatmul.bf16.gmra.mxu0 %v1280
        %v2176 = vpop.f32.mrf.mxu0
        %v2177 = vadd.f32 0.0, %v2176
        %v2178 = vpop.f32.mrf.mxu0
        %v2179 = vadd.f32 0.0, %v2178
        %2180 = vmatmul.bf16.gmra.mxu0 %v1288
        %v2181 = vpop.f32.mrf.mxu0
        %v2182 = vadd.f32 0.0, %v2181
        %v2183 = vpop.f32.mrf.mxu0
        %v2184 = vadd.f32 0.0, %v2183
        %2185 = vmatmul.bf16.gmra.mxu0 %v1296
        %v2186 = vpop.f32.mrf.mxu0
        %v2187 = vadd.f32 0.0, %v2186
        %v2188 = vpop.f32.mrf.mxu0
        %v2189 = vadd.f32 0.0, %v2188
        %2190 = vmatmul.bf16.gmra.mxu0 %v1304
        %v2191 = vpop.f32.mrf.mxu0
        %v2192 = vadd.f32 0.0, %v2191
        %v2193 = vpop.f32.mrf.mxu0
        %v2194 = vadd.f32 0.0, %v2193
        %2195 = vmatmul.bf16.gmra.mxu0 %v1312
        %v2196 = vpop.f32.mrf.mxu0
        %v2197 = vadd.f32 0.0, %v2196
        %v2198 = vpop.f32.mrf.mxu0
        %v2199 = vadd.f32 0.0, %v2198
        %2200 = vmatmul.bf16.gmra.mxu0 %v1320
        %v2201 = vpop.f32.mrf.mxu0
        %v2202 = vadd.f32 0.0, %v2201
        %v2203 = vpop.f32.mrf.mxu0
        %v2204 = vadd.f32 0.0, %v2203
        %2205 = vmatmul.bf16.gmra.mxu0 %v1328
        %v2206 = vpop.f32.mrf.mxu0
        %v2207 = vadd.f32 0.0, %v2206
        %v2208 = vpop.f32.mrf.mxu0
        %v2209 = vadd.f32 0.0, %v2208
        %2210 = vmatmul.bf16.gmra.mxu0 %v1336
        %v2211 = vpop.f32.mrf.mxu0
        %v2212 = vadd.f32 0.0, %v2211
        %v2213 = vpop.f32.mrf.mxu0
        %v2214 = vadd.f32 0.0, %v2213
        %2215 = vmatmul.bf16.gmra.mxu0 %v1344
        %v2216 = vpop.f32.mrf.mxu0
        %v2217 = vadd.f32 0.0, %v2216
        %v2218 = vpop.f32.mrf.mxu0
        %v2219 = vadd.f32 0.0, %v2218
        %2220 = vmatmul.bf16.gmra.mxu0 %v1352
        %v2221 = vpop.f32.mrf.mxu0
        %v2222 = vadd.f32 0.0, %v2221
        %v2223 = vpop.f32.mrf.mxu0
        %v2224 = vadd.f32 0.0, %v2223
        %2225 = vmatmul.bf16.gmra.mxu0 %v1360
        %v2226 = vpop.f32.mrf.mxu0
        %v2227 = vadd.f32 0.0, %v2226
        %v2228 = vpop.f32.mrf.mxu0
        %v2229 = vadd.f32 0.0, %v2228
        %2230 = vmatmul.bf16.gmra.mxu0 %v1368
        %v2231 = vpop.f32.mrf.mxu0
        %v2232 = vadd.f32 0.0, %v2231
        %v2233 = vpop.f32.mrf.mxu0
        %v2234 = vadd.f32 0.0, %v2233
        %2235 = vmatmul.bf16.gmra.mxu0 %v1376
        %v2236 = vpop.f32.mrf.mxu0
        %v2237 = vadd.f32 0.0, %v2236
        %v2238 = vpop.f32.mrf.mxu0
        %v2239 = vadd.f32 0.0, %v2238
        %2240 = vdwg.mxu0
        %2241 = vmatpush.bf16.msra.mxu0 %v1926
        %2242 = vmatpush.bf16.msra.mxu0 %v1924
        %2243 = vmatpush.bf16.msra.mxu0 %v1922
        %2244 = vmatpush.bf16.msra.mxu0 %v1920
        %2245 = vmatpush.bf16.msra.mxu0 %v1918
        %2246 = vmatpush.bf16.msra.mxu0 %v1916
        %2247 = vmatpush.bf16.msra.mxu0 %v1914
        %2248 = vmatpush.bf16.msra.mxu0 %v1912
        %2249 = vmatmul.bf16.gmra.mxu0 %v1257
        %v2250 = vpop.f32.mrf.mxu0
        %v2251 = vadd.f32 %v2162, %v2250
        %v2252 = vpop.f32.mrf.mxu0
        %v2253 = vadd.f32 %v2164, %v2252
        %2254 = vmatmul.bf16.gmra.mxu0 %v1265
        %v2255 = vpop.f32.mrf.mxu0
        %v2256 = vadd.f32 %v2167, %v2255
        %v2257 = vpop.f32.mrf.mxu0
        %v2258 = vadd.f32 %v2169, %v2257
        %2259 = vmatmul.bf16.gmra.mxu0 %v1273
        %v2260 = vpop.f32.mrf.mxu0
        %v2261 = vadd.f32 %v2172, %v2260
        %v2262 = vpop.f32.mrf.mxu0
        %v2263 = vadd.f32 %v2174, %v2262
        %2264 = vmatmul.bf16.gmra.mxu0 %v1281
        %v2265 = vpop.f32.mrf.mxu0
        %v2266 = vadd.f32 %v2177, %v2265
        %v2267 = vpop.f32.mrf.mxu0
        %v2268 = vadd.f32 %v2179, %v2267
        %2269 = vmatmul.bf16.gmra.mxu0 %v1289
        %v2270 = vpop.f32.mrf.mxu0
        %v2271 = vadd.f32 %v2182, %v2270
        %v2272 = vpop.f32.mrf.mxu0
        %v2273 = vadd.f32 %v2184, %v2272
        %2274 = vmatmul.bf16.gmra.mxu0 %v1297
        %v2275 = vpop.f32.mrf.mxu0
        %v2276 = vadd.f32 %v2187, %v2275
        %v2277 = vpop.f32.mrf.mxu0
        %v2278 = vadd.f32 %v2189, %v2277
        %2279 = vmatmul.bf16.gmra.mxu0 %v1305
        %v2280 = vpop.f32.mrf.mxu0
        %v2281 = vadd.f32 %v2192, %v2280
        %v2282 = vpop.f32.mrf.mxu0
        %v2283 = vadd.f32 %v2194, %v2282
        %2284 = vmatmul.bf16.gmra.mxu0 %v1313
        %v2285 = vpop.f32.mrf.mxu0
        %v2286 = vadd.f32 %v2197, %v2285
        %v2287 = vpop.f32.mrf.mxu0
        %v2288 = vadd.f32 %v2199, %v2287
        %2289 = vmatmul.bf16.gmra.mxu0 %v1321
        %v2290 = vpop.f32.mrf.mxu0
        %v2291 = vadd.f32 %v2202, %v2290
        %v2292 = vpop.f32.mrf.mxu0
        %v2293 = vadd.f32 %v2204, %v2292
        %2294 = vmatmul.bf16.gmra.mxu0 %v1329
        %v2295 = vpop.f32.mrf.mxu0
        %v2296 = vadd.f32 %v2207, %v2295
        %v2297 = vpop.f32.mrf.mxu0
        %v2298 = vadd.f32 %v2209, %v2297
        %2299 = vmatmul.bf16.gmra.mxu0 %v1337
        %v2300 = vpop.f32.mrf.mxu0
        %v2301 = vadd.f32 %v2212, %v2300
        %v2302 = vpop.f32.mrf.mxu0
        %v2303 = vadd.f32 %v2214, %v2302
        %2304 = vmatmul.bf16.gmra.mxu0 %v1345
        %v2305 = vpop.f32.mrf.mxu0
        %v2306 = vadd.f32 %v2217, %v2305
        %v2307 = vpop.f32.mrf.mxu0
        %v2308 = vadd.f32 %v2219, %v2307
        %2309 = vmatmul.bf16.gmra.mxu0 %v1353
        %v2310 = vpop.f32.mrf.mxu0
        %v2311 = vadd.f32 %v2222, %v2310
        %v2312 = vpop.f32.mrf.mxu0
        %v2313 = vadd.f32 %v2224, %v2312
        %2314 = vmatmul.bf16.gmra.mxu0 %v1361
        %v2315 = vpop.f32.mrf.mxu0
        %v2316 = vadd.f32 %v2227, %v2315
        %v2317 = vpop.f32.mrf.mxu0
        %v2318 = vadd.f32 %v2229, %v2317
        %2319 = vmatmul.bf16.gmra.mxu0 %v1369
        %v2320 = vpop.f32.mrf.mxu0
        %v2321 = vadd.f32 %v2232, %v2320
        %v2322 = vpop.f32.mrf.mxu0
        %v2323 = vadd.f32 %v2234, %v2322
        %2324 = vmatmul.bf16.gmra.mxu0 %v1377
        %v2325 = vpop.f32.mrf.mxu0
        %v2326 = vadd.f32 %v2237, %v2325
        %v2327 = vpop.f32.mrf.mxu0
        %v2328 = vadd.f32 %v2239, %v2327
        %2329 = vdwg.mxu0
        %2330 = vmatpush.bf16.msra.mxu0 %v1942
        %2331 = vmatpush.bf16.msra.mxu0 %v1940
        %2332 = vmatpush.bf16.msra.mxu0 %v1938
        %2333 = vmatpush.bf16.msra.mxu0 %v1936
        %2334 = vmatpush.bf16.msra.mxu0 %v1934
        %2335 = vmatpush.bf16.msra.mxu0 %v1932
        %2336 = vmatpush.bf16.msra.mxu0 %v1930
        %2337 = vmatpush.bf16.msra.mxu0 %v1928
        %2338 = vmatmul.bf16.gmra.mxu0 %v1258
        %v2339 = vpop.f32.mrf.mxu0
        %v2340 = vadd.f32 %v2251, %v2339
        %v2341 = vpop.f32.mrf.mxu0
        %v2342 = vadd.f32 %v2253, %v2341
        %2343 = vmatmul.bf16.gmra.mxu0 %v1266
        %v2344 = vpop.f32.mrf.mxu0
        %v2345 = vadd.f32 %v2256, %v2344
        %v2346 = vpop.f32.mrf.mxu0
        %v2347 = vadd.f32 %v2258, %v2346
        %2348 = vmatmul.bf16.gmra.mxu0 %v1274
        %v2349 = vpop.f32.mrf.mxu0
        %v2350 = vadd.f32 %v2261, %v2349
        %v2351 = vpop.f32.mrf.mxu0
        %v2352 = vadd.f32 %v2263, %v2351
        %2353 = vmatmul.bf16.gmra.mxu0 %v1282
        %v2354 = vpop.f32.mrf.mxu0
        %v2355 = vadd.f32 %v2266, %v2354
        %v2356 = vpop.f32.mrf.mxu0
        %v2357 = vadd.f32 %v2268, %v2356
        %2358 = vmatmul.bf16.gmra.mxu0 %v1290
        %v2359 = vpop.f32.mrf.mxu0
        %v2360 = vadd.f32 %v2271, %v2359
        %v2361 = vpop.f32.mrf.mxu0
        %v2362 = vadd.f32 %v2273, %v2361
        %2363 = vmatmul.bf16.gmra.mxu0 %v1298
        %v2364 = vpop.f32.mrf.mxu0
        %v2365 = vadd.f32 %v2276, %v2364
        %v2366 = vpop.f32.mrf.mxu0
        %v2367 = vadd.f32 %v2278, %v2366
        %2368 = vmatmul.bf16.gmra.mxu0 %v1306
        %v2369 = vpop.f32.mrf.mxu0
        %v2370 = vadd.f32 %v2281, %v2369
        %v2371 = vpop.f32.mrf.mxu0
        %v2372 = vadd.f32 %v2283, %v2371
        %2373 = vmatmul.bf16.gmra.mxu0 %v1314
        %v2374 = vpop.f32.mrf.mxu0
        %v2375 = vadd.f32 %v2286, %v2374
        %v2376 = vpop.f32.mrf.mxu0
        %v2377 = vadd.f32 %v2288, %v2376
        %2378 = vmatmul.bf16.gmra.mxu0 %v1322
        %v2379 = vpop.f32.mrf.mxu0
        %v2380 = vadd.f32 %v2291, %v2379
        %v2381 = vpop.f32.mrf.mxu0
        %v2382 = vadd.f32 %v2293, %v2381
        %2383 = vmatmul.bf16.gmra.mxu0 %v1330
        %v2384 = vpop.f32.mrf.mxu0
        %v2385 = vadd.f32 %v2296, %v2384
        %v2386 = vpop.f32.mrf.mxu0
        %v2387 = vadd.f32 %v2298, %v2386
        %2388 = vmatmul.bf16.gmra.mxu0 %v1338
        %v2389 = vpop.f32.mrf.mxu0
        %v2390 = vadd.f32 %v2301, %v2389
        %v2391 = vpop.f32.mrf.mxu0
        %v2392 = vadd.f32 %v2303, %v2391
        %2393 = vmatmul.bf16.gmra.mxu0 %v1346
        %v2394 = vpop.f32.mrf.mxu0
        %v2395 = vadd.f32 %v2306, %v2394
        %v2396 = vpop.f32.mrf.mxu0
        %v2397 = vadd.f32 %v2308, %v2396
        %2398 = vmatmul.bf16.gmra.mxu0 %v1354
        %v2399 = vpop.f32.mrf.mxu0
        %v2400 = vadd.f32 %v2311, %v2399
        %v2401 = vpop.f32.mrf.mxu0
        %v2402 = vadd.f32 %v2313, %v2401
        %2403 = vmatmul.bf16.gmra.mxu0 %v1362
        %v2404 = vpop.f32.mrf.mxu0
        %v2405 = vadd.f32 %v2316, %v2404
        %v2406 = vpop.f32.mrf.mxu0
        %v2407 = vadd.f32 %v2318, %v2406
        %2408 = vmatmul.bf16.gmra.mxu0 %v1370
        %v2409 = vpop.f32.mrf.mxu0
        %v2410 = vadd.f32 %v2321, %v2409
        %v2411 = vpop.f32.mrf.mxu0
        %v2412 = vadd.f32 %v2323, %v2411
        %2413 = vmatmul.bf16.gmra.mxu0 %v1378
        %v2414 = vpop.f32.mrf.mxu0
        %v2415 = vadd.f32 %v2326, %v2414
        %v2416 = vpop.f32.mrf.mxu0
        %v2417 = vadd.f32 %v2328, %v2416
        %2418 = vdwg.mxu0
        %2419 = vmatpush.bf16.msra.mxu0 %v1958
        %2420 = vmatpush.bf16.msra.mxu0 %v1956
        %2421 = vmatpush.bf16.msra.mxu0 %v1954
        %2422 = vmatpush.bf16.msra.mxu0 %v1952
        %2423 = vmatpush.bf16.msra.mxu0 %v1950
        %2424 = vmatpush.bf16.msra.mxu0 %v1948
        %2425 = vmatpush.bf16.msra.mxu0 %v1946
        %2426 = vmatpush.bf16.msra.mxu0 %v1944
        %2427 = vmatmul.bf16.gmra.mxu0 %v1259
        %v2428 = vpop.f32.mrf.mxu0
        %v2429 = vadd.f32 %v2340, %v2428
        %v2430 = vpop.f32.mrf.mxu0
        %v2431 = vadd.f32 %v2342, %v2430
        %2432 = vmatmul.bf16.gmra.mxu0 %v1267
        %v2433 = vpop.f32.mrf.mxu0
        %v2434 = vadd.f32 %v2345, %v2433
        %v2435 = vpop.f32.mrf.mxu0
        %v2436 = vadd.f32 %v2347, %v2435
        %2437 = vmatmul.bf16.gmra.mxu0 %v1275
        %v2438 = vpop.f32.mrf.mxu0
        %v2439 = vadd.f32 %v2350, %v2438
        %v2440 = vpop.f32.mrf.mxu0
        %v2441 = vadd.f32 %v2352, %v2440
        %2442 = vmatmul.bf16.gmra.mxu0 %v1283
        %v2443 = vpop.f32.mrf.mxu0
        %v2444 = vadd.f32 %v2355, %v2443
        %v2445 = vpop.f32.mrf.mxu0
        %v2446 = vadd.f32 %v2357, %v2445
        %2447 = vmatmul.bf16.gmra.mxu0 %v1291
        %v2448 = vpop.f32.mrf.mxu0
        %v2449 = vadd.f32 %v2360, %v2448
        %v2450 = vpop.f32.mrf.mxu0
        %v2451 = vadd.f32 %v2362, %v2450
        %2452 = vmatmul.bf16.gmra.mxu0 %v1299
        %v2453 = vpop.f32.mrf.mxu0
        %v2454 = vadd.f32 %v2365, %v2453
        %v2455 = vpop.f32.mrf.mxu0
        %v2456 = vadd.f32 %v2367, %v2455
        %2457 = vmatmul.bf16.gmra.mxu0 %v1307
        %v2458 = vpop.f32.mrf.mxu0
        %v2459 = vadd.f32 %v2370, %v2458
        %v2460 = vpop.f32.mrf.mxu0
        %v2461 = vadd.f32 %v2372, %v2460
        %2462 = vmatmul.bf16.gmra.mxu0 %v1315
        %v2463 = vpop.f32.mrf.mxu0
        %v2464 = vadd.f32 %v2375, %v2463
        %v2465 = vpop.f32.mrf.mxu0
        %v2466 = vadd.f32 %v2377, %v2465
        %2467 = vmatmul.bf16.gmra.mxu0 %v1323
        %v2468 = vpop.f32.mrf.mxu0
        %v2469 = vadd.f32 %v2380, %v2468
        %v2470 = vpop.f32.mrf.mxu0
        %v2471 = vadd.f32 %v2382, %v2470
        %2472 = vmatmul.bf16.gmra.mxu0 %v1331
        %v2473 = vpop.f32.mrf.mxu0
        %v2474 = vadd.f32 %v2385, %v2473
        %v2475 = vpop.f32.mrf.mxu0
        %v2476 = vadd.f32 %v2387, %v2475
        %2477 = vmatmul.bf16.gmra.mxu0 %v1339
        %v2478 = vpop.f32.mrf.mxu0
        %v2479 = vadd.f32 %v2390, %v2478
        %v2480 = vpop.f32.mrf.mxu0
        %v2481 = vadd.f32 %v2392, %v2480
        %2482 = vmatmul.bf16.gmra.mxu0 %v1347
        %v2483 = vpop.f32.mrf.mxu0
        %v2484 = vadd.f32 %v2395, %v2483
        %v2485 = vpop.f32.mrf.mxu0
        %v2486 = vadd.f32 %v2397, %v2485
        %2487 = vmatmul.bf16.gmra.mxu0 %v1355
        %v2488 = vpop.f32.mrf.mxu0
        %v2489 = vadd.f32 %v2400, %v2488
        %v2490 = vpop.f32.mrf.mxu0
        %v2491 = vadd.f32 %v2402, %v2490
        %2492 = vmatmul.bf16.gmra.mxu0 %v1363
        %v2493 = vpop.f32.mrf.mxu0
        %v2494 = vadd.f32 %v2405, %v2493
        %v2495 = vpop.f32.mrf.mxu0
        %v2496 = vadd.f32 %v2407, %v2495
        %2497 = vmatmul.bf16.gmra.mxu0 %v1371
        %v2498 = vpop.f32.mrf.mxu0
        %v2499 = vadd.f32 %v2410, %v2498
        %v2500 = vpop.f32.mrf.mxu0
        %v2501 = vadd.f32 %v2412, %v2500
        %2502 = vmatmul.bf16.gmra.mxu0 %v1379
        %v2503 = vpop.f32.mrf.mxu0
        %v2504 = vadd.f32 %v2415, %v2503
        %v2505 = vpop.f32.mrf.mxu0
        %v2506 = vadd.f32 %v2417, %v2505
        %2507 = vdwg.mxu0
        %2508 = vmatpush.bf16.msra.mxu0 %v1974
        %2509 = vmatpush.bf16.msra.mxu0 %v1972
        %2510 = vmatpush.bf16.msra.mxu0 %v1970
        %2511 = vmatpush.bf16.msra.mxu0 %v1968
        %2512 = vmatpush.bf16.msra.mxu0 %v1966
        %2513 = vmatpush.bf16.msra.mxu0 %v1964
        %2514 = vmatpush.bf16.msra.mxu0 %v1962
        %2515 = vmatpush.bf16.msra.mxu0 %v1960
        %2516 = vmatmul.bf16.gmra.mxu0 %v1260
        %v2517 = vpop.f32.mrf.mxu0
        %v2518 = vadd.f32 %v2429, %v2517
        %v2519 = vpop.f32.mrf.mxu0
        %v2520 = vadd.f32 %v2431, %v2519
        %2521 = vmatmul.bf16.gmra.mxu0 %v1268
        %v2522 = vpop.f32.mrf.mxu0
        %v2523 = vadd.f32 %v2434, %v2522
        %v2524 = vpop.f32.mrf.mxu0
        %v2525 = vadd.f32 %v2436, %v2524
        %2526 = vmatmul.bf16.gmra.mxu0 %v1276
        %v2527 = vpop.f32.mrf.mxu0
        %v2528 = vadd.f32 %v2439, %v2527
        %v2529 = vpop.f32.mrf.mxu0
        %v2530 = vadd.f32 %v2441, %v2529
        %2531 = vmatmul.bf16.gmra.mxu0 %v1284
        %v2532 = vpop.f32.mrf.mxu0
        %v2533 = vadd.f32 %v2444, %v2532
        %v2534 = vpop.f32.mrf.mxu0
        %v2535 = vadd.f32 %v2446, %v2534
        %2536 = vmatmul.bf16.gmra.mxu0 %v1292
        %v2537 = vpop.f32.mrf.mxu0
        %v2538 = vadd.f32 %v2449, %v2537
        %v2539 = vpop.f32.mrf.mxu0
        %v2540 = vadd.f32 %v2451, %v2539
        %2541 = vmatmul.bf16.gmra.mxu0 %v1300
        %v2542 = vpop.f32.mrf.mxu0
        %v2543 = vadd.f32 %v2454, %v2542
        %v2544 = vpop.f32.mrf.mxu0
        %v2545 = vadd.f32 %v2456, %v2544
        %2546 = vmatmul.bf16.gmra.mxu0 %v1308
        %v2547 = vpop.f32.mrf.mxu0
        %v2548 = vadd.f32 %v2459, %v2547
        %v2549 = vpop.f32.mrf.mxu0
        %v2550 = vadd.f32 %v2461, %v2549
        %2551 = vmatmul.bf16.gmra.mxu0 %v1316
        %v2552 = vpop.f32.mrf.mxu0
        %v2553 = vadd.f32 %v2464, %v2552
        %v2554 = vpop.f32.mrf.mxu0
        %v2555 = vadd.f32 %v2466, %v2554
        %2556 = vmatmul.bf16.gmra.mxu0 %v1324
        %v2557 = vpop.f32.mrf.mxu0
        %v2558 = vadd.f32 %v2469, %v2557
        %v2559 = vpop.f32.mrf.mxu0
        %v2560 = vadd.f32 %v2471, %v2559
        %2561 = vmatmul.bf16.gmra.mxu0 %v1332
        %v2562 = vpop.f32.mrf.mxu0
        %v2563 = vadd.f32 %v2474, %v2562
        %v2564 = vpop.f32.mrf.mxu0
        %v2565 = vadd.f32 %v2476, %v2564
        %2566 = vmatmul.bf16.gmra.mxu0 %v1340
        %v2567 = vpop.f32.mrf.mxu0
        %v2568 = vadd.f32 %v2479, %v2567
        %v2569 = vpop.f32.mrf.mxu0
        %v2570 = vadd.f32 %v2481, %v2569
        %2571 = vmatmul.bf16.gmra.mxu0 %v1348
        %v2572 = vpop.f32.mrf.mxu0
        %v2573 = vadd.f32 %v2484, %v2572
        %v2574 = vpop.f32.mrf.mxu0
        %v2575 = vadd.f32 %v2486, %v2574
        %2576 = vmatmul.bf16.gmra.mxu0 %v1356
        %v2577 = vpop.f32.mrf.mxu0
        %v2578 = vadd.f32 %v2489, %v2577
        %v2579 = vpop.f32.mrf.mxu0
        %v2580 = vadd.f32 %v2491, %v2579
        %2581 = vmatmul.bf16.gmra.mxu0 %v1364
        %v2582 = vpop.f32.mrf.mxu0
        %v2583 = vadd.f32 %v2494, %v2582
        %v2584 = vpop.f32.mrf.mxu0
        %v2585 = vadd.f32 %v2496, %v2584
        %2586 = vmatmul.bf16.gmra.mxu0 %v1372
        %v2587 = vpop.f32.mrf.mxu0
        %v2588 = vadd.f32 %v2499, %v2587
        %v2589 = vpop.f32.mrf.mxu0
        %v2590 = vadd.f32 %v2501, %v2589
        %2591 = vmatmul.bf16.gmra.mxu0 %v1380
        %v2592 = vpop.f32.mrf.mxu0
        %v2593 = vadd.f32 %v2504, %v2592
        %v2594 = vpop.f32.mrf.mxu0
        %v2595 = vadd.f32 %v2506, %v2594
        %2596 = vdwg.mxu0
        %2597 = vmatpush.bf16.msra.mxu0 %v1990
        %2598 = vmatpush.bf16.msra.mxu0 %v1988
        %2599 = vmatpush.bf16.msra.mxu0 %v1986
        %2600 = vmatpush.bf16.msra.mxu0 %v1984
        %2601 = vmatpush.bf16.msra.mxu0 %v1982
        %2602 = vmatpush.bf16.msra.mxu0 %v1980
        %2603 = vmatpush.bf16.msra.mxu0 %v1978
        %2604 = vmatpush.bf16.msra.mxu0 %v1976
        %2605 = vmatmul.bf16.gmra.mxu0 %v1261
        %v2606 = vpop.f32.mrf.mxu0
        %v2607 = vadd.f32 %v2518, %v2606
        %v2608 = vpop.f32.mrf.mxu0
        %v2609 = vadd.f32 %v2520, %v2608
        %2610 = vmatmul.bf16.gmra.mxu0 %v1269
        %v2611 = vpop.f32.mrf.mxu0
        %v2612 = vadd.f32 %v2523, %v2611
        %v2613 = vpop.f32.mrf.mxu0
        %v2614 = vadd.f32 %v2525, %v2613
        %2615 = vmatmul.bf16.gmra.mxu0 %v1277
        %v2616 = vpop.f32.mrf.mxu0
        %v2617 = vadd.f32 %v2528, %v2616
        %v2618 = vpop.f32.mrf.mxu0
        %v2619 = vadd.f32 %v2530, %v2618
        %2620 = vmatmul.bf16.gmra.mxu0 %v1285
        %v2621 = vpop.f32.mrf.mxu0
        %v2622 = vadd.f32 %v2533, %v2621
        %v2623 = vpop.f32.mrf.mxu0
        %v2624 = vadd.f32 %v2535, %v2623
        %2625 = vmatmul.bf16.gmra.mxu0 %v1293
        %v2626 = vpop.f32.mrf.mxu0
        %v2627 = vadd.f32 %v2538, %v2626
        %v2628 = vpop.f32.mrf.mxu0
        %v2629 = vadd.f32 %v2540, %v2628
        %2630 = vmatmul.bf16.gmra.mxu0 %v1301
        %v2631 = vpop.f32.mrf.mxu0
        %v2632 = vadd.f32 %v2543, %v2631
        %v2633 = vpop.f32.mrf.mxu0
        %v2634 = vadd.f32 %v2545, %v2633
        %2635 = vmatmul.bf16.gmra.mxu0 %v1309
        %v2636 = vpop.f32.mrf.mxu0
        %v2637 = vadd.f32 %v2548, %v2636
        %v2638 = vpop.f32.mrf.mxu0
        %v2639 = vadd.f32 %v2550, %v2638
        %2640 = vmatmul.bf16.gmra.mxu0 %v1317
        %v2641 = vpop.f32.mrf.mxu0
        %v2642 = vadd.f32 %v2553, %v2641
        %v2643 = vpop.f32.mrf.mxu0
        %v2644 = vadd.f32 %v2555, %v2643
        %2645 = vmatmul.bf16.gmra.mxu0 %v1325
        %v2646 = vpop.f32.mrf.mxu0
        %v2647 = vadd.f32 %v2558, %v2646
        %v2648 = vpop.f32.mrf.mxu0
        %v2649 = vadd.f32 %v2560, %v2648
        %2650 = vmatmul.bf16.gmra.mxu0 %v1333
        %v2651 = vpop.f32.mrf.mxu0
        %v2652 = vadd.f32 %v2563, %v2651
        %v2653 = vpop.f32.mrf.mxu0
        %v2654 = vadd.f32 %v2565, %v2653
        %2655 = vmatmul.bf16.gmra.mxu0 %v1341
        %v2656 = vpop.f32.mrf.mxu0
        %v2657 = vadd.f32 %v2568, %v2656
        %v2658 = vpop.f32.mrf.mxu0
        %v2659 = vadd.f32 %v2570, %v2658
        %2660 = vmatmul.bf16.gmra.mxu0 %v1349
        %v2661 = vpop.f32.mrf.mxu0
        %v2662 = vadd.f32 %v2573, %v2661
        %v2663 = vpop.f32.mrf.mxu0
        %v2664 = vadd.f32 %v2575, %v2663
        %2665 = vmatmul.bf16.gmra.mxu0 %v1357
        %v2666 = vpop.f32.mrf.mxu0
        %v2667 = vadd.f32 %v2578, %v2666
        %v2668 = vpop.f32.mrf.mxu0
        %v2669 = vadd.f32 %v2580, %v2668
        %2670 = vmatmul.bf16.gmra.mxu0 %v1365
        %v2671 = vpop.f32.mrf.mxu0
        %v2672 = vadd.f32 %v2583, %v2671
        %v2673 = vpop.f32.mrf.mxu0
        %v2674 = vadd.f32 %v2585, %v2673
        %2675 = vmatmul.bf16.gmra.mxu0 %v1373
        %v2676 = vpop.f32.mrf.mxu0
        %v2677 = vadd.f32 %v2588, %v2676
        %v2678 = vpop.f32.mrf.mxu0
        %v2679 = vadd.f32 %v2590, %v2678
        %2680 = vmatmul.bf16.gmra.mxu0 %v1381
        %v2681 = vpop.f32.mrf.mxu0
        %v2682 = vadd.f32 %v2593, %v2681
        %v2683 = vpop.f32.mrf.mxu0
        %v2684 = vadd.f32 %v2595, %v2683
        %2685 = vdwg.mxu0
        %2686 = vmatpush.bf16.msra.mxu0 %v2006
        %2687 = vmatpush.bf16.msra.mxu0 %v2004
        %2688 = vmatpush.bf16.msra.mxu0 %v2002
        %2689 = vmatpush.bf16.msra.mxu0 %v2000
        %2690 = vmatpush.bf16.msra.mxu0 %v1998
        %2691 = vmatpush.bf16.msra.mxu0 %v1996
        %2692 = vmatpush.bf16.msra.mxu0 %v1994
        %2693 = vmatpush.bf16.msra.mxu0 %v1992
        %2694 = vmatmul.bf16.gmra.mxu0 %v1262
        %v2695 = vpop.f32.mrf.mxu0
        %v2696 = vadd.f32 %v2607, %v2695
        %v2697 = vpop.f32.mrf.mxu0
        %v2698 = vadd.f32 %v2609, %v2697
        %2699 = vmatmul.bf16.gmra.mxu0 %v1270
        %v2700 = vpop.f32.mrf.mxu0
        %v2701 = vadd.f32 %v2612, %v2700
        %v2702 = vpop.f32.mrf.mxu0
        %v2703 = vadd.f32 %v2614, %v2702
        %2704 = vmatmul.bf16.gmra.mxu0 %v1278
        %v2705 = vpop.f32.mrf.mxu0
        %v2706 = vadd.f32 %v2617, %v2705
        %v2707 = vpop.f32.mrf.mxu0
        %v2708 = vadd.f32 %v2619, %v2707
        %2709 = vmatmul.bf16.gmra.mxu0 %v1286
        %v2710 = vpop.f32.mrf.mxu0
        %v2711 = vadd.f32 %v2622, %v2710
        %v2712 = vpop.f32.mrf.mxu0
        %v2713 = vadd.f32 %v2624, %v2712
        %2714 = vmatmul.bf16.gmra.mxu0 %v1294
        %v2715 = vpop.f32.mrf.mxu0
        %v2716 = vadd.f32 %v2627, %v2715
        %v2717 = vpop.f32.mrf.mxu0
        %v2718 = vadd.f32 %v2629, %v2717
        %2719 = vmatmul.bf16.gmra.mxu0 %v1302
        %v2720 = vpop.f32.mrf.mxu0
        %v2721 = vadd.f32 %v2632, %v2720
        %v2722 = vpop.f32.mrf.mxu0
        %v2723 = vadd.f32 %v2634, %v2722
        %2724 = vmatmul.bf16.gmra.mxu0 %v1310
        %v2725 = vpop.f32.mrf.mxu0
        %v2726 = vadd.f32 %v2637, %v2725
        %v2727 = vpop.f32.mrf.mxu0
        %v2728 = vadd.f32 %v2639, %v2727
        %2729 = vmatmul.bf16.gmra.mxu0 %v1318
        %v2730 = vpop.f32.mrf.mxu0
        %v2731 = vadd.f32 %v2642, %v2730
        %v2732 = vpop.f32.mrf.mxu0
        %v2733 = vadd.f32 %v2644, %v2732
        %2734 = vmatmul.bf16.gmra.mxu0 %v1326
        %v2735 = vpop.f32.mrf.mxu0
        %v2736 = vadd.f32 %v2647, %v2735
        %v2737 = vpop.f32.mrf.mxu0
        %v2738 = vadd.f32 %v2649, %v2737
        %2739 = vmatmul.bf16.gmra.mxu0 %v1334
        %v2740 = vpop.f32.mrf.mxu0
        %v2741 = vadd.f32 %v2652, %v2740
        %v2742 = vpop.f32.mrf.mxu0
        %v2743 = vadd.f32 %v2654, %v2742
        %2744 = vmatmul.bf16.gmra.mxu0 %v1342
        %v2745 = vpop.f32.mrf.mxu0
        %v2746 = vadd.f32 %v2657, %v2745
        %v2747 = vpop.f32.mrf.mxu0
        %v2748 = vadd.f32 %v2659, %v2747
        %2749 = vmatmul.bf16.gmra.mxu0 %v1350
        %v2750 = vpop.f32.mrf.mxu0
        %v2751 = vadd.f32 %v2662, %v2750
        %v2752 = vpop.f32.mrf.mxu0
        %v2753 = vadd.f32 %v2664, %v2752
        %2754 = vmatmul.bf16.gmra.mxu0 %v1358
        %v2755 = vpop.f32.mrf.mxu0
        %v2756 = vadd.f32 %v2667, %v2755
        %v2757 = vpop.f32.mrf.mxu0
        %v2758 = vadd.f32 %v2669, %v2757
        %2759 = vmatmul.bf16.gmra.mxu0 %v1366
        %v2760 = vpop.f32.mrf.mxu0
        %v2761 = vadd.f32 %v2672, %v2760
        %v2762 = vpop.f32.mrf.mxu0
        %v2763 = vadd.f32 %v2674, %v2762
        %2764 = vmatmul.bf16.gmra.mxu0 %v1374
        %v2765 = vpop.f32.mrf.mxu0
        %v2766 = vadd.f32 %v2677, %v2765
        %v2767 = vpop.f32.mrf.mxu0
        %v2768 = vadd.f32 %v2679, %v2767
        %2769 = vmatmul.bf16.gmra.mxu0 %v1382
        %v2770 = vpop.f32.mrf.mxu0
        %v2771 = vadd.f32 %v2682, %v2770
        %v2772 = vpop.f32.mrf.mxu0
        %v2773 = vadd.f32 %v2684, %v2772
        %2774 = vdwg.mxu0
        %2775 = vmatpush.bf16.msra.mxu0 %v2022
        %2776 = vmatpush.bf16.msra.mxu0 %v2020
        %2777 = vmatpush.bf16.msra.mxu0 %v2018
        %2778 = vmatpush.bf16.msra.mxu0 %v2016
        %2779 = vmatpush.bf16.msra.mxu0 %v2014
        %2780 = vmatpush.bf16.msra.mxu0 %v2012
        %2781 = vmatpush.bf16.msra.mxu0 %v2010
        %2782 = vmatpush.bf16.msra.mxu0 %v2008
        %2783 = vmatmul.bf16.gmra.mxu0 %v1263
        %v2784 = vpop.f32.mrf.mxu0
        %v2785 = vadd.f32 %v2696, %v2784
        %v2786 = vpop.f32.mrf.mxu0
        %v2787 = vadd.f32 %v2698, %v2786
        %2788 = vmatmul.bf16.gmra.mxu0 %v1271
        %v2789 = vpop.f32.mrf.mxu0
        %v2790 = vadd.f32 %v2701, %v2789
        %v2791 = vpop.f32.mrf.mxu0
        %v2792 = vadd.f32 %v2703, %v2791
        %2793 = vmatmul.bf16.gmra.mxu0 %v1279
        %v2794 = vpop.f32.mrf.mxu0
        %v2795 = vadd.f32 %v2706, %v2794
        %v2796 = vpop.f32.mrf.mxu0
        %v2797 = vadd.f32 %v2708, %v2796
        %2798 = vmatmul.bf16.gmra.mxu0 %v1287
        %v2799 = vpop.f32.mrf.mxu0
        %v2800 = vadd.f32 %v2711, %v2799
        %v2801 = vpop.f32.mrf.mxu0
        %v2802 = vadd.f32 %v2713, %v2801
        %2803 = vmatmul.bf16.gmra.mxu0 %v1295
        %v2804 = vpop.f32.mrf.mxu0
        %v2805 = vadd.f32 %v2716, %v2804
        %v2806 = vpop.f32.mrf.mxu0
        %v2807 = vadd.f32 %v2718, %v2806
        %2808 = vmatmul.bf16.gmra.mxu0 %v1303
        %v2809 = vpop.f32.mrf.mxu0
        %v2810 = vadd.f32 %v2721, %v2809
        %v2811 = vpop.f32.mrf.mxu0
        %v2812 = vadd.f32 %v2723, %v2811
        %2813 = vmatmul.bf16.gmra.mxu0 %v1311
        %v2814 = vpop.f32.mrf.mxu0
        %v2815 = vadd.f32 %v2726, %v2814
        %v2816 = vpop.f32.mrf.mxu0
        %v2817 = vadd.f32 %v2728, %v2816
        %2818 = vmatmul.bf16.gmra.mxu0 %v1319
        %v2819 = vpop.f32.mrf.mxu0
        %v2820 = vadd.f32 %v2731, %v2819
        %v2821 = vpop.f32.mrf.mxu0
        %v2822 = vadd.f32 %v2733, %v2821
        %2823 = vmatmul.bf16.gmra.mxu0 %v1327
        %v2824 = vpop.f32.mrf.mxu0
        %v2825 = vadd.f32 %v2736, %v2824
        %v2826 = vpop.f32.mrf.mxu0
        %v2827 = vadd.f32 %v2738, %v2826
        %2828 = vmatmul.bf16.gmra.mxu0 %v1335
        %v2829 = vpop.f32.mrf.mxu0
        %v2830 = vadd.f32 %v2741, %v2829
        %v2831 = vpop.f32.mrf.mxu0
        %v2832 = vadd.f32 %v2743, %v2831
        %2833 = vmatmul.bf16.gmra.mxu0 %v1343
        %v2834 = vpop.f32.mrf.mxu0
        %v2835 = vadd.f32 %v2746, %v2834
        %v2836 = vpop.f32.mrf.mxu0
        %v2837 = vadd.f32 %v2748, %v2836
        %2838 = vmatmul.bf16.gmra.mxu0 %v1351
        %v2839 = vpop.f32.mrf.mxu0
        %v2840 = vadd.f32 %v2751, %v2839
        %v2841 = vpop.f32.mrf.mxu0
        %v2842 = vadd.f32 %v2753, %v2841
        %2843 = vmatmul.bf16.gmra.mxu0 %v1359
        %v2844 = vpop.f32.mrf.mxu0
        %v2845 = vadd.f32 %v2756, %v2844
        %v2846 = vpop.f32.mrf.mxu0
        %v2847 = vadd.f32 %v2758, %v2846
        %2848 = vmatmul.bf16.gmra.mxu0 %v1367
        %v2849 = vpop.f32.mrf.mxu0
        %v2850 = vadd.f32 %v2761, %v2849
        %v2851 = vpop.f32.mrf.mxu0
        %v2852 = vadd.f32 %v2763, %v2851
        %2853 = vmatmul.bf16.gmra.mxu0 %v1375
        %v2854 = vpop.f32.mrf.mxu0
        %v2855 = vadd.f32 %v2766, %v2854
        %v2856 = vpop.f32.mrf.mxu0
        %v2857 = vadd.f32 %v2768, %v2856
        %2858 = vmatmul.bf16.gmra.mxu0 %v1383
        %v2859 = vpop.f32.mrf.mxu0
        %v2860 = vadd.f32 %v2771, %v2859
        %v2861 = vpop.f32.mrf.mxu0
        %v2862 = vadd.f32 %v2773, %v2861
        %2863 = vdwg.mxu0
        %2864 = vmatpush.bf16.msra.mxu0 %v1911
        %2865 = vmatpush.bf16.msra.mxu0 %v1909
        %2866 = vmatpush.bf16.msra.mxu0 %v1907
        %2867 = vmatpush.bf16.msra.mxu0 %v1905
        %2868 = vmatpush.bf16.msra.mxu0 %v1903
        %2869 = vmatpush.bf16.msra.mxu0 %v1901
        %2870 = vmatpush.bf16.msra.mxu0 %v1899
        %2871 = vmatpush.bf16.msra.mxu0 %v1897
        %2872 = vmatmul.bf16.gmra.mxu0 %v1256
        %v2873 = vpop.f32.mrf.mxu0
        %v2874 = vadd.f32 0.0, %v2873
        %v2875 = vpop.f32.mrf.mxu0
        %v2876 = vadd.f32 0.0, %v2875
        %2877 = vmatmul.bf16.gmra.mxu0 %v1264
        %v2878 = vpop.f32.mrf.mxu0
        %v2879 = vadd.f32 0.0, %v2878
        %v2880 = vpop.f32.mrf.mxu0
        %v2881 = vadd.f32 0.0, %v2880
        %2882 = vmatmul.bf16.gmra.mxu0 %v1272
        %v2883 = vpop.f32.mrf.mxu0
        %v2884 = vadd.f32 0.0, %v2883
        %v2885 = vpop.f32.mrf.mxu0
        %v2886 = vadd.f32 0.0, %v2885
        %2887 = vmatmul.bf16.gmra.mxu0 %v1280
        %v2888 = vpop.f32.mrf.mxu0
        %v2889 = vadd.f32 0.0, %v2888
        %v2890 = vpop.f32.mrf.mxu0
        %v2891 = vadd.f32 0.0, %v2890
        %2892 = vmatmul.bf16.gmra.mxu0 %v1288
        %v2893 = vpop.f32.mrf.mxu0
        %v2894 = vadd.f32 0.0, %v2893
        %v2895 = vpop.f32.mrf.mxu0
        %v2896 = vadd.f32 0.0, %v2895
        %2897 = vmatmul.bf16.gmra.mxu0 %v1296
        %v2898 = vpop.f32.mrf.mxu0
        %v2899 = vadd.f32 0.0, %v2898
        %v2900 = vpop.f32.mrf.mxu0
        %v2901 = vadd.f32 0.0, %v2900
        %2902 = vmatmul.bf16.gmra.mxu0 %v1304
        %v2903 = vpop.f32.mrf.mxu0
        %v2904 = vadd.f32 0.0, %v2903
        %v2905 = vpop.f32.mrf.mxu0
        %v2906 = vadd.f32 0.0, %v2905
        %2907 = vmatmul.bf16.gmra.mxu0 %v1312
        %v2908 = vpop.f32.mrf.mxu0
        %v2909 = vadd.f32 0.0, %v2908
        %v2910 = vpop.f32.mrf.mxu0
        %v2911 = vadd.f32 0.0, %v2910
        %2912 = vmatmul.bf16.gmra.mxu0 %v1320
        %v2913 = vpop.f32.mrf.mxu0
        %v2914 = vadd.f32 0.0, %v2913
        %v2915 = vpop.f32.mrf.mxu0
        %v2916 = vadd.f32 0.0, %v2915
        %2917 = vmatmul.bf16.gmra.mxu0 %v1328
        %v2918 = vpop.f32.mrf.mxu0
        %v2919 = vadd.f32 0.0, %v2918
        %v2920 = vpop.f32.mrf.mxu0
        %v2921 = vadd.f32 0.0, %v2920
        %2922 = vmatmul.bf16.gmra.mxu0 %v1336
        %v2923 = vpop.f32.mrf.mxu0
        %v2924 = vadd.f32 0.0, %v2923
        %v2925 = vpop.f32.mrf.mxu0
        %v2926 = vadd.f32 0.0, %v2925
        %2927 = vmatmul.bf16.gmra.mxu0 %v1344
        %v2928 = vpop.f32.mrf.mxu0
        %v2929 = vadd.f32 0.0, %v2928
        %v2930 = vpop.f32.mrf.mxu0
        %v2931 = vadd.f32 0.0, %v2930
        %2932 = vmatmul.bf16.gmra.mxu0 %v1352
        %v2933 = vpop.f32.mrf.mxu0
        %v2934 = vadd.f32 0.0, %v2933
        %v2935 = vpop.f32.mrf.mxu0
        %v2936 = vadd.f32 0.0, %v2935
        %2937 = vmatmul.bf16.gmra.mxu0 %v1360
        %v2938 = vpop.f32.mrf.mxu0
        %v2939 = vadd.f32 0.0, %v2938
        %v2940 = vpop.f32.mrf.mxu0
        %v2941 = vadd.f32 0.0, %v2940
        %2942 = vmatmul.bf16.gmra.mxu0 %v1368
        %v2943 = vpop.f32.mrf.mxu0
        %v2944 = vadd.f32 0.0, %v2943
        %v2945 = vpop.f32.mrf.mxu0
        %v2946 = vadd.f32 0.0, %v2945
        %2947 = vmatmul.bf16.gmra.mxu0 %v1376
        %v2948 = vpop.f32.mrf.mxu0
        %v2949 = vadd.f32 0.0, %v2948
        %v2950 = vpop.f32.mrf.mxu0
        %v2951 = vadd.f32 0.0, %v2950
        %2952 = vdwg.mxu0
        %2953 = vmatpush.bf16.msra.mxu0 %v1927
        %2954 = vmatpush.bf16.msra.mxu0 %v1925
        %2955 = vmatpush.bf16.msra.mxu0 %v1923
        %2956 = vmatpush.bf16.msra.mxu0 %v1921
        %2957 = vmatpush.bf16.msra.mxu0 %v1919
        %2958 = vmatpush.bf16.msra.mxu0 %v1917
        %2959 = vmatpush.bf16.msra.mxu0 %v1915
        %2960 = vmatpush.bf16.msra.mxu0 %v1913
        %2961 = vmatmul.bf16.gmra.mxu0 %v1257
        %v2962 = vpop.f32.mrf.mxu0
        %v2963 = vadd.f32 %v2874, %v2962
        %v2964 = vpop.f32.mrf.mxu0
        %v2965 = vadd.f32 %v2876, %v2964
        %2966 = vmatmul.bf16.gmra.mxu0 %v1265
        %v2967 = vpop.f32.mrf.mxu0
        %v2968 = vadd.f32 %v2879, %v2967
        %v2969 = vpop.f32.mrf.mxu0
        %v2970 = vadd.f32 %v2881, %v2969
        %2971 = vmatmul.bf16.gmra.mxu0 %v1273
        %v2972 = vpop.f32.mrf.mxu0
        %v2973 = vadd.f32 %v2884, %v2972
        %v2974 = vpop.f32.mrf.mxu0
        %v2975 = vadd.f32 %v2886, %v2974
        %2976 = vmatmul.bf16.gmra.mxu0 %v1281
        %v2977 = vpop.f32.mrf.mxu0
        %v2978 = vadd.f32 %v2889, %v2977
        %v2979 = vpop.f32.mrf.mxu0
        %v2980 = vadd.f32 %v2891, %v2979
        %2981 = vmatmul.bf16.gmra.mxu0 %v1289
        %v2982 = vpop.f32.mrf.mxu0
        %v2983 = vadd.f32 %v2894, %v2982
        %v2984 = vpop.f32.mrf.mxu0
        %v2985 = vadd.f32 %v2896, %v2984
        %2986 = vmatmul.bf16.gmra.mxu0 %v1297
        %v2987 = vpop.f32.mrf.mxu0
        %v2988 = vadd.f32 %v2899, %v2987
        %v2989 = vpop.f32.mrf.mxu0
        %v2990 = vadd.f32 %v2901, %v2989
        %2991 = vmatmul.bf16.gmra.mxu0 %v1305
        %v2992 = vpop.f32.mrf.mxu0
        %v2993 = vadd.f32 %v2904, %v2992
        %v2994 = vpop.f32.mrf.mxu0
        %v2995 = vadd.f32 %v2906, %v2994
        %2996 = vmatmul.bf16.gmra.mxu0 %v1313
        %v2997 = vpop.f32.mrf.mxu0
        %v2998 = vadd.f32 %v2909, %v2997
        %v2999 = vpop.f32.mrf.mxu0
        %v3000 = vadd.f32 %v2911, %v2999
        %3001 = vmatmul.bf16.gmra.mxu0 %v1321
        %v3002 = vpop.f32.mrf.mxu0
        %v3003 = vadd.f32 %v2914, %v3002
        %v3004 = vpop.f32.mrf.mxu0
        %v3005 = vadd.f32 %v2916, %v3004
        %3006 = vmatmul.bf16.gmra.mxu0 %v1329
        %v3007 = vpop.f32.mrf.mxu0
        %v3008 = vadd.f32 %v2919, %v3007
        %v3009 = vpop.f32.mrf.mxu0
        %v3010 = vadd.f32 %v2921, %v3009
        %3011 = vmatmul.bf16.gmra.mxu0 %v1337
        %v3012 = vpop.f32.mrf.mxu0
        %v3013 = vadd.f32 %v2924, %v3012
        %v3014 = vpop.f32.mrf.mxu0
        %v3015 = vadd.f32 %v2926, %v3014
        %3016 = vmatmul.bf16.gmra.mxu0 %v1345
        %v3017 = vpop.f32.mrf.mxu0
        %v3018 = vadd.f32 %v2929, %v3017
        %v3019 = vpop.f32.mrf.mxu0
        %v3020 = vadd.f32 %v2931, %v3019
        %3021 = vmatmul.bf16.gmra.mxu0 %v1353
        %v3022 = vpop.f32.mrf.mxu0
        %v3023 = vadd.f32 %v2934, %v3022
        %v3024 = vpop.f32.mrf.mxu0
        %v3025 = vadd.f32 %v2936, %v3024
        %3026 = vmatmul.bf16.gmra.mxu0 %v1361
        %v3027 = vpop.f32.mrf.mxu0
        %v3028 = vadd.f32 %v2939, %v3027
        %v3029 = vpop.f32.mrf.mxu0
        %v3030 = vadd.f32 %v2941, %v3029
        %3031 = vmatmul.bf16.gmra.mxu0 %v1369
        %v3032 = vpop.f32.mrf.mxu0
        %v3033 = vadd.f32 %v2944, %v3032
        %v3034 = vpop.f32.mrf.mxu0
        %v3035 = vadd.f32 %v2946, %v3034
        %3036 = vmatmul.bf16.gmra.mxu0 %v1377
        %v3037 = vpop.f32.mrf.mxu0
        %v3038 = vadd.f32 %v2949, %v3037
        %v3039 = vpop.f32.mrf.mxu0
        %v3040 = vadd.f32 %v2951, %v3039
        %3041 = vdwg.mxu0
        %3042 = vmatpush.bf16.msra.mxu0 %v1943
        %3043 = vmatpush.bf16.msra.mxu0 %v1941
        %3044 = vmatpush.bf16.msra.mxu0 %v1939
        %3045 = vmatpush.bf16.msra.mxu0 %v1937
        %3046 = vmatpush.bf16.msra.mxu0 %v1935
        %3047 = vmatpush.bf16.msra.mxu0 %v1933
        %3048 = vmatpush.bf16.msra.mxu0 %v1931
        %3049 = vmatpush.bf16.msra.mxu0 %v1929
        %3050 = vmatmul.bf16.gmra.mxu0 %v1258
        %v3051 = vpop.f32.mrf.mxu0
        %v3052 = vadd.f32 %v2963, %v3051
        %v3053 = vpop.f32.mrf.mxu0
        %v3054 = vadd.f32 %v2965, %v3053
        %3055 = vmatmul.bf16.gmra.mxu0 %v1266
        %v3056 = vpop.f32.mrf.mxu0
        %v3057 = vadd.f32 %v2968, %v3056
        %v3058 = vpop.f32.mrf.mxu0
        %v3059 = vadd.f32 %v2970, %v3058
        %3060 = vmatmul.bf16.gmra.mxu0 %v1274
        %v3061 = vpop.f32.mrf.mxu0
        %v3062 = vadd.f32 %v2973, %v3061
        %v3063 = vpop.f32.mrf.mxu0
        %v3064 = vadd.f32 %v2975, %v3063
        %3065 = vmatmul.bf16.gmra.mxu0 %v1282
        %v3066 = vpop.f32.mrf.mxu0
        %v3067 = vadd.f32 %v2978, %v3066
        %v3068 = vpop.f32.mrf.mxu0
        %v3069 = vadd.f32 %v2980, %v3068
        %3070 = vmatmul.bf16.gmra.mxu0 %v1290
        %v3071 = vpop.f32.mrf.mxu0
        %v3072 = vadd.f32 %v2983, %v3071
        %v3073 = vpop.f32.mrf.mxu0
        %v3074 = vadd.f32 %v2985, %v3073
        %3075 = vmatmul.bf16.gmra.mxu0 %v1298
        %v3076 = vpop.f32.mrf.mxu0
        %v3077 = vadd.f32 %v2988, %v3076
        %v3078 = vpop.f32.mrf.mxu0
        %v3079 = vadd.f32 %v2990, %v3078
        %3080 = vmatmul.bf16.gmra.mxu0 %v1306
        %v3081 = vpop.f32.mrf.mxu0
        %v3082 = vadd.f32 %v2993, %v3081
        %v3083 = vpop.f32.mrf.mxu0
        %v3084 = vadd.f32 %v2995, %v3083
        %3085 = vmatmul.bf16.gmra.mxu0 %v1314
        %v3086 = vpop.f32.mrf.mxu0
        %v3087 = vadd.f32 %v2998, %v3086
        %v3088 = vpop.f32.mrf.mxu0
        %v3089 = vadd.f32 %v3000, %v3088
        %3090 = vmatmul.bf16.gmra.mxu0 %v1322
        %v3091 = vpop.f32.mrf.mxu0
        %v3092 = vadd.f32 %v3003, %v3091
        %v3093 = vpop.f32.mrf.mxu0
        %v3094 = vadd.f32 %v3005, %v3093
        %3095 = vmatmul.bf16.gmra.mxu0 %v1330
        %v3096 = vpop.f32.mrf.mxu0
        %v3097 = vadd.f32 %v3008, %v3096
        %v3098 = vpop.f32.mrf.mxu0
        %v3099 = vadd.f32 %v3010, %v3098
        %3100 = vmatmul.bf16.gmra.mxu0 %v1338
        %v3101 = vpop.f32.mrf.mxu0
        %v3102 = vadd.f32 %v3013, %v3101
        %v3103 = vpop.f32.mrf.mxu0
        %v3104 = vadd.f32 %v3015, %v3103
        %3105 = vmatmul.bf16.gmra.mxu0 %v1346
        %v3106 = vpop.f32.mrf.mxu0
        %v3107 = vadd.f32 %v3018, %v3106
        %v3108 = vpop.f32.mrf.mxu0
        %v3109 = vadd.f32 %v3020, %v3108
        %3110 = vmatmul.bf16.gmra.mxu0 %v1354
        %v3111 = vpop.f32.mrf.mxu0
        %v3112 = vadd.f32 %v3023, %v3111
        %v3113 = vpop.f32.mrf.mxu0
        %v3114 = vadd.f32 %v3025, %v3113
        %3115 = vmatmul.bf16.gmra.mxu0 %v1362
        %v3116 = vpop.f32.mrf.mxu0
        %v3117 = vadd.f32 %v3028, %v3116
        %v3118 = vpop.f32.mrf.mxu0
        %v3119 = vadd.f32 %v3030, %v3118
        %3120 = vmatmul.bf16.gmra.mxu0 %v1370
        %v3121 = vpop.f32.mrf.mxu0
        %v3122 = vadd.f32 %v3033, %v3121
        %v3123 = vpop.f32.mrf.mxu0
        %v3124 = vadd.f32 %v3035, %v3123
        %3125 = vmatmul.bf16.gmra.mxu0 %v1378
        %v3126 = vpop.f32.mrf.mxu0
        %v3127 = vadd.f32 %v3038, %v3126
        %v3128 = vpop.f32.mrf.mxu0
        %v3129 = vadd.f32 %v3040, %v3128
        %3130 = vdwg.mxu0
        %3131 = vmatpush.bf16.msra.mxu0 %v1959
        %3132 = vmatpush.bf16.msra.mxu0 %v1957
        %3133 = vmatpush.bf16.msra.mxu0 %v1955
        %3134 = vmatpush.bf16.msra.mxu0 %v1953
        %3135 = vmatpush.bf16.msra.mxu0 %v1951
        %3136 = vmatpush.bf16.msra.mxu0 %v1949
        %3137 = vmatpush.bf16.msra.mxu0 %v1947
        %3138 = vmatpush.bf16.msra.mxu0 %v1945
        %3139 = vmatmul.bf16.gmra.mxu0 %v1259
        %v3140 = vpop.f32.mrf.mxu0
        %v3141 = vadd.f32 %v3052, %v3140
        %v3142 = vpop.f32.mrf.mxu0
        %v3143 = vadd.f32 %v3054, %v3142
        %3144 = vmatmul.bf16.gmra.mxu0 %v1267
        %v3145 = vpop.f32.mrf.mxu0
        %v3146 = vadd.f32 %v3057, %v3145
        %v3147 = vpop.f32.mrf.mxu0
        %v3148 = vadd.f32 %v3059, %v3147
        %3149 = vmatmul.bf16.gmra.mxu0 %v1275
        %v3150 = vpop.f32.mrf.mxu0
        %v3151 = vadd.f32 %v3062, %v3150
        %v3152 = vpop.f32.mrf.mxu0
        %v3153 = vadd.f32 %v3064, %v3152
        %3154 = vmatmul.bf16.gmra.mxu0 %v1283
        %v3155 = vpop.f32.mrf.mxu0
        %v3156 = vadd.f32 %v3067, %v3155
        %v3157 = vpop.f32.mrf.mxu0
        %v3158 = vadd.f32 %v3069, %v3157
        %3159 = vmatmul.bf16.gmra.mxu0 %v1291
        %v3160 = vpop.f32.mrf.mxu0
        %v3161 = vadd.f32 %v3072, %v3160
        %v3162 = vpop.f32.mrf.mxu0
        %v3163 = vadd.f32 %v3074, %v3162
        %3164 = vmatmul.bf16.gmra.mxu0 %v1299
        %v3165 = vpop.f32.mrf.mxu0
        %v3166 = vadd.f32 %v3077, %v3165
        %v3167 = vpop.f32.mrf.mxu0
        %v3168 = vadd.f32 %v3079, %v3167
        %3169 = vmatmul.bf16.gmra.mxu0 %v1307
        %v3170 = vpop.f32.mrf.mxu0
        %v3171 = vadd.f32 %v3082, %v3170
        %v3172 = vpop.f32.mrf.mxu0
        %v3173 = vadd.f32 %v3084, %v3172
        %3174 = vmatmul.bf16.gmra.mxu0 %v1315
        %v3175 = vpop.f32.mrf.mxu0
        %v3176 = vadd.f32 %v3087, %v3175
        %v3177 = vpop.f32.mrf.mxu0
        %v3178 = vadd.f32 %v3089, %v3177
        %3179 = vmatmul.bf16.gmra.mxu0 %v1323
        %v3180 = vpop.f32.mrf.mxu0
        %v3181 = vadd.f32 %v3092, %v3180
        %v3182 = vpop.f32.mrf.mxu0
        %v3183 = vadd.f32 %v3094, %v3182
        %3184 = vmatmul.bf16.gmra.mxu0 %v1331
        %v3185 = vpop.f32.mrf.mxu0
        %v3186 = vadd.f32 %v3097, %v3185
        %v3187 = vpop.f32.mrf.mxu0
        %v3188 = vadd.f32 %v3099, %v3187
        %3189 = vmatmul.bf16.gmra.mxu0 %v1339
        %v3190 = vpop.f32.mrf.mxu0
        %v3191 = vadd.f32 %v3102, %v3190
        %v3192 = vpop.f32.mrf.mxu0
        %v3193 = vadd.f32 %v3104, %v3192
        %3194 = vmatmul.bf16.gmra.mxu0 %v1347
        %v3195 = vpop.f32.mrf.mxu0
        %v3196 = vadd.f32 %v3107, %v3195
        %v3197 = vpop.f32.mrf.mxu0
        %v3198 = vadd.f32 %v3109, %v3197
        %3199 = vmatmul.bf16.gmra.mxu0 %v1355
        %v3200 = vpop.f32.mrf.mxu0
        %v3201 = vadd.f32 %v3112, %v3200
        %v3202 = vpop.f32.mrf.mxu0
        %v3203 = vadd.f32 %v3114, %v3202
        %3204 = vmatmul.bf16.gmra.mxu0 %v1363
        %v3205 = vpop.f32.mrf.mxu0
        %v3206 = vadd.f32 %v3117, %v3205
        %v3207 = vpop.f32.mrf.mxu0
        %v3208 = vadd.f32 %v3119, %v3207
        %3209 = vmatmul.bf16.gmra.mxu0 %v1371
        %v3210 = vpop.f32.mrf.mxu0
        %v3211 = vadd.f32 %v3122, %v3210
        %v3212 = vpop.f32.mrf.mxu0
        %v3213 = vadd.f32 %v3124, %v3212
        %3214 = vmatmul.bf16.gmra.mxu0 %v1379
        %v3215 = vpop.f32.mrf.mxu0
        %v3216 = vadd.f32 %v3127, %v3215
        %v3217 = vpop.f32.mrf.mxu0
        %v3218 = vadd.f32 %v3129, %v3217
        %3219 = vdwg.mxu0
        %3220 = vmatpush.bf16.msra.mxu0 %v1975
        %3221 = vmatpush.bf16.msra.mxu0 %v1973
        %3222 = vmatpush.bf16.msra.mxu0 %v1971
        %3223 = vmatpush.bf16.msra.mxu0 %v1969
        %3224 = vmatpush.bf16.msra.mxu0 %v1967
        %3225 = vmatpush.bf16.msra.mxu0 %v1965
        %3226 = vmatpush.bf16.msra.mxu0 %v1963
        %3227 = vmatpush.bf16.msra.mxu0 %v1961
        %3228 = vmatmul.bf16.gmra.mxu0 %v1260
        %v3229 = vpop.f32.mrf.mxu0
        %v3230 = vadd.f32 %v3141, %v3229
        %v3231 = vpop.f32.mrf.mxu0
        %v3232 = vadd.f32 %v3143, %v3231
        %3233 = vmatmul.bf16.gmra.mxu0 %v1268
        %v3234 = vpop.f32.mrf.mxu0
        %v3235 = vadd.f32 %v3146, %v3234
        %v3236 = vpop.f32.mrf.mxu0
        %v3237 = vadd.f32 %v3148, %v3236
        %3238 = vmatmul.bf16.gmra.mxu0 %v1276
        %v3239 = vpop.f32.mrf.mxu0
        %v3240 = vadd.f32 %v3151, %v3239
        %v3241 = vpop.f32.mrf.mxu0
        %v3242 = vadd.f32 %v3153, %v3241
        %3243 = vmatmul.bf16.gmra.mxu0 %v1284
        %v3244 = vpop.f32.mrf.mxu0
        %v3245 = vadd.f32 %v3156, %v3244
        %v3246 = vpop.f32.mrf.mxu0
        %v3247 = vadd.f32 %v3158, %v3246
        %3248 = vmatmul.bf16.gmra.mxu0 %v1292
        %v3249 = vpop.f32.mrf.mxu0
        %v3250 = vadd.f32 %v3161, %v3249
        %v3251 = vpop.f32.mrf.mxu0
        %v3252 = vadd.f32 %v3163, %v3251
        %3253 = vmatmul.bf16.gmra.mxu0 %v1300
        %v3254 = vpop.f32.mrf.mxu0
        %v3255 = vadd.f32 %v3166, %v3254
        %v3256 = vpop.f32.mrf.mxu0
        %v3257 = vadd.f32 %v3168, %v3256
        %3258 = vmatmul.bf16.gmra.mxu0 %v1308
        %v3259 = vpop.f32.mrf.mxu0
        %v3260 = vadd.f32 %v3171, %v3259
        %v3261 = vpop.f32.mrf.mxu0
        %v3262 = vadd.f32 %v3173, %v3261
        %3263 = vmatmul.bf16.gmra.mxu0 %v1316
        %v3264 = vpop.f32.mrf.mxu0
        %v3265 = vadd.f32 %v3176, %v3264
        %v3266 = vpop.f32.mrf.mxu0
        %v3267 = vadd.f32 %v3178, %v3266
        %3268 = vmatmul.bf16.gmra.mxu0 %v1324
        %v3269 = vpop.f32.mrf.mxu0
        %v3270 = vadd.f32 %v3181, %v3269
        %v3271 = vpop.f32.mrf.mxu0
        %v3272 = vadd.f32 %v3183, %v3271
        %3273 = vmatmul.bf16.gmra.mxu0 %v1332
        %v3274 = vpop.f32.mrf.mxu0
        %v3275 = vadd.f32 %v3186, %v3274
        %v3276 = vpop.f32.mrf.mxu0
        %v3277 = vadd.f32 %v3188, %v3276
        %3278 = vmatmul.bf16.gmra.mxu0 %v1340
        %v3279 = vpop.f32.mrf.mxu0
        %v3280 = vadd.f32 %v3191, %v3279
        %v3281 = vpop.f32.mrf.mxu0
        %v3282 = vadd.f32 %v3193, %v3281
        %3283 = vmatmul.bf16.gmra.mxu0 %v1348
        %v3284 = vpop.f32.mrf.mxu0
        %v3285 = vadd.f32 %v3196, %v3284
        %v3286 = vpop.f32.mrf.mxu0
        %v3287 = vadd.f32 %v3198, %v3286
        %3288 = vmatmul.bf16.gmra.mxu0 %v1356
        %v3289 = vpop.f32.mrf.mxu0
        %v3290 = vadd.f32 %v3201, %v3289
        %v3291 = vpop.f32.mrf.mxu0
        %v3292 = vadd.f32 %v3203, %v3291
        %3293 = vmatmul.bf16.gmra.mxu0 %v1364
        %v3294 = vpop.f32.mrf.mxu0
        %v3295 = vadd.f32 %v3206, %v3294
        %v3296 = vpop.f32.mrf.mxu0
        %v3297 = vadd.f32 %v3208, %v3296
        %3298 = vmatmul.bf16.gmra.mxu0 %v1372
        %v3299 = vpop.f32.mrf.mxu0
        %v3300 = vadd.f32 %v3211, %v3299
        %v3301 = vpop.f32.mrf.mxu0
        %v3302 = vadd.f32 %v3213, %v3301
        %3303 = vmatmul.bf16.gmra.mxu0 %v1380
        %v3304 = vpop.f32.mrf.mxu0
        %v3305 = vadd.f32 %v3216, %v3304
        %v3306 = vpop.f32.mrf.mxu0
        %v3307 = vadd.f32 %v3218, %v3306
        %3308 = vdwg.mxu0
        %3309 = vmatpush.bf16.msra.mxu0 %v1991
        %3310 = vmatpush.bf16.msra.mxu0 %v1989
        %3311 = vmatpush.bf16.msra.mxu0 %v1987
        %3312 = vmatpush.bf16.msra.mxu0 %v1985
        %3313 = vmatpush.bf16.msra.mxu0 %v1983
        %3314 = vmatpush.bf16.msra.mxu0 %v1981
        %3315 = vmatpush.bf16.msra.mxu0 %v1979
        %3316 = vmatpush.bf16.msra.mxu0 %v1977
        %3317 = vmatmul.bf16.gmra.mxu0 %v1261
        %v3318 = vpop.f32.mrf.mxu0
        %v3319 = vadd.f32 %v3230, %v3318
        %v3320 = vpop.f32.mrf.mxu0
        %v3321 = vadd.f32 %v3232, %v3320
        %3322 = vmatmul.bf16.gmra.mxu0 %v1269
        %v3323 = vpop.f32.mrf.mxu0
        %v3324 = vadd.f32 %v3235, %v3323
        %v3325 = vpop.f32.mrf.mxu0
        %v3326 = vadd.f32 %v3237, %v3325
        %3327 = vmatmul.bf16.gmra.mxu0 %v1277
        %v3328 = vpop.f32.mrf.mxu0
        %v3329 = vadd.f32 %v3240, %v3328
        %v3330 = vpop.f32.mrf.mxu0
        %v3331 = vadd.f32 %v3242, %v3330
        %3332 = vmatmul.bf16.gmra.mxu0 %v1285
        %v3333 = vpop.f32.mrf.mxu0
        %v3334 = vadd.f32 %v3245, %v3333
        %v3335 = vpop.f32.mrf.mxu0
        %v3336 = vadd.f32 %v3247, %v3335
        %3337 = vmatmul.bf16.gmra.mxu0 %v1293
        %v3338 = vpop.f32.mrf.mxu0
        %v3339 = vadd.f32 %v3250, %v3338
        %v3340 = vpop.f32.mrf.mxu0
        %v3341 = vadd.f32 %v3252, %v3340
        %3342 = vmatmul.bf16.gmra.mxu0 %v1301
        %v3343 = vpop.f32.mrf.mxu0
        %v3344 = vadd.f32 %v3255, %v3343
        %v3345 = vpop.f32.mrf.mxu0
        %v3346 = vadd.f32 %v3257, %v3345
        %3347 = vmatmul.bf16.gmra.mxu0 %v1309
        %v3348 = vpop.f32.mrf.mxu0
        %v3349 = vadd.f32 %v3260, %v3348
        %v3350 = vpop.f32.mrf.mxu0
        %v3351 = vadd.f32 %v3262, %v3350
        %3352 = vmatmul.bf16.gmra.mxu0 %v1317
        %v3353 = vpop.f32.mrf.mxu0
        %v3354 = vadd.f32 %v3265, %v3353
        %v3355 = vpop.f32.mrf.mxu0
        %v3356 = vadd.f32 %v3267, %v3355
        %3357 = vmatmul.bf16.gmra.mxu0 %v1325
        %v3358 = vpop.f32.mrf.mxu0
        %v3359 = vadd.f32 %v3270, %v3358
        %v3360 = vpop.f32.mrf.mxu0
        %v3361 = vadd.f32 %v3272, %v3360
        %3362 = vmatmul.bf16.gmra.mxu0 %v1333
        %v3363 = vpop.f32.mrf.mxu0
        %v3364 = vadd.f32 %v3275, %v3363
        %v3365 = vpop.f32.mrf.mxu0
        %v3366 = vadd.f32 %v3277, %v3365
        %3367 = vmatmul.bf16.gmra.mxu0 %v1341
        %v3368 = vpop.f32.mrf.mxu0
        %v3369 = vadd.f32 %v3280, %v3368
        %v3370 = vpop.f32.mrf.mxu0
        %v3371 = vadd.f32 %v3282, %v3370
        %3372 = vmatmul.bf16.gmra.mxu0 %v1349
        %v3373 = vpop.f32.mrf.mxu0
        %v3374 = vadd.f32 %v3285, %v3373
        %v3375 = vpop.f32.mrf.mxu0
        %v3376 = vadd.f32 %v3287, %v3375
        %3377 = vmatmul.bf16.gmra.mxu0 %v1357
        %v3378 = vpop.f32.mrf.mxu0
        %v3379 = vadd.f32 %v3290, %v3378
        %v3380 = vpop.f32.mrf.mxu0
        %v3381 = vadd.f32 %v3292, %v3380
        %3382 = vmatmul.bf16.gmra.mxu0 %v1365
        %v3383 = vpop.f32.mrf.mxu0
        %v3384 = vadd.f32 %v3295, %v3383
        %v3385 = vpop.f32.mrf.mxu0
        %v3386 = vadd.f32 %v3297, %v3385
        %3387 = vmatmul.bf16.gmra.mxu0 %v1373
        %v3388 = vpop.f32.mrf.mxu0
        %v3389 = vadd.f32 %v3300, %v3388
        %v3390 = vpop.f32.mrf.mxu0
        %v3391 = vadd.f32 %v3302, %v3390
        %3392 = vmatmul.bf16.gmra.mxu0 %v1381
        %v3393 = vpop.f32.mrf.mxu0
        %v3394 = vadd.f32 %v3305, %v3393
        %v3395 = vpop.f32.mrf.mxu0
        %v3396 = vadd.f32 %v3307, %v3395
        %3397 = vdwg.mxu0
        %3398 = vmatpush.bf16.msra.mxu0 %v2007
        %3399 = vmatpush.bf16.msra.mxu0 %v2005
        %3400 = vmatpush.bf16.msra.mxu0 %v2003
        %3401 = vmatpush.bf16.msra.mxu0 %v2001
        %3402 = vmatpush.bf16.msra.mxu0 %v1999
        %3403 = vmatpush.bf16.msra.mxu0 %v1997
        %3404 = vmatpush.bf16.msra.mxu0 %v1995
        %3405 = vmatpush.bf16.msra.mxu0 %v1993
        %3406 = vmatmul.bf16.gmra.mxu0 %v1262
        %v3407 = vpop.f32.mrf.mxu0
        %v3408 = vadd.f32 %v3319, %v3407
        %v3409 = vpop.f32.mrf.mxu0
        %v3410 = vadd.f32 %v3321, %v3409
        %3411 = vmatmul.bf16.gmra.mxu0 %v1270
        %v3412 = vpop.f32.mrf.mxu0
        %v3413 = vadd.f32 %v3324, %v3412
        %v3414 = vpop.f32.mrf.mxu0
        %v3415 = vadd.f32 %v3326, %v3414
        %3416 = vmatmul.bf16.gmra.mxu0 %v1278
        %v3417 = vpop.f32.mrf.mxu0
        %v3418 = vadd.f32 %v3329, %v3417
        %v3419 = vpop.f32.mrf.mxu0
        %v3420 = vadd.f32 %v3331, %v3419
        %3421 = vmatmul.bf16.gmra.mxu0 %v1286
        %v3422 = vpop.f32.mrf.mxu0
        %v3423 = vadd.f32 %v3334, %v3422
        %v3424 = vpop.f32.mrf.mxu0
        %v3425 = vadd.f32 %v3336, %v3424
        %3426 = vmatmul.bf16.gmra.mxu0 %v1294
        %v3427 = vpop.f32.mrf.mxu0
        %v3428 = vadd.f32 %v3339, %v3427
        %v3429 = vpop.f32.mrf.mxu0
        %v3430 = vadd.f32 %v3341, %v3429
        %3431 = vmatmul.bf16.gmra.mxu0 %v1302
        %v3432 = vpop.f32.mrf.mxu0
        %v3433 = vadd.f32 %v3344, %v3432
        %v3434 = vpop.f32.mrf.mxu0
        %v3435 = vadd.f32 %v3346, %v3434
        %3436 = vmatmul.bf16.gmra.mxu0 %v1310
        %v3437 = vpop.f32.mrf.mxu0
        %v3438 = vadd.f32 %v3349, %v3437
        %v3439 = vpop.f32.mrf.mxu0
        %v3440 = vadd.f32 %v3351, %v3439
        %3441 = vmatmul.bf16.gmra.mxu0 %v1318
        %v3442 = vpop.f32.mrf.mxu0
        %v3443 = vadd.f32 %v3354, %v3442
        %v3444 = vpop.f32.mrf.mxu0
        %v3445 = vadd.f32 %v3356, %v3444
        %3446 = vmatmul.bf16.gmra.mxu0 %v1326
        %v3447 = vpop.f32.mrf.mxu0
        %v3448 = vadd.f32 %v3359, %v3447
        %v3449 = vpop.f32.mrf.mxu0
        %v3450 = vadd.f32 %v3361, %v3449
        %3451 = vmatmul.bf16.gmra.mxu0 %v1334
        %v3452 = vpop.f32.mrf.mxu0
        %v3453 = vadd.f32 %v3364, %v3452
        %v3454 = vpop.f32.mrf.mxu0
        %v3455 = vadd.f32 %v3366, %v3454
        %3456 = vmatmul.bf16.gmra.mxu0 %v1342
        %v3457 = vpop.f32.mrf.mxu0
        %v3458 = vadd.f32 %v3369, %v3457
        %v3459 = vpop.f32.mrf.mxu0
        %v3460 = vadd.f32 %v3371, %v3459
        %3461 = vmatmul.bf16.gmra.mxu0 %v1350
        %v3462 = vpop.f32.mrf.mxu0
        %v3463 = vadd.f32 %v3374, %v3462
        %v3464 = vpop.f32.mrf.mxu0
        %v3465 = vadd.f32 %v3376, %v3464
        %3466 = vmatmul.bf16.gmra.mxu0 %v1358
        %v3467 = vpop.f32.mrf.mxu0
        %v3468 = vadd.f32 %v3379, %v3467
        %v3469 = vpop.f32.mrf.mxu0
        %v3470 = vadd.f32 %v3381, %v3469
        %3471 = vmatmul.bf16.gmra.mxu0 %v1366
        %v3472 = vpop.f32.mrf.mxu0
        %v3473 = vadd.f32 %v3384, %v3472
        %v3474 = vpop.f32.mrf.mxu0
        %v3475 = vadd.f32 %v3386, %v3474
        %3476 = vmatmul.bf16.gmra.mxu0 %v1374
        %v3477 = vpop.f32.mrf.mxu0
        %v3478 = vadd.f32 %v3389, %v3477
        %v3479 = vpop.f32.mrf.mxu0
        %v3480 = vadd.f32 %v3391, %v3479
        %3481 = vmatmul.bf16.gmra.mxu0 %v1382
        %v3482 = vpop.f32.mrf.mxu0
        %v3483 = vadd.f32 %v3394, %v3482
        %v3484 = vpop.f32.mrf.mxu0
        %v3485 = vadd.f32 %v3396, %v3484
        %3486 = vdwg.mxu0
        %3487 = vmatpush.bf16.msra.mxu0 %v2023
        %3488 = vmatpush.bf16.msra.mxu0 %v2021
        %3489 = vmatpush.bf16.msra.mxu0 %v2019
        %3490 = vmatpush.bf16.msra.mxu0 %v2017
        %3491 = vmatpush.bf16.msra.mxu0 %v2015
        %3492 = vmatpush.bf16.msra.mxu0 %v2013
        %3493 = vmatpush.bf16.msra.mxu0 %v2011
        %3494 = vmatpush.bf16.msra.mxu0 %v2009
        %3495 = vmatmul.bf16.gmra.mxu0 %v1263
        %v3496 = vpop.f32.mrf.mxu0
        %v3497 = vadd.f32 %v3408, %v3496
        %v3498 = vpop.f32.mrf.mxu0
        %v3499 = vadd.f32 %v3410, %v3498
        %3500 = vmatmul.bf16.gmra.mxu0 %v1271
        %v3501 = vpop.f32.mrf.mxu0
        %v3502 = vadd.f32 %v3413, %v3501
        %v3503 = vpop.f32.mrf.mxu0
        %v3504 = vadd.f32 %v3415, %v3503
        %3505 = vmatmul.bf16.gmra.mxu0 %v1279
        %v3506 = vpop.f32.mrf.mxu0
        %v3507 = vadd.f32 %v3418, %v3506
        %v3508 = vpop.f32.mrf.mxu0
        %v3509 = vadd.f32 %v3420, %v3508
        %3510 = vmatmul.bf16.gmra.mxu0 %v1287
        %v3511 = vpop.f32.mrf.mxu0
        %v3512 = vadd.f32 %v3423, %v3511
        %v3513 = vpop.f32.mrf.mxu0
        %v3514 = vadd.f32 %v3425, %v3513
        %3515 = vmatmul.bf16.gmra.mxu0 %v1295
        %v3516 = vpop.f32.mrf.mxu0
        %v3517 = vadd.f32 %v3428, %v3516
        %v3518 = vpop.f32.mrf.mxu0
        %v3519 = vadd.f32 %v3430, %v3518
        %3520 = vmatmul.bf16.gmra.mxu0 %v1303
        %v3521 = vpop.f32.mrf.mxu0
        %v3522 = vadd.f32 %v3433, %v3521
        %v3523 = vpop.f32.mrf.mxu0
        %v3524 = vadd.f32 %v3435, %v3523
        %3525 = vmatmul.bf16.gmra.mxu0 %v1311
        %v3526 = vpop.f32.mrf.mxu0
        %v3527 = vadd.f32 %v3438, %v3526
        %v3528 = vpop.f32.mrf.mxu0
        %v3529 = vadd.f32 %v3440, %v3528
        %3530 = vmatmul.bf16.gmra.mxu0 %v1319
        %v3531 = vpop.f32.mrf.mxu0
        %v3532 = vadd.f32 %v3443, %v3531
        %v3533 = vpop.f32.mrf.mxu0
        %v3534 = vadd.f32 %v3445, %v3533
        %3535 = vmatmul.bf16.gmra.mxu0 %v1327
        %v3536 = vpop.f32.mrf.mxu0
        %v3537 = vadd.f32 %v3448, %v3536
        %v3538 = vpop.f32.mrf.mxu0
        %v3539 = vadd.f32 %v3450, %v3538
        %3540 = vmatmul.bf16.gmra.mxu0 %v1335
        %v3541 = vpop.f32.mrf.mxu0
        %v3542 = vadd.f32 %v3453, %v3541
        %v3543 = vpop.f32.mrf.mxu0
        %v3544 = vadd.f32 %v3455, %v3543
        %3545 = vmatmul.bf16.gmra.mxu0 %v1343
        %v3546 = vpop.f32.mrf.mxu0
        %v3547 = vadd.f32 %v3458, %v3546
        %v3548 = vpop.f32.mrf.mxu0
        %v3549 = vadd.f32 %v3460, %v3548
        %3550 = vmatmul.bf16.gmra.mxu0 %v1351
        %v3551 = vpop.f32.mrf.mxu0
        %v3552 = vadd.f32 %v3463, %v3551
        %v3553 = vpop.f32.mrf.mxu0
        %v3554 = vadd.f32 %v3465, %v3553
        %3555 = vmatmul.bf16.gmra.mxu0 %v1359
        %v3556 = vpop.f32.mrf.mxu0
        %v3557 = vadd.f32 %v3468, %v3556
        %v3558 = vpop.f32.mrf.mxu0
        %v3559 = vadd.f32 %v3470, %v3558
        %3560 = vmatmul.bf16.gmra.mxu0 %v1367
        %v3561 = vpop.f32.mrf.mxu0
        %v3562 = vadd.f32 %v3473, %v3561
        %v3563 = vpop.f32.mrf.mxu0
        %v3564 = vadd.f32 %v3475, %v3563
        %3565 = vmatmul.bf16.gmra.mxu0 %v1375
        %v3566 = vpop.f32.mrf.mxu0
        %v3567 = vadd.f32 %v3478, %v3566
        %v3568 = vpop.f32.mrf.mxu0
        %v3569 = vadd.f32 %v3480, %v3568
        %3570 = vmatmul.bf16.gmra.mxu0 %v1383
        %v3571 = vpop.f32.mrf.mxu0
        %v3572 = vadd.f32 %v3483, %v3571
        %v3573 = vpop.f32.mrf.mxu0
        %v3574 = vadd.f32 %v3485, %v3573
        %3575 = vdwg.mxu0
        %v3576 = vadd.f32 %v552, %v2785
        %v3577 = vadd.f32 %v553, %v3497
        %v3578 = vadd.f32 %v554, %v2787
        %v3579 = vadd.f32 %v555, %v3499
        %v3580 = vadd.f32 %v556, %v2790
        %v3581 = vadd.f32 %v557, %v3502
        %v3582 = vadd.f32 %v558, %v2792
        %v3583 = vadd.f32 %v559, %v3504
        %v3584 = vadd.f32 %v560, %v2795
        %v3585 = vadd.f32 %v561, %v3507
        %v3586 = vadd.f32 %v562, %v2797
        %v3587 = vadd.f32 %v563, %v3509
        %v3588 = vadd.f32 %v564, %v2800
        %v3589 = vadd.f32 %v565, %v3512
        %v3590 = vadd.f32 %v566, %v2802
        %v3591 = vadd.f32 %v567, %v3514
        %v3592 = vadd.f32 %v568, %v2805
        %v3593 = vadd.f32 %v569, %v3517
        %v3594 = vadd.f32 %v570, %v2807
        %v3595 = vadd.f32 %v571, %v3519
        %v3596 = vadd.f32 %v572, %v2810
        %v3597 = vadd.f32 %v573, %v3522
        %v3598 = vadd.f32 %v574, %v2812
        %v3599 = vadd.f32 %v575, %v3524
        %v3600 = vadd.f32 %v576, %v2815
        %v3601 = vadd.f32 %v577, %v3527
        %v3602 = vadd.f32 %v578, %v2817
        %v3603 = vadd.f32 %v579, %v3529
        %v3604 = vadd.f32 %v580, %v2820
        %v3605 = vadd.f32 %v581, %v3532
        %v3606 = vadd.f32 %v582, %v2822
        %v3607 = vadd.f32 %v583, %v3534
        %v3608 = vadd.f32 %v584, %v2825
        %v3609 = vadd.f32 %v585, %v3537
        %v3610 = vadd.f32 %v586, %v2827
        %v3611 = vadd.f32 %v587, %v3539
        %v3612 = vadd.f32 %v588, %v2830
        %v3613 = vadd.f32 %v589, %v3542
        %v3614 = vadd.f32 %v590, %v2832
        %v3615 = vadd.f32 %v591, %v3544
        %v3616 = vadd.f32 %v592, %v2835
        %v3617 = vadd.f32 %v593, %v3547
        %v3618 = vadd.f32 %v594, %v2837
        %v3619 = vadd.f32 %v595, %v3549
        %v3620 = vadd.f32 %v596, %v2840
        %v3621 = vadd.f32 %v597, %v3552
        %v3622 = vadd.f32 %v598, %v2842
        %v3623 = vadd.f32 %v599, %v3554
        %v3624 = vadd.f32 %v600, %v2845
        %v3625 = vadd.f32 %v601, %v3557
        %v3626 = vadd.f32 %v602, %v2847
        %v3627 = vadd.f32 %v603, %v3559
        %v3628 = vadd.f32 %v604, %v2850
        %v3629 = vadd.f32 %v605, %v3562
        %v3630 = vadd.f32 %v606, %v2852
        %v3631 = vadd.f32 %v607, %v3564
        %v3632 = vadd.f32 %v608, %v2855
        %v3633 = vadd.f32 %v609, %v3567
        %v3634 = vadd.f32 %v610, %v2857
        %v3635 = vadd.f32 %v611, %v3569
        %v3636 = vadd.f32 %v612, %v2860
        %v3637 = vadd.f32 %v613, %v3572
        %v3638 = vadd.f32 %v614, %v2862
        %v3639 = vadd.f32 %v615, %v3574
        %3640 = vst [vmem:[#allocation2] sm:$0xff] %v3576
        %3641 = vst [vmem:[#allocation2 + $0x8] sm:$0xff] %v3577
        %3642 = vst [vmem:[#allocation2 + $0x10] sm:$0xff] %v3578
        %3643 = vst [vmem:[#allocation2 + $0x18] sm:$0xff] %v3579
        %3644 = vst [vmem:[#allocation2 + $0x20] sm:$0xff] %v3580
        %3645 = vst [vmem:[#allocation2 + $0x28] sm:$0xff] %v3581
        %3646 = vst [vmem:[#allocation2 + $0x30] sm:$0xff] %v3582
        %3647 = vst [vmem:[#allocation2 + $0x38] sm:$0xff] %v3583
        %3648 = vst [vmem:[#allocation2 + $0x40] sm:$0xff] %v3584
        %3649 = vst [vmem:[#allocation2 + $0x48] sm:$0xff] %v3585
        %3650 = vst [vmem:[#allocation2 + $0x50] sm:$0xff] %v3586
        %3651 = vst [vmem:[#allocation2 + $0x58] sm:$0xff] %v3587
        %3652 = vst [vmem:[#allocation2 + $0x60] sm:$0xff] %v3588
        %3653 = vst [vmem:[#allocation2 + $0x68] sm:$0xff] %v3589
        %3654 = vst [vmem:[#allocation2 + $0x70] sm:$0xff] %v3590
        %3655 = vst [vmem:[#allocation2 + $0x78] sm:$0xff] %v3591
        %3656 = vst [vmem:[#allocation2 + $0x80] sm:$0xff] %v3592
        %3657 = vst [vmem:[#allocation2 + $0x88] sm:$0xff] %v3593
        %3658 = vst [vmem:[#allocation2 + $0x90] sm:$0xff] %v3594
        %3659 = vst [vmem:[#allocation2 + $0x98] sm:$0xff] %v3595
        %3660 = vst [vmem:[#allocation2 + $0xa0] sm:$0xff] %v3596
        %3661 = vst [vmem:[#allocation2 + $0xa8] sm:$0xff] %v3597
        %3662 = vst [vmem:[#allocation2 + $0xb0] sm:$0xff] %v3598
        %3663 = vst [vmem:[#allocation2 + $0xb8] sm:$0xff] %v3599
        %3664 = vst [vmem:[#allocation2 + $0xc0] sm:$0xff] %v3600
        %3665 = vst [vmem:[#allocation2 + $0xc8] sm:$0xff] %v3601
        %3666 = vst [vmem:[#allocation2 + $0xd0] sm:$0xff] %v3602
        %3667 = vst [vmem:[#allocation2 + $0xd8] sm:$0xff] %v3603
        %3668 = vst [vmem:[#allocation2 + $0xe0] sm:$0xff] %v3604
        %3669 = vst [vmem:[#allocation2 + $0xe8] sm:$0xff] %v3605
        %3670 = vst [vmem:[#allocation2 + $0xf0] sm:$0xff] %v3606
        %3671 = vst [vmem:[#allocation2 + $0xf8] sm:$0xff] %v3607
        %3672 = vst [vmem:[#allocation2 + $0x100] sm:$0xff] %v3608
        %3673 = vst [vmem:[#allocation2 + $0x108] sm:$0xff] %v3609
        %3674 = vst [vmem:[#allocation2 + $0x110] sm:$0xff] %v3610
        %3675 = vst [vmem:[#allocation2 + $0x118] sm:$0xff] %v3611
        %3676 = vst [vmem:[#allocation2 + $0x120] sm:$0xff] %v3612
        %3677 = vst [vmem:[#allocation2 + $0x128] sm:$0xff] %v3613
        %3678 = vst [vmem:[#allocation2 + $0x130] sm:$0xff] %v3614
        %3679 = vst [vmem:[#allocation2 + $0x138] sm:$0xff] %v3615
        %3680 = vst [vmem:[#allocation2 + $0x140] sm:$0xff] %v3616
        %3681 = vst [vmem:[#allocation2 + $0x148] sm:$0xff] %v3617
        %3682 = vst [vmem:[#allocation2 + $0x150] sm:$0xff] %v3618
        %3683 = vst [vmem:[#allocation2 + $0x158] sm:$0xff] %v3619
        %3684 = vst [vmem:[#allocation2 + $0x160] sm:$0xff] %v3620
        %3685 = vst [vmem:[#allocation2 + $0x168] sm:$0xff] %v3621
        %3686 = vst [vmem:[#allocation2 + $0x170] sm:$0xff] %v3622
        %3687 = vst [vmem:[#allocation2 + $0x178] sm:$0xff] %v3623
        %3688 = vst [vmem:[#allocation2 + $0x180] sm:$0xff] %v3624
        %3689 = vst [vmem:[#allocation2 + $0x188] sm:$0xff] %v3625
        %3690 = vst [vmem:[#allocation2 + $0x190] sm:$0xff] %v3626
        %3691 = vst [vmem:[#allocation2 + $0x198] sm:$0xff] %v3627
        %3692 = vst [vmem:[#allocation2 + $0x1a0] sm:$0xff] %v3628
        %3693 = vst [vmem:[#allocation2 + $0x1a8] sm:$0xff] %v3629
        %3694 = vst [vmem:[#allocation2 + $0x1b0] sm:$0xff] %v3630
        %3695 = vst [vmem:[#allocation2 + $0x1b8] sm:$0xff] %v3631
        %3696 = vst [vmem:[#allocation2 + $0x1c0] sm:$0xff] %v3632
        %3697 = vst [vmem:[#allocation2 + $0x1c8] sm:$0xff] %v3633
        %3698 = vst [vmem:[#allocation2 + $0x1d0] sm:$0xff] %v3634
        %3699 = vst [vmem:[#allocation2 + $0x1d8] sm:$0xff] %v3635
        %3700 = vst [vmem:[#allocation2 + $0x1e0] sm:$0xff] %v3636
        %3701 = vst [vmem:[#allocation2 + $0x1e8] sm:$0xff] %v3637
        %3702 = vst [vmem:[#allocation2 + $0x1f0] sm:$0xff] %v3638
        %3703 = vst [vmem:[#allocation2 + $0x1f8] sm:$0xff] %v3639
        %p3704 = scmp.eq.s32.totalorder %s39, 1
        // Predicated region
        $region81: #{tpu_custom_call.1} parent=47 // pred_check
          %p3705 = pneg %p3704
        $region82: #{tpu_custom_call.1} parent=47 // pred_check_branch
          %3707 = sbr.rel (%p3705) target = $region84
        $region83: #{tpu_custom_call.1} parent=47 // pred_region
          %v3708 = vld [vmem:[#allocation2] sm:$0xff]
          %v3709 = vld [vmem:[#allocation2 + $0x8] sm:$0xff]
          %v3710 = vld [vmem:[#allocation2 + $0x10] sm:$0xff]
          %v3711 = vld [vmem:[#allocation2 + $0x18] sm:$0xff]
          %v3712 = vld [vmem:[#allocation2 + $0x20] sm:$0xff]
          %v3713 = vld [vmem:[#allocation2 + $0x28] sm:$0xff]
          %v3714 = vld [vmem:[#allocation2 + $0x30] sm:$0xff]
          %v3715 = vld [vmem:[#allocation2 + $0x38] sm:$0xff]
          %v3716 = vld [vmem:[#allocation2 + $0x40] sm:$0xff]
          %v3717 = vld [vmem:[#allocation2 + $0x48] sm:$0xff]
          %v3718 = vld [vmem:[#allocation2 + $0x50] sm:$0xff]
          %v3719 = vld [vmem:[#allocation2 + $0x58] sm:$0xff]
          %v3720 = vld [vmem:[#allocation2 + $0x60] sm:$0xff]
          %v3721 = vld [vmem:[#allocation2 + $0x68] sm:$0xff]
          %v3722 = vld [vmem:[#allocation2 + $0x70] sm:$0xff]
          %v3723 = vld [vmem:[#allocation2 + $0x78] sm:$0xff]
          %v3724 = vld [vmem:[#allocation2 + $0x80] sm:$0xff]
          %v3725 = vld [vmem:[#allocation2 + $0x88] sm:$0xff]
          %v3726 = vld [vmem:[#allocation2 + $0x90] sm:$0xff]
          %v3727 = vld [vmem:[#allocation2 + $0x98] sm:$0xff]
          %v3728 = vld [vmem:[#allocation2 + $0xa0] sm:$0xff]
          %v3729 = vld [vmem:[#allocation2 + $0xa8] sm:$0xff]
          %v3730 = vld [vmem:[#allocation2 + $0xb0] sm:$0xff]
          %v3731 = vld [vmem:[#allocation2 + $0xb8] sm:$0xff]
          %v3732 = vld [vmem:[#allocation2 + $0xc0] sm:$0xff]
          %v3733 = vld [vmem:[#allocation2 + $0xc8] sm:$0xff]
          %v3734 = vld [vmem:[#allocation2 + $0xd0] sm:$0xff]
          %v3735 = vld [vmem:[#allocation2 + $0xd8] sm:$0xff]
          %v3736 = vld [vmem:[#allocation2 + $0xe0] sm:$0xff]
          %v3737 = vld [vmem:[#allocation2 + $0xe8] sm:$0xff]
          %v3738 = vld [vmem:[#allocation2 + $0xf0] sm:$0xff]
          %v3739 = vld [vmem:[#allocation2 + $0xf8] sm:$0xff]
          %v3740 = vld [vmem:[#allocation2 + $0x100] sm:$0xff]
          %v3741 = vld [vmem:[#allocation2 + $0x108] sm:$0xff]
          %v3742 = vld [vmem:[#allocation2 + $0x110] sm:$0xff]
          %v3743 = vld [vmem:[#allocation2 + $0x118] sm:$0xff]
          %v3744 = vld [vmem:[#allocation2 + $0x120] sm:$0xff]
          %v3745 = vld [vmem:[#allocation2 + $0x128] sm:$0xff]
          %v3746 = vld [vmem:[#allocation2 + $0x130] sm:$0xff]
          %v3747 = vld [vmem:[#allocation2 + $0x138] sm:$0xff]
          %v3748 = vld [vmem:[#allocation2 + $0x140] sm:$0xff]
          %v3749 = vld [vmem:[#allocation2 + $0x148] sm:$0xff]
          %v3750 = vld [vmem:[#allocation2 + $0x150] sm:$0xff]
          %v3751 = vld [vmem:[#allocation2 + $0x158] sm:$0xff]
          %v3752 = vld [vmem:[#allocation2 + $0x160] sm:$0xff]
          %v3753 = vld [vmem:[#allocation2 + $0x168] sm:$0xff]
          %v3754 = vld [vmem:[#allocation2 + $0x170] sm:$0xff]
          %v3755 = vld [vmem:[#allocation2 + $0x178] sm:$0xff]
          %v3756 = vld [vmem:[#allocation2 + $0x180] sm:$0xff]
          %v3757 = vld [vmem:[#allocation2 + $0x188] sm:$0xff]
          %v3758 = vld [vmem:[#allocation2 + $0x190] sm:$0xff]
          %v3759 = vld [vmem:[#allocation2 + $0x198] sm:$0xff]
          %v3760 = vld [vmem:[#allocation2 + $0x1a0] sm:$0xff]
          %v3761 = vld [vmem:[#allocation2 + $0x1a8] sm:$0xff]
          %v3762 = vld [vmem:[#allocation2 + $0x1b0] sm:$0xff]
          %v3763 = vld [vmem:[#allocation2 + $0x1b8] sm:$0xff]
          %v3764 = vld [vmem:[#allocation2 + $0x1c0] sm:$0xff]
          %v3765 = vld [vmem:[#allocation2 + $0x1c8] sm:$0xff]
          %v3766 = vld [vmem:[#allocation2 + $0x1d0] sm:$0xff]
          %v3767 = vld [vmem:[#allocation2 + $0x1d8] sm:$0xff]
          %v3768 = vld [vmem:[#allocation2 + $0x1e0] sm:$0xff]
          %v3769 = vld [vmem:[#allocation2 + $0x1e8] sm:$0xff]
          %v3770 = vld [vmem:[#allocation2 + $0x1f0] sm:$0xff]
          %v3771 = vld [vmem:[#allocation2 + $0x1f8] sm:$0xff]
          %v3772 = vmax.f32 %v3708, 0.0
          %v3773 = vmax.f32 %v3709, 0.0
          %v3774 = vmax.f32 %v3710, 0.0
          %v3775 = vmax.f32 %v3711, 0.0
          %v3776 = vmax.f32 %v3712, 0.0
          %v3777 = vmax.f32 %v3713, 0.0
          %v3778 = vmax.f32 %v3714, 0.0
          %v3779 = vmax.f32 %v3715, 0.0
          %v3780 = vmax.f32 %v3716, 0.0
          %v3781 = vmax.f32 %v3717, 0.0
          %v3782 = vmax.f32 %v3718, 0.0
          %v3783 = vmax.f32 %v3719, 0.0
          %v3784 = vmax.f32 %v3720, 0.0
          %v3785 = vmax.f32 %v3721, 0.0
          %v3786 = vmax.f32 %v3722, 0.0
          %v3787 = vmax.f32 %v3723, 0.0
          %v3788 = vmax.f32 %v3724, 0.0
          %v3789 = vmax.f32 %v3725, 0.0
          %v3790 = vmax.f32 %v3726, 0.0
          %v3791 = vmax.f32 %v3727, 0.0
          %v3792 = vmax.f32 %v3728, 0.0
          %v3793 = vmax.f32 %v3729, 0.0
          %v3794 = vmax.f32 %v3730, 0.0
          %v3795 = vmax.f32 %v3731, 0.0
          %v3796 = vmax.f32 %v3732, 0.0
          %v3797 = vmax.f32 %v3733, 0.0
          %v3798 = vmax.f32 %v3734, 0.0
          %v3799 = vmax.f32 %v3735, 0.0
          %v3800 = vmax.f32 %v3736, 0.0
          %v3801 = vmax.f32 %v3737, 0.0
          %v3802 = vmax.f32 %v3738, 0.0
          %v3803 = vmax.f32 %v3739, 0.0
          %v3804 = vmax.f32 %v3740, 0.0
          %v3805 = vmax.f32 %v3741, 0.0
          %v3806 = vmax.f32 %v3742, 0.0
          %v3807 = vmax.f32 %v3743, 0.0
          %v3808 = vmax.f32 %v3744, 0.0
          %v3809 = vmax.f32 %v3745, 0.0
          %v3810 = vmax.f32 %v3746, 0.0
          %v3811 = vmax.f32 %v3747, 0.0
          %v3812 = vmax.f32 %v3748, 0.0
          %v3813 = vmax.f32 %v3749, 0.0
          %v3814 = vmax.f32 %v3750, 0.0
          %v3815 = vmax.f32 %v3751, 0.0
          %v3816 = vmax.f32 %v3752, 0.0
          %v3817 = vmax.f32 %v3753, 0.0
          %v3818 = vmax.f32 %v3754, 0.0
          %v3819 = vmax.f32 %v3755, 0.0
          %v3820 = vmax.f32 %v3756, 0.0
          %v3821 = vmax.f32 %v3757, 0.0
          %v3822 = vmax.f32 %v3758, 0.0
          %v3823 = vmax.f32 %v3759, 0.0
          %v3824 = vmax.f32 %v3760, 0.0
          %v3825 = vmax.f32 %v3761, 0.0
          %v3826 = vmax.f32 %v3762, 0.0
          %v3827 = vmax.f32 %v3763, 0.0
          %v3828 = vmax.f32 %v3764, 0.0
          %v3829 = vmax.f32 %v3765, 0.0
          %v3830 = vmax.f32 %v3766, 0.0
          %v3831 = vmax.f32 %v3767, 0.0
          %v3832 = vmax.f32 %v3768, 0.0
          %v3833 = vmax.f32 %v3769, 0.0
          %v3834 = vmax.f32 %v3770, 0.0
          %v3835 = vmax.f32 %v3771, 0.0
          %v3836 = vpack.c.bf16 %v3774, %v3772
          %v3837 = vpack.c.bf16 %v3775, %v3773
          %v3838 = vpack.c.bf16 %v3778, %v3776
          %v3839 = vpack.c.bf16 %v3779, %v3777
          %v3840 = vpack.c.bf16 %v3782, %v3780
          %v3841 = vpack.c.bf16 %v3783, %v3781
          %v3842 = vpack.c.bf16 %v3786, %v3784
          %v3843 = vpack.c.bf16 %v3787, %v3785
          %v3844 = vpack.c.bf16 %v3790, %v3788
          %v3845 = vpack.c.bf16 %v3791, %v3789
          %v3846 = vpack.c.bf16 %v3794, %v3792
          %v3847 = vpack.c.bf16 %v3795, %v3793
          %v3848 = vpack.c.bf16 %v3798, %v3796
          %v3849 = vpack.c.bf16 %v3799, %v3797
          %v3850 = vpack.c.bf16 %v3802, %v3800
          %v3851 = vpack.c.bf16 %v3803, %v3801
          %v3852 = vpack.c.bf16 %v3806, %v3804
          %v3853 = vpack.c.bf16 %v3807, %v3805
          %v3854 = vpack.c.bf16 %v3810, %v3808
          %v3855 = vpack.c.bf16 %v3811, %v3809
          %v3856 = vpack.c.bf16 %v3814, %v3812
          %v3857 = vpack.c.bf16 %v3815, %v3813
          %v3858 = vpack.c.bf16 %v3818, %v3816
          %v3859 = vpack.c.bf16 %v3819, %v3817
          %v3860 = vpack.c.bf16 %v3822, %v3820
          %v3861 = vpack.c.bf16 %v3823, %v3821
          %v3862 = vpack.c.bf16 %v3826, %v3824
          %v3863 = vpack.c.bf16 %v3827, %v3825
          %v3864 = vpack.c.bf16 %v3830, %v3828
          %v3865 = vpack.c.bf16 %v3831, %v3829
          %v3866 = vpack.c.bf16 %v3834, %v3832
          %v3867 = vpack.c.bf16 %v3835, %v3833
          %v3868 = vld [vmem:[#allocation9] sm:$0xff]
          %v3869 = vld [vmem:[#allocation9 + $0x8] sm:$0xff]
          %v3870 = vld [vmem:[#allocation9 + $0x10] sm:$0xff]
          %v3871 = vld [vmem:[#allocation9 + $0x18] sm:$0xff]
          %v3872 = vld [vmem:[#allocation9 + $0x20] sm:$0xff]
          %v3873 = vld [vmem:[#allocation9 + $0x28] sm:$0xff]
          %v3874 = vld [vmem:[#allocation9 + $0x30] sm:$0xff]
          %v3875 = vld [vmem:[#allocation9 + $0x38] sm:$0xff]
          %v3876 = vld [vmem:[#allocation9 + $0x40] sm:$0xff]
          %v3877 = vld [vmem:[#allocation9 + $0x48] sm:$0xff]
          %v3878 = vld [vmem:[#allocation9 + $0x50] sm:$0xff]
          %v3879 = vld [vmem:[#allocation9 + $0x58] sm:$0xff]
          %v3880 = vld [vmem:[#allocation9 + $0x60] sm:$0xff]
          %v3881 = vld [vmem:[#allocation9 + $0x68] sm:$0xff]
          %v3882 = vld [vmem:[#allocation9 + $0x70] sm:$0xff]
          %v3883 = vld [vmem:[#allocation9 + $0x78] sm:$0xff]
          %v3884 = vld [vmem:[#allocation9 + $0x80] sm:$0xff]
          %v3885 = vld [vmem:[#allocation9 + $0x88] sm:$0xff]
          %v3886 = vld [vmem:[#allocation9 + $0x90] sm:$0xff]
          %v3887 = vld [vmem:[#allocation9 + $0x98] sm:$0xff]
          %v3888 = vld [vmem:[#allocation9 + $0xa0] sm:$0xff]
          %v3889 = vld [vmem:[#allocation9 + $0xa8] sm:$0xff]
          %v3890 = vld [vmem:[#allocation9 + $0xb0] sm:$0xff]
          %v3891 = vld [vmem:[#allocation9 + $0xb8] sm:$0xff]
          %v3892 = vld [vmem:[#allocation9 + $0xc0] sm:$0xff]
          %v3893 = vld [vmem:[#allocation9 + $0xc8] sm:$0xff]
          %v3894 = vld [vmem:[#allocation9 + $0xd0] sm:$0xff]
          %v3895 = vld [vmem:[#allocation9 + $0xd8] sm:$0xff]
          %v3896 = vld [vmem:[#allocation9 + $0xe0] sm:$0xff]
          %v3897 = vld [vmem:[#allocation9 + $0xe8] sm:$0xff]
          %v3898 = vld [vmem:[#allocation9 + $0xf0] sm:$0xff]
          %v3899 = vld [vmem:[#allocation9 + $0xf8] sm:$0xff]
          %v3900 = vld [vmem:[#allocation11] sm:$0x3]
          %v3902 = vperm.slane %v3900, 0
          %v3903 = vperm.slane %v3900, 1
          %v3938 = vunpack.c.l.b16 %v3868
          %v3939 = vunpack.c.h.b16 %v3868
          %v3940 = vunpack.c.l.b16 %v3869
          %v3941 = vunpack.c.h.b16 %v3869
          %v3942 = vunpack.c.l.b16 %v3870
          %v3943 = vunpack.c.h.b16 %v3870
          %v3944 = vunpack.c.l.b16 %v3871
          %v3945 = vunpack.c.h.b16 %v3871
          %v3946 = vunpack.c.l.b16 %v3872
          %v3947 = vunpack.c.h.b16 %v3872
          %v3948 = vunpack.c.l.b16 %v3873
          %v3949 = vunpack.c.h.b16 %v3873
          %v3950 = vunpack.c.l.b16 %v3874
          %v3951 = vunpack.c.h.b16 %v3874
          %v3952 = vunpack.c.l.b16 %v3875
          %v3953 = vunpack.c.h.b16 %v3875
          %v3954 = vunpack.c.l.b16 %v3876
          %v3955 = vunpack.c.h.b16 %v3876
          %v3956 = vunpack.c.l.b16 %v3877
          %v3957 = vunpack.c.h.b16 %v3877
          %v3958 = vunpack.c.l.b16 %v3878
          %v3959 = vunpack.c.h.b16 %v3878
          %v3960 = vunpack.c.l.b16 %v3879
          %v3961 = vunpack.c.h.b16 %v3879
          %v3962 = vunpack.c.l.b16 %v3880
          %v3963 = vunpack.c.h.b16 %v3880
          %v3964 = vunpack.c.l.b16 %v3881
          %v3965 = vunpack.c.h.b16 %v3881
          %v3966 = vunpack.c.l.b16 %v3882
          %v3967 = vunpack.c.h.b16 %v3882
          %v3968 = vunpack.c.l.b16 %v3883
          %v3969 = vunpack.c.h.b16 %v3883
          %v3970 = vunpack.c.l.b16 %v3884
          %v3971 = vunpack.c.h.b16 %v3884
          %v3972 = vunpack.c.l.b16 %v3885
          %v3973 = vunpack.c.h.b16 %v3885
          %v3974 = vunpack.c.l.b16 %v3886
          %v3975 = vunpack.c.h.b16 %v3886
          %v3976 = vunpack.c.l.b16 %v3887
          %v3977 = vunpack.c.h.b16 %v3887
          %v3978 = vunpack.c.l.b16 %v3888
          %v3979 = vunpack.c.h.b16 %v3888
          %v3980 = vunpack.c.l.b16 %v3889
          %v3981 = vunpack.c.h.b16 %v3889
          %v3982 = vunpack.c.l.b16 %v3890
          %v3983 = vunpack.c.h.b16 %v3890
          %v3984 = vunpack.c.l.b16 %v3891
          %v3985 = vunpack.c.h.b16 %v3891
          %v3986 = vunpack.c.l.b16 %v3892
          %v3987 = vunpack.c.h.b16 %v3892
          %v3988 = vunpack.c.l.b16 %v3893
          %v3989 = vunpack.c.h.b16 %v3893
          %v3990 = vunpack.c.l.b16 %v3894
          %v3991 = vunpack.c.h.b16 %v3894
          %v3992 = vunpack.c.l.b16 %v3895
          %v3993 = vunpack.c.h.b16 %v3895
          %v3994 = vunpack.c.l.b16 %v3896
          %v3995 = vunpack.c.h.b16 %v3896
          %v3996 = vunpack.c.l.b16 %v3897
          %v3997 = vunpack.c.h.b16 %v3897
          %v3998 = vunpack.c.l.b16 %v3898
          %v3999 = vunpack.c.h.b16 %v3898
          %v4000 = vunpack.c.l.b16 %v3899
          %v4001 = vunpack.c.h.b16 %v3899
          %v4002 = vpack.c.b16 %v3940, %v3938
          %v4003 = vpack.c.b16 %v3941, %v3939
          %v4004 = vpack.c.b16 %v3944, %v3942
          %v4005 = vpack.c.b16 %v3945, %v3943
          %v4006 = vpack.c.b16 %v3948, %v3946
          %v4007 = vpack.c.b16 %v3949, %v3947
          %v4008 = vpack.c.b16 %v3952, %v3950
          %v4009 = vpack.c.b16 %v3953, %v3951
          %v4010 = vpack.c.b16 %v3956, %v3954
          %v4011 = vpack.c.b16 %v3957, %v3955
          %v4012 = vpack.c.b16 %v3960, %v3958
          %v4013 = vpack.c.b16 %v3961, %v3959
          %v4014 = vpack.c.b16 %v3964, %v3962
          %v4015 = vpack.c.b16 %v3965, %v3963
          %v4016 = vpack.c.b16 %v3968, %v3966
          %v4017 = vpack.c.b16 %v3969, %v3967
          %v4018 = vpack.c.b16 %v3972, %v3970
          %v4019 = vpack.c.b16 %v3973, %v3971
          %v4020 = vpack.c.b16 %v3976, %v3974
          %v4021 = vpack.c.b16 %v3977, %v3975
          %v4022 = vpack.c.b16 %v3980, %v3978
          %v4023 = vpack.c.b16 %v3981, %v3979
          %v4024 = vpack.c.b16 %v3984, %v3982
          %v4025 = vpack.c.b16 %v3985, %v3983
          %v4026 = vpack.c.b16 %v3988, %v3986
          %v4027 = vpack.c.b16 %v3989, %v3987
          %v4028 = vpack.c.b16 %v3992, %v3990
          %v4029 = vpack.c.b16 %v3993, %v3991
          %v4030 = vpack.c.b16 %v3996, %v3994
          %v4031 = vpack.c.b16 %v3997, %v3995
          %v4032 = vpack.c.b16 %v4000, %v3998
          %v4033 = vpack.c.b16 %v4001, %v3999
          %4066 = vmatpush.bf16.msra.mxu0 %v4016
          %4067 = vmatpush.bf16.msra.mxu0 %v4014
          %4068 = vmatpush.bf16.msra.mxu0 %v4012
          %4069 = vmatpush.bf16.msra.mxu0 %v4010
          %4070 = vmatpush.bf16.msra.mxu0 %v4008
          %4071 = vmatpush.bf16.msra.mxu0 %v4006
          %4072 = vmatpush.bf16.msra.mxu0 %v4004
          %4073 = vmatpush.bf16.msra.mxu0 %v4002
          %4074 = vmatmul.bf16.gmra.mxu0 %v3836
          %v4075 = vpop.f32.mrf.mxu0
          %v4076 = vadd.f32 %v3902, %v4075
          %v4077 = vpop.f32.mrf.mxu0
          %v4078 = vadd.f32 %v3902, %v4077
          %4079 = vmatmul.bf16.gmra.mxu0 %v3838
          %v4080 = vpop.f32.mrf.mxu0
          %v4081 = vadd.f32 %v3902, %v4080
          %v4082 = vpop.f32.mrf.mxu0
          %v4083 = vadd.f32 %v3902, %v4082
          %4084 = vmatmul.bf16.gmra.mxu0 %v3840
          %v4085 = vpop.f32.mrf.mxu0
          %v4086 = vadd.f32 %v3902, %v4085
          %v4087 = vpop.f32.mrf.mxu0
          %v4088 = vadd.f32 %v3902, %v4087
          %4089 = vmatmul.bf16.gmra.mxu0 %v3842
          %v4090 = vpop.f32.mrf.mxu0
          %v4091 = vadd.f32 %v3902, %v4090
          %v4092 = vpop.f32.mrf.mxu0
          %v4093 = vadd.f32 %v3902, %v4092
          %4094 = vmatmul.bf16.gmra.mxu0 %v3844
          %v4095 = vpop.f32.mrf.mxu0
          %v4096 = vadd.f32 %v3902, %v4095
          %v4097 = vpop.f32.mrf.mxu0
          %v4098 = vadd.f32 %v3902, %v4097
          %4099 = vmatmul.bf16.gmra.mxu0 %v3846
          %v4100 = vpop.f32.mrf.mxu0
          %v4101 = vadd.f32 %v3902, %v4100
          %v4102 = vpop.f32.mrf.mxu0
          %v4103 = vadd.f32 %v3902, %v4102
          %4104 = vmatmul.bf16.gmra.mxu0 %v3848
          %v4105 = vpop.f32.mrf.mxu0
          %v4106 = vadd.f32 %v3902, %v4105
          %v4107 = vpop.f32.mrf.mxu0
          %v4108 = vadd.f32 %v3902, %v4107
          %4109 = vmatmul.bf16.gmra.mxu0 %v3850
          %v4110 = vpop.f32.mrf.mxu0
          %v4111 = vadd.f32 %v3902, %v4110
          %v4112 = vpop.f32.mrf.mxu0
          %v4113 = vadd.f32 %v3902, %v4112
          %4114 = vmatmul.bf16.gmra.mxu0 %v3852
          %v4115 = vpop.f32.mrf.mxu0
          %v4116 = vadd.f32 %v3902, %v4115
          %v4117 = vpop.f32.mrf.mxu0
          %v4118 = vadd.f32 %v3902, %v4117
          %4119 = vmatmul.bf16.gmra.mxu0 %v3854
          %v4120 = vpop.f32.mrf.mxu0
          %v4121 = vadd.f32 %v3902, %v4120
          %v4122 = vpop.f32.mrf.mxu0
          %v4123 = vadd.f32 %v3902, %v4122
          %4124 = vmatmul.bf16.gmra.mxu0 %v3856
          %v4125 = vpop.f32.mrf.mxu0
          %v4126 = vadd.f32 %v3902, %v4125
          %v4127 = vpop.f32.mrf.mxu0
          %v4128 = vadd.f32 %v3902, %v4127
          %4129 = vmatmul.bf16.gmra.mxu0 %v3858
          %v4130 = vpop.f32.mrf.mxu0
          %v4131 = vadd.f32 %v3902, %v4130
          %v4132 = vpop.f32.mrf.mxu0
          %v4133 = vadd.f32 %v3902, %v4132
          %4134 = vmatmul.bf16.gmra.mxu0 %v3860
          %v4135 = vpop.f32.mrf.mxu0
          %v4136 = vadd.f32 %v3902, %v4135
          %v4137 = vpop.f32.mrf.mxu0
          %v4138 = vadd.f32 %v3902, %v4137
          %4139 = vmatmul.bf16.gmra.mxu0 %v3862
          %v4140 = vpop.f32.mrf.mxu0
          %v4141 = vadd.f32 %v3902, %v4140
          %v4142 = vpop.f32.mrf.mxu0
          %v4143 = vadd.f32 %v3902, %v4142
          %4144 = vmatmul.bf16.gmra.mxu0 %v3864
          %v4145 = vpop.f32.mrf.mxu0
          %v4146 = vadd.f32 %v3902, %v4145
          %v4147 = vpop.f32.mrf.mxu0
          %v4148 = vadd.f32 %v3902, %v4147
          %4149 = vmatmul.bf16.gmra.mxu0 %v3866
          %v4150 = vpop.f32.mrf.mxu0
          %v4151 = vadd.f32 %v3902, %v4150
          %v4152 = vpop.f32.mrf.mxu0
          %v4153 = vadd.f32 %v3902, %v4152
          %4154 = vdwg.mxu0
          %4155 = vmatpush.bf16.msra.mxu0 %v4032
          %4156 = vmatpush.bf16.msra.mxu0 %v4030
          %4157 = vmatpush.bf16.msra.mxu0 %v4028
          %4158 = vmatpush.bf16.msra.mxu0 %v4026
          %4159 = vmatpush.bf16.msra.mxu0 %v4024
          %4160 = vmatpush.bf16.msra.mxu0 %v4022
          %4161 = vmatpush.bf16.msra.mxu0 %v4020
          %4162 = vmatpush.bf16.msra.mxu0 %v4018
          %4163 = vmatmul.bf16.gmra.mxu0 %v3837
          %v4164 = vpop.f32.mrf.mxu0
          %v4165 = vadd.f32 %v4076, %v4164
          %v4166 = vpop.f32.mrf.mxu0
          %v4167 = vadd.f32 %v4078, %v4166
          %4168 = vmatmul.bf16.gmra.mxu0 %v3839
          %v4169 = vpop.f32.mrf.mxu0
          %v4170 = vadd.f32 %v4081, %v4169
          %v4171 = vpop.f32.mrf.mxu0
          %v4172 = vadd.f32 %v4083, %v4171
          %4173 = vmatmul.bf16.gmra.mxu0 %v3841
          %v4174 = vpop.f32.mrf.mxu0
          %v4175 = vadd.f32 %v4086, %v4174
          %v4176 = vpop.f32.mrf.mxu0
          %v4177 = vadd.f32 %v4088, %v4176
          %4178 = vmatmul.bf16.gmra.mxu0 %v3843
          %v4179 = vpop.f32.mrf.mxu0
          %v4180 = vadd.f32 %v4091, %v4179
          %v4181 = vpop.f32.mrf.mxu0
          %v4182 = vadd.f32 %v4093, %v4181
          %4183 = vmatmul.bf16.gmra.mxu0 %v3845
          %v4184 = vpop.f32.mrf.mxu0
          %v4185 = vadd.f32 %v4096, %v4184
          %v4186 = vpop.f32.mrf.mxu0
          %v4187 = vadd.f32 %v4098, %v4186
          %4188 = vmatmul.bf16.gmra.mxu0 %v3847
          %v4189 = vpop.f32.mrf.mxu0
          %v4190 = vadd.f32 %v4101, %v4189
          %v4191 = vpop.f32.mrf.mxu0
          %v4192 = vadd.f32 %v4103, %v4191
          %4193 = vmatmul.bf16.gmra.mxu0 %v3849
          %v4194 = vpop.f32.mrf.mxu0
          %v4195 = vadd.f32 %v4106, %v4194
          %v4196 = vpop.f32.mrf.mxu0
          %v4197 = vadd.f32 %v4108, %v4196
          %4198 = vmatmul.bf16.gmra.mxu0 %v3851
          %v4199 = vpop.f32.mrf.mxu0
          %v4200 = vadd.f32 %v4111, %v4199
          %v4201 = vpop.f32.mrf.mxu0
          %v4202 = vadd.f32 %v4113, %v4201
          %4203 = vmatmul.bf16.gmra.mxu0 %v3853
          %v4204 = vpop.f32.mrf.mxu0
          %v4205 = vadd.f32 %v4116, %v4204
          %v4206 = vpop.f32.mrf.mxu0
          %v4207 = vadd.f32 %v4118, %v4206
          %4208 = vmatmul.bf16.gmra.mxu0 %v3855
          %v4209 = vpop.f32.mrf.mxu0
          %v4210 = vadd.f32 %v4121, %v4209
          %v4211 = vpop.f32.mrf.mxu0
          %v4212 = vadd.f32 %v4123, %v4211
          %4213 = vmatmul.bf16.gmra.mxu0 %v3857
          %v4214 = vpop.f32.mrf.mxu0
          %v4215 = vadd.f32 %v4126, %v4214
          %v4216 = vpop.f32.mrf.mxu0
          %v4217 = vadd.f32 %v4128, %v4216
          %4218 = vmatmul.bf16.gmra.mxu0 %v3859
          %v4219 = vpop.f32.mrf.mxu0
          %v4220 = vadd.f32 %v4131, %v4219
          %v4221 = vpop.f32.mrf.mxu0
          %v4222 = vadd.f32 %v4133, %v4221
          %4223 = vmatmul.bf16.gmra.mxu0 %v3861
          %v4224 = vpop.f32.mrf.mxu0
          %v4225 = vadd.f32 %v4136, %v4224
          %v4226 = vpop.f32.mrf.mxu0
          %v4227 = vadd.f32 %v4138, %v4226
          %4228 = vmatmul.bf16.gmra.mxu0 %v3863
          %v4229 = vpop.f32.mrf.mxu0
          %v4230 = vadd.f32 %v4141, %v4229
          %v4231 = vpop.f32.mrf.mxu0
          %v4232 = vadd.f32 %v4143, %v4231
          %4233 = vmatmul.bf16.gmra.mxu0 %v3865
          %v4234 = vpop.f32.mrf.mxu0
          %v4235 = vadd.f32 %v4146, %v4234
          %v4236 = vpop.f32.mrf.mxu0
          %v4237 = vadd.f32 %v4148, %v4236
          %4238 = vmatmul.bf16.gmra.mxu0 %v3867
          %v4239 = vpop.f32.mrf.mxu0
          %v4240 = vadd.f32 %v4151, %v4239
          %v4241 = vpop.f32.mrf.mxu0
          %v4242 = vadd.f32 %v4153, %v4241
          %4243 = vdwg.mxu0
          %4244 = vmatpush.bf16.msra.mxu0 %v4017
          %4245 = vmatpush.bf16.msra.mxu0 %v4015
          %4246 = vmatpush.bf16.msra.mxu0 %v4013
          %4247 = vmatpush.bf16.msra.mxu0 %v4011
          %4248 = vmatpush.bf16.msra.mxu0 %v4009
          %4249 = vmatpush.bf16.msra.mxu0 %v4007
          %4250 = vmatpush.bf16.msra.mxu0 %v4005
          %4251 = vmatpush.bf16.msra.mxu0 %v4003
          %4252 = vmatmul.bf16.gmra.mxu0 %v3836
          %v4253 = vpop.f32.mrf.mxu0
          %v4254 = vadd.f32 %v3903, %v4253
          %v4255 = vpop.f32.mrf.mxu0
          %v4256 = vadd.f32 %v3903, %v4255
          %4257 = vmatmul.bf16.gmra.mxu0 %v3838
          %v4258 = vpop.f32.mrf.mxu0
          %v4259 = vadd.f32 %v3903, %v4258
          %v4260 = vpop.f32.mrf.mxu0
          %v4261 = vadd.f32 %v3903, %v4260
          %4262 = vmatmul.bf16.gmra.mxu0 %v3840
          %v4263 = vpop.f32.mrf.mxu0
          %v4264 = vadd.f32 %v3903, %v4263
          %v4265 = vpop.f32.mrf.mxu0
          %v4266 = vadd.f32 %v3903, %v4265
          %4267 = vmatmul.bf16.gmra.mxu0 %v3842
          %v4268 = vpop.f32.mrf.mxu0
          %v4269 = vadd.f32 %v3903, %v4268
          %v4270 = vpop.f32.mrf.mxu0
          %v4271 = vadd.f32 %v3903, %v4270
          %4272 = vmatmul.bf16.gmra.mxu0 %v3844
          %v4273 = vpop.f32.mrf.mxu0
          %v4274 = vadd.f32 %v3903, %v4273
          %v4275 = vpop.f32.mrf.mxu0
          %v4276 = vadd.f32 %v3903, %v4275
          %4277 = vmatmul.bf16.gmra.mxu0 %v3846
          %v4278 = vpop.f32.mrf.mxu0
          %v4279 = vadd.f32 %v3903, %v4278
          %v4280 = vpop.f32.mrf.mxu0
          %v4281 = vadd.f32 %v3903, %v4280
          %4282 = vmatmul.bf16.gmra.mxu0 %v3848
          %v4283 = vpop.f32.mrf.mxu0
          %v4284 = vadd.f32 %v3903, %v4283
          %v4285 = vpop.f32.mrf.mxu0
          %v4286 = vadd.f32 %v3903, %v4285
          %4287 = vmatmul.bf16.gmra.mxu0 %v3850
          %v4288 = vpop.f32.mrf.mxu0
          %v4289 = vadd.f32 %v3903, %v4288
          %v4290 = vpop.f32.mrf.mxu0
          %v4291 = vadd.f32 %v3903, %v4290
          %4292 = vmatmul.bf16.gmra.mxu0 %v3852
          %v4293 = vpop.f32.mrf.mxu0
          %v4294 = vadd.f32 %v3903, %v4293
          %v4295 = vpop.f32.mrf.mxu0
          %v4296 = vadd.f32 %v3903, %v4295
          %4297 = vmatmul.bf16.gmra.mxu0 %v3854
          %v4298 = vpop.f32.mrf.mxu0
          %v4299 = vadd.f32 %v3903, %v4298
          %v4300 = vpop.f32.mrf.mxu0
          %v4301 = vadd.f32 %v3903, %v4300
          %4302 = vmatmul.bf16.gmra.mxu0 %v3856
          %v4303 = vpop.f32.mrf.mxu0
          %v4304 = vadd.f32 %v3903, %v4303
          %v4305 = vpop.f32.mrf.mxu0
          %v4306 = vadd.f32 %v3903, %v4305
          %4307 = vmatmul.bf16.gmra.mxu0 %v3858
          %v4308 = vpop.f32.mrf.mxu0
          %v4309 = vadd.f32 %v3903, %v4308
          %v4310 = vpop.f32.mrf.mxu0
          %v4311 = vadd.f32 %v3903, %v4310
          %4312 = vmatmul.bf16.gmra.mxu0 %v3860
          %v4313 = vpop.f32.mrf.mxu0
          %v4314 = vadd.f32 %v3903, %v4313
          %v4315 = vpop.f32.mrf.mxu0
          %v4316 = vadd.f32 %v3903, %v4315
          %4317 = vmatmul.bf16.gmra.mxu0 %v3862
          %v4318 = vpop.f32.mrf.mxu0
          %v4319 = vadd.f32 %v3903, %v4318
          %v4320 = vpop.f32.mrf.mxu0
          %v4321 = vadd.f32 %v3903, %v4320
          %4322 = vmatmul.bf16.gmra.mxu0 %v3864
          %v4323 = vpop.f32.mrf.mxu0
          %v4324 = vadd.f32 %v3903, %v4323
          %v4325 = vpop.f32.mrf.mxu0
          %v4326 = vadd.f32 %v3903, %v4325
          %4327 = vmatmul.bf16.gmra.mxu0 %v3866
          %v4328 = vpop.f32.mrf.mxu0
          %v4329 = vadd.f32 %v3903, %v4328
          %v4330 = vpop.f32.mrf.mxu0
          %v4331 = vadd.f32 %v3903, %v4330
          %4332 = vdwg.mxu0
          %4333 = vmatpush.bf16.msra.mxu0 %v4033
          %4334 = vmatpush.bf16.msra.mxu0 %v4031
          %4335 = vmatpush.bf16.msra.mxu0 %v4029
          %4336 = vmatpush.bf16.msra.mxu0 %v4027
          %4337 = vmatpush.bf16.msra.mxu0 %v4025
          %4338 = vmatpush.bf16.msra.mxu0 %v4023
          %4339 = vmatpush.bf16.msra.mxu0 %v4021
          %4340 = vmatpush.bf16.msra.mxu0 %v4019
          %4341 = vmatmul.bf16.gmra.mxu0 %v3837
          %v4342 = vpop.f32.mrf.mxu0
          %v4343 = vadd.f32 %v4254, %v4342
          %v4344 = vpop.f32.mrf.mxu0
          %v4345 = vadd.f32 %v4256, %v4344
          %4346 = vmatmul.bf16.gmra.mxu0 %v3839
          %v4347 = vpop.f32.mrf.mxu0
          %v4348 = vadd.f32 %v4259, %v4347
          %v4349 = vpop.f32.mrf.mxu0
          %v4350 = vadd.f32 %v4261, %v4349
          %4351 = vmatmul.bf16.gmra.mxu0 %v3841
          %v4352 = vpop.f32.mrf.mxu0
          %v4353 = vadd.f32 %v4264, %v4352
          %v4354 = vpop.f32.mrf.mxu0
          %v4355 = vadd.f32 %v4266, %v4354
          %4356 = vmatmul.bf16.gmra.mxu0 %v3843
          %v4357 = vpop.f32.mrf.mxu0
          %v4358 = vadd.f32 %v4269, %v4357
          %v4359 = vpop.f32.mrf.mxu0
          %v4360 = vadd.f32 %v4271, %v4359
          %4361 = vmatmul.bf16.gmra.mxu0 %v3845
          %v4362 = vpop.f32.mrf.mxu0
          %v4363 = vadd.f32 %v4274, %v4362
          %v4364 = vpop.f32.mrf.mxu0
          %v4365 = vadd.f32 %v4276, %v4364
          %4366 = vmatmul.bf16.gmra.mxu0 %v3847
          %v4367 = vpop.f32.mrf.mxu0
          %v4368 = vadd.f32 %v4279, %v4367
          %v4369 = vpop.f32.mrf.mxu0
          %v4370 = vadd.f32 %v4281, %v4369
          %4371 = vmatmul.bf16.gmra.mxu0 %v3849
          %v4372 = vpop.f32.mrf.mxu0
          %v4373 = vadd.f32 %v4284, %v4372
          %v4374 = vpop.f32.mrf.mxu0
          %v4375 = vadd.f32 %v4286, %v4374
          %4376 = vmatmul.bf16.gmra.mxu0 %v3851
          %v4377 = vpop.f32.mrf.mxu0
          %v4378 = vadd.f32 %v4289, %v4377
          %v4379 = vpop.f32.mrf.mxu0
          %v4380 = vadd.f32 %v4291, %v4379
          %4381 = vmatmul.bf16.gmra.mxu0 %v3853
          %v4382 = vpop.f32.mrf.mxu0
          %v4383 = vadd.f32 %v4294, %v4382
          %v4384 = vpop.f32.mrf.mxu0
          %v4385 = vadd.f32 %v4296, %v4384
          %4386 = vmatmul.bf16.gmra.mxu0 %v3855
          %v4387 = vpop.f32.mrf.mxu0
          %v4388 = vadd.f32 %v4299, %v4387
          %v4389 = vpop.f32.mrf.mxu0
          %v4390 = vadd.f32 %v4301, %v4389
          %4391 = vmatmul.bf16.gmra.mxu0 %v3857
          %v4392 = vpop.f32.mrf.mxu0
          %v4393 = vadd.f32 %v4304, %v4392
          %v4394 = vpop.f32.mrf.mxu0
          %v4395 = vadd.f32 %v4306, %v4394
          %4396 = vmatmul.bf16.gmra.mxu0 %v3859
          %v4397 = vpop.f32.mrf.mxu0
          %v4398 = vadd.f32 %v4309, %v4397
          %v4399 = vpop.f32.mrf.mxu0
          %v4400 = vadd.f32 %v4311, %v4399
          %4401 = vmatmul.bf16.gmra.mxu0 %v3861
          %v4402 = vpop.f32.mrf.mxu0
          %v4403 = vadd.f32 %v4314, %v4402
          %v4404 = vpop.f32.mrf.mxu0
          %v4405 = vadd.f32 %v4316, %v4404
          %4406 = vmatmul.bf16.gmra.mxu0 %v3863
          %v4407 = vpop.f32.mrf.mxu0
          %v4408 = vadd.f32 %v4319, %v4407
          %v4409 = vpop.f32.mrf.mxu0
          %v4410 = vadd.f32 %v4321, %v4409
          %4411 = vmatmul.bf16.gmra.mxu0 %v3865
          %v4412 = vpop.f32.mrf.mxu0
          %v4413 = vadd.f32 %v4324, %v4412
          %v4414 = vpop.f32.mrf.mxu0
          %v4415 = vadd.f32 %v4326, %v4414
          %4416 = vmatmul.bf16.gmra.mxu0 %v3867
          %v4417 = vpop.f32.mrf.mxu0
          %v4418 = vadd.f32 %v4329, %v4417
          %v4419 = vpop.f32.mrf.mxu0
          %v4420 = vadd.f32 %v4331, %v4419
          %4421 = vdwg.mxu0
          %v4422 = vmax.f32 %v4165, 0.0
          %v4423 = vmax.f32 %v4343, 0.0
          %v4424 = vmax.f32 %v4167, 0.0
          %v4425 = vmax.f32 %v4345, 0.0
          %v4426 = vmax.f32 %v4170, 0.0
          %v4427 = vmax.f32 %v4348, 0.0
          %v4428 = vmax.f32 %v4172, 0.0
          %v4429 = vmax.f32 %v4350, 0.0
          %v4430 = vmax.f32 %v4175, 0.0
          %v4431 = vmax.f32 %v4353, 0.0
          %v4432 = vmax.f32 %v4177, 0.0
          %v4433 = vmax.f32 %v4355, 0.0
          %v4434 = vmax.f32 %v4180, 0.0
          %v4435 = vmax.f32 %v4358, 0.0
          %v4436 = vmax.f32 %v4182, 0.0
          %v4437 = vmax.f32 %v4360, 0.0
          %v4438 = vmax.f32 %v4185, 0.0
          %v4439 = vmax.f32 %v4363, 0.0
          %v4440 = vmax.f32 %v4187, 0.0
          %v4441 = vmax.f32 %v4365, 0.0
          %v4442 = vmax.f32 %v4190, 0.0
          %v4443 = vmax.f32 %v4368, 0.0
          %v4444 = vmax.f32 %v4192, 0.0
          %v4445 = vmax.f32 %v4370, 0.0
          %v4446 = vmax.f32 %v4195, 0.0
          %v4447 = vmax.f32 %v4373, 0.0
          %v4448 = vmax.f32 %v4197, 0.0
          %v4449 = vmax.f32 %v4375, 0.0
          %v4450 = vmax.f32 %v4200, 0.0
          %v4451 = vmax.f32 %v4378, 0.0
          %v4452 = vmax.f32 %v4202, 0.0
          %v4453 = vmax.f32 %v4380, 0.0
          %v4454 = vmax.f32 %v4205, 0.0
          %v4455 = vmax.f32 %v4383, 0.0
          %v4456 = vmax.f32 %v4207, 0.0
          %v4457 = vmax.f32 %v4385, 0.0
          %v4458 = vmax.f32 %v4210, 0.0
          %v4459 = vmax.f32 %v4388, 0.0
          %v4460 = vmax.f32 %v4212, 0.0
          %v4461 = vmax.f32 %v4390, 0.0
          %v4462 = vmax.f32 %v4215, 0.0
          %v4463 = vmax.f32 %v4393, 0.0
          %v4464 = vmax.f32 %v4217, 0.0
          %v4465 = vmax.f32 %v4395, 0.0
          %v4466 = vmax.f32 %v4220, 0.0
          %v4467 = vmax.f32 %v4398, 0.0
          %v4468 = vmax.f32 %v4222, 0.0
          %v4469 = vmax.f32 %v4400, 0.0
          %v4470 = vmax.f32 %v4225, 0.0
          %v4471 = vmax.f32 %v4403, 0.0
          %v4472 = vmax.f32 %v4227, 0.0
          %v4473 = vmax.f32 %v4405, 0.0
          %v4474 = vmax.f32 %v4230, 0.0
          %v4475 = vmax.f32 %v4408, 0.0
          %v4476 = vmax.f32 %v4232, 0.0
          %v4477 = vmax.f32 %v4410, 0.0
          %v4478 = vmax.f32 %v4235, 0.0
          %v4479 = vmax.f32 %v4413, 0.0
          %v4480 = vmax.f32 %v4237, 0.0
          %v4481 = vmax.f32 %v4415, 0.0
          %v4482 = vmax.f32 %v4240, 0.0
          %v4483 = vmax.f32 %v4418, 0.0
          %v4484 = vmax.f32 %v4242, 0.0
          %v4485 = vmax.f32 %v4420, 0.0
          %v4486 = vpack.c.bf16 %v4423, %v4422
          %v4487 = vpack.c.bf16 %v4425, %v4424
          %v4488 = vpack.c.bf16 %v4427, %v4426
          %v4489 = vpack.c.bf16 %v4429, %v4428
          %v4490 = vpack.c.bf16 %v4431, %v4430
          %v4491 = vpack.c.bf16 %v4433, %v4432
          %v4492 = vpack.c.bf16 %v4435, %v4434
          %v4493 = vpack.c.bf16 %v4437, %v4436
          %v4494 = vpack.c.bf16 %v4439, %v4438
          %v4495 = vpack.c.bf16 %v4441, %v4440
          %v4496 = vpack.c.bf16 %v4443, %v4442
          %v4497 = vpack.c.bf16 %v4445, %v4444
          %v4498 = vpack.c.bf16 %v4447, %v4446
          %v4499 = vpack.c.bf16 %v4449, %v4448
          %v4500 = vpack.c.bf16 %v4451, %v4450
          %v4501 = vpack.c.bf16 %v4453, %v4452
          %v4502 = vpack.c.bf16 %v4455, %v4454
          %v4503 = vpack.c.bf16 %v4457, %v4456
          %v4504 = vpack.c.bf16 %v4459, %v4458
          %v4505 = vpack.c.bf16 %v4461, %v4460
          %v4506 = vpack.c.bf16 %v4463, %v4462
          %v4507 = vpack.c.bf16 %v4465, %v4464
          %v4508 = vpack.c.bf16 %v4467, %v4466
          %v4509 = vpack.c.bf16 %v4469, %v4468
          %v4510 = vpack.c.bf16 %v4471, %v4470
          %v4511 = vpack.c.bf16 %v4473, %v4472
          %v4512 = vpack.c.bf16 %v4475, %v4474
          %v4513 = vpack.c.bf16 %v4477, %v4476
          %v4514 = vpack.c.bf16 %v4479, %v4478
          %v4515 = vpack.c.bf16 %v4481, %v4480
          %v4516 = vpack.c.bf16 %v4483, %v4482
          %v4517 = vpack.c.bf16 %v4485, %v4484
          %4518 = vst [vmem:[%s465] sm:$0xff] %v4486
          %4519 = vst [vmem:[%s465 + $0x8] sm:$0xff] %v4487
          %4520 = vst [vmem:[%s465 + $0x10] sm:$0xff] %v4488
          %4521 = vst [vmem:[%s465 + $0x18] sm:$0xff] %v4489
          %4522 = vst [vmem:[%s465 + $0x20] sm:$0xff] %v4490
          %4523 = vst [vmem:[%s465 + $0x28] sm:$0xff] %v4491
          %4524 = vst [vmem:[%s465 + $0x30] sm:$0xff] %v4492
          %4525 = vst [vmem:[%s465 + $0x38] sm:$0xff] %v4493
          %4526 = vst [vmem:[%s465 + $0x40] sm:$0xff] %v4494
          %4527 = vst [vmem:[%s465 + $0x48] sm:$0xff] %v4495
          %4528 = vst [vmem:[%s465 + $0x50] sm:$0xff] %v4496
          %4529 = vst [vmem:[%s465 + $0x58] sm:$0xff] %v4497
          %4530 = vst [vmem:[%s465 + $0x60] sm:$0xff] %v4498
          %4531 = vst [vmem:[%s465 + $0x68] sm:$0xff] %v4499
          %4532 = vst [vmem:[%s465 + $0x70] sm:$0xff] %v4500
          %4533 = vst [vmem:[%s465 + $0x78] sm:$0xff] %v4501
          %4534 = vst [vmem:[%s465 + $0x80] sm:$0xff] %v4502
          %4535 = vst [vmem:[%s465 + $0x88] sm:$0xff] %v4503
          %4536 = vst [vmem:[%s465 + $0x90] sm:$0xff] %v4504
          %4537 = vst [vmem:[%s465 + $0x98] sm:$0xff] %v4505
          %4538 = vst [vmem:[%s465 + $0xa0] sm:$0xff] %v4506
          %4539 = vst [vmem:[%s465 + $0xa8] sm:$0xff] %v4507
          %4540 = vst [vmem:[%s465 + $0xb0] sm:$0xff] %v4508
          %4541 = vst [vmem:[%s465 + $0xb8] sm:$0xff] %v4509
          %4542 = vst [vmem:[%s465 + $0xc0] sm:$0xff] %v4510
          %4543 = vst [vmem:[%s465 + $0xc8] sm:$0xff] %v4511
          %4544 = vst [vmem:[%s465 + $0xd0] sm:$0xff] %v4512
          %4545 = vst [vmem:[%s465 + $0xd8] sm:$0xff] %v4513
          %4546 = vst [vmem:[%s465 + $0xe0] sm:$0xff] %v4514
          %4547 = vst [vmem:[%s465 + $0xe8] sm:$0xff] %v4515
          %4548 = vst [vmem:[%s465 + $0xf0] sm:$0xff] %v4516
          %4549 = vst [vmem:[%s465 + $0xf8] sm:$0xff] %v4517
          %v4550 = vld [vmem:[#allocation12] sm:$0xf]
          %v4551 = vld [vmem:[#allocation12 + $0x4] sm:$0xf]
          %v4552 = vld [vmem:[#allocation12 + $0x8] sm:$0xf]
          %v4553 = vld [vmem:[#allocation12 + $0xc] sm:$0xf]
          %v4554 = vld [vmem:[#allocation12 + $0x10] sm:$0xf]
          %v4555 = vld [vmem:[#allocation12 + $0x14] sm:$0xf]
          %v4556 = vld [vmem:[#allocation12 + $0x18] sm:$0xf]
          %v4557 = vld [vmem:[#allocation12 + $0x1c] sm:$0xf]
          %v4558 = vld [vmem:[#allocation12 + $0x20] sm:$0xf]
          %v4559 = vld [vmem:[#allocation12 + $0x24] sm:$0xf]
          %v4560 = vld [vmem:[#allocation12 + $0x28] sm:$0xf]
          %v4561 = vld [vmem:[#allocation12 + $0x2c] sm:$0xf]
          %v4562 = vld [vmem:[#allocation12 + $0x30] sm:$0xf]
          %v4563 = vld [vmem:[#allocation12 + $0x34] sm:$0xf]
          %v4564 = vld [vmem:[#allocation12 + $0x38] sm:$0xf]
          %v4565 = vld [vmem:[#allocation12 + $0x3c] sm:$0xf]
          %v4566 = vld [vmem:[#allocation12 + $0x40] sm:$0xf]
          %v4567 = vld [vmem:[#allocation12 + $0x44] sm:$0xf]
          %v4568 = vld [vmem:[#allocation12 + $0x48] sm:$0xf]
          %v4569 = vld [vmem:[#allocation12 + $0x4c] sm:$0xf]
          %v4570 = vld [vmem:[#allocation12 + $0x50] sm:$0xf]
          %v4571 = vld [vmem:[#allocation12 + $0x54] sm:$0xf]
          %v4572 = vld [vmem:[#allocation12 + $0x58] sm:$0xf]
          %v4573 = vld [vmem:[#allocation12 + $0x5c] sm:$0xf]
          %v4574 = vld [vmem:[#allocation12 + $0x60] sm:$0xf]
          %v4575 = vld [vmem:[#allocation12 + $0x64] sm:$0xf]
          %v4576 = vld [vmem:[#allocation12 + $0x68] sm:$0xf]
          %v4577 = vld [vmem:[#allocation12 + $0x6c] sm:$0xf]
          %v4578 = vld [vmem:[#allocation12 + $0x70] sm:$0xf]
          %v4579 = vld [vmem:[#allocation12 + $0x74] sm:$0xf]
          %v4580 = vld [vmem:[#allocation12 + $0x78] sm:$0xf]
          %v4581 = vld [vmem:[#allocation12 + $0x7c] sm:$0xf]
          %v4582 = vld [vmem:[#allocation14] sm:$0x1]
          %v4584 = vperm.slane %v4582, 0
          %v4618 = vunpack.c.l.b16 %v4486
          %v4619 = vunpack.c.h.b16 %v4486
          %v4620 = vunpack.c.l.b16 %v4487
          %v4621 = vunpack.c.h.b16 %v4487
          %v4622 = vunpack.c.l.b16 %v4488
          %v4623 = vunpack.c.h.b16 %v4488
          %v4624 = vunpack.c.l.b16 %v4489
          %v4625 = vunpack.c.h.b16 %v4489
          %v4626 = vunpack.c.l.b16 %v4490
          %v4627 = vunpack.c.h.b16 %v4490
          %v4628 = vunpack.c.l.b16 %v4491
          %v4629 = vunpack.c.h.b16 %v4491
          %v4630 = vunpack.c.l.b16 %v4492
          %v4631 = vunpack.c.h.b16 %v4492
          %v4632 = vunpack.c.l.b16 %v4493
          %v4633 = vunpack.c.h.b16 %v4493
          %v4634 = vunpack.c.l.b16 %v4494
          %v4635 = vunpack.c.h.b16 %v4494
          %v4636 = vunpack.c.l.b16 %v4495
          %v4637 = vunpack.c.h.b16 %v4495
          %v4638 = vunpack.c.l.b16 %v4496
          %v4639 = vunpack.c.h.b16 %v4496
          %v4640 = vunpack.c.l.b16 %v4497
          %v4641 = vunpack.c.h.b16 %v4497
          %v4642 = vunpack.c.l.b16 %v4498
          %v4643 = vunpack.c.h.b16 %v4498
          %v4644 = vunpack.c.l.b16 %v4499
          %v4645 = vunpack.c.h.b16 %v4499
          %v4646 = vunpack.c.l.b16 %v4500
          %v4647 = vunpack.c.h.b16 %v4500
          %v4648 = vunpack.c.l.b16 %v4501
          %v4649 = vunpack.c.h.b16 %v4501
          %v4650 = vunpack.c.l.b16 %v4502
          %v4651 = vunpack.c.h.b16 %v4502
          %v4652 = vunpack.c.l.b16 %v4503
          %v4653 = vunpack.c.h.b16 %v4503
          %v4654 = vunpack.c.l.b16 %v4504
          %v4655 = vunpack.c.h.b16 %v4504
          %v4656 = vunpack.c.l.b16 %v4505
          %v4657 = vunpack.c.h.b16 %v4505
          %v4658 = vunpack.c.l.b16 %v4506
          %v4659 = vunpack.c.h.b16 %v4506
          %v4660 = vunpack.c.l.b16 %v4507
          %v4661 = vunpack.c.h.b16 %v4507
          %v4662 = vunpack.c.l.b16 %v4508
          %v4663 = vunpack.c.h.b16 %v4508
          %v4664 = vunpack.c.l.b16 %v4509
          %v4665 = vunpack.c.h.b16 %v4509
          %v4666 = vunpack.c.l.b16 %v4510
          %v4667 = vunpack.c.h.b16 %v4510
          %v4668 = vunpack.c.l.b16 %v4511
          %v4669 = vunpack.c.h.b16 %v4511
          %v4670 = vunpack.c.l.b16 %v4512
          %v4671 = vunpack.c.h.b16 %v4512
          %v4672 = vunpack.c.l.b16 %v4513
          %v4673 = vunpack.c.h.b16 %v4513
          %v4674 = vunpack.c.l.b16 %v4514
          %v4675 = vunpack.c.h.b16 %v4514
          %v4676 = vunpack.c.l.b16 %v4515
          %v4677 = vunpack.c.h.b16 %v4515
          %v4678 = vunpack.c.l.b16 %v4516
          %v4679 = vunpack.c.h.b16 %v4516
          %v4680 = vunpack.c.l.b16 %v4517
          %v4681 = vunpack.c.h.b16 %v4517
          %v4682 = vpack.c.b16 %v4620, %v4618
          %v4683 = vpack.c.b16 %v4621, %v4619
          %v4684 = vpack.c.b16 %v4624, %v4622
          %v4685 = vpack.c.b16 %v4625, %v4623
          %v4686 = vpack.c.b16 %v4628, %v4626
          %v4687 = vpack.c.b16 %v4629, %v4627
          %v4688 = vpack.c.b16 %v4632, %v4630
          %v4689 = vpack.c.b16 %v4633, %v4631
          %v4690 = vpack.c.b16 %v4636, %v4634
          %v4691 = vpack.c.b16 %v4637, %v4635
          %v4692 = vpack.c.b16 %v4640, %v4638
          %v4693 = vpack.c.b16 %v4641, %v4639
          %v4694 = vpack.c.b16 %v4644, %v4642
          %v4695 = vpack.c.b16 %v4645, %v4643
          %v4696 = vpack.c.b16 %v4648, %v4646
          %v4697 = vpack.c.b16 %v4649, %v4647
          %v4698 = vpack.c.b16 %v4652, %v4650
          %v4699 = vpack.c.b16 %v4653, %v4651
          %v4700 = vpack.c.b16 %v4656, %v4654
          %v4701 = vpack.c.b16 %v4657, %v4655
          %v4702 = vpack.c.b16 %v4660, %v4658
          %v4703 = vpack.c.b16 %v4661, %v4659
          %v4704 = vpack.c.b16 %v4664, %v4662
          %v4705 = vpack.c.b16 %v4665, %v4663
          %v4706 = vpack.c.b16 %v4668, %v4666
          %v4707 = vpack.c.b16 %v4669, %v4667
          %v4708 = vpack.c.b16 %v4672, %v4670
          %v4709 = vpack.c.b16 %v4673, %v4671
          %v4710 = vpack.c.b16 %v4676, %v4674
          %v4711 = vpack.c.b16 %v4677, %v4675
          %v4712 = vpack.c.b16 %v4680, %v4678
          %v4713 = vpack.c.b16 %v4681, %v4679
          %v4778 = vunpack.c.l.b16 %v4550
          %v4779 = vunpack.c.l.b16 %v4551
          %v4780 = vunpack.c.l.b16 %v4552
          %v4781 = vunpack.c.l.b16 %v4553
          %v4782 = vunpack.c.l.b16 %v4554
          %v4783 = vunpack.c.l.b16 %v4555
          %v4784 = vunpack.c.l.b16 %v4556
          %v4785 = vunpack.c.l.b16 %v4557
          %v4786 = vunpack.c.l.b16 %v4558
          %v4787 = vunpack.c.l.b16 %v4559
          %v4788 = vunpack.c.l.b16 %v4560
          %v4789 = vunpack.c.l.b16 %v4561
          %v4790 = vunpack.c.l.b16 %v4562
          %v4791 = vunpack.c.l.b16 %v4563
          %v4792 = vunpack.c.l.b16 %v4564
          %v4793 = vunpack.c.l.b16 %v4565
          %v4794 = vunpack.c.l.b16 %v4566
          %v4795 = vunpack.c.l.b16 %v4567
          %v4796 = vunpack.c.l.b16 %v4568
          %v4797 = vunpack.c.l.b16 %v4569
          %v4798 = vunpack.c.l.b16 %v4570
          %v4799 = vunpack.c.l.b16 %v4571
          %v4800 = vunpack.c.l.b16 %v4572
          %v4801 = vunpack.c.l.b16 %v4573
          %v4802 = vunpack.c.l.b16 %v4574
          %v4803 = vunpack.c.l.b16 %v4575
          %v4804 = vunpack.c.l.b16 %v4576
          %v4805 = vunpack.c.l.b16 %v4577
          %v4806 = vunpack.c.l.b16 %v4578
          %v4807 = vunpack.c.l.b16 %v4579
          %v4808 = vunpack.c.l.b16 %v4580
          %v4809 = vunpack.c.l.b16 %v4581
          %v4810 = vpack.c.b16 %v4779, %v4778
          %v4811 = vpack.c.b16 %v4781, %v4780
          %v4812 = vpack.c.b16 %v4783, %v4782
          %v4813 = vpack.c.b16 %v4785, %v4784
          %v4814 = vpack.c.b16 %v4787, %v4786
          %v4815 = vpack.c.b16 %v4789, %v4788
          %v4816 = vpack.c.b16 %v4791, %v4790
          %v4817 = vpack.c.b16 %v4793, %v4792
          %v4818 = vpack.c.b16 %v4795, %v4794
          %v4819 = vpack.c.b16 %v4797, %v4796
          %v4820 = vpack.c.b16 %v4799, %v4798
          %v4821 = vpack.c.b16 %v4801, %v4800
          %v4822 = vpack.c.b16 %v4803, %v4802
          %v4823 = vpack.c.b16 %v4805, %v4804
          %v4824 = vpack.c.b16 %v4807, %v4806
          %v4825 = vpack.c.b16 %v4809, %v4808
          %4842 = vmatpush.bf16.msra.mxu0 %v4817
          %4843 = vmatpush.bf16.msra.mxu0 %v4816
          %4844 = vmatpush.bf16.msra.mxu0 %v4815
          %4845 = vmatpush.bf16.msra.mxu0 %v4814
          %4846 = vmatpush.bf16.msra.mxu0 %v4813
          %4847 = vmatpush.bf16.msra.mxu0 %v4812
          %4848 = vmatpush.bf16.msra.mxu0 %v4811
          %4849 = vmatpush.bf16.msra.mxu0 %v4810
          %4850 = vmatmul.bf16.gmra.mxu0 %v4682
          %v4851 = vpop.f32.mrf.mxu0
          %v4852 = vadd.f32 %v4584, %v4851
          %v4853 = vpop.f32.mrf.mxu0
          %v4854 = vadd.f32 %v4584, %v4853
          %4855 = vmatmul.bf16.gmra.mxu0 %v4684
          %v4856 = vpop.f32.mrf.mxu0
          %v4857 = vadd.f32 %v4584, %v4856
          %v4858 = vpop.f32.mrf.mxu0
          %v4859 = vadd.f32 %v4584, %v4858
          %4860 = vmatmul.bf16.gmra.mxu0 %v4686
          %v4861 = vpop.f32.mrf.mxu0
          %v4862 = vadd.f32 %v4584, %v4861
          %v4863 = vpop.f32.mrf.mxu0
          %v4864 = vadd.f32 %v4584, %v4863
          %4865 = vmatmul.bf16.gmra.mxu0 %v4688
          %v4866 = vpop.f32.mrf.mxu0
          %v4867 = vadd.f32 %v4584, %v4866
          %v4868 = vpop.f32.mrf.mxu0
          %v4869 = vadd.f32 %v4584, %v4868
          %4870 = vmatmul.bf16.gmra.mxu0 %v4690
          %v4871 = vpop.f32.mrf.mxu0
          %v4872 = vadd.f32 %v4584, %v4871
          %v4873 = vpop.f32.mrf.mxu0
          %v4874 = vadd.f32 %v4584, %v4873
          %4875 = vmatmul.bf16.gmra.mxu0 %v4692
          %v4876 = vpop.f32.mrf.mxu0
          %v4877 = vadd.f32 %v4584, %v4876
          %v4878 = vpop.f32.mrf.mxu0
          %v4879 = vadd.f32 %v4584, %v4878
          %4880 = vmatmul.bf16.gmra.mxu0 %v4694
          %v4881 = vpop.f32.mrf.mxu0
          %v4882 = vadd.f32 %v4584, %v4881
          %v4883 = vpop.f32.mrf.mxu0
          %v4884 = vadd.f32 %v4584, %v4883
          %4885 = vmatmul.bf16.gmra.mxu0 %v4696
          %v4886 = vpop.f32.mrf.mxu0
          %v4887 = vadd.f32 %v4584, %v4886
          %v4888 = vpop.f32.mrf.mxu0
          %v4889 = vadd.f32 %v4584, %v4888
          %4890 = vmatmul.bf16.gmra.mxu0 %v4698
          %v4891 = vpop.f32.mrf.mxu0
          %v4892 = vadd.f32 %v4584, %v4891
          %v4893 = vpop.f32.mrf.mxu0
          %v4894 = vadd.f32 %v4584, %v4893
          %4895 = vmatmul.bf16.gmra.mxu0 %v4700
          %v4896 = vpop.f32.mrf.mxu0
          %v4897 = vadd.f32 %v4584, %v4896
          %v4898 = vpop.f32.mrf.mxu0
          %v4899 = vadd.f32 %v4584, %v4898
          %4900 = vmatmul.bf16.gmra.mxu0 %v4702
          %v4901 = vpop.f32.mrf.mxu0
          %v4902 = vadd.f32 %v4584, %v4901
          %v4903 = vpop.f32.mrf.mxu0
          %v4904 = vadd.f32 %v4584, %v4903
          %4905 = vmatmul.bf16.gmra.mxu0 %v4704
          %v4906 = vpop.f32.mrf.mxu0
          %v4907 = vadd.f32 %v4584, %v4906
          %v4908 = vpop.f32.mrf.mxu0
          %v4909 = vadd.f32 %v4584, %v4908
          %4910 = vmatmul.bf16.gmra.mxu0 %v4706
          %v4911 = vpop.f32.mrf.mxu0
          %v4912 = vadd.f32 %v4584, %v4911
          %v4913 = vpop.f32.mrf.mxu0
          %v4914 = vadd.f32 %v4584, %v4913
          %4915 = vmatmul.bf16.gmra.mxu0 %v4708
          %v4916 = vpop.f32.mrf.mxu0
          %v4917 = vadd.f32 %v4584, %v4916
          %v4918 = vpop.f32.mrf.mxu0
          %v4919 = vadd.f32 %v4584, %v4918
          %4920 = vmatmul.bf16.gmra.mxu0 %v4710
          %v4921 = vpop.f32.mrf.mxu0
          %v4922 = vadd.f32 %v4584, %v4921
          %v4923 = vpop.f32.mrf.mxu0
          %v4924 = vadd.f32 %v4584, %v4923
          %4925 = vmatmul.bf16.gmra.mxu0 %v4712
          %v4926 = vpop.f32.mrf.mxu0
          %v4927 = vadd.f32 %v4584, %v4926
          %v4928 = vpop.f32.mrf.mxu0
          %v4929 = vadd.f32 %v4584, %v4928
          %4930 = vdwg.mxu0
          %4931 = vmatpush.bf16.msra.mxu0 %v4825
          %4932 = vmatpush.bf16.msra.mxu0 %v4824
          %4933 = vmatpush.bf16.msra.mxu0 %v4823
          %4934 = vmatpush.bf16.msra.mxu0 %v4822
          %4935 = vmatpush.bf16.msra.mxu0 %v4821
          %4936 = vmatpush.bf16.msra.mxu0 %v4820
          %4937 = vmatpush.bf16.msra.mxu0 %v4819
          %4938 = vmatpush.bf16.msra.mxu0 %v4818
          %4939 = vmatmul.bf16.gmra.mxu0 %v4683
          %v4940 = vpop.f32.mrf.mxu0
          %v4941 = vadd.f32 %v4852, %v4940
          %v4942 = vpop.f32.mrf.mxu0
          %v4943 = vadd.f32 %v4854, %v4942
          %4944 = vmatmul.bf16.gmra.mxu0 %v4685
          %v4945 = vpop.f32.mrf.mxu0
          %v4946 = vadd.f32 %v4857, %v4945
          %v4947 = vpop.f32.mrf.mxu0
          %v4948 = vadd.f32 %v4859, %v4947
          %4949 = vmatmul.bf16.gmra.mxu0 %v4687
          %v4950 = vpop.f32.mrf.mxu0
          %v4951 = vadd.f32 %v4862, %v4950
          %v4952 = vpop.f32.mrf.mxu0
          %v4953 = vadd.f32 %v4864, %v4952
          %4954 = vmatmul.bf16.gmra.mxu0 %v4689
          %v4955 = vpop.f32.mrf.mxu0
          %v4956 = vadd.f32 %v4867, %v4955
          %v4957 = vpop.f32.mrf.mxu0
          %v4958 = vadd.f32 %v4869, %v4957
          %4959 = vmatmul.bf16.gmra.mxu0 %v4691
          %v4960 = vpop.f32.mrf.mxu0
          %v4961 = vadd.f32 %v4872, %v4960
          %v4962 = vpop.f32.mrf.mxu0
          %v4963 = vadd.f32 %v4874, %v4962
          %4964 = vmatmul.bf16.gmra.mxu0 %v4693
          %v4965 = vpop.f32.mrf.mxu0
          %v4966 = vadd.f32 %v4877, %v4965
          %v4967 = vpop.f32.mrf.mxu0
          %v4968 = vadd.f32 %v4879, %v4967
          %4969 = vmatmul.bf16.gmra.mxu0 %v4695
          %v4970 = vpop.f32.mrf.mxu0
          %v4971 = vadd.f32 %v4882, %v4970
          %v4972 = vpop.f32.mrf.mxu0
          %v4973 = vadd.f32 %v4884, %v4972
          %4974 = vmatmul.bf16.gmra.mxu0 %v4697
          %v4975 = vpop.f32.mrf.mxu0
          %v4976 = vadd.f32 %v4887, %v4975
          %v4977 = vpop.f32.mrf.mxu0
          %v4978 = vadd.f32 %v4889, %v4977
          %4979 = vmatmul.bf16.gmra.mxu0 %v4699
          %v4980 = vpop.f32.mrf.mxu0
          %v4981 = vadd.f32 %v4892, %v4980
          %v4982 = vpop.f32.mrf.mxu0
          %v4983 = vadd.f32 %v4894, %v4982
          %4984 = vmatmul.bf16.gmra.mxu0 %v4701
          %v4985 = vpop.f32.mrf.mxu0
          %v4986 = vadd.f32 %v4897, %v4985
          %v4987 = vpop.f32.mrf.mxu0
          %v4988 = vadd.f32 %v4899, %v4987
          %4989 = vmatmul.bf16.gmra.mxu0 %v4703
          %v4990 = vpop.f32.mrf.mxu0
          %v4991 = vadd.f32 %v4902, %v4990
          %v4992 = vpop.f32.mrf.mxu0
          %v4993 = vadd.f32 %v4904, %v4992
          %4994 = vmatmul.bf16.gmra.mxu0 %v4705
          %v4995 = vpop.f32.mrf.mxu0
          %v4996 = vadd.f32 %v4907, %v4995
          %v4997 = vpop.f32.mrf.mxu0
          %v4998 = vadd.f32 %v4909, %v4997
          %4999 = vmatmul.bf16.gmra.mxu0 %v4707
          %v5000 = vpop.f32.mrf.mxu0
          %v5001 = vadd.f32 %v4912, %v5000
          %v5002 = vpop.f32.mrf.mxu0
          %v5003 = vadd.f32 %v4914, %v5002
          %5004 = vmatmul.bf16.gmra.mxu0 %v4709
          %v5005 = vpop.f32.mrf.mxu0
          %v5006 = vadd.f32 %v4917, %v5005
          %v5007 = vpop.f32.mrf.mxu0
          %v5008 = vadd.f32 %v4919, %v5007
          %5009 = vmatmul.bf16.gmra.mxu0 %v4711
          %v5010 = vpop.f32.mrf.mxu0
          %v5011 = vadd.f32 %v4922, %v5010
          %v5012 = vpop.f32.mrf.mxu0
          %v5013 = vadd.f32 %v4924, %v5012
          %5014 = vmatmul.bf16.gmra.mxu0 %v4713
          %v5015 = vpop.f32.mrf.mxu0
          %v5016 = vadd.f32 %v4927, %v5015
          %v5017 = vpop.f32.mrf.mxu0
          %v5018 = vadd.f32 %v4929, %v5017
          %5019 = vdwg.mxu0
          %5020 = vst [vmem:[%s472] sm:$0xff] %v4941
          %5021 = vst [vmem:[%s472 + $0x8] sm:$0xff] %v4943
          %5022 = vst [vmem:[%s472 + $0x10] sm:$0xff] %v4946
          %5023 = vst [vmem:[%s472 + $0x18] sm:$0xff] %v4948
          %5024 = vst [vmem:[%s472 + $0x20] sm:$0xff] %v4951
          %5025 = vst [vmem:[%s472 + $0x28] sm:$0xff] %v4953
          %5026 = vst [vmem:[%s472 + $0x30] sm:$0xff] %v4956
          %5027 = vst [vmem:[%s472 + $0x38] sm:$0xff] %v4958
          %5028 = vst [vmem:[%s472 + $0x40] sm:$0xff] %v4961
          %5029 = vst [vmem:[%s472 + $0x48] sm:$0xff] %v4963
          %5030 = vst [vmem:[%s472 + $0x50] sm:$0xff] %v4966
          %5031 = vst [vmem:[%s472 + $0x58] sm:$0xff] %v4968
          %5032 = vst [vmem:[%s472 + $0x60] sm:$0xff] %v4971
          %5033 = vst [vmem:[%s472 + $0x68] sm:$0xff] %v4973
          %5034 = vst [vmem:[%s472 + $0x70] sm:$0xff] %v4976
          %5035 = vst [vmem:[%s472 + $0x78] sm:$0xff] %v4978
          %5036 = vst [vmem:[%s472 + $0x80] sm:$0xff] %v4981
          %5037 = vst [vmem:[%s472 + $0x88] sm:$0xff] %v4983
          %5038 = vst [vmem:[%s472 + $0x90] sm:$0xff] %v4986
          %5039 = vst [vmem:[%s472 + $0x98] sm:$0xff] %v4988
          %5040 = vst [vmem:[%s472 + $0xa0] sm:$0xff] %v4991
          %5041 = vst [vmem:[%s472 + $0xa8] sm:$0xff] %v4993
          %5042 = vst [vmem:[%s472 + $0xb0] sm:$0xff] %v4996
          %5043 = vst [vmem:[%s472 + $0xb8] sm:$0xff] %v4998
          %5044 = vst [vmem:[%s472 + $0xc0] sm:$0xff] %v5001
          %5045 = vst [vmem:[%s472 + $0xc8] sm:$0xff] %v5003
          %5046 = vst [vmem:[%s472 + $0xd0] sm:$0xff] %v5006
          %5047 = vst [vmem:[%s472 + $0xd8] sm:$0xff] %v5008
          %5048 = vst [vmem:[%s472 + $0xe0] sm:$0xff] %v5011
          %5049 = vst [vmem:[%s472 + $0xe8] sm:$0xff] %v5013
          %5050 = vst [vmem:[%s472 + $0xf0] sm:$0xff] %v5016
          %5051 = vst [vmem:[%s472 + $0xf8] sm:$0xff] %v5018
        $region84: #{tpu_custom_call.1} parent=47 // pred_fallthru
          _
        %s5052 = sand.u32 %s213, 1
        %s5053 = scalar_lea.sflag [#allocation5], %s5052
        %s5054 = sand.u32 %s213, 1
        %s5055 = smul.addr %s5054, 256
        %s5056 = scalar_lea.vmem [#allocation15], %s5055
        %s5057 = sand.u32 %s239, 1
        %s5058 = scalar_lea.sflag [#allocation17], %s5057
        %s5059 = sand.u32 %s239, 1
        %s5060 = smul.addr %s5059, 256
        %s5061 = scalar_lea.vmem [#allocation16], %s5060
        // Predicated region
        $region85: #{tpu_custom_call.1} parent=47 // pred_check
          %p5062 = pneg %p223
        $region86: #{tpu_custom_call.1} parent=47 // pred_check_branch
          %5064 = sbr.rel (%p5062) target = $region88
        $region87: #{tpu_custom_call.1} parent=47 // pred_region
          %s5065 = smul.u32 32, %s38
          %5067 = vsyncadd %s5053, 0
          %s5068 = smul.addr %s5065, 2
          %s5069 = smul.addr %s5068, 4
          %s5070 = scalar_lea.hbm %s7, %s5069
          %s5071 = sshll.u32 %s5056, 4
          %s5072 = int_to_ptr.vmem [resolvable:$true] %s5071
          %s5073 = sshll.u32 %s5070, 4
          %s5074 = int_to_ptr.hbm [resolvable:$true] %s5073
          %5079 = dma.vmem_to_hbm [thread:$0]  %s5072, 4096, %s5074, %s5053, 128, 128, 8
        $region88: #{tpu_custom_call.1} parent=47 // pred_fallthru
          _
        // Predicated region
        $region89: #{tpu_custom_call.1} parent=47 // pred_check
          %p5080 = pneg %p249
        $region90: #{tpu_custom_call.1} parent=47 // pred_check_branch
          %5082 = sbr.rel (%p5080) target = $region92
        $region91: #{tpu_custom_call.1} parent=47 // pred_region
          %s5083 = smul.u32 32, %s38
          %5085 = vsyncadd %s5058, 0
          %s5086 = smul.addr %s5083, 8
          %s5087 = scalar_lea.hbm %s8, %s5086
          %s5088 = sshll.u32 %s5061, 4
          %s5089 = int_to_ptr.vmem [resolvable:$true] %s5088
          %s5090 = sshll.u32 %s5087, 4
          %s5091 = int_to_ptr.hbm [resolvable:$true] %s5090
          %5096 = dma.vmem_to_hbm [thread:$0]  %s5089, 4096, %s5091, %s5058, 128, 128, 8
        $region92: #{tpu_custom_call.1} parent=47 // pred_fallthru
          _
      $region48: #{tpu_custom_call.1} parent=5 // pred_fallthru
        _
      %p5097 = scmp.le.s32.totalorder 2, %s29
      // Predicated region
      $region93: #{tpu_custom_call.1} parent=5 // pred_check
        %p5098 = pneg %p5097
      $region94: #{tpu_custom_call.1} parent=5 // pred_check_branch
        %5100 = sbr.rel (%p5098) target = $region96
      $region95: #{tpu_custom_call.1} parent=5 // pred_region
        %s5101 = ssub.s32 %s29, 2
        // Predicated region
        $region97: #{tpu_custom_call.1} parent=95 // pred_check
          %p5102 = pneg %p229
        $region98: #{tpu_custom_call.1} parent=95 // pred_check_branch
          %5104 = sbr.rel (%p5102) target = $region100
        $region99: #{tpu_custom_call.1} parent=95 // pred_region
          %s5105 = sand.u32 %s214, 1
          %s5106 = scalar_lea.sflag [#allocation5], %s5105
          %s5107 = sand.u32 %s214, 1
          %s5108 = smul.addr %s5107, 256
          %s5109 = scalar_lea.vmem [#allocation15], %s5108
          %5111 = dma.done %s5106, 4096
        $region100: #{tpu_custom_call.1} parent=95 // pred_fallthru
          _
        // Predicated region
        $region101: #{tpu_custom_call.1} parent=95 // pred_check
          %p5112 = pneg %p255
        $region102: #{tpu_custom_call.1} parent=95 // pred_check_branch
          %5114 = sbr.rel (%p5112) target = $region104
        $region103: #{tpu_custom_call.1} parent=95 // pred_region
          %s5115 = sand.u32 %s240, 1
          %s5116 = scalar_lea.sflag [#allocation17], %s5115
          %s5117 = sand.u32 %s240, 1
          %s5118 = smul.addr %s5117, 256
          %s5119 = scalar_lea.vmem [#allocation16], %s5118
          %5121 = dma.done %s5116, 4096
        $region104: #{tpu_custom_call.1} parent=95 // pred_fallthru
          _
      $region96: #{tpu_custom_call.1} parent=5 // pred_fallthru
        _
    $region6: #{tpu_custom_call.1} parent=1 // loop_footer
      %s33 = sadd.s32 1, %s29
    $region7: #{tpu_custom_call.1} parent=1 // loop_footer_branch
      %28 = sbr.rel target = $region3
    $region8: #{tpu_custom_call.1} parent=1 // loop_exit
      _
    %5122 = vsyncpa [#allocation4], 1
    %s5123 = scalar_lea.sflag [#allocation4], 1
    %5124 = vsyncpa %s5123, 1
    %5125 = vsyncpa [#allocation7], 1
    %s5126 = scalar_lea.sflag [#allocation7], 1
    %5127 = vsyncpa %s5126, 1
    %5128 = vsyncpa [#allocation10], 1
    %5129 = vsyncpa [#allocation13], 1
    %5130 = vsyncpa [#allocation5], 1
    %s5131 = scalar_lea.sflag [#allocation5], 1
    %5132 = vsyncpa %s5131, 1
    %5133 = vsyncpa [#allocation17], 1
    %s5134 = scalar_lea.sflag [#allocation17], 1
    %5135 = vsyncpa %s5134, 1

</llo_original>
